<compile_context>
chip_gen: v5e
topology: v5e:2x2
jax: 0.10.0
libtpu: 0.0.40
codegen_flags: <defaults>
</compile_context>

<pallas_src>
import functools

import jax
import jax.numpy as jnp
from jax import lax
from jax.experimental import pallas as pl
from jax.experimental.pallas import tpu as pltpu

HIDDEN = 128
INPUT_DIM = 5          # ['Open', 'High', 'Low', 'Close', 'Volume']
NUM_LAYERS = 5
OUTPUT_DIM = 1
PAD_BATCH = 8          # one full sublane group


def _lstm_kernel(gx0_ref, wih_ref, whh_ref, b_ref, wfc_ref, bfc_ref, out_ref,
                 gx_buf, *, hidden, seq_len, num_layers, batch):
    """All 5 LSTM layers + fc in one invocation.

    gx0_ref : (S, B, 4H) f32   layer-0 input-gate contributions (from wrapper)
    wih_ref : (L-1, H, 4H) bf16  transposed W_ih of layers 1..L-1
    whh_ref : (L,   H, 4H) bf16  transposed W_hh of all layers
    b_ref   : (L-1, B, 4H) f32   fused (b_ih + b_hh) of layers 1..L-1, pre-broadcast
    gx_buf  : (S, B, 4H) f32 VMEM scratch — next layer's input-gate contributions
    """
    H = hidden
    S = seq_len
    B = batch  # padded batch (sublane-aligned)

    def run_layer(gx_read, w_hh, w_ih_next=None, b_next=None):
        """Serial recurrence for one layer.

        If w_ih_next is given, the NEXT layer's input projection at step t is
        issued right after h_t is produced (MXU filler under the EUP/VALU part
        of the step) and written into gx_buf[t]. The read of gx at index t
        always happens before the write at index t, so a single buffer is safe.
        """
        h = jnp.zeros((B, H), jnp.float32)
        c = jnp.zeros((B, H), jnp.float32)
        for t in range(S):                       # statically unrolled: 8 steps
            g = gx_read(t) + jnp.dot(h, w_hh,
                                     preferred_element_type=jnp.float32)  # (B,4H)
            i_g = jax.nn.sigmoid(g[:, 0 * H:1 * H])
            f_g = jax.nn.sigmoid(g[:, 1 * H:2 * H])
            g_g = jnp.tanh(g[:, 2 * H:3 * H])
            o_g = jax.nn.sigmoid(g[:, 3 * H:4 * H])
            c = f_g * c + i_g * g_g
            h = o_g * jnp.tanh(c)
            if w_ih_next is not None:
                gx_buf[t] = (jnp.dot(h, w_ih_next,
                                     preferred_element_type=jnp.float32)
                             + b_next)
        return h

    # ---- Layer 0: input projection was done in the wrapper (gx0_ref) -------
    run_layer(lambda t: gx0_ref[t],
              whh_ref[0].astype(jnp.float32),
              wih_ref[0].astype(jnp.float32),
              b_ref[0])

    # ---- Layers 1 .. L-2: fori_loop bounds live ranges per layer -----------
    def layer_body(l, carry):
        run_layer(lambda t: gx_buf[t],
                  whh_ref[l].astype(jnp.float32),
                  wih_ref[l].astype(jnp.float32),   # index l == layer (l+1)'s W_ih
                  b_ref[l])
        return carry

    lax.fori_loop(1, num_layers - 1, layer_body, 0)

    # ---- Last layer: no next-layer projection; h_{S-1} feeds the fc --------
    h_last = run_layer(lambda t: gx_buf[t],
                       whh_ref[num_layers - 1].astype(jnp.float32))

    out_ref[...] = (jnp.dot(h_last, wfc_ref[...],
                            preferred_element_type=jnp.float32)
                    + bfc_ref[...])


def lstm_forward(x, params):
    """x: (batch, seq, INPUT_DIM) float32 -> (batch, OUTPUT_DIM) float32."""
    B, S, F = x.shape
    H = HIDDEN
    BP = PAD_BATCH

    # Pad batch up to a full sublane group (padded rows are zeros; sliced off
    # at the end). Padding is free in vreg/MXU terms and removes masked stores.
    x_p = jnp.zeros((BP, S, F), jnp.float32).at[:B].set(x)
    x_sbf = jnp.transpose(x_p, (1, 0, 2))                       # (S, BP, F)

    # Layer-0 gate projection in the wrapper (opt #10): (S,BP,5) @ (5,4H) + b0.
    gx0 = (jnp.einsum("sbf,fg->sbg", x_sbf, params["w_ih0"])
           + params["b0"]).astype(jnp.float32)                  # (S, BP, 4H)

    kernel = functools.partial(_lstm_kernel, hidden=H, seq_len=S,
                               num_layers=NUM_LAYERS, batch=BP)

    out = pl.pallas_call(
        kernel,
        out_shape=jax.ShapeDtypeStruct((BP, OUTPUT_DIM), jnp.float32),
        grid_spec=pltpu.PrefetchScalarGridSpec(
            num_scalar_prefetch=0,
            grid=(1,),
            in_specs=[
                pl.BlockSpec((S, BP, 4 * H), lambda i: (0, 0, 0)),           # gx0
                pl.BlockSpec((NUM_LAYERS - 1, H, 4 * H), lambda i: (0, 0, 0)),  # W_ih 1..4
                pl.BlockSpec((NUM_LAYERS, H, 4 * H), lambda i: (0, 0, 0)),      # W_hh 0..4
                pl.BlockSpec((NUM_LAYERS - 1, BP, 4 * H), lambda i: (0, 0, 0)), # bias 1..4
                pl.BlockSpec((H, OUTPUT_DIM), lambda i: (0, 0)),             # fc weight
                pl.BlockSpec((1, OUTPUT_DIM), lambda i: (0, 0)),             # fc bias
            ],
            out_specs=pl.BlockSpec((BP, OUTPUT_DIM), lambda i: (0, 0)),
            scratch_shapes=[
                pltpu.VMEM((S, BP, 4 * H), jnp.float32),   # next-layer gx carry
            ],
        ),
        compiler_params=pltpu.CompilerParams(
            dimension_semantics=("arbitrary",)),
    )(gx0, params["w_ih_rest"], params["w_hh"], params["bias_rest"],
      params["w_fc"], params["b_fc"])
    return out[:B]


def init_params(key):
    """PyTorch-style uniform(-1/sqrt(H), 1/sqrt(H)) init, deterministic."""
    H = HIDDEN
    k = 1.0 / jnp.sqrt(jnp.float32(H))
    keys = jax.random.split(key, 4 * NUM_LAYERS + 2)

    raw_layers = []                 # un-padded f32 params for the reference
    w_ih_rest, w_hh_list, bias_rest = [], [], []
    w_ih0 = None
    b0 = None
    for l in range(NUM_LAYERS):
        in_dim = INPUT_DIM if l == 0 else H
        k0, k1, k2, k3 = keys[4 * l:4 * l + 4]
        w_ih_raw = jax.random.uniform(k0, (4 * H, in_dim), jnp.float32, -k, k)
        w_hh_raw = jax.random.uniform(k1, (4 * H, H), jnp.float32, -k, k)
        b_ih_raw = jax.random.uniform(k2, (4 * H,), jnp.float32, -k, k)
        b_hh_raw = jax.random.uniform(k3, (4 * H,), jnp.float32, -k, k)
        raw_layers.append((w_ih_raw, w_hh_raw, b_ih_raw, b_hh_raw))

        bias_fused = b_ih_raw + b_hh_raw
        if l == 0:
            w_ih0 = w_ih_raw.T                              # (5, 4H) f32
            b0 = bias_fused                                 # (4H,)  f32
        else:
            w_ih_rest.append(w_ih_raw.T.astype(jnp.bfloat16))    # (H, 4H) bf16
            bias_rest.append(jnp.broadcast_to(bias_fused[None, :],
                                              (PAD_BATCH, 4 * H)))
        w_hh_list.append(w_hh_raw.T.astype(jnp.bfloat16))        # (H, 4H) bf16

    kw, kb = keys[-2], keys[-1]
    w_fc_raw = jax.random.uniform(kw, (OUTPUT_DIM, H), jnp.float32, -k, k)
    b_fc_raw = jax.random.uniform(kb, (OUTPUT_DIM,), jnp.float32, -k, k)

    params = {
        "w_ih0": w_ih0,                               # (5, 4H)      f32
        "b0": b0,                                     # (4H,)        f32
        "w_ih_rest": jnp.stack(w_ih_rest),            # (L-1, H, 4H) bf16
        "w_hh": jnp.stack(w_hh_list),                 # (L,   H, 4H) bf16
        "bias_rest": jnp.stack(bias_rest),            # (L-1, 8, 4H) f32
        "w_fc": w_fc_raw.T,                           # (H, 1)       f32
        "b_fc": b_fc_raw[None, :],                    # (1, 1)       f32
    }
    return params, raw_layers, (w_fc_raw, b_fc_raw)


def reference_forward(x, raw_layers, fc):
    """Pure-JAX f32 replica of the PyTorch nn.LSTM + Linear forward."""
    H = HIDDEN
    B, S, _ = x.shape
    layer_in = x
    for (w_ih, w_hh, b_ih, b_hh) in raw_layers:
        h = jnp.zeros((B, H), jnp.float32)
        c = jnp.zeros((B, H), jnp.float32)
        outs = []
        for t in range(S):
            g = layer_in[:, t, :] @ w_ih.T + b_ih + h @ w_hh.T + b_hh
            i_g = jax.nn.sigmoid(g[:, 0 * H:1 * H])
            f_g = jax.nn.sigmoid(g[:, 1 * H:2 * H])
            g_g = jnp.tanh(g[:, 2 * H:3 * H])
            o_g = jax.nn.sigmoid(g[:, 3 * H:4 * H])
            c = f_g * c + i_g * g_g
            h = o_g * jnp.tanh(c)
            outs.append(h)
        layer_in = jnp.stack(outs, axis=1)
    w_fc, b_fc = fc
    return layer_in[:, -1, :] @ w_fc.T + b_fc


if __name__ == "__main__":
    key = jax.random.PRNGKey(0)
    kp, kx = jax.random.split(key)

    params, raw_layers, fc = init_params(kp)

    batch, seq = 2, 8
    x = jax.random.normal(kx, (batch, seq, INPUT_DIM), jnp.float32)

    out = lstm_forward(x, params)
    out = jax.block_until_ready(out)

    ref = reference_forward(x, raw_layers, fc)
    assert out.shape == (batch, OUTPUT_DIM)
    # Tolerance relaxed vs. 1e-4 because w_ih/w_hh are stored in bfloat16
    # (math itself is f32); observed error is O(1e-3).
    assert jnp.allclose(out, ref, atol=2e-2, rtol=2e-2), (out, ref)

    print("KERNEL_OK")
</pallas_src>

<mosaic_0001>
module attributes {stable_mosaic.version = 11 : i64} {
  func.func @_lstm_kernel(%arg0: i32, %arg1: memref<8x8x512xf32, #tpu.memory_space<vmem>>, %arg2: memref<4x128x512xbf16, #tpu.memory_space<vmem>>, %arg3: memref<5x128x512xbf16, #tpu.memory_space<vmem>>, %arg4: memref<4x8x512xf32, #tpu.memory_space<vmem>>, %arg5: memref<128x1xf32, #tpu.memory_space<vmem>>, %arg6: memref<1x1xf32, #tpu.memory_space<vmem>>, %arg7: memref<8x1xf32, #tpu.memory_space<vmem>>, %arg8: memref<8x8x512xf32, #tpu.memory_space<vmem>>) attributes {dimension_semantics = [#tpu.dimension_semantics<arbitrary>], iteration_bounds = array<i64: 1>, scalar_prefetch = 0 : i64, scratch_operands = 1 : i64, tpu.core_type = #tpu.core_type<tc>, window_params = [{pipeline_mode = #tpu.pipeline_mode<synchronous>, transform_indices = @transform_0, window_bounds = array<i64: 8, 8, 512>}, {pipeline_mode = #tpu.pipeline_mode<synchronous>, transform_indices = @transform_1, window_bounds = array<i64: 4, 128, 512>}, {pipeline_mode = #tpu.pipeline_mode<synchronous>, transform_indices = @transform_2, window_bounds = array<i64: 5, 128, 512>}, {pipeline_mode = #tpu.pipeline_mode<synchronous>, transform_indices = @transform_3, window_bounds = array<i64: 4, 8, 512>}, {pipeline_mode = #tpu.pipeline_mode<synchronous>, transform_indices = @transform_4, window_bounds = array<i64: 128, 1>}, {pipeline_mode = #tpu.pipeline_mode<synchronous>, transform_indices = @transform_5, window_bounds = array<i64: 1, 1>}, {pipeline_mode = #tpu.pipeline_mode<synchronous>, transform_indices = @transform_6, window_bounds = array<i64: 8, 1>}]} {
    %c0 = arith.constant 0 : index
    %c0_0 = arith.constant 0 : index
    %c0_1 = arith.constant 0 : index
    %0 = vector.load %arg3[%c0, %c0_0, %c0_1] : memref<5x128x512xbf16, #tpu.memory_space<vmem>>, vector<1x128x512xbf16>
    %1 = vector.shape_cast %0 : vector<1x128x512xbf16> to vector<128x512xbf16>
    %2 = arith.extf %1 : vector<128x512xbf16> to vector<128x512xf32>
    %c0_2 = arith.constant 0 : index
    %c0_3 = arith.constant 0 : index
    %c0_4 = arith.constant 0 : index
    %3 = vector.load %arg2[%c0_2, %c0_3, %c0_4] : memref<4x128x512xbf16, #tpu.memory_space<vmem>>, vector<1x128x512xbf16>
    %4 = vector.shape_cast %3 : vector<1x128x512xbf16> to vector<128x512xbf16>
    %5 = arith.extf %4 : vector<128x512xbf16> to vector<128x512xf32>
    %c0_5 = arith.constant 0 : index
    %c0_6 = arith.constant 0 : index
    %c0_7 = arith.constant 0 : index
    %6 = vector.load %arg4[%c0_5, %c0_6, %c0_7] : memref<4x8x512xf32, #tpu.memory_space<vmem>>, vector<1x8x512xf32>
    %7 = vector.shape_cast %6 : vector<1x8x512xf32> to vector<8x512xf32>
    %cst = arith.constant 0.000000e+00 : f32
    %8 = vector.broadcast %cst : f32 to vector<8x128xf32>
    %cst_8 = arith.constant 0.000000e+00 : f32
    %9 = vector.broadcast %cst_8 : f32 to vector<8x128xf32>
    %c0_9 = arith.constant 0 : index
    %c0_10 = arith.constant 0 : index
    %c0_11 = arith.constant 0 : index
    %10 = vector.load %arg1[%c0_9, %c0_10, %c0_11] : memref<8x8x512xf32, #tpu.memory_space<vmem>>, vector<1x8x512xf32>
    %11 = vector.shape_cast %10 : vector<1x8x512xf32> to vector<8x512xf32>
    %cst_12 = arith.constant dense<0.000000e+00> : vector<8x512xf32>
    %12 = tpu.matmul %8, %2, %cst_12 {dimension_numbers = #tpu.dot_dimension_numbers<[1], [0], [0], [1], [0, 0, 1, 1], [], []>} : vector<8x128xf32>, vector<128x512xf32>, vector<8x512xf32> -> vector<8x512xf32>
    %13 = arith.addf %11, %12 : vector<8x512xf32>
    %14 = vector.extract_strided_slice %13 {offsets = [0, 0], sizes = [8, 128], strides = [1, 1]} : vector<8x512xf32> to vector<8x128xf32>
    %15 = arith.negf %14 : vector<8x128xf32>
    %16 = math.exp %15 : vector<8x128xf32>
    %cst_13 = arith.constant 1.000000e+00 : f32
    %17 = vector.broadcast %cst_13 : f32 to vector<8x128xf32>
    %18 = arith.addf %17, %16 : vector<8x128xf32>
    %19 = arith.divf %17, %18 : vector<8x128xf32>
    %20 = vector.extract_strided_slice %13 {offsets = [0, 128], sizes = [8, 128], strides = [1, 1]} : vector<8x512xf32> to vector<8x128xf32>
    %21 = arith.negf %20 : vector<8x128xf32>
    %22 = math.exp %21 : vector<8x128xf32>
    %cst_14 = arith.constant 1.000000e+00 : f32
    %23 = vector.broadcast %cst_14 : f32 to vector<8x128xf32>
    %24 = arith.addf %23, %22 : vector<8x128xf32>
    %25 = arith.divf %23, %24 : vector<8x128xf32>
    %26 = vector.extract_strided_slice %13 {offsets = [0, 256], sizes = [8, 128], strides = [1, 1]} : vector<8x512xf32> to vector<8x128xf32>
    %27 = math.tanh %26 : vector<8x128xf32>
    %28 = vector.extract_strided_slice %13 {offsets = [0, 384], sizes = [8, 128], strides = [1, 1]} : vector<8x512xf32> to vector<8x128xf32>
    %29 = arith.negf %28 : vector<8x128xf32>
    %30 = math.exp %29 : vector<8x128xf32>
    %cst_15 = arith.constant 1.000000e+00 : f32
    %31 = vector.broadcast %cst_15 : f32 to vector<8x128xf32>
    %32 = arith.addf %31, %30 : vector<8x128xf32>
    %33 = arith.divf %31, %32 : vector<8x128xf32>
    %34 = arith.mulf %25, %9 : vector<8x128xf32>
    %35 = arith.mulf %19, %27 : vector<8x128xf32>
    %36 = arith.addf %34, %35 : vector<8x128xf32>
    %37 = math.tanh %36 : vector<8x128xf32>
    %38 = arith.mulf %33, %37 : vector<8x128xf32>
    %cst_16 = arith.constant dense<0.000000e+00> : vector<8x512xf32>
    %39 = tpu.matmul %38, %5, %cst_16 {dimension_numbers = #tpu.dot_dimension_numbers<[1], [0], [0], [1], [0, 0, 1, 1], [], []>} : vector<8x128xf32>, vector<128x512xf32>, vector<8x512xf32> -> vector<8x512xf32>
    %40 = arith.addf %39, %7 : vector<8x512xf32>
    %c0_17 = arith.constant 0 : index
    %c0_18 = arith.constant 0 : index
    %c0_19 = arith.constant 0 : index
    %41 = vector.load %arg8[%c0_17, %c0_18, %c0_19] : memref<8x8x512xf32, #tpu.memory_space<vmem>>, vector<1x8x512xf32>
    %42 = vector.shape_cast %41 : vector<1x8x512xf32> to vector<8x512xf32>
    %43 = vector.shape_cast %40 : vector<8x512xf32> to vector<1x8x512xf32>
    tpu.vector_store %arg8[%c0_17, %c0_18, %c0_19], %43 {strides = array<i32>} : memref<8x8x512xf32, #tpu.memory_space<vmem>>, vector<1x8x512xf32>,
    %c1 = arith.constant 1 : index
    %c0_20 = arith.constant 0 : index
    %c0_21 = arith.constant 0 : index
    %44 = vector.load %arg1[%c1, %c0_20, %c0_21] : memref<8x8x512xf32, #tpu.memory_space<vmem>>, vector<1x8x512xf32>
    %45 = vector.shape_cast %44 : vector<1x8x512xf32> to vector<8x512xf32>
    %cst_22 = arith.constant dense<0.000000e+00> : vector<8x512xf32>
    %46 = tpu.matmul %38, %2, %cst_22 {dimension_numbers = #tpu.dot_dimension_numbers<[1], [0], [0], [1], [0, 0, 1, 1], [], []>} : vector<8x128xf32>, vector<128x512xf32>, vector<8x512xf32> -> vector<8x512xf32>
    %47 = arith.addf %45, %46 : vector<8x512xf32>
    %48 = vector.extract_strided_slice %47 {offsets = [0, 0], sizes = [8, 128], strides = [1, 1]} : vector<8x512xf32> to vector<8x128xf32>
    %49 = arith.negf %48 : vector<8x128xf32>
    %50 = math.exp %49 : vector<8x128xf32>
    %cst_23 = arith.constant 1.000000e+00 : f32
    %51 = vector.broadcast %cst_23 : f32 to vector<8x128xf32>
    %52 = arith.addf %51, %50 : vector<8x128xf32>
    %53 = arith.divf %51, %52 : vector<8x128xf32>
    %54 = vector.extract_strided_slice %47 {offsets = [0, 128], sizes = [8, 128], strides = [1, 1]} : vector<8x512xf32> to vector<8x128xf32>
    %55 = arith.negf %54 : vector<8x128xf32>
    %56 = math.exp %55 : vector<8x128xf32>
    %cst_24 = arith.constant 1.000000e+00 : f32
    %57 = vector.broadcast %cst_24 : f32 to vector<8x128xf32>
    %58 = arith.addf %57, %56 : vector<8x128xf32>
    %59 = arith.divf %57, %58 : vector<8x128xf32>
    %60 = vector.extract_strided_slice %47 {offsets = [0, 256], sizes = [8, 128], strides = [1, 1]} : vector<8x512xf32> to vector<8x128xf32>
    %61 = math.tanh %60 : vector<8x128xf32>
    %62 = vector.extract_strided_slice %47 {offsets = [0, 384], sizes = [8, 128], strides = [1, 1]} : vector<8x512xf32> to vector<8x128xf32>
    %63 = arith.negf %62 : vector<8x128xf32>
    %64 = math.exp %63 : vector<8x128xf32>
    %cst_25 = arith.constant 1.000000e+00 : f32
    %65 = vector.broadcast %cst_25 : f32 to vector<8x128xf32>
    %66 = arith.addf %65, %64 : vector<8x128xf32>
    %67 = arith.divf %65, %66 : vector<8x128xf32>
    %68 = arith.mulf %59, %36 : vector<8x128xf32>
    %69 = arith.mulf %53, %61 : vector<8x128xf32>
    %70 = arith.addf %68, %69 : vector<8x128xf32>
    %71 = math.tanh %70 : vector<8x128xf32>
    %72 = arith.mulf %67, %71 : vector<8x128xf32>
    %cst_26 = arith.constant dense<0.000000e+00> : vector<8x512xf32>
    %73 = tpu.matmul %72, %5, %cst_26 {dimension_numbers = #tpu.dot_dimension_numbers<[1], [0], [0], [1], [0, 0, 1, 1], [], []>} : vector<8x128xf32>, vector<128x512xf32>, vector<8x512xf32> -> vector<8x512xf32>
    %74 = arith.addf %73, %7 : vector<8x512xf32>
    %c1_27 = arith.constant 1 : index
    %c0_28 = arith.constant 0 : index
    %c0_29 = arith.constant 0 : index
    %75 = vector.load %arg8[%c1_27, %c0_28, %c0_29] : memref<8x8x512xf32, #tpu.memory_space<vmem>>, vector<1x8x512xf32>
    %76 = vector.shape_cast %75 : vector<1x8x512xf32> to vector<8x512xf32>
    %77 = vector.shape_cast %74 : vector<8x512xf32> to vector<1x8x512xf32>
    tpu.vector_store %arg8[%c1_27, %c0_28, %c0_29], %77 {strides = array<i32>} : memref<8x8x512xf32, #tpu.memory_space<vmem>>, vector<1x8x512xf32>,
    %c2 = arith.constant 2 : index
    %c0_30 = arith.constant 0 : index
    %c0_31 = arith.constant 0 : index
    %78 = vector.load %arg1[%c2, %c0_30, %c0_31] : memref<8x8x512xf32, #tpu.memory_space<vmem>>, vector<1x8x512xf32>
    %79 = vector.shape_cast %78 : vector<1x8x512xf32> to vector<8x512xf32>
    %cst_32 = arith.constant dense<0.000000e+00> : vector<8x512xf32>
    %80 = tpu.matmul %72, %2, %cst_32 {dimension_numbers = #tpu.dot_dimension_numbers<[1], [0], [0], [1], [0, 0, 1, 1], [], []>} : vector<8x128xf32>, vector<128x512xf32>, vector<8x512xf32> -> vector<8x512xf32>
    %81 = arith.addf %79, %80 : vector<8x512xf32>
    %82 = vector.extract_strided_slice %81 {offsets = [0, 0], sizes = [8, 128], strides = [1, 1]} : vector<8x512xf32> to vector<8x128xf32>
    %83 = arith.negf %82 : vector<8x128xf32>
    %84 = math.exp %83 : vector<8x128xf32>
    %cst_33 = arith.constant 1.000000e+00 : f32
    %85 = vector.broadcast %cst_33 : f32 to vector<8x128xf32>
    %86 = arith.addf %85, %84 : vector<8x128xf32>
    %87 = arith.divf %85, %86 : vector<8x128xf32>
    %88 = vector.extract_strided_slice %81 {offsets = [0, 128], sizes = [8, 128], strides = [1, 1]} : vector<8x512xf32> to vector<8x128xf32>
    %89 = arith.negf %88 : vector<8x128xf32>
    %90 = math.exp %89 : vector<8x128xf32>
    %cst_34 = arith.constant 1.000000e+00 : f32
    %91 = vector.broadcast %cst_34 : f32 to vector<8x128xf32>
    %92 = arith.addf %91, %90 : vector<8x128xf32>
    %93 = arith.divf %91, %92 : vector<8x128xf32>
    %94 = vector.extract_strided_slice %81 {offsets = [0, 256], sizes = [8, 128], strides = [1, 1]} : vector<8x512xf32> to vector<8x128xf32>
    %95 = math.tanh %94 : vector<8x128xf32>
    %96 = vector.extract_strided_slice %81 {offsets = [0, 384], sizes = [8, 128], strides = [1, 1]} : vector<8x512xf32> to vector<8x128xf32>
    %97 = arith.negf %96 : vector<8x128xf32>
    %98 = math.exp %97 : vector<8x128xf32>
    %cst_35 = arith.constant 1.000000e+00 : f32
    %99 = vector.broadcast %cst_35 : f32 to vector<8x128xf32>
    %100 = arith.addf %99, %98 : vector<8x128xf32>
    %101 = arith.divf %99, %100 : vector<8x128xf32>
    %102 = arith.mulf %93, %70 : vector<8x128xf32>
    %103 = arith.mulf %87, %95 : vector<8x128xf32>
    %104 = arith.addf %102, %103 : vector<8x128xf32>
    %105 = math.tanh %104 : vector<8x128xf32>
    %106 = arith.mulf %101, %105 : vector<8x128xf32>
    %cst_36 = arith.constant dense<0.000000e+00> : vector<8x512xf32>
    %107 = tpu.matmul %106, %5, %cst_36 {dimension_numbers = #tpu.dot_dimension_numbers<[1], [0], [0], [1], [0, 0, 1, 1], [], []>} : vector<8x128xf32>, vector<128x512xf32>, vector<8x512xf32> -> vector<8x512xf32>
    %108 = arith.addf %107, %7 : vector<8x512xf32>
    %c2_37 = arith.constant 2 : index
    %c0_38 = arith.constant 0 : index
    %c0_39 = arith.constant 0 : index
    %109 = vector.load %arg8[%c2_37, %c0_38, %c0_39] : memref<8x8x512xf32, #tpu.memory_space<vmem>>, vector<1x8x512xf32>
    %110 = vector.shape_cast %109 : vector<1x8x512xf32> to vector<8x512xf32>
    %111 = vector.shape_cast %108 : vector<8x512xf32> to vector<1x8x512xf32>
    tpu.vector_store %arg8[%c2_37, %c0_38, %c0_39], %111 {strides = array<i32>} : memref<8x8x512xf32, #tpu.memory_space<vmem>>, vector<1x8x512xf32>,
    %c3 = arith.constant 3 : index
    %c0_40 = arith.constant 0 : index
    %c0_41 = arith.constant 0 : index
    %112 = vector.load %arg1[%c3, %c0_40, %c0_41] : memref<8x8x512xf32, #tpu.memory_space<vmem>>, vector<1x8x512xf32>
    %113 = vector.shape_cast %112 : vector<1x8x512xf32> to vector<8x512xf32>
    %cst_42 = arith.constant dense<0.000000e+00> : vector<8x512xf32>
    %114 = tpu.matmul %106, %2, %cst_42 {dimension_numbers = #tpu.dot_dimension_numbers<[1], [0], [0], [1], [0, 0, 1, 1], [], []>} : vector<8x128xf32>, vector<128x512xf32>, vector<8x512xf32> -> vector<8x512xf32>
    %115 = arith.addf %113, %114 : vector<8x512xf32>
    %116 = vector.extract_strided_slice %115 {offsets = [0, 0], sizes = [8, 128], strides = [1, 1]} : vector<8x512xf32> to vector<8x128xf32>
    %117 = arith.negf %116 : vector<8x128xf32>
    %118 = math.exp %117 : vector<8x128xf32>
    %cst_43 = arith.constant 1.000000e+00 : f32
    %119 = vector.broadcast %cst_43 : f32 to vector<8x128xf32>
    %120 = arith.addf %119, %118 : vector<8x128xf32>
    %121 = arith.divf %119, %120 : vector<8x128xf32>
    %122 = vector.extract_strided_slice %115 {offsets = [0, 128], sizes = [8, 128], strides = [1, 1]} : vector<8x512xf32> to vector<8x128xf32>
    %123 = arith.negf %122 : vector<8x128xf32>
    %124 = math.exp %123 : vector<8x128xf32>
    %cst_44 = arith.constant 1.000000e+00 : f32
    %125 = vector.broadcast %cst_44 : f32 to vector<8x128xf32>
    %126 = arith.addf %125, %124 : vector<8x128xf32>
    %127 = arith.divf %125, %126 : vector<8x128xf32>
    %128 = vector.extract_strided_slice %115 {offsets = [0, 256], sizes = [8, 128], strides = [1, 1]} : vector<8x512xf32> to vector<8x128xf32>
    %129 = math.tanh %128 : vector<8x128xf32>
    %130 = vector.extract_strided_slice %115 {offsets = [0, 384], sizes = [8, 128], strides = [1, 1]} : vector<8x512xf32> to vector<8x128xf32>
    %131 = arith.negf %130 : vector<8x128xf32>
    %132 = math.exp %131 : vector<8x128xf32>
    %cst_45 = arith.constant 1.000000e+00 : f32
    %133 = vector.broadcast %cst_45 : f32 to vector<8x128xf32>
    %134 = arith.addf %133, %132 : vector<8x128xf32>
    %135 = arith.divf %133, %134 : vector<8x128xf32>
    %136 = arith.mulf %127, %104 : vector<8x128xf32>
    %137 = arith.mulf %121, %129 : vector<8x128xf32>
    %138 = arith.addf %136, %137 : vector<8x128xf32>
    %139 = math.tanh %138 : vector<8x128xf32>
    %140 = arith.mulf %135, %139 : vector<8x128xf32>
    %cst_46 = arith.constant dense<0.000000e+00> : vector<8x512xf32>
    %141 = tpu.matmul %140, %5, %cst_46 {dimension_numbers = #tpu.dot_dimension_numbers<[1], [0], [0], [1], [0, 0, 1, 1], [], []>} : vector<8x128xf32>, vector<128x512xf32>, vector<8x512xf32> -> vector<8x512xf32>
    %142 = arith.addf %141, %7 : vector<8x512xf32>
    %c3_47 = arith.constant 3 : index
    %c0_48 = arith.constant 0 : index
    %c0_49 = arith.constant 0 : index
    %143 = vector.load %arg8[%c3_47, %c0_48, %c0_49] : memref<8x8x512xf32, #tpu.memory_space<vmem>>, vector<1x8x512xf32>
    %144 = vector.shape_cast %143 : vector<1x8x512xf32> to vector<8x512xf32>
    %145 = vector.shape_cast %142 : vector<8x512xf32> to vector<1x8x512xf32>
    tpu.vector_store %arg8[%c3_47, %c0_48, %c0_49], %145 {strides = array<i32>} : memref<8x8x512xf32, #tpu.memory_space<vmem>>, vector<1x8x512xf32>,
    %c4 = arith.constant 4 : index
    %c0_50 = arith.constant 0 : index
    %c0_51 = arith.constant 0 : index
    %146 = vector.load %arg1[%c4, %c0_50, %c0_51] : memref<8x8x512xf32, #tpu.memory_space<vmem>>, vector<1x8x512xf32>
    %147 = vector.shape_cast %146 : vector<1x8x512xf32> to vector<8x512xf32>
    %cst_52 = arith.constant dense<0.000000e+00> : vector<8x512xf32>
    %148 = tpu.matmul %140, %2, %cst_52 {dimension_numbers = #tpu.dot_dimension_numbers<[1], [0], [0], [1], [0, 0, 1, 1], [], []>} : vector<8x128xf32>, vector<128x512xf32>, vector<8x512xf32> -> vector<8x512xf32>
    %149 = arith.addf %147, %148 : vector<8x512xf32>
    %150 = vector.extract_strided_slice %149 {offsets = [0, 0], sizes = [8, 128], strides = [1, 1]} : vector<8x512xf32> to vector<8x128xf32>
    %151 = arith.negf %150 : vector<8x128xf32>
    %152 = math.exp %151 : vector<8x128xf32>
    %cst_53 = arith.constant 1.000000e+00 : f32
    %153 = vector.broadcast %cst_53 : f32 to vector<8x128xf32>
    %154 = arith.addf %153, %152 : vector<8x128xf32>
    %155 = arith.divf %153, %154 : vector<8x128xf32>
    %156 = vector.extract_strided_slice %149 {offsets = [0, 128], sizes = [8, 128], strides = [1, 1]} : vector<8x512xf32> to vector<8x128xf32>
    %157 = arith.negf %156 : vector<8x128xf32>
    %158 = math.exp %157 : vector<8x128xf32>
    %cst_54 = arith.constant 1.000000e+00 : f32
    %159 = vector.broadcast %cst_54 : f32 to vector<8x128xf32>
    %160 = arith.addf %159, %158 : vector<8x128xf32>
    %161 = arith.divf %159, %160 : vector<8x128xf32>
    %162 = vector.extract_strided_slice %149 {offsets = [0, 256], sizes = [8, 128], strides = [1, 1]} : vector<8x512xf32> to vector<8x128xf32>
    %163 = math.tanh %162 : vector<8x128xf32>
    %164 = vector.extract_strided_slice %149 {offsets = [0, 384], sizes = [8, 128], strides = [1, 1]} : vector<8x512xf32> to vector<8x128xf32>
    %165 = arith.negf %164 : vector<8x128xf32>
    %166 = math.exp %165 : vector<8x128xf32>
    %cst_55 = arith.constant 1.000000e+00 : f32
    %167 = vector.broadcast %cst_55 : f32 to vector<8x128xf32>
    %168 = arith.addf %167, %166 : vector<8x128xf32>
    %169 = arith.divf %167, %168 : vector<8x128xf32>
    %170 = arith.mulf %161, %138 : vector<8x128xf32>
    %171 = arith.mulf %155, %163 : vector<8x128xf32>
    %172 = arith.addf %170, %171 : vector<8x128xf32>
    %173 = math.tanh %172 : vector<8x128xf32>
    %174 = arith.mulf %169, %173 : vector<8x128xf32>
    %cst_56 = arith.constant dense<0.000000e+00> : vector<8x512xf32>
    %175 = tpu.matmul %174, %5, %cst_56 {dimension_numbers = #tpu.dot_dimension_numbers<[1], [0], [0], [1], [0, 0, 1, 1], [], []>} : vector<8x128xf32>, vector<128x512xf32>, vector<8x512xf32> -> vector<8x512xf32>
    %176 = arith.addf %175, %7 : vector<8x512xf32>
    %c4_57 = arith.constant 4 : index
    %c0_58 = arith.constant 0 : index
    %c0_59 = arith.constant 0 : index
    %177 = vector.load %arg8[%c4_57, %c0_58, %c0_59] : memref<8x8x512xf32, #tpu.memory_space<vmem>>, vector<1x8x512xf32>
    %178 = vector.shape_cast %177 : vector<1x8x512xf32> to vector<8x512xf32>
    %179 = vector.shape_cast %176 : vector<8x512xf32> to vector<1x8x512xf32>
    tpu.vector_store %arg8[%c4_57, %c0_58, %c0_59], %179 {strides = array<i32>} : memref<8x8x512xf32, #tpu.memory_space<vmem>>, vector<1x8x512xf32>,
    %c5 = arith.constant 5 : index
    %c0_60 = arith.constant 0 : index
    %c0_61 = arith.constant 0 : index
    %180 = vector.load %arg1[%c5, %c0_60, %c0_61] : memref<8x8x512xf32, #tpu.memory_space<vmem>>, vector<1x8x512xf32>
    %181 = vector.shape_cast %180 : vector<1x8x512xf32> to vector<8x512xf32>
    %cst_62 = arith.constant dense<0.000000e+00> : vector<8x512xf32>
    %182 = tpu.matmul %174, %2, %cst_62 {dimension_numbers = #tpu.dot_dimension_numbers<[1], [0], [0], [1], [0, 0, 1, 1], [], []>} : vector<8x128xf32>, vector<128x512xf32>, vector<8x512xf32> -> vector<8x512xf32>
    %183 = arith.addf %181, %182 : vector<8x512xf32>
    %184 = vector.extract_strided_slice %183 {offsets = [0, 0], sizes = [8, 128], strides = [1, 1]} : vector<8x512xf32> to vector<8x128xf32>
    %185 = arith.negf %184 : vector<8x128xf32>
    %186 = math.exp %185 : vector<8x128xf32>
    %cst_63 = arith.constant 1.000000e+00 : f32
    %187 = vector.broadcast %cst_63 : f32 to vector<8x128xf32>
    %188 = arith.addf %187, %186 : vector<8x128xf32>
    %189 = arith.divf %187, %188 : vector<8x128xf32>
    %190 = vector.extract_strided_slice %183 {offsets = [0, 128], sizes = [8, 128], strides = [1, 1]} : vector<8x512xf32> to vector<8x128xf32>
    %191 = arith.negf %190 : vector<8x128xf32>
    %192 = math.exp %191 : vector<8x128xf32>
    %cst_64 = arith.constant 1.000000e+00 : f32
    %193 = vector.broadcast %cst_64 : f32 to vector<8x128xf32>
    %194 = arith.addf %193, %192 : vector<8x128xf32>
    %195 = arith.divf %193, %194 : vector<8x128xf32>
    %196 = vector.extract_strided_slice %183 {offsets = [0, 256], sizes = [8, 128], strides = [1, 1]} : vector<8x512xf32> to vector<8x128xf32>
    %197 = math.tanh %196 : vector<8x128xf32>
    %198 = vector.extract_strided_slice %183 {offsets = [0, 384], sizes = [8, 128], strides = [1, 1]} : vector<8x512xf32> to vector<8x128xf32>
    %199 = arith.negf %198 : vector<8x128xf32>
    %200 = math.exp %199 : vector<8x128xf32>
    %cst_65 = arith.constant 1.000000e+00 : f32
    %201 = vector.broadcast %cst_65 : f32 to vector<8x128xf32>
    %202 = arith.addf %201, %200 : vector<8x128xf32>
    %203 = arith.divf %201, %202 : vector<8x128xf32>
    %204 = arith.mulf %195, %172 : vector<8x128xf32>
    %205 = arith.mulf %189, %197 : vector<8x128xf32>
    %206 = arith.addf %204, %205 : vector<8x128xf32>
    %207 = math.tanh %206 : vector<8x128xf32>
    %208 = arith.mulf %203, %207 : vector<8x128xf32>
    %cst_66 = arith.constant dense<0.000000e+00> : vector<8x512xf32>
    %209 = tpu.matmul %208, %5, %cst_66 {dimension_numbers = #tpu.dot_dimension_numbers<[1], [0], [0], [1], [0, 0, 1, 1], [], []>} : vector<8x128xf32>, vector<128x512xf32>, vector<8x512xf32> -> vector<8x512xf32>
    %210 = arith.addf %209, %7 : vector<8x512xf32>
    %c5_67 = arith.constant 5 : index
    %c0_68 = arith.constant 0 : index
    %c0_69 = arith.constant 0 : index
    %211 = vector.load %arg8[%c5_67, %c0_68, %c0_69] : memref<8x8x512xf32, #tpu.memory_space<vmem>>, vector<1x8x512xf32>
    %212 = vector.shape_cast %211 : vector<1x8x512xf32> to vector<8x512xf32>
    %213 = vector.shape_cast %210 : vector<8x512xf32> to vector<1x8x512xf32>
    tpu.vector_store %arg8[%c5_67, %c0_68, %c0_69], %213 {strides = array<i32>} : memref<8x8x512xf32, #tpu.memory_space<vmem>>, vector<1x8x512xf32>,
    %c6 = arith.constant 6 : index
    %c0_70 = arith.constant 0 : index
    %c0_71 = arith.constant 0 : index
    %214 = vector.load %arg1[%c6, %c0_70, %c0_71] : memref<8x8x512xf32, #tpu.memory_space<vmem>>, vector<1x8x512xf32>
    %215 = vector.shape_cast %214 : vector<1x8x512xf32> to vector<8x512xf32>
    %cst_72 = arith.constant dense<0.000000e+00> : vector<8x512xf32>
    %216 = tpu.matmul %208, %2, %cst_72 {dimension_numbers = #tpu.dot_dimension_numbers<[1], [0], [0], [1], [0, 0, 1, 1], [], []>} : vector<8x128xf32>, vector<128x512xf32>, vector<8x512xf32> -> vector<8x512xf32>
    %217 = arith.addf %215, %216 : vector<8x512xf32>
    %218 = vector.extract_strided_slice %217 {offsets = [0, 0], sizes = [8, 128], strides = [1, 1]} : vector<8x512xf32> to vector<8x128xf32>
    %219 = arith.negf %218 : vector<8x128xf32>
    %220 = math.exp %219 : vector<8x128xf32>
    %cst_73 = arith.constant 1.000000e+00 : f32
    %221 = vector.broadcast %cst_73 : f32 to vector<8x128xf32>
    %222 = arith.addf %221, %220 : vector<8x128xf32>
    %223 = arith.divf %221, %222 : vector<8x128xf32>
    %224 = vector.extract_strided_slice %217 {offsets = [0, 128], sizes = [8, 128], strides = [1, 1]} : vector<8x512xf32> to vector<8x128xf32>
    %225 = arith.negf %224 : vector<8x128xf32>
    %226 = math.exp %225 : vector<8x128xf32>
    %cst_74 = arith.constant 1.000000e+00 : f32
    %227 = vector.broadcast %cst_74 : f32 to vector<8x128xf32>
    %228 = arith.addf %227, %226 : vector<8x128xf32>
    %229 = arith.divf %227, %228 : vector<8x128xf32>
    %230 = vector.extract_strided_slice %217 {offsets = [0, 256], sizes = [8, 128], strides = [1, 1]} : vector<8x512xf32> to vector<8x128xf32>
    %231 = math.tanh %230 : vector<8x128xf32>
    %232 = vector.extract_strided_slice %217 {offsets = [0, 384], sizes = [8, 128], strides = [1, 1]} : vector<8x512xf32> to vector<8x128xf32>
    %233 = arith.negf %232 : vector<8x128xf32>
    %234 = math.exp %233 : vector<8x128xf32>
    %cst_75 = arith.constant 1.000000e+00 : f32
    %235 = vector.broadcast %cst_75 : f32 to vector<8x128xf32>
    %236 = arith.addf %235, %234 : vector<8x128xf32>
    %237 = arith.divf %235, %236 : vector<8x128xf32>
    %238 = arith.mulf %229, %206 : vector<8x128xf32>
    %239 = arith.mulf %223, %231 : vector<8x128xf32>
    %240 = arith.addf %238, %239 : vector<8x128xf32>
    %241 = math.tanh %240 : vector<8x128xf32>
    %242 = arith.mulf %237, %241 : vector<8x128xf32>
    %cst_76 = arith.constant dense<0.000000e+00> : vector<8x512xf32>
    %243 = tpu.matmul %242, %5, %cst_76 {dimension_numbers = #tpu.dot_dimension_numbers<[1], [0], [0], [1], [0, 0, 1, 1], [], []>} : vector<8x128xf32>, vector<128x512xf32>, vector<8x512xf32> -> vector<8x512xf32>
    %244 = arith.addf %243, %7 : vector<8x512xf32>
    %c6_77 = arith.constant 6 : index
    %c0_78 = arith.constant 0 : index
    %c0_79 = arith.constant 0 : index
    %245 = vector.load %arg8[%c6_77, %c0_78, %c0_79] : memref<8x8x512xf32, #tpu.memory_space<vmem>>, vector<1x8x512xf32>
    %246 = vector.shape_cast %245 : vector<1x8x512xf32> to vector<8x512xf32>
    %247 = vector.shape_cast %244 : vector<8x512xf32> to vector<1x8x512xf32>
    tpu.vector_store %arg8[%c6_77, %c0_78, %c0_79], %247 {strides = array<i32>} : memref<8x8x512xf32, #tpu.memory_space<vmem>>, vector<1x8x512xf32>,
    %c7 = arith.constant 7 : index
    %c0_80 = arith.constant 0 : index
    %c0_81 = arith.constant 0 : index
    %248 = vector.load %arg1[%c7, %c0_80, %c0_81] : memref<8x8x512xf32, #tpu.memory_space<vmem>>, vector<1x8x512xf32>
    %249 = vector.shape_cast %248 : vector<1x8x512xf32> to vector<8x512xf32>
    %cst_82 = arith.constant dense<0.000000e+00> : vector<8x512xf32>
    %250 = tpu.matmul %242, %2, %cst_82 {dimension_numbers = #tpu.dot_dimension_numbers<[1], [0], [0], [1], [0, 0, 1, 1], [], []>} : vector<8x128xf32>, vector<128x512xf32>, vector<8x512xf32> -> vector<8x512xf32>
    %251 = arith.addf %249, %250 : vector<8x512xf32>
    %252 = vector.extract_strided_slice %251 {offsets = [0, 0], sizes = [8, 128], strides = [1, 1]} : vector<8x512xf32> to vector<8x128xf32>
    %253 = arith.negf %252 : vector<8x128xf32>
    %254 = math.exp %253 : vector<8x128xf32>
    %cst_83 = arith.constant 1.000000e+00 : f32
    %255 = vector.broadcast %cst_83 : f32 to vector<8x128xf32>
    %256 = arith.addf %255, %254 : vector<8x128xf32>
    %257 = arith.divf %255, %256 : vector<8x128xf32>
    %258 = vector.extract_strided_slice %251 {offsets = [0, 128], sizes = [8, 128], strides = [1, 1]} : vector<8x512xf32> to vector<8x128xf32>
    %259 = arith.negf %258 : vector<8x128xf32>
    %260 = math.exp %259 : vector<8x128xf32>
    %cst_84 = arith.constant 1.000000e+00 : f32
    %261 = vector.broadcast %cst_84 : f32 to vector<8x128xf32>
    %262 = arith.addf %261, %260 : vector<8x128xf32>
    %263 = arith.divf %261, %262 : vector<8x128xf32>
    %264 = vector.extract_strided_slice %251 {offsets = [0, 256], sizes = [8, 128], strides = [1, 1]} : vector<8x512xf32> to vector<8x128xf32>
    %265 = math.tanh %264 : vector<8x128xf32>
    %266 = vector.extract_strided_slice %251 {offsets = [0, 384], sizes = [8, 128], strides = [1, 1]} : vector<8x512xf32> to vector<8x128xf32>
    %267 = arith.negf %266 : vector<8x128xf32>
    %268 = math.exp %267 : vector<8x128xf32>
    %cst_85 = arith.constant 1.000000e+00 : f32
    %269 = vector.broadcast %cst_85 : f32 to vector<8x128xf32>
    %270 = arith.addf %269, %268 : vector<8x128xf32>
    %271 = arith.divf %269, %270 : vector<8x128xf32>
    %272 = arith.mulf %263, %240 : vector<8x128xf32>
    %273 = arith.mulf %257, %265 : vector<8x128xf32>
    %274 = arith.addf %272, %273 : vector<8x128xf32>
    %275 = math.tanh %274 : vector<8x128xf32>
    %276 = arith.mulf %271, %275 : vector<8x128xf32>
    %cst_86 = arith.constant dense<0.000000e+00> : vector<8x512xf32>
    %277 = tpu.matmul %276, %5, %cst_86 {dimension_numbers = #tpu.dot_dimension_numbers<[1], [0], [0], [1], [0, 0, 1, 1], [], []>} : vector<8x128xf32>, vector<128x512xf32>, vector<8x512xf32> -> vector<8x512xf32>
    %278 = arith.addf %277, %7 : vector<8x512xf32>
    %c7_87 = arith.constant 7 : index
    %c0_88 = arith.constant 0 : index
    %c0_89 = arith.constant 0 : index
    %279 = vector.load %arg8[%c7_87, %c0_88, %c0_89] : memref<8x8x512xf32, #tpu.memory_space<vmem>>, vector<1x8x512xf32>
    %280 = vector.shape_cast %279 : vector<1x8x512xf32> to vector<8x512xf32>
    %281 = vector.shape_cast %278 : vector<8x512xf32> to vector<1x8x512xf32>
    tpu.vector_store %arg8[%c7_87, %c0_88, %c0_89], %281 {strides = array<i32>} : memref<8x8x512xf32, #tpu.memory_space<vmem>>, vector<1x8x512xf32>,
    %c1_i32 = arith.constant 1 : i32
    %c3_i32 = arith.constant 3 : i32
    %282 = arith.addi %c1_i32, %c3_i32 : i32
    %c1_i32_90 = arith.constant 1 : i32
    scf.for %arg9 = %c1_i32 to %282 step %c1_i32_90  : i32 {
      %526 = arith.index_cast %arg9 : i32 to index
      %c0_160 = arith.constant 0 : index
      %c0_161 = arith.constant 0 : index
      %527 = vector.load %arg3[%526, %c0_160, %c0_161] : memref<5x128x512xbf16, #tpu.memory_space<vmem>>, vector<1x128x512xbf16>
      %528 = vector.shape_cast %527 : vector<1x128x512xbf16> to vector<128x512xbf16>
      %529 = arith.extf %528 : vector<128x512xbf16> to vector<128x512xf32>
      %530 = arith.index_cast %arg9 : i32 to index
      %c0_162 = arith.constant 0 : index
      %c0_163 = arith.constant 0 : index
      %531 = vector.load %arg2[%530, %c0_162, %c0_163] : memref<4x128x512xbf16, #tpu.memory_space<vmem>>, vector<1x128x512xbf16>
      %532 = vector.shape_cast %531 : vector<1x128x512xbf16> to vector<128x512xbf16>
      %533 = arith.extf %532 : vector<128x512xbf16> to vector<128x512xf32>
      %534 = arith.index_cast %arg9 : i32 to index
      %c0_164 = arith.constant 0 : index
      %c0_165 = arith.constant 0 : index
      %535 = vector.load %arg4[%534, %c0_164, %c0_165] : memref<4x8x512xf32, #tpu.memory_space<vmem>>, vector<1x8x512xf32>
      %536 = vector.shape_cast %535 : vector<1x8x512xf32> to vector<8x512xf32>
      %cst_166 = arith.constant 0.000000e+00 : f32
      %537 = vector.broadcast %cst_166 : f32 to vector<8x128xf32>
      %cst_167 = arith.constant 0.000000e+00 : f32
      %538 = vector.broadcast %cst_167 : f32 to vector<8x128xf32>
      %c0_168 = arith.constant 0 : index
      %c0_169 = arith.constant 0 : index
      %c0_170 = arith.constant 0 : index
      %539 = vector.load %arg8[%c0_168, %c0_169, %c0_170] : memref<8x8x512xf32, #tpu.memory_space<vmem>>, vector<1x8x512xf32>
      %540 = vector.shape_cast %539 : vector<1x8x512xf32> to vector<8x512xf32>
      %cst_171 = arith.constant dense<0.000000e+00> : vector<8x512xf32>
      %541 = tpu.matmul %537, %529, %cst_171 {dimension_numbers = #tpu.dot_dimension_numbers<[1], [0], [0], [1], [0, 0, 1, 1], [], []>} : vector<8x128xf32>, vector<128x512xf32>, vector<8x512xf32> -> vector<8x512xf32>
      %542 = arith.addf %540, %541 : vector<8x512xf32>
      %543 = vector.extract_strided_slice %542 {offsets = [0, 0], sizes = [8, 128], strides = [1, 1]} : vector<8x512xf32> to vector<8x128xf32>
      %544 = arith.negf %543 : vector<8x128xf32>
      %545 = math.exp %544 : vector<8x128xf32>
      %cst_172 = arith.constant 1.000000e+00 : f32
      %546 = vector.broadcast %cst_172 : f32 to vector<8x128xf32>
      %547 = arith.addf %546, %545 : vector<8x128xf32>
      %548 = arith.divf %546, %547 : vector<8x128xf32>
      %549 = vector.extract_strided_slice %542 {offsets = [0, 128], sizes = [8, 128], strides = [1, 1]} : vector<8x512xf32> to vector<8x128xf32>
      %550 = arith.negf %549 : vector<8x128xf32>
      %551 = math.exp %550 : vector<8x128xf32>
      %cst_173 = arith.constant 1.000000e+00 : f32
      %552 = vector.broadcast %cst_173 : f32 to vector<8x128xf32>
      %553 = arith.addf %552, %551 : vector<8x128xf32>
      %554 = arith.divf %552, %553 : vector<8x128xf32>
      %555 = vector.extract_strided_slice %542 {offsets = [0, 256], sizes = [8, 128], strides = [1, 1]} : vector<8x512xf32> to vector<8x128xf32>
      %556 = math.tanh %555 : vector<8x128xf32>
      %557 = vector.extract_strided_slice %542 {offsets = [0, 384], sizes = [8, 128], strides = [1, 1]} : vector<8x512xf32> to vector<8x128xf32>
      %558 = arith.negf %557 : vector<8x128xf32>
      %559 = math.exp %558 : vector<8x128xf32>
      %cst_174 = arith.constant 1.000000e+00 : f32
      %560 = vector.broadcast %cst_174 : f32 to vector<8x128xf32>
      %561 = arith.addf %560, %559 : vector<8x128xf32>
      %562 = arith.divf %560, %561 : vector<8x128xf32>
      %563 = arith.mulf %554, %538 : vector<8x128xf32>
      %564 = arith.mulf %548, %556 : vector<8x128xf32>
      %565 = arith.addf %563, %564 : vector<8x128xf32>
      %566 = math.tanh %565 : vector<8x128xf32>
      %567 = arith.mulf %562, %566 : vector<8x128xf32>
      %cst_175 = arith.constant dense<0.000000e+00> : vector<8x512xf32>
      %568 = tpu.matmul %567, %533, %cst_175 {dimension_numbers = #tpu.dot_dimension_numbers<[1], [0], [0], [1], [0, 0, 1, 1], [], []>} : vector<8x128xf32>, vector<128x512xf32>, vector<8x512xf32> -> vector<8x512xf32>
      %569 = arith.addf %568, %536 : vector<8x512xf32>
      %c0_176 = arith.constant 0 : index
      %c0_177 = arith.constant 0 : index
      %c0_178 = arith.constant 0 : index
      %570 = vector.load %arg8[%c0_176, %c0_177, %c0_178] : memref<8x8x512xf32, #tpu.memory_space<vmem>>, vector<1x8x512xf32>
      %571 = vector.shape_cast %570 : vector<1x8x512xf32> to vector<8x512xf32>
      %572 = vector.shape_cast %569 : vector<8x512xf32> to vector<1x8x512xf32>
      tpu.vector_store %arg8[%c0_176, %c0_177, %c0_178], %572 {strides = array<i32>} : memref<8x8x512xf32, #tpu.memory_space<vmem>>, vector<1x8x512xf32>,
      %c1_179 = arith.constant 1 : index
      %c0_180 = arith.constant 0 : index
      %c0_181 = arith.constant 0 : index
      %573 = vector.load %arg8[%c1_179, %c0_180, %c0_181] : memref<8x8x512xf32, #tpu.memory_space<vmem>>, vector<1x8x512xf32>
      %574 = vector.shape_cast %573 : vector<1x8x512xf32> to vector<8x512xf32>
      %cst_182 = arith.constant dense<0.000000e+00> : vector<8x512xf32>
      %575 = tpu.matmul %567, %529, %cst_182 {dimension_numbers = #tpu.dot_dimension_numbers<[1], [0], [0], [1], [0, 0, 1, 1], [], []>} : vector<8x128xf32>, vector<128x512xf32>, vector<8x512xf32> -> vector<8x512xf32>
      %576 = arith.addf %574, %575 : vector<8x512xf32>
      %577 = vector.extract_strided_slice %576 {offsets = [0, 0], sizes = [8, 128], strides = [1, 1]} : vector<8x512xf32> to vector<8x128xf32>
      %578 = arith.negf %577 : vector<8x128xf32>
      %579 = math.exp %578 : vector<8x128xf32>
      %cst_183 = arith.constant 1.000000e+00 : f32
      %580 = vector.broadcast %cst_183 : f32 to vector<8x128xf32>
      %581 = arith.addf %580, %579 : vector<8x128xf32>
      %582 = arith.divf %580, %581 : vector<8x128xf32>
      %583 = vector.extract_strided_slice %576 {offsets = [0, 128], sizes = [8, 128], strides = [1, 1]} : vector<8x512xf32> to vector<8x128xf32>
      %584 = arith.negf %583 : vector<8x128xf32>
      %585 = math.exp %584 : vector<8x128xf32>
      %cst_184 = arith.constant 1.000000e+00 : f32
      %586 = vector.broadcast %cst_184 : f32 to vector<8x128xf32>
      %587 = arith.addf %586, %585 : vector<8x128xf32>
      %588 = arith.divf %586, %587 : vector<8x128xf32>
      %589 = vector.extract_strided_slice %576 {offsets = [0, 256], sizes = [8, 128], strides = [1, 1]} : vector<8x512xf32> to vector<8x128xf32>
      %590 = math.tanh %589 : vector<8x128xf32>
      %591 = vector.extract_strided_slice %576 {offsets = [0, 384], sizes = [8, 128], strides = [1, 1]} : vector<8x512xf32> to vector<8x128xf32>
      %592 = arith.negf %591 : vector<8x128xf32>
      %593 = math.exp %592 : vector<8x128xf32>
      %cst_185 = arith.constant 1.000000e+00 : f32
      %594 = vector.broadcast %cst_185 : f32 to vector<8x128xf32>
      %595 = arith.addf %594, %593 : vector<8x128xf32>
      %596 = arith.divf %594, %595 : vector<8x128xf32>
      %597 = arith.mulf %588, %565 : vector<8x128xf32>
      %598 = arith.mulf %582, %590 : vector<8x128xf32>
      %599 = arith.addf %597, %598 : vector<8x128xf32>
      %600 = math.tanh %599 : vector<8x128xf32>
      %601 = arith.mulf %596, %600 : vector<8x128xf32>
      %cst_186 = arith.constant dense<0.000000e+00> : vector<8x512xf32>
      %602 = tpu.matmul %601, %533, %cst_186 {dimension_numbers = #tpu.dot_dimension_numbers<[1], [0], [0], [1], [0, 0, 1, 1], [], []>} : vector<8x128xf32>, vector<128x512xf32>, vector<8x512xf32> -> vector<8x512xf32>
      %603 = arith.addf %602, %536 : vector<8x512xf32>
      %c1_187 = arith.constant 1 : index
      %c0_188 = arith.constant 0 : index
      %c0_189 = arith.constant 0 : index
      %604 = vector.load %arg8[%c1_187, %c0_188, %c0_189] : memref<8x8x512xf32, #tpu.memory_space<vmem>>, vector<1x8x512xf32>
      %605 = vector.shape_cast %604 : vector<1x8x512xf32> to vector<8x512xf32>
      %606 = vector.shape_cast %603 : vector<8x512xf32> to vector<1x8x512xf32>
      tpu.vector_store %arg8[%c1_187, %c0_188, %c0_189], %606 {strides = array<i32>} : memref<8x8x512xf32, #tpu.memory_space<vmem>>, vector<1x8x512xf32>,
      %c2_190 = arith.constant 2 : index
      %c0_191 = arith.constant 0 : index
      %c0_192 = arith.constant 0 : index
      %607 = vector.load %arg8[%c2_190, %c0_191, %c0_192] : memref<8x8x512xf32, #tpu.memory_space<vmem>>, vector<1x8x512xf32>
      %608 = vector.shape_cast %607 : vector<1x8x512xf32> to vector<8x512xf32>
      %cst_193 = arith.constant dense<0.000000e+00> : vector<8x512xf32>
      %609 = tpu.matmul %601, %529, %cst_193 {dimension_numbers = #tpu.dot_dimension_numbers<[1], [0], [0], [1], [0, 0, 1, 1], [], []>} : vector<8x128xf32>, vector<128x512xf32>, vector<8x512xf32> -> vector<8x512xf32>
      %610 = arith.addf %608, %609 : vector<8x512xf32>
      %611 = vector.extract_strided_slice %610 {offsets = [0, 0], sizes = [8, 128], strides = [1, 1]} : vector<8x512xf32> to vector<8x128xf32>
      %612 = arith.negf %611 : vector<8x128xf32>
      %613 = math.exp %612 : vector<8x128xf32>
      %cst_194 = arith.constant 1.000000e+00 : f32
      %614 = vector.broadcast %cst_194 : f32 to vector<8x128xf32>
      %615 = arith.addf %614, %613 : vector<8x128xf32>
      %616 = arith.divf %614, %615 : vector<8x128xf32>
      %617 = vector.extract_strided_slice %610 {offsets = [0, 128], sizes = [8, 128], strides = [1, 1]} : vector<8x512xf32> to vector<8x128xf32>
      %618 = arith.negf %617 : vector<8x128xf32>
      %619 = math.exp %618 : vector<8x128xf32>
      %cst_195 = arith.constant 1.000000e+00 : f32
      %620 = vector.broadcast %cst_195 : f32 to vector<8x128xf32>
      %621 = arith.addf %620, %619 : vector<8x128xf32>
      %622 = arith.divf %620, %621 : vector<8x128xf32>
      %623 = vector.extract_strided_slice %610 {offsets = [0, 256], sizes = [8, 128], strides = [1, 1]} : vector<8x512xf32> to vector<8x128xf32>
      %624 = math.tanh %623 : vector<8x128xf32>
      %625 = vector.extract_strided_slice %610 {offsets = [0, 384], sizes = [8, 128], strides = [1, 1]} : vector<8x512xf32> to vector<8x128xf32>
      %626 = arith.negf %625 : vector<8x128xf32>
      %627 = math.exp %626 : vector<8x128xf32>
      %cst_196 = arith.constant 1.000000e+00 : f32
      %628 = vector.broadcast %cst_196 : f32 to vector<8x128xf32>
      %629 = arith.addf %628, %627 : vector<8x128xf32>
      %630 = arith.divf %628, %629 : vector<8x128xf32>
      %631 = arith.mulf %622, %599 : vector<8x128xf32>
      %632 = arith.mulf %616, %624 : vector<8x128xf32>
      %633 = arith.addf %631, %632 : vector<8x128xf32>
      %634 = math.tanh %633 : vector<8x128xf32>
      %635 = arith.mulf %630, %634 : vector<8x128xf32>
      %cst_197 = arith.constant dense<0.000000e+00> : vector<8x512xf32>
      %636 = tpu.matmul %635, %533, %cst_197 {dimension_numbers = #tpu.dot_dimension_numbers<[1], [0], [0], [1], [0, 0, 1, 1], [], []>} : vector<8x128xf32>, vector<128x512xf32>, vector<8x512xf32> -> vector<8x512xf32>
      %637 = arith.addf %636, %536 : vector<8x512xf32>
      %c2_198 = arith.constant 2 : index
      %c0_199 = arith.constant 0 : index
      %c0_200 = arith.constant 0 : index
      %638 = vector.load %arg8[%c2_198, %c0_199, %c0_200] : memref<8x8x512xf32, #tpu.memory_space<vmem>>, vector<1x8x512xf32>
      %639 = vector.shape_cast %638 : vector<1x8x512xf32> to vector<8x512xf32>
      %640 = vector.shape_cast %637 : vector<8x512xf32> to vector<1x8x512xf32>
      tpu.vector_store %arg8[%c2_198, %c0_199, %c0_200], %640 {strides = array<i32>} : memref<8x8x512xf32, #tpu.memory_space<vmem>>, vector<1x8x512xf32>,
      %c3_201 = arith.constant 3 : index
      %c0_202 = arith.constant 0 : index
      %c0_203 = arith.constant 0 : index
      %641 = vector.load %arg8[%c3_201, %c0_202, %c0_203] : memref<8x8x512xf32, #tpu.memory_space<vmem>>, vector<1x8x512xf32>
      %642 = vector.shape_cast %641 : vector<1x8x512xf32> to vector<8x512xf32>
      %cst_204 = arith.constant dense<0.000000e+00> : vector<8x512xf32>
      %643 = tpu.matmul %635, %529, %cst_204 {dimension_numbers = #tpu.dot_dimension_numbers<[1], [0], [0], [1], [0, 0, 1, 1], [], []>} : vector<8x128xf32>, vector<128x512xf32>, vector<8x512xf32> -> vector<8x512xf32>
      %644 = arith.addf %642, %643 : vector<8x512xf32>
      %645 = vector.extract_strided_slice %644 {offsets = [0, 0], sizes = [8, 128], strides = [1, 1]} : vector<8x512xf32> to vector<8x128xf32>
      %646 = arith.negf %645 : vector<8x128xf32>
      %647 = math.exp %646 : vector<8x128xf32>
      %cst_205 = arith.constant 1.000000e+00 : f32
      %648 = vector.broadcast %cst_205 : f32 to vector<8x128xf32>
      %649 = arith.addf %648, %647 : vector<8x128xf32>
      %650 = arith.divf %648, %649 : vector<8x128xf32>
      %651 = vector.extract_strided_slice %644 {offsets = [0, 128], sizes = [8, 128], strides = [1, 1]} : vector<8x512xf32> to vector<8x128xf32>
      %652 = arith.negf %651 : vector<8x128xf32>
      %653 = math.exp %652 : vector<8x128xf32>
      %cst_206 = arith.constant 1.000000e+00 : f32
      %654 = vector.broadcast %cst_206 : f32 to vector<8x128xf32>
      %655 = arith.addf %654, %653 : vector<8x128xf32>
      %656 = arith.divf %654, %655 : vector<8x128xf32>
      %657 = vector.extract_strided_slice %644 {offsets = [0, 256], sizes = [8, 128], strides = [1, 1]} : vector<8x512xf32> to vector<8x128xf32>
      %658 = math.tanh %657 : vector<8x128xf32>
      %659 = vector.extract_strided_slice %644 {offsets = [0, 384], sizes = [8, 128], strides = [1, 1]} : vector<8x512xf32> to vector<8x128xf32>
      %660 = arith.negf %659 : vector<8x128xf32>
      %661 = math.exp %660 : vector<8x128xf32>
      %cst_207 = arith.constant 1.000000e+00 : f32
      %662 = vector.broadcast %cst_207 : f32 to vector<8x128xf32>
      %663 = arith.addf %662, %661 : vector<8x128xf32>
      %664 = arith.divf %662, %663 : vector<8x128xf32>
      %665 = arith.mulf %656, %633 : vector<8x128xf32>
      %666 = arith.mulf %650, %658 : vector<8x128xf32>
      %667 = arith.addf %665, %666 : vector<8x128xf32>
      %668 = math.tanh %667 : vector<8x128xf32>
      %669 = arith.mulf %664, %668 : vector<8x128xf32>
      %cst_208 = arith.constant dense<0.000000e+00> : vector<8x512xf32>
      %670 = tpu.matmul %669, %533, %cst_208 {dimension_numbers = #tpu.dot_dimension_numbers<[1], [0], [0], [1], [0, 0, 1, 1], [], []>} : vector<8x128xf32>, vector<128x512xf32>, vector<8x512xf32> -> vector<8x512xf32>
      %671 = arith.addf %670, %536 : vector<8x512xf32>
      %c3_209 = arith.constant 3 : index
      %c0_210 = arith.constant 0 : index
      %c0_211 = arith.constant 0 : index
      %672 = vector.load %arg8[%c3_209, %c0_210, %c0_211] : memref<8x8x512xf32, #tpu.memory_space<vmem>>, vector<1x8x512xf32>
      %673 = vector.shape_cast %672 : vector<1x8x512xf32> to vector<8x512xf32>
      %674 = vector.shape_cast %671 : vector<8x512xf32> to vector<1x8x512xf32>
      tpu.vector_store %arg8[%c3_209, %c0_210, %c0_211], %674 {strides = array<i32>} : memref<8x8x512xf32, #tpu.memory_space<vmem>>, vector<1x8x512xf32>,
      %c4_212 = arith.constant 4 : index
      %c0_213 = arith.constant 0 : index
      %c0_214 = arith.constant 0 : index
      %675 = vector.load %arg8[%c4_212, %c0_213, %c0_214] : memref<8x8x512xf32, #tpu.memory_space<vmem>>, vector<1x8x512xf32>
      %676 = vector.shape_cast %675 : vector<1x8x512xf32> to vector<8x512xf32>
      %cst_215 = arith.constant dense<0.000000e+00> : vector<8x512xf32>
      %677 = tpu.matmul %669, %529, %cst_215 {dimension_numbers = #tpu.dot_dimension_numbers<[1], [0], [0], [1], [0, 0, 1, 1], [], []>} : vector<8x128xf32>, vector<128x512xf32>, vector<8x512xf32> -> vector<8x512xf32>
      %678 = arith.addf %676, %677 : vector<8x512xf32>
      %679 = vector.extract_strided_slice %678 {offsets = [0, 0], sizes = [8, 128], strides = [1, 1]} : vector<8x512xf32> to vector<8x128xf32>
      %680 = arith.negf %679 : vector<8x128xf32>
      %681 = math.exp %680 : vector<8x128xf32>
      %cst_216 = arith.constant 1.000000e+00 : f32
      %682 = vector.broadcast %cst_216 : f32 to vector<8x128xf32>
      %683 = arith.addf %682, %681 : vector<8x128xf32>
      %684 = arith.divf %682, %683 : vector<8x128xf32>
      %685 = vector.extract_strided_slice %678 {offsets = [0, 128], sizes = [8, 128], strides = [1, 1]} : vector<8x512xf32> to vector<8x128xf32>
      %686 = arith.negf %685 : vector<8x128xf32>
      %687 = math.exp %686 : vector<8x128xf32>
      %cst_217 = arith.constant 1.000000e+00 : f32
      %688 = vector.broadcast %cst_217 : f32 to vector<8x128xf32>
      %689 = arith.addf %688, %687 : vector<8x128xf32>
      %690 = arith.divf %688, %689 : vector<8x128xf32>
      %691 = vector.extract_strided_slice %678 {offsets = [0, 256], sizes = [8, 128], strides = [1, 1]} : vector<8x512xf32> to vector<8x128xf32>
      %692 = math.tanh %691 : vector<8x128xf32>
      %693 = vector.extract_strided_slice %678 {offsets = [0, 384], sizes = [8, 128], strides = [1, 1]} : vector<8x512xf32> to vector<8x128xf32>
      %694 = arith.negf %693 : vector<8x128xf32>
      %695 = math.exp %694 : vector<8x128xf32>
      %cst_218 = arith.constant 1.000000e+00 : f32
      %696 = vector.broadcast %cst_218 : f32 to vector<8x128xf32>
      %697 = arith.addf %696, %695 : vector<8x128xf32>
      %698 = arith.divf %696, %697 : vector<8x128xf32>
      %699 = arith.mulf %690, %667 : vector<8x128xf32>
      %700 = arith.mulf %684, %692 : vector<8x128xf32>
      %701 = arith.addf %699, %700 : vector<8x128xf32>
      %702 = math.tanh %701 : vector<8x128xf32>
      %703 = arith.mulf %698, %702 : vector<8x128xf32>
      %cst_219 = arith.constant dense<0.000000e+00> : vector<8x512xf32>
      %704 = tpu.matmul %703, %533, %cst_219 {dimension_numbers = #tpu.dot_dimension_numbers<[1], [0], [0], [1], [0, 0, 1, 1], [], []>} : vector<8x128xf32>, vector<128x512xf32>, vector<8x512xf32> -> vector<8x512xf32>
      %705 = arith.addf %704, %536 : vector<8x512xf32>
      %c4_220 = arith.constant 4 : index
      %c0_221 = arith.constant 0 : index
      %c0_222 = arith.constant 0 : index
      %706 = vector.load %arg8[%c4_220, %c0_221, %c0_222] : memref<8x8x512xf32, #tpu.memory_space<vmem>>, vector<1x8x512xf32>
      %707 = vector.shape_cast %706 : vector<1x8x512xf32> to vector<8x512xf32>
      %708 = vector.shape_cast %705 : vector<8x512xf32> to vector<1x8x512xf32>
      tpu.vector_store %arg8[%c4_220, %c0_221, %c0_222], %708 {strides = array<i32>} : memref<8x8x512xf32, #tpu.memory_space<vmem>>, vector<1x8x512xf32>,
      %c5_223 = arith.constant 5 : index
      %c0_224 = arith.constant 0 : index
      %c0_225 = arith.constant 0 : index
      %709 = vector.load %arg8[%c5_223, %c0_224, %c0_225] : memref<8x8x512xf32, #tpu.memory_space<vmem>>, vector<1x8x512xf32>
      %710 = vector.shape_cast %709 : vector<1x8x512xf32> to vector<8x512xf32>
      %cst_226 = arith.constant dense<0.000000e+00> : vector<8x512xf32>
      %711 = tpu.matmul %703, %529, %cst_226 {dimension_numbers = #tpu.dot_dimension_numbers<[1], [0], [0], [1], [0, 0, 1, 1], [], []>} : vector<8x128xf32>, vector<128x512xf32>, vector<8x512xf32> -> vector<8x512xf32>
      %712 = arith.addf %710, %711 : vector<8x512xf32>
      %713 = vector.extract_strided_slice %712 {offsets = [0, 0], sizes = [8, 128], strides = [1, 1]} : vector<8x512xf32> to vector<8x128xf32>
      %714 = arith.negf %713 : vector<8x128xf32>
      %715 = math.exp %714 : vector<8x128xf32>
      %cst_227 = arith.constant 1.000000e+00 : f32
      %716 = vector.broadcast %cst_227 : f32 to vector<8x128xf32>
      %717 = arith.addf %716, %715 : vector<8x128xf32>
      %718 = arith.divf %716, %717 : vector<8x128xf32>
      %719 = vector.extract_strided_slice %712 {offsets = [0, 128], sizes = [8, 128], strides = [1, 1]} : vector<8x512xf32> to vector<8x128xf32>
      %720 = arith.negf %719 : vector<8x128xf32>
      %721 = math.exp %720 : vector<8x128xf32>
      %cst_228 = arith.constant 1.000000e+00 : f32
      %722 = vector.broadcast %cst_228 : f32 to vector<8x128xf32>
      %723 = arith.addf %722, %721 : vector<8x128xf32>
      %724 = arith.divf %722, %723 : vector<8x128xf32>
      %725 = vector.extract_strided_slice %712 {offsets = [0, 256], sizes = [8, 128], strides = [1, 1]} : vector<8x512xf32> to vector<8x128xf32>
      %726 = math.tanh %725 : vector<8x128xf32>
      %727 = vector.extract_strided_slice %712 {offsets = [0, 384], sizes = [8, 128], strides = [1, 1]} : vector<8x512xf32> to vector<8x128xf32>
      %728 = arith.negf %727 : vector<8x128xf32>
      %729 = math.exp %728 : vector<8x128xf32>
      %cst_229 = arith.constant 1.000000e+00 : f32
      %730 = vector.broadcast %cst_229 : f32 to vector<8x128xf32>
      %731 = arith.addf %730, %729 : vector<8x128xf32>
      %732 = arith.divf %730, %731 : vector<8x128xf32>
      %733 = arith.mulf %724, %701 : vector<8x128xf32>
      %734 = arith.mulf %718, %726 : vector<8x128xf32>
      %735 = arith.addf %733, %734 : vector<8x128xf32>
      %736 = math.tanh %735 : vector<8x128xf32>
      %737 = arith.mulf %732, %736 : vector<8x128xf32>
      %cst_230 = arith.constant dense<0.000000e+00> : vector<8x512xf32>
      %738 = tpu.matmul %737, %533, %cst_230 {dimension_numbers = #tpu.dot_dimension_numbers<[1], [0], [0], [1], [0, 0, 1, 1], [], []>} : vector<8x128xf32>, vector<128x512xf32>, vector<8x512xf32> -> vector<8x512xf32>
      %739 = arith.addf %738, %536 : vector<8x512xf32>
      %c5_231 = arith.constant 5 : index
      %c0_232 = arith.constant 0 : index
      %c0_233 = arith.constant 0 : index
      %740 = vector.load %arg8[%c5_231, %c0_232, %c0_233] : memref<8x8x512xf32, #tpu.memory_space<vmem>>, vector<1x8x512xf32>
      %741 = vector.shape_cast %740 : vector<1x8x512xf32> to vector<8x512xf32>
      %742 = vector.shape_cast %739 : vector<8x512xf32> to vector<1x8x512xf32>
      tpu.vector_store %arg8[%c5_231, %c0_232, %c0_233], %742 {strides = array<i32>} : memref<8x8x512xf32, #tpu.memory_space<vmem>>, vector<1x8x512xf32>,
      %c6_234 = arith.constant 6 : index
      %c0_235 = arith.constant 0 : index
      %c0_236 = arith.constant 0 : index
      %743 = vector.load %arg8[%c6_234, %c0_235, %c0_236] : memref<8x8x512xf32, #tpu.memory_space<vmem>>, vector<1x8x512xf32>
      %744 = vector.shape_cast %743 : vector<1x8x512xf32> to vector<8x512xf32>
      %cst_237 = arith.constant dense<0.000000e+00> : vector<8x512xf32>
      %745 = tpu.matmul %737, %529, %cst_237 {dimension_numbers = #tpu.dot_dimension_numbers<[1], [0], [0], [1], [0, 0, 1, 1], [], []>} : vector<8x128xf32>, vector<128x512xf32>, vector<8x512xf32> -> vector<8x512xf32>
      %746 = arith.addf %744, %745 : vector<8x512xf32>
      %747 = vector.extract_strided_slice %746 {offsets = [0, 0], sizes = [8, 128], strides = [1, 1]} : vector<8x512xf32> to vector<8x128xf32>
      %748 = arith.negf %747 : vector<8x128xf32>
      %749 = math.exp %748 : vector<8x128xf32>
      %cst_238 = arith.constant 1.000000e+00 : f32
      %750 = vector.broadcast %cst_238 : f32 to vector<8x128xf32>
      %751 = arith.addf %750, %749 : vector<8x128xf32>
      %752 = arith.divf %750, %751 : vector<8x128xf32>
      %753 = vector.extract_strided_slice %746 {offsets = [0, 128], sizes = [8, 128], strides = [1, 1]} : vector<8x512xf32> to vector<8x128xf32>
      %754 = arith.negf %753 : vector<8x128xf32>
      %755 = math.exp %754 : vector<8x128xf32>
      %cst_239 = arith.constant 1.000000e+00 : f32
      %756 = vector.broadcast %cst_239 : f32 to vector<8x128xf32>
      %757 = arith.addf %756, %755 : vector<8x128xf32>
      %758 = arith.divf %756, %757 : vector<8x128xf32>
      %759 = vector.extract_strided_slice %746 {offsets = [0, 256], sizes = [8, 128], strides = [1, 1]} : vector<8x512xf32> to vector<8x128xf32>
      %760 = math.tanh %759 : vector<8x128xf32>
      %761 = vector.extract_strided_slice %746 {offsets = [0, 384], sizes = [8, 128], strides = [1, 1]} : vector<8x512xf32> to vector<8x128xf32>
      %762 = arith.negf %761 : vector<8x128xf32>
      %763 = math.exp %762 : vector<8x128xf32>
      %cst_240 = arith.constant 1.000000e+00 : f32
      %764 = vector.broadcast %cst_240 : f32 to vector<8x128xf32>
      %765 = arith.addf %764, %763 : vector<8x128xf32>
      %766 = arith.divf %764, %765 : vector<8x128xf32>
      %767 = arith.mulf %758, %735 : vector<8x128xf32>
      %768 = arith.mulf %752, %760 : vector<8x128xf32>
      %769 = arith.addf %767, %768 : vector<8x128xf32>
      %770 = math.tanh %769 : vector<8x128xf32>
      %771 = arith.mulf %766, %770 : vector<8x128xf32>
      %cst_241 = arith.constant dense<0.000000e+00> : vector<8x512xf32>
      %772 = tpu.matmul %771, %533, %cst_241 {dimension_numbers = #tpu.dot_dimension_numbers<[1], [0], [0], [1], [0, 0, 1, 1], [], []>} : vector<8x128xf32>, vector<128x512xf32>, vector<8x512xf32> -> vector<8x512xf32>
      %773 = arith.addf %772, %536 : vector<8x512xf32>
      %c6_242 = arith.constant 6 : index
      %c0_243 = arith.constant 0 : index
      %c0_244 = arith.constant 0 : index
      %774 = vector.load %arg8[%c6_242, %c0_243, %c0_244] : memref<8x8x512xf32, #tpu.memory_space<vmem>>, vector<1x8x512xf32>
      %775 = vector.shape_cast %774 : vector<1x8x512xf32> to vector<8x512xf32>
      %776 = vector.shape_cast %773 : vector<8x512xf32> to vector<1x8x512xf32>
      tpu.vector_store %arg8[%c6_242, %c0_243, %c0_244], %776 {strides = array<i32>} : memref<8x8x512xf32, #tpu.memory_space<vmem>>, vector<1x8x512xf32>,
      %c7_245 = arith.constant 7 : index
      %c0_246 = arith.constant 0 : index
      %c0_247 = arith.constant 0 : index
      %777 = vector.load %arg8[%c7_245, %c0_246, %c0_247] : memref<8x8x512xf32, #tpu.memory_space<vmem>>, vector<1x8x512xf32>
      %778 = vector.shape_cast %777 : vector<1x8x512xf32> to vector<8x512xf32>
      %cst_248 = arith.constant dense<0.000000e+00> : vector<8x512xf32>
      %779 = tpu.matmul %771, %529, %cst_248 {dimension_numbers = #tpu.dot_dimension_numbers<[1], [0], [0], [1], [0, 0, 1, 1], [], []>} : vector<8x128xf32>, vector<128x512xf32>, vector<8x512xf32> -> vector<8x512xf32>
      %780 = arith.addf %778, %779 : vector<8x512xf32>
      %781 = vector.extract_strided_slice %780 {offsets = [0, 0], sizes = [8, 128], strides = [1, 1]} : vector<8x512xf32> to vector<8x128xf32>
      %782 = arith.negf %781 : vector<8x128xf32>
      %783 = math.exp %782 : vector<8x128xf32>
      %cst_249 = arith.constant 1.000000e+00 : f32
      %784 = vector.broadcast %cst_249 : f32 to vector<8x128xf32>
      %785 = arith.addf %784, %783 : vector<8x128xf32>
      %786 = arith.divf %784, %785 : vector<8x128xf32>
      %787 = vector.extract_strided_slice %780 {offsets = [0, 128], sizes = [8, 128], strides = [1, 1]} : vector<8x512xf32> to vector<8x128xf32>
      %788 = arith.negf %787 : vector<8x128xf32>
      %789 = math.exp %788 : vector<8x128xf32>
      %cst_250 = arith.constant 1.000000e+00 : f32
      %790 = vector.broadcast %cst_250 : f32 to vector<8x128xf32>
      %791 = arith.addf %790, %789 : vector<8x128xf32>
      %792 = arith.divf %790, %791 : vector<8x128xf32>
      %793 = vector.extract_strided_slice %780 {offsets = [0, 256], sizes = [8, 128], strides = [1, 1]} : vector<8x512xf32> to vector<8x128xf32>
      %794 = math.tanh %793 : vector<8x128xf32>
      %795 = vector.extract_strided_slice %780 {offsets = [0, 384], sizes = [8, 128], strides = [1, 1]} : vector<8x512xf32> to vector<8x128xf32>
      %796 = arith.negf %795 : vector<8x128xf32>
      %797 = math.exp %796 : vector<8x128xf32>
      %cst_251 = arith.constant 1.000000e+00 : f32
      %798 = vector.broadcast %cst_251 : f32 to vector<8x128xf32>
      %799 = arith.addf %798, %797 : vector<8x128xf32>
      %800 = arith.divf %798, %799 : vector<8x128xf32>
      %801 = arith.mulf %792, %769 : vector<8x128xf32>
      %802 = arith.mulf %786, %794 : vector<8x128xf32>
      %803 = arith.addf %801, %802 : vector<8x128xf32>
      %804 = math.tanh %803 : vector<8x128xf32>
      %805 = arith.mulf %800, %804 : vector<8x128xf32>
      %cst_252 = arith.constant dense<0.000000e+00> : vector<8x512xf32>
      %806 = tpu.matmul %805, %533, %cst_252 {dimension_numbers = #tpu.dot_dimension_numbers<[1], [0], [0], [1], [0, 0, 1, 1], [], []>} : vector<8x128xf32>, vector<128x512xf32>, vector<8x512xf32> -> vector<8x512xf32>
      %807 = arith.addf %806, %536 : vector<8x512xf32>
      %c7_253 = arith.constant 7 : index
      %c0_254 = arith.constant 0 : index
      %c0_255 = arith.constant 0 : index
      %808 = vector.load %arg8[%c7_253, %c0_254, %c0_255] : memref<8x8x512xf32, #tpu.memory_space<vmem>>, vector<1x8x512xf32>
      %809 = vector.shape_cast %808 : vector<1x8x512xf32> to vector<8x512xf32>
      %810 = vector.shape_cast %807 : vector<8x512xf32> to vector<1x8x512xf32>
      tpu.vector_store %arg8[%c7_253, %c0_254, %c0_255], %810 {strides = array<i32>} : memref<8x8x512xf32, #tpu.memory_space<vmem>>, vector<1x8x512xf32>,
    }
    %c3_i32_91 = arith.constant 3 : i32
    %c4_92 = arith.constant 4 : index
    %c0_93 = arith.constant 0 : index
    %c0_94 = arith.constant 0 : index
    %283 = vector.load %arg3[%c4_92, %c0_93, %c0_94] : memref<5x128x512xbf16, #tpu.memory_space<vmem>>, vector<1x128x512xbf16>
    %284 = vector.shape_cast %283 : vector<1x128x512xbf16> to vector<128x512xbf16>
    %285 = arith.extf %284 : vector<128x512xbf16> to vector<128x512xf32>
    %cst_95 = arith.constant 0.000000e+00 : f32
    %286 = vector.broadcast %cst_95 : f32 to vector<8x128xf32>
    %cst_96 = arith.constant 0.000000e+00 : f32
    %287 = vector.broadcast %cst_96 : f32 to vector<8x128xf32>
    %c0_97 = arith.constant 0 : index
    %c0_98 = arith.constant 0 : index
    %c0_99 = arith.constant 0 : index
    %288 = vector.load %arg8[%c0_97, %c0_98, %c0_99] : memref<8x8x512xf32, #tpu.memory_space<vmem>>, vector<1x8x512xf32>
    %289 = vector.shape_cast %288 : vector<1x8x512xf32> to vector<8x512xf32>
    %cst_100 = arith.constant dense<0.000000e+00> : vector<8x512xf32>
    %290 = tpu.matmul %286, %285, %cst_100 {dimension_numbers = #tpu.dot_dimension_numbers<[1], [0], [0], [1], [0, 0, 1, 1], [], []>} : vector<8x128xf32>, vector<128x512xf32>, vector<8x512xf32> -> vector<8x512xf32>
    %291 = arith.addf %289, %290 : vector<8x512xf32>
    %292 = vector.extract_strided_slice %291 {offsets = [0, 0], sizes = [8, 128], strides = [1, 1]} : vector<8x512xf32> to vector<8x128xf32>
    %293 = arith.negf %292 : vector<8x128xf32>
    %294 = math.exp %293 : vector<8x128xf32>
    %cst_101 = arith.constant 1.000000e+00 : f32
    %295 = vector.broadcast %cst_101 : f32 to vector<8x128xf32>
    %296 = arith.addf %295, %294 : vector<8x128xf32>
    %297 = arith.divf %295, %296 : vector<8x128xf32>
    %298 = vector.extract_strided_slice %291 {offsets = [0, 128], sizes = [8, 128], strides = [1, 1]} : vector<8x512xf32> to vector<8x128xf32>
    %299 = arith.negf %298 : vector<8x128xf32>
    %300 = math.exp %299 : vector<8x128xf32>
    %cst_102 = arith.constant 1.000000e+00 : f32
    %301 = vector.broadcast %cst_102 : f32 to vector<8x128xf32>
    %302 = arith.addf %301, %300 : vector<8x128xf32>
    %303 = arith.divf %301, %302 : vector<8x128xf32>
    %304 = vector.extract_strided_slice %291 {offsets = [0, 256], sizes = [8, 128], strides = [1, 1]} : vector<8x512xf32> to vector<8x128xf32>
    %305 = math.tanh %304 : vector<8x128xf32>
    %306 = vector.extract_strided_slice %291 {offsets = [0, 384], sizes = [8, 128], strides = [1, 1]} : vector<8x512xf32> to vector<8x128xf32>
    %307 = arith.negf %306 : vector<8x128xf32>
    %308 = math.exp %307 : vector<8x128xf32>
    %cst_103 = arith.constant 1.000000e+00 : f32
    %309 = vector.broadcast %cst_103 : f32 to vector<8x128xf32>
    %310 = arith.addf %309, %308 : vector<8x128xf32>
    %311 = arith.divf %309, %310 : vector<8x128xf32>
    %312 = arith.mulf %303, %287 : vector<8x128xf32>
    %313 = arith.mulf %297, %305 : vector<8x128xf32>
    %314 = arith.addf %312, %313 : vector<8x128xf32>
    %315 = math.tanh %314 : vector<8x128xf32>
    %316 = arith.mulf %311, %315 : vector<8x128xf32>
    %c1_104 = arith.constant 1 : index
    %c0_105 = arith.constant 0 : index
    %c0_106 = arith.constant 0 : index
    %317 = vector.load %arg8[%c1_104, %c0_105, %c0_106] : memref<8x8x512xf32, #tpu.memory_space<vmem>>, vector<1x8x512xf32>
    %318 = vector.shape_cast %317 : vector<1x8x512xf32> to vector<8x512xf32>
    %cst_107 = arith.constant dense<0.000000e+00> : vector<8x512xf32>
    %319 = tpu.matmul %316, %285, %cst_107 {dimension_numbers = #tpu.dot_dimension_numbers<[1], [0], [0], [1], [0, 0, 1, 1], [], []>} : vector<8x128xf32>, vector<128x512xf32>, vector<8x512xf32> -> vector<8x512xf32>
    %320 = arith.addf %318, %319 : vector<8x512xf32>
    %321 = vector.extract_strided_slice %320 {offsets = [0, 0], sizes = [8, 128], strides = [1, 1]} : vector<8x512xf32> to vector<8x128xf32>
    %322 = arith.negf %321 : vector<8x128xf32>
    %323 = math.exp %322 : vector<8x128xf32>
    %cst_108 = arith.constant 1.000000e+00 : f32
    %324 = vector.broadcast %cst_108 : f32 to vector<8x128xf32>
    %325 = arith.addf %324, %323 : vector<8x128xf32>
    %326 = arith.divf %324, %325 : vector<8x128xf32>
    %327 = vector.extract_strided_slice %320 {offsets = [0, 128], sizes = [8, 128], strides = [1, 1]} : vector<8x512xf32> to vector<8x128xf32>
    %328 = arith.negf %327 : vector<8x128xf32>
    %329 = math.exp %328 : vector<8x128xf32>
    %cst_109 = arith.constant 1.000000e+00 : f32
    %330 = vector.broadcast %cst_109 : f32 to vector<8x128xf32>
    %331 = arith.addf %330, %329 : vector<8x128xf32>
    %332 = arith.divf %330, %331 : vector<8x128xf32>
    %333 = vector.extract_strided_slice %320 {offsets = [0, 256], sizes = [8, 128], strides = [1, 1]} : vector<8x512xf32> to vector<8x128xf32>
    %334 = math.tanh %333 : vector<8x128xf32>
    %335 = vector.extract_strided_slice %320 {offsets = [0, 384], sizes = [8, 128], strides = [1, 1]} : vector<8x512xf32> to vector<8x128xf32>
    %336 = arith.negf %335 : vector<8x128xf32>
    %337 = math.exp %336 : vector<8x128xf32>
    %cst_110 = arith.constant 1.000000e+00 : f32
    %338 = vector.broadcast %cst_110 : f32 to vector<8x128xf32>
    %339 = arith.addf %338, %337 : vector<8x128xf32>
    %340 = arith.divf %338, %339 : vector<8x128xf32>
    %341 = arith.mulf %332, %314 : vector<8x128xf32>
    %342 = arith.mulf %326, %334 : vector<8x128xf32>
    %343 = arith.addf %341, %342 : vector<8x128xf32>
    %344 = math.tanh %343 : vector<8x128xf32>
    %345 = arith.mulf %340, %344 : vector<8x128xf32>
    %c2_111 = arith.constant 2 : index
    %c0_112 = arith.constant 0 : index
    %c0_113 = arith.constant 0 : index
    %346 = vector.load %arg8[%c2_111, %c0_112, %c0_113] : memref<8x8x512xf32, #tpu.memory_space<vmem>>, vector<1x8x512xf32>
    %347 = vector.shape_cast %346 : vector<1x8x512xf32> to vector<8x512xf32>
    %cst_114 = arith.constant dense<0.000000e+00> : vector<8x512xf32>
    %348 = tpu.matmul %345, %285, %cst_114 {dimension_numbers = #tpu.dot_dimension_numbers<[1], [0], [0], [1], [0, 0, 1, 1], [], []>} : vector<8x128xf32>, vector<128x512xf32>, vector<8x512xf32> -> vector<8x512xf32>
    %349 = arith.addf %347, %348 : vector<8x512xf32>
    %350 = vector.extract_strided_slice %349 {offsets = [0, 0], sizes = [8, 128], strides = [1, 1]} : vector<8x512xf32> to vector<8x128xf32>
    %351 = arith.negf %350 : vector<8x128xf32>
    %352 = math.exp %351 : vector<8x128xf32>
    %cst_115 = arith.constant 1.000000e+00 : f32
    %353 = vector.broadcast %cst_115 : f32 to vector<8x128xf32>
    %354 = arith.addf %353, %352 : vector<8x128xf32>
    %355 = arith.divf %353, %354 : vector<8x128xf32>
    %356 = vector.extract_strided_slice %349 {offsets = [0, 128], sizes = [8, 128], strides = [1, 1]} : vector<8x512xf32> to vector<8x128xf32>
    %357 = arith.negf %356 : vector<8x128xf32>
    %358 = math.exp %357 : vector<8x128xf32>
    %cst_116 = arith.constant 1.000000e+00 : f32
    %359 = vector.broadcast %cst_116 : f32 to vector<8x128xf32>
    %360 = arith.addf %359, %358 : vector<8x128xf32>
    %361 = arith.divf %359, %360 : vector<8x128xf32>
    %362 = vector.extract_strided_slice %349 {offsets = [0, 256], sizes = [8, 128], strides = [1, 1]} : vector<8x512xf32> to vector<8x128xf32>
    %363 = math.tanh %362 : vector<8x128xf32>
    %364 = vector.extract_strided_slice %349 {offsets = [0, 384], sizes = [8, 128], strides = [1, 1]} : vector<8x512xf32> to vector<8x128xf32>
    %365 = arith.negf %364 : vector<8x128xf32>
    %366 = math.exp %365 : vector<8x128xf32>
    %cst_117 = arith.constant 1.000000e+00 : f32
    %367 = vector.broadcast %cst_117 : f32 to vector<8x128xf32>
    %368 = arith.addf %367, %366 : vector<8x128xf32>
    %369 = arith.divf %367, %368 : vector<8x128xf32>
    %370 = arith.mulf %361, %343 : vector<8x128xf32>
    %371 = arith.mulf %355, %363 : vector<8x128xf32>
    %372 = arith.addf %370, %371 : vector<8x128xf32>
    %373 = math.tanh %372 : vector<8x128xf32>
    %374 = arith.mulf %369, %373 : vector<8x128xf32>
    %c3_118 = arith.constant 3 : index
    %c0_119 = arith.constant 0 : index
    %c0_120 = arith.constant 0 : index
    %375 = vector.load %arg8[%c3_118, %c0_119, %c0_120] : memref<8x8x512xf32, #tpu.memory_space<vmem>>, vector<1x8x512xf32>
    %376 = vector.shape_cast %375 : vector<1x8x512xf32> to vector<8x512xf32>
    %cst_121 = arith.constant dense<0.000000e+00> : vector<8x512xf32>
    %377 = tpu.matmul %374, %285, %cst_121 {dimension_numbers = #tpu.dot_dimension_numbers<[1], [0], [0], [1], [0, 0, 1, 1], [], []>} : vector<8x128xf32>, vector<128x512xf32>, vector<8x512xf32> -> vector<8x512xf32>
    %378 = arith.addf %376, %377 : vector<8x512xf32>
    %379 = vector.extract_strided_slice %378 {offsets = [0, 0], sizes = [8, 128], strides = [1, 1]} : vector<8x512xf32> to vector<8x128xf32>
    %380 = arith.negf %379 : vector<8x128xf32>
    %381 = math.exp %380 : vector<8x128xf32>
    %cst_122 = arith.constant 1.000000e+00 : f32
    %382 = vector.broadcast %cst_122 : f32 to vector<8x128xf32>
    %383 = arith.addf %382, %381 : vector<8x128xf32>
    %384 = arith.divf %382, %383 : vector<8x128xf32>
    %385 = vector.extract_strided_slice %378 {offsets = [0, 128], sizes = [8, 128], strides = [1, 1]} : vector<8x512xf32> to vector<8x128xf32>
    %386 = arith.negf %385 : vector<8x128xf32>
    %387 = math.exp %386 : vector<8x128xf32>
    %cst_123 = arith.constant 1.000000e+00 : f32
    %388 = vector.broadcast %cst_123 : f32 to vector<8x128xf32>
    %389 = arith.addf %388, %387 : vector<8x128xf32>
    %390 = arith.divf %388, %389 : vector<8x128xf32>
    %391 = vector.extract_strided_slice %378 {offsets = [0, 256], sizes = [8, 128], strides = [1, 1]} : vector<8x512xf32> to vector<8x128xf32>
    %392 = math.tanh %391 : vector<8x128xf32>
    %393 = vector.extract_strided_slice %378 {offsets = [0, 384], sizes = [8, 128], strides = [1, 1]} : vector<8x512xf32> to vector<8x128xf32>
    %394 = arith.negf %393 : vector<8x128xf32>
    %395 = math.exp %394 : vector<8x128xf32>
    %cst_124 = arith.constant 1.000000e+00 : f32
    %396 = vector.broadcast %cst_124 : f32 to vector<8x128xf32>
    %397 = arith.addf %396, %395 : vector<8x128xf32>
    %398 = arith.divf %396, %397 : vector<8x128xf32>
    %399 = arith.mulf %390, %372 : vector<8x128xf32>
    %400 = arith.mulf %384, %392 : vector<8x128xf32>
    %401 = arith.addf %399, %400 : vector<8x128xf32>
    %402 = math.tanh %401 : vector<8x128xf32>
    %403 = arith.mulf %398, %402 : vector<8x128xf32>
    %c4_125 = arith.constant 4 : index
    %c0_126 = arith.constant 0 : index
    %c0_127 = arith.constant 0 : index
    %404 = vector.load %arg8[%c4_125, %c0_126, %c0_127] : memref<8x8x512xf32, #tpu.memory_space<vmem>>, vector<1x8x512xf32>
    %405 = vector.shape_cast %404 : vector<1x8x512xf32> to vector<8x512xf32>
    %cst_128 = arith.constant dense<0.000000e+00> : vector<8x512xf32>
    %406 = tpu.matmul %403, %285, %cst_128 {dimension_numbers = #tpu.dot_dimension_numbers<[1], [0], [0], [1], [0, 0, 1, 1], [], []>} : vector<8x128xf32>, vector<128x512xf32>, vector<8x512xf32> -> vector<8x512xf32>
    %407 = arith.addf %405, %406 : vector<8x512xf32>
    %408 = vector.extract_strided_slice %407 {offsets = [0, 0], sizes = [8, 128], strides = [1, 1]} : vector<8x512xf32> to vector<8x128xf32>
    %409 = arith.negf %408 : vector<8x128xf32>
    %410 = math.exp %409 : vector<8x128xf32>
    %cst_129 = arith.constant 1.000000e+00 : f32
    %411 = vector.broadcast %cst_129 : f32 to vector<8x128xf32>
    %412 = arith.addf %411, %410 : vector<8x128xf32>
    %413 = arith.divf %411, %412 : vector<8x128xf32>
    %414 = vector.extract_strided_slice %407 {offsets = [0, 128], sizes = [8, 128], strides = [1, 1]} : vector<8x512xf32> to vector<8x128xf32>
    %415 = arith.negf %414 : vector<8x128xf32>
    %416 = math.exp %415 : vector<8x128xf32>
    %cst_130 = arith.constant 1.000000e+00 : f32
    %417 = vector.broadcast %cst_130 : f32 to vector<8x128xf32>
    %418 = arith.addf %417, %416 : vector<8x128xf32>
    %419 = arith.divf %417, %418 : vector<8x128xf32>
    %420 = vector.extract_strided_slice %407 {offsets = [0, 256], sizes = [8, 128], strides = [1, 1]} : vector<8x512xf32> to vector<8x128xf32>
    %421 = math.tanh %420 : vector<8x128xf32>
    %422 = vector.extract_strided_slice %407 {offsets = [0, 384], sizes = [8, 128], strides = [1, 1]} : vector<8x512xf32> to vector<8x128xf32>
    %423 = arith.negf %422 : vector<8x128xf32>
    %424 = math.exp %423 : vector<8x128xf32>
    %cst_131 = arith.constant 1.000000e+00 : f32
    %425 = vector.broadcast %cst_131 : f32 to vector<8x128xf32>
    %426 = arith.addf %425, %424 : vector<8x128xf32>
    %427 = arith.divf %425, %426 : vector<8x128xf32>
    %428 = arith.mulf %419, %401 : vector<8x128xf32>
    %429 = arith.mulf %413, %421 : vector<8x128xf32>
    %430 = arith.addf %428, %429 : vector<8x128xf32>
    %431 = math.tanh %430 : vector<8x128xf32>
    %432 = arith.mulf %427, %431 : vector<8x128xf32>
    %c5_132 = arith.constant 5 : index
    %c0_133 = arith.constant 0 : index
    %c0_134 = arith.constant 0 : index
    %433 = vector.load %arg8[%c5_132, %c0_133, %c0_134] : memref<8x8x512xf32, #tpu.memory_space<vmem>>, vector<1x8x512xf32>
    %434 = vector.shape_cast %433 : vector<1x8x512xf32> to vector<8x512xf32>
    %cst_135 = arith.constant dense<0.000000e+00> : vector<8x512xf32>
    %435 = tpu.matmul %432, %285, %cst_135 {dimension_numbers = #tpu.dot_dimension_numbers<[1], [0], [0], [1], [0, 0, 1, 1], [], []>} : vector<8x128xf32>, vector<128x512xf32>, vector<8x512xf32> -> vector<8x512xf32>
    %436 = arith.addf %434, %435 : vector<8x512xf32>
    %437 = vector.extract_strided_slice %436 {offsets = [0, 0], sizes = [8, 128], strides = [1, 1]} : vector<8x512xf32> to vector<8x128xf32>
    %438 = arith.negf %437 : vector<8x128xf32>
    %439 = math.exp %438 : vector<8x128xf32>
    %cst_136 = arith.constant 1.000000e+00 : f32
    %440 = vector.broadcast %cst_136 : f32 to vector<8x128xf32>
    %441 = arith.addf %440, %439 : vector<8x128xf32>
    %442 = arith.divf %440, %441 : vector<8x128xf32>
    %443 = vector.extract_strided_slice %436 {offsets = [0, 128], sizes = [8, 128], strides = [1, 1]} : vector<8x512xf32> to vector<8x128xf32>
    %444 = arith.negf %443 : vector<8x128xf32>
    %445 = math.exp %444 : vector<8x128xf32>
    %cst_137 = arith.constant 1.000000e+00 : f32
    %446 = vector.broadcast %cst_137 : f32 to vector<8x128xf32>
    %447 = arith.addf %446, %445 : vector<8x128xf32>
    %448 = arith.divf %446, %447 : vector<8x128xf32>
    %449 = vector.extract_strided_slice %436 {offsets = [0, 256], sizes = [8, 128], strides = [1, 1]} : vector<8x512xf32> to vector<8x128xf32>
    %450 = math.tanh %449 : vector<8x128xf32>
    %451 = vector.extract_strided_slice %436 {offsets = [0, 384], sizes = [8, 128], strides = [1, 1]} : vector<8x512xf32> to vector<8x128xf32>
    %452 = arith.negf %451 : vector<8x128xf32>
    %453 = math.exp %452 : vector<8x128xf32>
    %cst_138 = arith.constant 1.000000e+00 : f32
    %454 = vector.broadcast %cst_138 : f32 to vector<8x128xf32>
    %455 = arith.addf %454, %453 : vector<8x128xf32>
    %456 = arith.divf %454, %455 : vector<8x128xf32>
    %457 = arith.mulf %448, %430 : vector<8x128xf32>
    %458 = arith.mulf %442, %450 : vector<8x128xf32>
    %459 = arith.addf %457, %458 : vector<8x128xf32>
    %460 = math.tanh %459 : vector<8x128xf32>
    %461 = arith.mulf %456, %460 : vector<8x128xf32>
    %c6_139 = arith.constant 6 : index
    %c0_140 = arith.constant 0 : index
    %c0_141 = arith.constant 0 : index
    %462 = vector.load %arg8[%c6_139, %c0_140, %c0_141] : memref<8x8x512xf32, #tpu.memory_space<vmem>>, vector<1x8x512xf32>
    %463 = vector.shape_cast %462 : vector<1x8x512xf32> to vector<8x512xf32>
    %cst_142 = arith.constant dense<0.000000e+00> : vector<8x512xf32>
    %464 = tpu.matmul %461, %285, %cst_142 {dimension_numbers = #tpu.dot_dimension_numbers<[1], [0], [0], [1], [0, 0, 1, 1], [], []>} : vector<8x128xf32>, vector<128x512xf32>, vector<8x512xf32> -> vector<8x512xf32>
    %465 = arith.addf %463, %464 : vector<8x512xf32>
    %466 = vector.extract_strided_slice %465 {offsets = [0, 0], sizes = [8, 128], strides = [1, 1]} : vector<8x512xf32> to vector<8x128xf32>
    %467 = arith.negf %466 : vector<8x128xf32>
    %468 = math.exp %467 : vector<8x128xf32>
    %cst_143 = arith.constant 1.000000e+00 : f32
    %469 = vector.broadcast %cst_143 : f32 to vector<8x128xf32>
    %470 = arith.addf %469, %468 : vector<8x128xf32>
    %471 = arith.divf %469, %470 : vector<8x128xf32>
    %472 = vector.extract_strided_slice %465 {offsets = [0, 128], sizes = [8, 128], strides = [1, 1]} : vector<8x512xf32> to vector<8x128xf32>
    %473 = arith.negf %472 : vector<8x128xf32>
    %474 = math.exp %473 : vector<8x128xf32>
    %cst_144 = arith.constant 1.000000e+00 : f32
    %475 = vector.broadcast %cst_144 : f32 to vector<8x128xf32>
    %476 = arith.addf %475, %474 : vector<8x128xf32>
    %477 = arith.divf %475, %476 : vector<8x128xf32>
    %478 = vector.extract_strided_slice %465 {offsets = [0, 256], sizes = [8, 128], strides = [1, 1]} : vector<8x512xf32> to vector<8x128xf32>
    %479 = math.tanh %478 : vector<8x128xf32>
    %480 = vector.extract_strided_slice %465 {offsets = [0, 384], sizes = [8, 128], strides = [1, 1]} : vector<8x512xf32> to vector<8x128xf32>
    %481 = arith.negf %480 : vector<8x128xf32>
    %482 = math.exp %481 : vector<8x128xf32>
    %cst_145 = arith.constant 1.000000e+00 : f32
    %483 = vector.broadcast %cst_145 : f32 to vector<8x128xf32>
    %484 = arith.addf %483, %482 : vector<8x128xf32>
    %485 = arith.divf %483, %484 : vector<8x128xf32>
    %486 = arith.mulf %477, %459 : vector<8x128xf32>
    %487 = arith.mulf %471, %479 : vector<8x128xf32>
    %488 = arith.addf %486, %487 : vector<8x128xf32>
    %489 = math.tanh %488 : vector<8x128xf32>
    %490 = arith.mulf %485, %489 : vector<8x128xf32>
    %c7_146 = arith.constant 7 : index
    %c0_147 = arith.constant 0 : index
    %c0_148 = arith.constant 0 : index
    %491 = vector.load %arg8[%c7_146, %c0_147, %c0_148] : memref<8x8x512xf32, #tpu.memory_space<vmem>>, vector<1x8x512xf32>
    %492 = vector.shape_cast %491 : vector<1x8x512xf32> to vector<8x512xf32>
    %cst_149 = arith.constant dense<0.000000e+00> : vector<8x512xf32>
    %493 = tpu.matmul %490, %285, %cst_149 {dimension_numbers = #tpu.dot_dimension_numbers<[1], [0], [0], [1], [0, 0, 1, 1], [], []>} : vector<8x128xf32>, vector<128x512xf32>, vector<8x512xf32> -> vector<8x512xf32>
    %494 = arith.addf %492, %493 : vector<8x512xf32>
    %495 = vector.extract_strided_slice %494 {offsets = [0, 0], sizes = [8, 128], strides = [1, 1]} : vector<8x512xf32> to vector<8x128xf32>
    %496 = arith.negf %495 : vector<8x128xf32>
    %497 = math.exp %496 : vector<8x128xf32>
    %cst_150 = arith.constant 1.000000e+00 : f32
    %498 = vector.broadcast %cst_150 : f32 to vector<8x128xf32>
    %499 = arith.addf %498, %497 : vector<8x128xf32>
    %500 = arith.divf %498, %499 : vector<8x128xf32>
    %501 = vector.extract_strided_slice %494 {offsets = [0, 128], sizes = [8, 128], strides = [1, 1]} : vector<8x512xf32> to vector<8x128xf32>
    %502 = arith.negf %501 : vector<8x128xf32>
    %503 = math.exp %502 : vector<8x128xf32>
    %cst_151 = arith.constant 1.000000e+00 : f32
    %504 = vector.broadcast %cst_151 : f32 to vector<8x128xf32>
    %505 = arith.addf %504, %503 : vector<8x128xf32>
    %506 = arith.divf %504, %505 : vector<8x128xf32>
    %507 = vector.extract_strided_slice %494 {offsets = [0, 256], sizes = [8, 128], strides = [1, 1]} : vector<8x512xf32> to vector<8x128xf32>
    %508 = math.tanh %507 : vector<8x128xf32>
    %509 = vector.extract_strided_slice %494 {offsets = [0, 384], sizes = [8, 128], strides = [1, 1]} : vector<8x512xf32> to vector<8x128xf32>
    %510 = arith.negf %509 : vector<8x128xf32>
    %511 = math.exp %510 : vector<8x128xf32>
    %cst_152 = arith.constant 1.000000e+00 : f32
    %512 = vector.broadcast %cst_152 : f32 to vector<8x128xf32>
    %513 = arith.addf %512, %511 : vector<8x128xf32>
    %514 = arith.divf %512, %513 : vector<8x128xf32>
    %515 = arith.mulf %506, %488 : vector<8x128xf32>
    %516 = arith.mulf %500, %508 : vector<8x128xf32>
    %517 = arith.addf %515, %516 : vector<8x128xf32>
    %518 = math.tanh %517 : vector<8x128xf32>
    %519 = arith.mulf %514, %518 : vector<8x128xf32>
    %c0_153 = arith.constant 0 : index
    %c0_154 = arith.constant 0 : index
    %520 = vector.load %arg5[%c0_153, %c0_154] : memref<128x1xf32, #tpu.memory_space<vmem>>, vector<128x1xf32>
    %cst_155 = arith.constant dense<0.000000e+00> : vector<8x1xf32>
    %521 = tpu.matmul %519, %520, %cst_155 {dimension_numbers = #tpu.dot_dimension_numbers<[1], [0], [0], [1], [0, 0, 1, 1], [], []>} : vector<8x128xf32>, vector<128x1xf32>, vector<8x1xf32> -> vector<8x1xf32>
    %c0_156 = arith.constant 0 : index
    %c0_157 = arith.constant 0 : index
    %522 = vector.load %arg6[%c0_156, %c0_157] : memref<1x1xf32, #tpu.memory_space<vmem>>, vector<1x1xf32>
    %523 = vector.broadcast %522 : vector<1x1xf32> to vector<8x1xf32>
    %524 = arith.addf %521, %523 : vector<8x1xf32>
    %c0_158 = arith.constant 0 : index
    %c0_159 = arith.constant 0 : index
    %525 = vector.load %arg7[%c0_158, %c0_159] : memref<8x1xf32, #tpu.memory_space<vmem>>, vector<8x1xf32>
    tpu.vector_store %arg7[%c0_158, %c0_159], %524 {strides = array<i32>} : memref<8x1xf32, #tpu.memory_space<vmem>>, vector<8x1xf32>,
    return
  }
  func.func @transform_0(%arg0: i32) -> (i32, i32, i32) {
    %c0_i32 = arith.constant 0 : i32
    %c0_i32_0 = arith.constant 0 : i32
    %c0_i32_1 = arith.constant 0 : i32
    %c0_i32_2 = arith.constant 0 : i32
    return %c0_i32, %c0_i32_0, %c0_i32_1 : i32, i32, i32
  }
  func.func @transform_1(%arg0: i32) -> (i32, i32, i32) {
    %c0_i32 = arith.constant 0 : i32
    %c0_i32_0 = arith.constant 0 : i32
    %c0_i32_1 = arith.constant 0 : i32
    %c0_i32_2 = arith.constant 0 : i32
    return %c0_i32, %c0_i32_0, %c0_i32_1 : i32, i32, i32
  }
  func.func @transform_2(%arg0: i32) -> (i32, i32, i32) {
    %c0_i32 = arith.constant 0 : i32
    %c0_i32_0 = arith.constant 0 : i32
    %c0_i32_1 = arith.constant 0 : i32
    %c0_i32_2 = arith.constant 0 : i32
    return %c0_i32, %c0_i32_0, %c0_i32_1 : i32, i32, i32
  }
  func.func @transform_3(%arg0: i32) -> (i32, i32, i32) {
    %c0_i32 = arith.constant 0 : i32
    %c0_i32_0 = arith.constant 0 : i32
    %c0_i32_1 = arith.constant 0 : i32
    %c0_i32_2 = arith.constant 0 : i32
    return %c0_i32, %c0_i32_0, %c0_i32_1 : i32, i32, i32
  }
  func.func @transform_4(%arg0: i32) -> (i32, i32) {
    %c0_i32 = arith.constant 0 : i32
    %c0_i32_0 = arith.constant 0 : i32
    %c0_i32_1 = arith.constant 0 : i32
    return %c0_i32, %c0_i32_0 : i32, i32
  }
  func.func @transform_5(%arg0: i32) -> (i32, i32) {
    %c0_i32 = arith.constant 0 : i32
    %c0_i32_0 = arith.constant 0 : i32
    %c0_i32_1 = arith.constant 0 : i32
    return %c0_i32, %c0_i32_0 : i32, i32
  }
  func.func @transform_6(%arg0: i32) -> (i32, i32) {
    %c0_i32 = arith.constant 0 : i32
    %c0_i32_0 = arith.constant 0 : i32
    %c0_i32_1 = arith.constant 0 : i32
    return %c0_i32, %c0_i32_0 : i32, i32
  }
}

</mosaic_0001>

<llo_original>
// kernel: tpu_custom_call.1
$region0: #{tpu_custom_call.1}
  #allocation0 [shape = 'u32[]', space=smem, size = 0x4, offset = 0x4, fixed_abs, tag = 'smem constant byte address 0x4 - core index']
  #allocation1 [shape = 'u32[72,128]{1,0:T(1,128)}', space=vmem, size = 0x9000, scoped, tag = 'internal scratch']
  #allocation2 [shape = 'f32[8,8,512]{2,1,0:T(8,128)}', space=vmem, size = 0x20000, scoped, tag = 'scratch operand']
  #allocation3 [shape = 'f32[1,1]{1,0:T(1,128)S(1)}', space=vmem, size = 0x200, scoped, tag = 'scoped memory for tpu_custom_call.1']
  %s0 = inlined_call_operand.hbm [shape: f32[8,8,512], index: 0, kind: input, shape index: {}]
  %s1 = inlined_call_operand.hbm [shape: bf16[4,128,512], index: 1, kind: input, shape index: {}]
  %s2 = inlined_call_operand.hbm [shape: bf16[5,128,512], index: 2, kind: input, shape index: {}]
  %s3 = inlined_call_operand.vmem [shape: f32[4,8,512], index: 3, kind: input, shape index: {}]
  %s4 = inlined_call_operand.vmem [shape: f32[128,1], index: 4, kind: input, shape index: {}]
  %s5 = inlined_call_operand.<no memory space> [shape: f32[1,1], index: 5, kind: input, shape index: {}]
  %s6 = inlined_call_operand.vmem [shape: f32[8,1], index: 6, kind: output, shape index: {}]
  %s7 = sld [smem:[#allocation0]]
  $region53: #{tpu_custom_call.1} parent=0
    _
  %s9 = ssub.s32 1, %s7
  %s10 = scalar_select 0, %s9, %s7
  %v11 = vstv %s5
  %12 = vst [vmem:[#allocation3] sm:$0x1] %v11
  $region1: #{tpu_custom_call.1} parent=0
    #allocation4 [shape = 'u8[131072]{0}', space=vmem, size = 0x20000, scoped, tag = 'input window, operand 0, single buffered']
    #allocation5 [shape = 's32[1]{0}', space=sflag, size = 0x4, scoped, tag = 'scoped memory for tpu_custom_call.1']
    #allocation6 [shape = 'u8[524288]{0}', space=vmem, size = 0x80000, scoped, tag = 'input window, operand 1, single buffered']
    #allocation7 [shape = 's32[1]{0}', space=sflag, size = 0x4, scoped, tag = 'scoped memory for tpu_custom_call.1']
    #allocation8 [shape = 'u8[655360]{0}', space=vmem, size = 0xa0000, scoped, tag = 'input window, operand 2, single buffered']
    %13 = vsyncpa [#allocation5], 0
    %14 = vsyncpa [#allocation7], 0
    // Predicated region
    $region2: #{tpu_custom_call.1} parent=1 // pred_check
      _
    $region3: #{tpu_custom_call.1} parent=1 // pred_check_branch
      %16 = sbr.rel (0) target = $region5
    $region4: #{tpu_custom_call.1} parent=1 // pred_region
      %18 = vsyncadd [#allocation5], 0
      %s19 = sshll.u32 %s0, 4
      %s20 = int_to_ptr.hbm [resolvable:$true] %s19
      %s21 = sshll.u32 [#allocation4], 4
      %s22 = int_to_ptr.vmem [resolvable:$true] %s21
      %27 = dma.hbm_to_vmem [thread:$0]  %s20, 4096, %s22, [#allocation5], 512, 512, 32
    $region5: #{tpu_custom_call.1} parent=1 // pred_fallthru
      _
    // Predicated region
    $region6: #{tpu_custom_call.1} parent=1 // pred_check
      _
    $region7: #{tpu_custom_call.1} parent=1 // pred_check_branch
      %29 = sbr.rel (0) target = $region9
    $region8: #{tpu_custom_call.1} parent=1 // pred_region
      %31 = vsyncadd [#allocation7], 0
      %s32 = sshll.u32 %s1, 4
      %s33 = int_to_ptr.hbm [resolvable:$true] %s32
      %s34 = sshll.u32 [#allocation6], 4
      %s35 = int_to_ptr.vmem [resolvable:$true] %s34
      %40 = dma.hbm_to_vmem [thread:$0]  %s33, 16384, %s35, [#allocation7], 256, 256, 16
    $region9: #{tpu_custom_call.1} parent=1 // pred_fallthru
      _
    // Predicated region
    $region10: #{tpu_custom_call.1} parent=1 // pred_check
      _
    $region11: #{tpu_custom_call.1} parent=1 // pred_check_branch
      %42 = sbr.rel (0) target = $region13
    $region12: #{tpu_custom_call.1} parent=1 // pred_region
      %44 = vsyncadd [#allocation7], 0
      %s45 = sshll.u32 %s2, 4
      %s46 = int_to_ptr.hbm [resolvable:$true] %s45
      %s47 = sshll.u32 [#allocation8], 4
      %s48 = int_to_ptr.vmem [resolvable:$true] %s47
      %53 = dma.hbm_to_vmem [thread:$0]  %s46, 20480, %s48, [#allocation7], 256, 256, 16
    $region13: #{tpu_custom_call.1} parent=1 // pred_fallthru
      _
    // Predicated region
    $region14: #{tpu_custom_call.1} parent=1 // pred_check
      _
    $region15: #{tpu_custom_call.1} parent=1 // pred_check_branch
      %55 = sbr.rel (0) target = $region17
    $region16: #{tpu_custom_call.1} parent=1 // pred_region
      _
    $region17: #{tpu_custom_call.1} parent=1 // pred_fallthru
      _
    // Predicated region
    $region18: #{tpu_custom_call.1} parent=1 // pred_check
      _
    $region19: #{tpu_custom_call.1} parent=1 // pred_check_branch
      %57 = sbr.rel (0) target = $region21
    $region20: #{tpu_custom_call.1} parent=1 // pred_region
      _
    $region21: #{tpu_custom_call.1} parent=1 // pred_fallthru
      _
    // Predicated region
    $region22: #{tpu_custom_call.1} parent=1 // pred_check
      _
    $region23: #{tpu_custom_call.1} parent=1 // pred_check_branch
      %59 = sbr.rel (0) target = $region25
    $region24: #{tpu_custom_call.1} parent=1 // pred_region
      _
    $region25: #{tpu_custom_call.1} parent=1 // pred_fallthru
      _
    // Predicated region
    $region26: #{tpu_custom_call.1} parent=1 // pred_check
      _
    $region27: #{tpu_custom_call.1} parent=1 // pred_check_branch
      %61 = sbr.rel (0) target = $region29
    $region28: #{tpu_custom_call.1} parent=1 // pred_region
      %63 = dma.done [#allocation5], 4096
    $region29: #{tpu_custom_call.1} parent=1 // pred_fallthru
      _
    // Predicated region
    $region30: #{tpu_custom_call.1} parent=1 // pred_check
      _
    $region31: #{tpu_custom_call.1} parent=1 // pred_check_branch
      %65 = sbr.rel (0) target = $region33
    $region32: #{tpu_custom_call.1} parent=1 // pred_region
      %67 = dma.done [#allocation7], 16384
    $region33: #{tpu_custom_call.1} parent=1 // pred_fallthru
      _
    // Predicated region
    $region34: #{tpu_custom_call.1} parent=1 // pred_check
      _
    $region35: #{tpu_custom_call.1} parent=1 // pred_check_branch
      %69 = sbr.rel (0) target = $region37
    $region36: #{tpu_custom_call.1} parent=1 // pred_region
      %71 = dma.done [#allocation7], 20480
    $region37: #{tpu_custom_call.1} parent=1 // pred_fallthru
      _
    %v72 = vld [vmem:[#allocation8] sm:$0xff]
    %v73 = vld [vmem:[#allocation8 + $0x8] sm:$0xff]
    %v74 = vld [vmem:[#allocation8 + $0x10] sm:$0xff]
    %v75 = vld [vmem:[#allocation8 + $0x18] sm:$0xff]
    %v76 = vld [vmem:[#allocation8 + $0x20] sm:$0xff]
    %v77 = vld [vmem:[#allocation8 + $0x28] sm:$0xff]
    %v78 = vld [vmem:[#allocation8 + $0x30] sm:$0xff]
    %v79 = vld [vmem:[#allocation8 + $0x38] sm:$0xff]
    %v80 = vld [vmem:[#allocation8 + $0x40] sm:$0xff]
    %v81 = vld [vmem:[#allocation8 + $0x48] sm:$0xff]
    %v82 = vld [vmem:[#allocation8 + $0x50] sm:$0xff]
    %v83 = vld [vmem:[#allocation8 + $0x58] sm:$0xff]
    %v84 = vld [vmem:[#allocation8 + $0x60] sm:$0xff]
    %v85 = vld [vmem:[#allocation8 + $0x68] sm:$0xff]
    %v86 = vld [vmem:[#allocation8 + $0x70] sm:$0xff]
    %v87 = vld [vmem:[#allocation8 + $0x78] sm:$0xff]
    %v88 = vld [vmem:[#allocation8 + $0x80] sm:$0xff]
    %v89 = vld [vmem:[#allocation8 + $0x88] sm:$0xff]
    %v90 = vld [vmem:[#allocation8 + $0x90] sm:$0xff]
    %v91 = vld [vmem:[#allocation8 + $0x98] sm:$0xff]
    %v92 = vld [vmem:[#allocation8 + $0xa0] sm:$0xff]
    %v93 = vld [vmem:[#allocation8 + $0xa8] sm:$0xff]
    %v94 = vld [vmem:[#allocation8 + $0xb0] sm:$0xff]
    %v95 = vld [vmem:[#allocation8 + $0xb8] sm:$0xff]
    %v96 = vld [vmem:[#allocation8 + $0xc0] sm:$0xff]
    %v97 = vld [vmem:[#allocation8 + $0xc8] sm:$0xff]
    %v98 = vld [vmem:[#allocation8 + $0xd0] sm:$0xff]
    %v99 = vld [vmem:[#allocation8 + $0xd8] sm:$0xff]
    %v100 = vld [vmem:[#allocation8 + $0xe0] sm:$0xff]
    %v101 = vld [vmem:[#allocation8 + $0xe8] sm:$0xff]
    %v102 = vld [vmem:[#allocation8 + $0xf0] sm:$0xff]
    %v103 = vld [vmem:[#allocation8 + $0xf8] sm:$0xff]
    %v104 = vunpack.c.l.bf16 %v72
    %v105 = vunpack.c.h.bf16 %v72
    %v106 = vunpack.c.l.bf16 %v73
    %v107 = vunpack.c.h.bf16 %v73
    %v108 = vunpack.c.l.bf16 %v74
    %v109 = vunpack.c.h.bf16 %v74
    %v110 = vunpack.c.l.bf16 %v75
    %v111 = vunpack.c.h.bf16 %v75
    %v112 = vunpack.c.l.bf16 %v76
    %v113 = vunpack.c.h.bf16 %v76
    %v114 = vunpack.c.l.bf16 %v77
    %v115 = vunpack.c.h.bf16 %v77
    %v116 = vunpack.c.l.bf16 %v78
    %v117 = vunpack.c.h.bf16 %v78
    %v118 = vunpack.c.l.bf16 %v79
    %v119 = vunpack.c.h.bf16 %v79
    %v120 = vunpack.c.l.bf16 %v80
    %v121 = vunpack.c.h.bf16 %v80
    %v122 = vunpack.c.l.bf16 %v81
    %v123 = vunpack.c.h.bf16 %v81
    %v124 = vunpack.c.l.bf16 %v82
    %v125 = vunpack.c.h.bf16 %v82
    %v126 = vunpack.c.l.bf16 %v83
    %v127 = vunpack.c.h.bf16 %v83
    %v128 = vunpack.c.l.bf16 %v84
    %v129 = vunpack.c.h.bf16 %v84
    %v130 = vunpack.c.l.bf16 %v85
    %v131 = vunpack.c.h.bf16 %v85
    %v132 = vunpack.c.l.bf16 %v86
    %v133 = vunpack.c.h.bf16 %v86
    %v134 = vunpack.c.l.bf16 %v87
    %v135 = vunpack.c.h.bf16 %v87
    %v136 = vunpack.c.l.bf16 %v88
    %v137 = vunpack.c.h.bf16 %v88
    %v138 = vunpack.c.l.bf16 %v89
    %v139 = vunpack.c.h.bf16 %v89
    %v140 = vunpack.c.l.bf16 %v90
    %v141 = vunpack.c.h.bf16 %v90
    %v142 = vunpack.c.l.bf16 %v91
    %v143 = vunpack.c.h.bf16 %v91
    %v144 = vunpack.c.l.bf16 %v92
    %v145 = vunpack.c.h.bf16 %v92
    %v146 = vunpack.c.l.bf16 %v93
    %v147 = vunpack.c.h.bf16 %v93
    %v148 = vunpack.c.l.bf16 %v94
    %v149 = vunpack.c.h.bf16 %v94
    %v150 = vunpack.c.l.bf16 %v95
    %v151 = vunpack.c.h.bf16 %v95
    %v152 = vunpack.c.l.bf16 %v96
    %v153 = vunpack.c.h.bf16 %v96
    %v154 = vunpack.c.l.bf16 %v97
    %v155 = vunpack.c.h.bf16 %v97
    %v156 = vunpack.c.l.bf16 %v98
    %v157 = vunpack.c.h.bf16 %v98
    %v158 = vunpack.c.l.bf16 %v99
    %v159 = vunpack.c.h.bf16 %v99
    %v160 = vunpack.c.l.bf16 %v100
    %v161 = vunpack.c.h.bf16 %v100
    %v162 = vunpack.c.l.bf16 %v101
    %v163 = vunpack.c.h.bf16 %v101
    %v164 = vunpack.c.l.bf16 %v102
    %v165 = vunpack.c.h.bf16 %v102
    %v166 = vunpack.c.l.bf16 %v103
    %v167 = vunpack.c.h.bf16 %v103
    %v168 = vld [vmem:[#allocation6] sm:$0xff]
    %v169 = vld [vmem:[#allocation6 + $0x8] sm:$0xff]
    %v170 = vld [vmem:[#allocation6 + $0x10] sm:$0xff]
    %v171 = vld [vmem:[#allocation6 + $0x18] sm:$0xff]
    %v172 = vld [vmem:[#allocation6 + $0x20] sm:$0xff]
    %v173 = vld [vmem:[#allocation6 + $0x28] sm:$0xff]
    %v174 = vld [vmem:[#allocation6 + $0x30] sm:$0xff]
    %v175 = vld [vmem:[#allocation6 + $0x38] sm:$0xff]
    %v176 = vld [vmem:[#allocation6 + $0x40] sm:$0xff]
    %v177 = vld [vmem:[#allocation6 + $0x48] sm:$0xff]
    %v178 = vld [vmem:[#allocation6 + $0x50] sm:$0xff]
    %v179 = vld [vmem:[#allocation6 + $0x58] sm:$0xff]
    %v180 = vld [vmem:[#allocation6 + $0x60] sm:$0xff]
    %v181 = vld [vmem:[#allocation6 + $0x68] sm:$0xff]
    %v182 = vld [vmem:[#allocation6 + $0x70] sm:$0xff]
    %v183 = vld [vmem:[#allocation6 + $0x78] sm:$0xff]
    %v184 = vld [vmem:[#allocation6 + $0x80] sm:$0xff]
    %v185 = vld [vmem:[#allocation6 + $0x88] sm:$0xff]
    %v186 = vld [vmem:[#allocation6 + $0x90] sm:$0xff]
    %v187 = vld [vmem:[#allocation6 + $0x98] sm:$0xff]
    %v188 = vld [vmem:[#allocation6 + $0xa0] sm:$0xff]
    %v189 = vld [vmem:[#allocation6 + $0xa8] sm:$0xff]
    %v190 = vld [vmem:[#allocation6 + $0xb0] sm:$0xff]
    %v191 = vld [vmem:[#allocation6 + $0xb8] sm:$0xff]
    %v192 = vld [vmem:[#allocation6 + $0xc0] sm:$0xff]
    %v193 = vld [vmem:[#allocation6 + $0xc8] sm:$0xff]
    %v194 = vld [vmem:[#allocation6 + $0xd0] sm:$0xff]
    %v195 = vld [vmem:[#allocation6 + $0xd8] sm:$0xff]
    %v196 = vld [vmem:[#allocation6 + $0xe0] sm:$0xff]
    %v197 = vld [vmem:[#allocation6 + $0xe8] sm:$0xff]
    %v198 = vld [vmem:[#allocation6 + $0xf0] sm:$0xff]
    %v199 = vld [vmem:[#allocation6 + $0xf8] sm:$0xff]
    %v200 = vunpack.c.l.bf16 %v168
    %v201 = vunpack.c.h.bf16 %v168
    %v202 = vunpack.c.l.bf16 %v169
    %v203 = vunpack.c.h.bf16 %v169
    %v204 = vunpack.c.l.bf16 %v170
    %v205 = vunpack.c.h.bf16 %v170
    %v206 = vunpack.c.l.bf16 %v171
    %v207 = vunpack.c.h.bf16 %v171
    %v208 = vunpack.c.l.bf16 %v172
    %v209 = vunpack.c.h.bf16 %v172
    %v210 = vunpack.c.l.bf16 %v173
    %v211 = vunpack.c.h.bf16 %v173
    %v212 = vunpack.c.l.bf16 %v174
    %v213 = vunpack.c.h.bf16 %v174
    %v214 = vunpack.c.l.bf16 %v175
    %v215 = vunpack.c.h.bf16 %v175
    %v216 = vunpack.c.l.bf16 %v176
    %v217 = vunpack.c.h.bf16 %v176
    %v218 = vunpack.c.l.bf16 %v177
    %v219 = vunpack.c.h.bf16 %v177
    %v220 = vunpack.c.l.bf16 %v178
    %v221 = vunpack.c.h.bf16 %v178
    %v222 = vunpack.c.l.bf16 %v179
    %v223 = vunpack.c.h.bf16 %v179
    %v224 = vunpack.c.l.bf16 %v180
    %v225 = vunpack.c.h.bf16 %v180
    %v226 = vunpack.c.l.bf16 %v181
    %v227 = vunpack.c.h.bf16 %v181
    %v228 = vunpack.c.l.bf16 %v182
    %v229 = vunpack.c.h.bf16 %v182
    %v230 = vunpack.c.l.bf16 %v183
    %v231 = vunpack.c.h.bf16 %v183
    %v232 = vunpack.c.l.bf16 %v184
    %v233 = vunpack.c.h.bf16 %v184
    %v234 = vunpack.c.l.bf16 %v185
    %v235 = vunpack.c.h.bf16 %v185
    %v236 = vunpack.c.l.bf16 %v186
    %v237 = vunpack.c.h.bf16 %v186
    %v238 = vunpack.c.l.bf16 %v187
    %v239 = vunpack.c.h.bf16 %v187
    %v240 = vunpack.c.l.bf16 %v188
    %v241 = vunpack.c.h.bf16 %v188
    %v242 = vunpack.c.l.bf16 %v189
    %v243 = vunpack.c.h.bf16 %v189
    %v244 = vunpack.c.l.bf16 %v190
    %v245 = vunpack.c.h.bf16 %v190
    %v246 = vunpack.c.l.bf16 %v191
    %v247 = vunpack.c.h.bf16 %v191
    %v248 = vunpack.c.l.bf16 %v192
    %v249 = vunpack.c.h.bf16 %v192
    %v250 = vunpack.c.l.bf16 %v193
    %v251 = vunpack.c.h.bf16 %v193
    %v252 = vunpack.c.l.bf16 %v194
    %v253 = vunpack.c.h.bf16 %v194
    %v254 = vunpack.c.l.bf16 %v195
    %v255 = vunpack.c.h.bf16 %v195
    %v256 = vunpack.c.l.bf16 %v196
    %v257 = vunpack.c.h.bf16 %v196
    %v258 = vunpack.c.l.bf16 %v197
    %v259 = vunpack.c.h.bf16 %v197
    %v260 = vunpack.c.l.bf16 %v198
    %v261 = vunpack.c.h.bf16 %v198
    %v262 = vunpack.c.l.bf16 %v199
    %v263 = vunpack.c.h.bf16 %v199
    %v264 = vld [vmem:[%s3] sm:$0xff]
    %v265 = vld [vmem:[%s3 + $0x8] sm:$0xff]
    %v266 = vld [vmem:[%s3 + $0x10] sm:$0xff]
    %v267 = vld [vmem:[%s3 + $0x18] sm:$0xff]
    %v268 = vld [vmem:[#allocation4] sm:$0xff]
    %v269 = vld [vmem:[#allocation4 + $0x8] sm:$0xff]
    %v270 = vld [vmem:[#allocation4 + $0x10] sm:$0xff]
    %v271 = vld [vmem:[#allocation4 + $0x18] sm:$0xff]
    %272 = vmatpush.msra.mxu0 %v164
    %273 = vmatpush.msra.mxu0 %v160
    %274 = vmatpush.msra.mxu0 %v156
    %275 = vmatpush.msra.mxu0 %v152
    %276 = vmatpush.msra.mxu0 %v148
    %277 = vmatpush.msra.mxu0 %v144
    %278 = vmatpush.msra.mxu0 %v140
    %279 = vmatpush.msra.mxu0 %v136
    %280 = vmatpush.msra.mxu0 %v132
    %281 = vmatpush.msra.mxu0 %v128
    %282 = vmatpush.msra.mxu0 %v124
    %283 = vmatpush.msra.mxu0 %v120
    %284 = vmatpush.msra.mxu0 %v116
    %285 = vmatpush.msra.mxu0 %v112
    %286 = vmatpush.msra.mxu0 %v108
    %287 = vmatpush.msra.mxu0 %v104
    %288 = vmatmul.f32.gmra.mxu0 0.0
    %v289 = vpop.f32.mrf.mxu0
    %v290 = vadd.f32 0.0, %v289
    %291 = vdwg.mxu0
    %292 = vmatpush.msra.mxu0 %v165
    %293 = vmatpush.msra.mxu0 %v161
    %294 = vmatpush.msra.mxu0 %v157
    %295 = vmatpush.msra.mxu0 %v153
    %296 = vmatpush.msra.mxu0 %v149
    %297 = vmatpush.msra.mxu0 %v145
    %298 = vmatpush.msra.mxu0 %v141
    %299 = vmatpush.msra.mxu0 %v137
    %300 = vmatpush.msra.mxu0 %v133
    %301 = vmatpush.msra.mxu0 %v129
    %302 = vmatpush.msra.mxu0 %v125
    %303 = vmatpush.msra.mxu0 %v121
    %304 = vmatpush.msra.mxu0 %v117
    %305 = vmatpush.msra.mxu0 %v113
    %306 = vmatpush.msra.mxu0 %v109
    %307 = vmatpush.msra.mxu0 %v105
    %308 = vmatmul.f32.gmra.mxu0 0.0
    %v309 = vpop.f32.mrf.mxu0
    %v310 = vadd.f32 0.0, %v309
    %311 = vdwg.mxu0
    %312 = vmatpush.msra.mxu0 %v166
    %313 = vmatpush.msra.mxu0 %v162
    %314 = vmatpush.msra.mxu0 %v158
    %315 = vmatpush.msra.mxu0 %v154
    %316 = vmatpush.msra.mxu0 %v150
    %317 = vmatpush.msra.mxu0 %v146
    %318 = vmatpush.msra.mxu0 %v142
    %319 = vmatpush.msra.mxu0 %v138
    %320 = vmatpush.msra.mxu0 %v134
    %321 = vmatpush.msra.mxu0 %v130
    %322 = vmatpush.msra.mxu0 %v126
    %323 = vmatpush.msra.mxu0 %v122
    %324 = vmatpush.msra.mxu0 %v118
    %325 = vmatpush.msra.mxu0 %v114
    %326 = vmatpush.msra.mxu0 %v110
    %327 = vmatpush.msra.mxu0 %v106
    %328 = vmatmul.f32.gmra.mxu0 0.0
    %v329 = vpop.f32.mrf.mxu0
    %v330 = vadd.f32 0.0, %v329
    %331 = vdwg.mxu0
    %332 = vmatpush.msra.mxu0 %v167
    %333 = vmatpush.msra.mxu0 %v163
    %334 = vmatpush.msra.mxu0 %v159
    %335 = vmatpush.msra.mxu0 %v155
    %336 = vmatpush.msra.mxu0 %v151
    %337 = vmatpush.msra.mxu0 %v147
    %338 = vmatpush.msra.mxu0 %v143
    %339 = vmatpush.msra.mxu0 %v139
    %340 = vmatpush.msra.mxu0 %v135
    %341 = vmatpush.msra.mxu0 %v131
    %342 = vmatpush.msra.mxu0 %v127
    %343 = vmatpush.msra.mxu0 %v123
    %344 = vmatpush.msra.mxu0 %v119
    %345 = vmatpush.msra.mxu0 %v115
    %346 = vmatpush.msra.mxu0 %v111
    %347 = vmatpush.msra.mxu0 %v107
    %348 = vmatmul.f32.gmra.mxu0 0.0
    %v349 = vpop.f32.mrf.mxu0
    %v350 = vadd.f32 0.0, %v349
    %351 = vdwg.mxu0
    %v352 = vadd.f32 %v268, %v290
    %v353 = vadd.f32 %v269, %v310
    %v354 = vadd.f32 %v270, %v330
    %v355 = vadd.f32 %v271, %v350
    %v356 = vxor.u32 %v352, 2147483648
    %v357 = vmul.f32 %v356, 1.442695
    %v358 = vpow.pop %v357
    %v359 = vadd.f32 %v358, 1.0
    %v360 = vrcp.pop %v359
    %v361 = vmul.f32 %v359, %v360
    %v362 = vsub.f32 1.0, %v361
    %v363 = vmul.f32 %v360, %v362
    %v364 = vadd.f32 %v360, %v363
    %vm365 = vweird.f32 %v359
    %vm366 = vweird.f32 %v360
    %vm367 = vmor %vm365, %vm366
    %v368 = vsel %vm367, %v360, %v364
    %v369 = vand.u32 2147483647, %v359
    %vm370 = vcmp.eq.f32.partialorder %v369, 8.507059e+37
    %v371 = vand.u32 %v359, 2147483648
    %v372 = vor.u32 1.1754944e-38, %v371
    %v373 = vsel %vm370, %v372, %v368
    %v374 = vmul.f32 1.0, %v373
    %v375 = vxor.u32 %v353, 2147483648
    %v376 = vmul.f32 %v375, 1.442695
    %v377 = vpow.pop %v376
    %v378 = vadd.f32 %v377, 1.0
    %v379 = vrcp.pop %v378
    %v380 = vmul.f32 %v378, %v379
    %v381 = vsub.f32 1.0, %v380
    %v382 = vmul.f32 %v379, %v381
    %v383 = vadd.f32 %v379, %v382
    %vm384 = vweird.f32 %v378
    %vm385 = vweird.f32 %v379
    %vm386 = vmor %vm384, %vm385
    %v387 = vsel %vm386, %v379, %v383
    %v388 = vand.u32 2147483647, %v378
    %vm389 = vcmp.eq.f32.partialorder %v388, 8.507059e+37
    %v390 = vand.u32 %v378, 2147483648
    %v391 = vor.u32 1.1754944e-38, %v390
    %v392 = vsel %vm389, %v391, %v387
    %v393 = vmul.f32 1.0, %v392
    %v394 = vtanh.pop %v354
    %v395 = vxor.u32 %v355, 2147483648
    %v396 = vmul.f32 %v395, 1.442695
    %v397 = vpow.pop %v396
    %v398 = vadd.f32 %v397, 1.0
    %v399 = vrcp.pop %v398
    %v400 = vmul.f32 %v398, %v399
    %v401 = vsub.f32 1.0, %v400
    %v402 = vmul.f32 %v399, %v401
    %v403 = vadd.f32 %v399, %v402
    %vm404 = vweird.f32 %v398
    %vm405 = vweird.f32 %v399
    %vm406 = vmor %vm404, %vm405
    %v407 = vsel %vm406, %v399, %v403
    %v408 = vand.u32 2147483647, %v398
    %vm409 = vcmp.eq.f32.partialorder %v408, 8.507059e+37
    %v410 = vand.u32 %v398, 2147483648
    %v411 = vor.u32 1.1754944e-38, %v410
    %v412 = vsel %vm409, %v411, %v407
    %v413 = vmul.f32 1.0, %v412
    %v414 = vmul.f32 %v393, 0.0
    %v415 = vmul.f32 %v374, %v394
    %v416 = vadd.f32 %v414, %v415
    %v417 = vtanh.pop %v416
    %v418 = vmul.f32 %v413, %v417
    %419 = vmatpush.msra.mxu0 %v260
    %420 = vmatpush.msra.mxu0 %v256
    %421 = vmatpush.msra.mxu0 %v252
    %422 = vmatpush.msra.mxu0 %v248
    %423 = vmatpush.msra.mxu0 %v244
    %424 = vmatpush.msra.mxu0 %v240
    %425 = vmatpush.msra.mxu0 %v236
    %426 = vmatpush.msra.mxu0 %v232
    %427 = vmatpush.msra.mxu0 %v228
    %428 = vmatpush.msra.mxu0 %v224
    %429 = vmatpush.msra.mxu0 %v220
    %430 = vmatpush.msra.mxu0 %v216
    %431 = vmatpush.msra.mxu0 %v212
    %432 = vmatpush.msra.mxu0 %v208
    %433 = vmatpush.msra.mxu0 %v204
    %434 = vmatpush.msra.mxu0 %v200
    %435 = vmatmul.f32.gmra.mxu0 %v418
    %v436 = vpop.f32.mrf.mxu0
    %v437 = vadd.f32 %v264, %v436
    %438 = vdwg.mxu0
    %439 = vmatpush.msra.mxu0 %v261
    %440 = vmatpush.msra.mxu0 %v257
    %441 = vmatpush.msra.mxu0 %v253
    %442 = vmatpush.msra.mxu0 %v249
    %443 = vmatpush.msra.mxu0 %v245
    %444 = vmatpush.msra.mxu0 %v241
    %445 = vmatpush.msra.mxu0 %v237
    %446 = vmatpush.msra.mxu0 %v233
    %447 = vmatpush.msra.mxu0 %v229
    %448 = vmatpush.msra.mxu0 %v225
    %449 = vmatpush.msra.mxu0 %v221
    %450 = vmatpush.msra.mxu0 %v217
    %451 = vmatpush.msra.mxu0 %v213
    %452 = vmatpush.msra.mxu0 %v209
    %453 = vmatpush.msra.mxu0 %v205
    %454 = vmatpush.msra.mxu0 %v201
    %455 = vmatmul.f32.gmra.mxu0 %v418
    %v456 = vpop.f32.mrf.mxu0
    %v457 = vadd.f32 %v265, %v456
    %458 = vdwg.mxu0
    %459 = vmatpush.msra.mxu0 %v262
    %460 = vmatpush.msra.mxu0 %v258
    %461 = vmatpush.msra.mxu0 %v254
    %462 = vmatpush.msra.mxu0 %v250
    %463 = vmatpush.msra.mxu0 %v246
    %464 = vmatpush.msra.mxu0 %v242
    %465 = vmatpush.msra.mxu0 %v238
    %466 = vmatpush.msra.mxu0 %v234
    %467 = vmatpush.msra.mxu0 %v230
    %468 = vmatpush.msra.mxu0 %v226
    %469 = vmatpush.msra.mxu0 %v222
    %470 = vmatpush.msra.mxu0 %v218
    %471 = vmatpush.msra.mxu0 %v214
    %472 = vmatpush.msra.mxu0 %v210
    %473 = vmatpush.msra.mxu0 %v206
    %474 = vmatpush.msra.mxu0 %v202
    %475 = vmatmul.f32.gmra.mxu0 %v418
    %v476 = vpop.f32.mrf.mxu0
    %v477 = vadd.f32 %v266, %v476
    %478 = vdwg.mxu0
    %479 = vmatpush.msra.mxu0 %v263
    %480 = vmatpush.msra.mxu0 %v259
    %481 = vmatpush.msra.mxu0 %v255
    %482 = vmatpush.msra.mxu0 %v251
    %483 = vmatpush.msra.mxu0 %v247
    %484 = vmatpush.msra.mxu0 %v243
    %485 = vmatpush.msra.mxu0 %v239
    %486 = vmatpush.msra.mxu0 %v235
    %487 = vmatpush.msra.mxu0 %v231
    %488 = vmatpush.msra.mxu0 %v227
    %489 = vmatpush.msra.mxu0 %v223
    %490 = vmatpush.msra.mxu0 %v219
    %491 = vmatpush.msra.mxu0 %v215
    %492 = vmatpush.msra.mxu0 %v211
    %493 = vmatpush.msra.mxu0 %v207
    %494 = vmatpush.msra.mxu0 %v203
    %495 = vmatmul.f32.gmra.mxu0 %v418
    %v496 = vpop.f32.mrf.mxu0
    %v497 = vadd.f32 %v267, %v496
    %498 = vdwg.mxu0
    %499 = vst [vmem:[#allocation2] sm:$0xff] %v437
    %500 = vst [vmem:[#allocation2 + $0x8] sm:$0xff] %v457
    %501 = vst [vmem:[#allocation2 + $0x10] sm:$0xff] %v477
    %502 = vst [vmem:[#allocation2 + $0x18] sm:$0xff] %v497
    %s503 = scalar_lea.vmem [#allocation4], 32
    %v504 = vld [vmem:[%s503] sm:$0xff]
    %v505 = vld [vmem:[%s503 + $0x8] sm:$0xff]
    %v506 = vld [vmem:[%s503 + $0x10] sm:$0xff]
    %v507 = vld [vmem:[%s503 + $0x18] sm:$0xff]
    %508 = vmatpush.msra.mxu0 %v164
    %509 = vmatpush.msra.mxu0 %v160
    %510 = vmatpush.msra.mxu0 %v156
    %511 = vmatpush.msra.mxu0 %v152
    %512 = vmatpush.msra.mxu0 %v148
    %513 = vmatpush.msra.mxu0 %v144
    %514 = vmatpush.msra.mxu0 %v140
    %515 = vmatpush.msra.mxu0 %v136
    %516 = vmatpush.msra.mxu0 %v132
    %517 = vmatpush.msra.mxu0 %v128
    %518 = vmatpush.msra.mxu0 %v124
    %519 = vmatpush.msra.mxu0 %v120
    %520 = vmatpush.msra.mxu0 %v116
    %521 = vmatpush.msra.mxu0 %v112
    %522 = vmatpush.msra.mxu0 %v108
    %523 = vmatpush.msra.mxu0 %v104
    %524 = vmatmul.f32.gmra.mxu0 %v418
    %v525 = vpop.f32.mrf.mxu0
    %v526 = vadd.f32 0.0, %v525
    %527 = vdwg.mxu0
    %528 = vmatpush.msra.mxu0 %v165
    %529 = vmatpush.msra.mxu0 %v161
    %530 = vmatpush.msra.mxu0 %v157
    %531 = vmatpush.msra.mxu0 %v153
    %532 = vmatpush.msra.mxu0 %v149
    %533 = vmatpush.msra.mxu0 %v145
    %534 = vmatpush.msra.mxu0 %v141
    %535 = vmatpush.msra.mxu0 %v137
    %536 = vmatpush.msra.mxu0 %v133
    %537 = vmatpush.msra.mxu0 %v129
    %538 = vmatpush.msra.mxu0 %v125
    %539 = vmatpush.msra.mxu0 %v121
    %540 = vmatpush.msra.mxu0 %v117
    %541 = vmatpush.msra.mxu0 %v113
    %542 = vmatpush.msra.mxu0 %v109
    %543 = vmatpush.msra.mxu0 %v105
    %544 = vmatmul.f32.gmra.mxu0 %v418
    %v545 = vpop.f32.mrf.mxu0
    %v546 = vadd.f32 0.0, %v545
    %547 = vdwg.mxu0
    %548 = vmatpush.msra.mxu0 %v166
    %549 = vmatpush.msra.mxu0 %v162
    %550 = vmatpush.msra.mxu0 %v158
    %551 = vmatpush.msra.mxu0 %v154
    %552 = vmatpush.msra.mxu0 %v150
    %553 = vmatpush.msra.mxu0 %v146
    %554 = vmatpush.msra.mxu0 %v142
    %555 = vmatpush.msra.mxu0 %v138
    %556 = vmatpush.msra.mxu0 %v134
    %557 = vmatpush.msra.mxu0 %v130
    %558 = vmatpush.msra.mxu0 %v126
    %559 = vmatpush.msra.mxu0 %v122
    %560 = vmatpush.msra.mxu0 %v118
    %561 = vmatpush.msra.mxu0 %v114
    %562 = vmatpush.msra.mxu0 %v110
    %563 = vmatpush.msra.mxu0 %v106
    %564 = vmatmul.f32.gmra.mxu0 %v418
    %v565 = vpop.f32.mrf.mxu0
    %v566 = vadd.f32 0.0, %v565
    %567 = vdwg.mxu0
    %568 = vmatpush.msra.mxu0 %v167
    %569 = vmatpush.msra.mxu0 %v163
    %570 = vmatpush.msra.mxu0 %v159
    %571 = vmatpush.msra.mxu0 %v155
    %572 = vmatpush.msra.mxu0 %v151
    %573 = vmatpush.msra.mxu0 %v147
    %574 = vmatpush.msra.mxu0 %v143
    %575 = vmatpush.msra.mxu0 %v139
    %576 = vmatpush.msra.mxu0 %v135
    %577 = vmatpush.msra.mxu0 %v131
    %578 = vmatpush.msra.mxu0 %v127
    %579 = vmatpush.msra.mxu0 %v123
    %580 = vmatpush.msra.mxu0 %v119
    %581 = vmatpush.msra.mxu0 %v115
    %582 = vmatpush.msra.mxu0 %v111
    %583 = vmatpush.msra.mxu0 %v107
    %584 = vmatmul.f32.gmra.mxu0 %v418
    %v585 = vpop.f32.mrf.mxu0
    %v586 = vadd.f32 0.0, %v585
    %587 = vdwg.mxu0
    %v588 = vadd.f32 %v504, %v526
    %v589 = vadd.f32 %v505, %v546
    %v590 = vadd.f32 %v506, %v566
    %v591 = vadd.f32 %v507, %v586
    %v592 = vxor.u32 %v588, 2147483648
    %v593 = vmul.f32 %v592, 1.442695
    %v594 = vpow.pop %v593
    %v595 = vadd.f32 %v594, 1.0
    %v596 = vrcp.pop %v595
    %v597 = vmul.f32 %v595, %v596
    %v598 = vsub.f32 1.0, %v597
    %v599 = vmul.f32 %v596, %v598
    %v600 = vadd.f32 %v596, %v599
    %vm601 = vweird.f32 %v595
    %vm602 = vweird.f32 %v596
    %vm603 = vmor %vm601, %vm602
    %v604 = vsel %vm603, %v596, %v600
    %v605 = vand.u32 2147483647, %v595
    %vm606 = vcmp.eq.f32.partialorder %v605, 8.507059e+37
    %v607 = vand.u32 %v595, 2147483648
    %v608 = vor.u32 1.1754944e-38, %v607
    %v609 = vsel %vm606, %v608, %v604
    %v610 = vmul.f32 1.0, %v609
    %v611 = vxor.u32 %v589, 2147483648
    %v612 = vmul.f32 %v611, 1.442695
    %v613 = vpow.pop %v612
    %v614 = vadd.f32 %v613, 1.0
    %v615 = vrcp.pop %v614
    %v616 = vmul.f32 %v614, %v615
    %v617 = vsub.f32 1.0, %v616
    %v618 = vmul.f32 %v615, %v617
    %v619 = vadd.f32 %v615, %v618
    %vm620 = vweird.f32 %v614
    %vm621 = vweird.f32 %v615
    %vm622 = vmor %vm620, %vm621
    %v623 = vsel %vm622, %v615, %v619
    %v624 = vand.u32 2147483647, %v614
    %vm625 = vcmp.eq.f32.partialorder %v624, 8.507059e+37
    %v626 = vand.u32 %v614, 2147483648
    %v627 = vor.u32 1.1754944e-38, %v626
    %v628 = vsel %vm625, %v627, %v623
    %v629 = vmul.f32 1.0, %v628
    %v630 = vtanh.pop %v590
    %v631 = vxor.u32 %v591, 2147483648
    %v632 = vmul.f32 %v631, 1.442695
    %v633 = vpow.pop %v632
    %v634 = vadd.f32 %v633, 1.0
    %v635 = vrcp.pop %v634
    %v636 = vmul.f32 %v634, %v635
    %v637 = vsub.f32 1.0, %v636
    %v638 = vmul.f32 %v635, %v637
    %v639 = vadd.f32 %v635, %v638
    %vm640 = vweird.f32 %v634
    %vm641 = vweird.f32 %v635
    %vm642 = vmor %vm640, %vm641
    %v643 = vsel %vm642, %v635, %v639
    %v644 = vand.u32 2147483647, %v634
    %vm645 = vcmp.eq.f32.partialorder %v644, 8.507059e+37
    %v646 = vand.u32 %v634, 2147483648
    %v647 = vor.u32 1.1754944e-38, %v646
    %v648 = vsel %vm645, %v647, %v643
    %v649 = vmul.f32 1.0, %v648
    %v650 = vmul.f32 %v629, %v416
    %v651 = vmul.f32 %v610, %v630
    %v652 = vadd.f32 %v650, %v651
    %v653 = vtanh.pop %v652
    %v654 = vmul.f32 %v649, %v653
    %655 = vmatpush.msra.mxu0 %v260
    %656 = vmatpush.msra.mxu0 %v256
    %657 = vmatpush.msra.mxu0 %v252
    %658 = vmatpush.msra.mxu0 %v248
    %659 = vmatpush.msra.mxu0 %v244
    %660 = vmatpush.msra.mxu0 %v240
    %661 = vmatpush.msra.mxu0 %v236
    %662 = vmatpush.msra.mxu0 %v232
    %663 = vmatpush.msra.mxu0 %v228
    %664 = vmatpush.msra.mxu0 %v224
    %665 = vmatpush.msra.mxu0 %v220
    %666 = vmatpush.msra.mxu0 %v216
    %667 = vmatpush.msra.mxu0 %v212
    %668 = vmatpush.msra.mxu0 %v208
    %669 = vmatpush.msra.mxu0 %v204
    %670 = vmatpush.msra.mxu0 %v200
    %671 = vmatmul.f32.gmra.mxu0 %v654
    %v672 = vpop.f32.mrf.mxu0
    %v673 = vadd.f32 %v264, %v672
    %674 = vdwg.mxu0
    %675 = vmatpush.msra.mxu0 %v261
    %676 = vmatpush.msra.mxu0 %v257
    %677 = vmatpush.msra.mxu0 %v253
    %678 = vmatpush.msra.mxu0 %v249
    %679 = vmatpush.msra.mxu0 %v245
    %680 = vmatpush.msra.mxu0 %v241
    %681 = vmatpush.msra.mxu0 %v237
    %682 = vmatpush.msra.mxu0 %v233
    %683 = vmatpush.msra.mxu0 %v229
    %684 = vmatpush.msra.mxu0 %v225
    %685 = vmatpush.msra.mxu0 %v221
    %686 = vmatpush.msra.mxu0 %v217
    %687 = vmatpush.msra.mxu0 %v213
    %688 = vmatpush.msra.mxu0 %v209
    %689 = vmatpush.msra.mxu0 %v205
    %690 = vmatpush.msra.mxu0 %v201
    %691 = vmatmul.f32.gmra.mxu0 %v654
    %v692 = vpop.f32.mrf.mxu0
    %v693 = vadd.f32 %v265, %v692
    %694 = vdwg.mxu0
    %695 = vmatpush.msra.mxu0 %v262
    %696 = vmatpush.msra.mxu0 %v258
    %697 = vmatpush.msra.mxu0 %v254
    %698 = vmatpush.msra.mxu0 %v250
    %699 = vmatpush.msra.mxu0 %v246
    %700 = vmatpush.msra.mxu0 %v242
    %701 = vmatpush.msra.mxu0 %v238
    %702 = vmatpush.msra.mxu0 %v234
    %703 = vmatpush.msra.mxu0 %v230
    %704 = vmatpush.msra.mxu0 %v226
    %705 = vmatpush.msra.mxu0 %v222
    %706 = vmatpush.msra.mxu0 %v218
    %707 = vmatpush.msra.mxu0 %v214
    %708 = vmatpush.msra.mxu0 %v210
    %709 = vmatpush.msra.mxu0 %v206
    %710 = vmatpush.msra.mxu0 %v202
    %711 = vmatmul.f32.gmra.mxu0 %v654
    %v712 = vpop.f32.mrf.mxu0
    %v713 = vadd.f32 %v266, %v712
    %714 = vdwg.mxu0
    %715 = vmatpush.msra.mxu0 %v263
    %716 = vmatpush.msra.mxu0 %v259
    %717 = vmatpush.msra.mxu0 %v255
    %718 = vmatpush.msra.mxu0 %v251
    %719 = vmatpush.msra.mxu0 %v247
    %720 = vmatpush.msra.mxu0 %v243
    %721 = vmatpush.msra.mxu0 %v239
    %722 = vmatpush.msra.mxu0 %v235
    %723 = vmatpush.msra.mxu0 %v231
    %724 = vmatpush.msra.mxu0 %v227
    %725 = vmatpush.msra.mxu0 %v223
    %726 = vmatpush.msra.mxu0 %v219
    %727 = vmatpush.msra.mxu0 %v215
    %728 = vmatpush.msra.mxu0 %v211
    %729 = vmatpush.msra.mxu0 %v207
    %730 = vmatpush.msra.mxu0 %v203
    %731 = vmatmul.f32.gmra.mxu0 %v654
    %v732 = vpop.f32.mrf.mxu0
    %v733 = vadd.f32 %v267, %v732
    %734 = vdwg.mxu0
    %s735 = scalar_lea.vmem [#allocation2], 32
    %736 = vst [vmem:[%s735] sm:$0xff] %v673
    %737 = vst [vmem:[%s735 + $0x8] sm:$0xff] %v693
    %738 = vst [vmem:[%s735 + $0x10] sm:$0xff] %v713
    %739 = vst [vmem:[%s735 + $0x18] sm:$0xff] %v733
    %s740 = scalar_lea.vmem [#allocation4], 64
    %v741 = vld [vmem:[%s740] sm:$0xff]
    %v742 = vld [vmem:[%s740 + $0x8] sm:$0xff]
    %v743 = vld [vmem:[%s740 + $0x10] sm:$0xff]
    %v744 = vld [vmem:[%s740 + $0x18] sm:$0xff]
    %745 = vmatpush.msra.mxu0 %v164
    %746 = vmatpush.msra.mxu0 %v160
    %747 = vmatpush.msra.mxu0 %v156
    %748 = vmatpush.msra.mxu0 %v152
    %749 = vmatpush.msra.mxu0 %v148
    %750 = vmatpush.msra.mxu0 %v144
    %751 = vmatpush.msra.mxu0 %v140
    %752 = vmatpush.msra.mxu0 %v136
    %753 = vmatpush.msra.mxu0 %v132
    %754 = vmatpush.msra.mxu0 %v128
    %755 = vmatpush.msra.mxu0 %v124
    %756 = vmatpush.msra.mxu0 %v120
    %757 = vmatpush.msra.mxu0 %v116
    %758 = vmatpush.msra.mxu0 %v112
    %759 = vmatpush.msra.mxu0 %v108
    %760 = vmatpush.msra.mxu0 %v104
    %761 = vmatmul.f32.gmra.mxu0 %v654
    %v762 = vpop.f32.mrf.mxu0
    %v763 = vadd.f32 0.0, %v762
    %764 = vdwg.mxu0
    %765 = vmatpush.msra.mxu0 %v165
    %766 = vmatpush.msra.mxu0 %v161
    %767 = vmatpush.msra.mxu0 %v157
    %768 = vmatpush.msra.mxu0 %v153
    %769 = vmatpush.msra.mxu0 %v149
    %770 = vmatpush.msra.mxu0 %v145
    %771 = vmatpush.msra.mxu0 %v141
    %772 = vmatpush.msra.mxu0 %v137
    %773 = vmatpush.msra.mxu0 %v133
    %774 = vmatpush.msra.mxu0 %v129
    %775 = vmatpush.msra.mxu0 %v125
    %776 = vmatpush.msra.mxu0 %v121
    %777 = vmatpush.msra.mxu0 %v117
    %778 = vmatpush.msra.mxu0 %v113
    %779 = vmatpush.msra.mxu0 %v109
    %780 = vmatpush.msra.mxu0 %v105
    %781 = vmatmul.f32.gmra.mxu0 %v654
    %v782 = vpop.f32.mrf.mxu0
    %v783 = vadd.f32 0.0, %v782
    %784 = vdwg.mxu0
    %785 = vmatpush.msra.mxu0 %v166
    %786 = vmatpush.msra.mxu0 %v162
    %787 = vmatpush.msra.mxu0 %v158
    %788 = vmatpush.msra.mxu0 %v154
    %789 = vmatpush.msra.mxu0 %v150
    %790 = vmatpush.msra.mxu0 %v146
    %791 = vmatpush.msra.mxu0 %v142
    %792 = vmatpush.msra.mxu0 %v138
    %793 = vmatpush.msra.mxu0 %v134
    %794 = vmatpush.msra.mxu0 %v130
    %795 = vmatpush.msra.mxu0 %v126
    %796 = vmatpush.msra.mxu0 %v122
    %797 = vmatpush.msra.mxu0 %v118
    %798 = vmatpush.msra.mxu0 %v114
    %799 = vmatpush.msra.mxu0 %v110
    %800 = vmatpush.msra.mxu0 %v106
    %801 = vmatmul.f32.gmra.mxu0 %v654
    %v802 = vpop.f32.mrf.mxu0
    %v803 = vadd.f32 0.0, %v802
    %804 = vdwg.mxu0
    %805 = vmatpush.msra.mxu0 %v167
    %806 = vmatpush.msra.mxu0 %v163
    %807 = vmatpush.msra.mxu0 %v159
    %808 = vmatpush.msra.mxu0 %v155
    %809 = vmatpush.msra.mxu0 %v151
    %810 = vmatpush.msra.mxu0 %v147
    %811 = vmatpush.msra.mxu0 %v143
    %812 = vmatpush.msra.mxu0 %v139
    %813 = vmatpush.msra.mxu0 %v135
    %814 = vmatpush.msra.mxu0 %v131
    %815 = vmatpush.msra.mxu0 %v127
    %816 = vmatpush.msra.mxu0 %v123
    %817 = vmatpush.msra.mxu0 %v119
    %818 = vmatpush.msra.mxu0 %v115
    %819 = vmatpush.msra.mxu0 %v111
    %820 = vmatpush.msra.mxu0 %v107
    %821 = vmatmul.f32.gmra.mxu0 %v654
    %v822 = vpop.f32.mrf.mxu0
    %v823 = vadd.f32 0.0, %v822
    %824 = vdwg.mxu0
    %v825 = vadd.f32 %v741, %v763
    %v826 = vadd.f32 %v742, %v783
    %v827 = vadd.f32 %v743, %v803
    %v828 = vadd.f32 %v744, %v823
    %v829 = vxor.u32 %v825, 2147483648
    %v830 = vmul.f32 %v829, 1.442695
    %v831 = vpow.pop %v830
    %v832 = vadd.f32 %v831, 1.0
    %v833 = vrcp.pop %v832
    %v834 = vmul.f32 %v832, %v833
    %v835 = vsub.f32 1.0, %v834
    %v836 = vmul.f32 %v833, %v835
    %v837 = vadd.f32 %v833, %v836
    %vm838 = vweird.f32 %v832
    %vm839 = vweird.f32 %v833
    %vm840 = vmor %vm838, %vm839
    %v841 = vsel %vm840, %v833, %v837
    %v842 = vand.u32 2147483647, %v832
    %vm843 = vcmp.eq.f32.partialorder %v842, 8.507059e+37
    %v844 = vand.u32 %v832, 2147483648
    %v845 = vor.u32 1.1754944e-38, %v844
    %v846 = vsel %vm843, %v845, %v841
    %v847 = vmul.f32 1.0, %v846
    %v848 = vxor.u32 %v826, 2147483648
    %v849 = vmul.f32 %v848, 1.442695
    %v850 = vpow.pop %v849
    %v851 = vadd.f32 %v850, 1.0
    %v852 = vrcp.pop %v851
    %v853 = vmul.f32 %v851, %v852
    %v854 = vsub.f32 1.0, %v853
    %v855 = vmul.f32 %v852, %v854
    %v856 = vadd.f32 %v852, %v855
    %vm857 = vweird.f32 %v851
    %vm858 = vweird.f32 %v852
    %vm859 = vmor %vm857, %vm858
    %v860 = vsel %vm859, %v852, %v856
    %v861 = vand.u32 2147483647, %v851
    %vm862 = vcmp.eq.f32.partialorder %v861, 8.507059e+37
    %v863 = vand.u32 %v851, 2147483648
    %v864 = vor.u32 1.1754944e-38, %v863
    %v865 = vsel %vm862, %v864, %v860
    %v866 = vmul.f32 1.0, %v865
    %v867 = vtanh.pop %v827
    %v868 = vxor.u32 %v828, 2147483648
    %v869 = vmul.f32 %v868, 1.442695
    %v870 = vpow.pop %v869
    %v871 = vadd.f32 %v870, 1.0
    %v872 = vrcp.pop %v871
    %v873 = vmul.f32 %v871, %v872
    %v874 = vsub.f32 1.0, %v873
    %v875 = vmul.f32 %v872, %v874
    %v876 = vadd.f32 %v872, %v875
    %vm877 = vweird.f32 %v871
    %vm878 = vweird.f32 %v872
    %vm879 = vmor %vm877, %vm878
    %v880 = vsel %vm879, %v872, %v876
    %v881 = vand.u32 2147483647, %v871
    %vm882 = vcmp.eq.f32.partialorder %v881, 8.507059e+37
    %v883 = vand.u32 %v871, 2147483648
    %v884 = vor.u32 1.1754944e-38, %v883
    %v885 = vsel %vm882, %v884, %v880
    %v886 = vmul.f32 1.0, %v885
    %v887 = vmul.f32 %v866, %v652
    %v888 = vmul.f32 %v847, %v867
    %v889 = vadd.f32 %v887, %v888
    %v890 = vtanh.pop %v889
    %v891 = vmul.f32 %v886, %v890
    %892 = vmatpush.msra.mxu0 %v260
    %893 = vmatpush.msra.mxu0 %v256
    %894 = vmatpush.msra.mxu0 %v252
    %895 = vmatpush.msra.mxu0 %v248
    %896 = vmatpush.msra.mxu0 %v244
    %897 = vmatpush.msra.mxu0 %v240
    %898 = vmatpush.msra.mxu0 %v236
    %899 = vmatpush.msra.mxu0 %v232
    %900 = vmatpush.msra.mxu0 %v228
    %901 = vmatpush.msra.mxu0 %v224
    %902 = vmatpush.msra.mxu0 %v220
    %903 = vmatpush.msra.mxu0 %v216
    %904 = vmatpush.msra.mxu0 %v212
    %905 = vmatpush.msra.mxu0 %v208
    %906 = vmatpush.msra.mxu0 %v204
    %907 = vmatpush.msra.mxu0 %v200
    %908 = vmatmul.f32.gmra.mxu0 %v891
    %v909 = vpop.f32.mrf.mxu0
    %v910 = vadd.f32 %v264, %v909
    %911 = vdwg.mxu0
    %912 = vmatpush.msra.mxu0 %v261
    %913 = vmatpush.msra.mxu0 %v257
    %914 = vmatpush.msra.mxu0 %v253
    %915 = vmatpush.msra.mxu0 %v249
    %916 = vmatpush.msra.mxu0 %v245
    %917 = vmatpush.msra.mxu0 %v241
    %918 = vmatpush.msra.mxu0 %v237
    %919 = vmatpush.msra.mxu0 %v233
    %920 = vmatpush.msra.mxu0 %v229
    %921 = vmatpush.msra.mxu0 %v225
    %922 = vmatpush.msra.mxu0 %v221
    %923 = vmatpush.msra.mxu0 %v217
    %924 = vmatpush.msra.mxu0 %v213
    %925 = vmatpush.msra.mxu0 %v209
    %926 = vmatpush.msra.mxu0 %v205
    %927 = vmatpush.msra.mxu0 %v201
    %928 = vmatmul.f32.gmra.mxu0 %v891
    %v929 = vpop.f32.mrf.mxu0
    %v930 = vadd.f32 %v265, %v929
    %931 = vdwg.mxu0
    %932 = vmatpush.msra.mxu0 %v262
    %933 = vmatpush.msra.mxu0 %v258
    %934 = vmatpush.msra.mxu0 %v254
    %935 = vmatpush.msra.mxu0 %v250
    %936 = vmatpush.msra.mxu0 %v246
    %937 = vmatpush.msra.mxu0 %v242
    %938 = vmatpush.msra.mxu0 %v238
    %939 = vmatpush.msra.mxu0 %v234
    %940 = vmatpush.msra.mxu0 %v230
    %941 = vmatpush.msra.mxu0 %v226
    %942 = vmatpush.msra.mxu0 %v222
    %943 = vmatpush.msra.mxu0 %v218
    %944 = vmatpush.msra.mxu0 %v214
    %945 = vmatpush.msra.mxu0 %v210
    %946 = vmatpush.msra.mxu0 %v206
    %947 = vmatpush.msra.mxu0 %v202
    %948 = vmatmul.f32.gmra.mxu0 %v891
    %v949 = vpop.f32.mrf.mxu0
    %v950 = vadd.f32 %v266, %v949
    %951 = vdwg.mxu0
    %952 = vmatpush.msra.mxu0 %v263
    %953 = vmatpush.msra.mxu0 %v259
    %954 = vmatpush.msra.mxu0 %v255
    %955 = vmatpush.msra.mxu0 %v251
    %956 = vmatpush.msra.mxu0 %v247
    %957 = vmatpush.msra.mxu0 %v243
    %958 = vmatpush.msra.mxu0 %v239
    %959 = vmatpush.msra.mxu0 %v235
    %960 = vmatpush.msra.mxu0 %v231
    %961 = vmatpush.msra.mxu0 %v227
    %962 = vmatpush.msra.mxu0 %v223
    %963 = vmatpush.msra.mxu0 %v219
    %964 = vmatpush.msra.mxu0 %v215
    %965 = vmatpush.msra.mxu0 %v211
    %966 = vmatpush.msra.mxu0 %v207
    %967 = vmatpush.msra.mxu0 %v203
    %968 = vmatmul.f32.gmra.mxu0 %v891
    %v969 = vpop.f32.mrf.mxu0
    %v970 = vadd.f32 %v267, %v969
    %971 = vdwg.mxu0
    %s972 = scalar_lea.vmem [#allocation2], 64
    %973 = vst [vmem:[%s972] sm:$0xff] %v910
    %974 = vst [vmem:[%s972 + $0x8] sm:$0xff] %v930
    %975 = vst [vmem:[%s972 + $0x10] sm:$0xff] %v950
    %976 = vst [vmem:[%s972 + $0x18] sm:$0xff] %v970
    %s977 = scalar_lea.vmem [#allocation4], 96
    %v978 = vld [vmem:[%s977] sm:$0xff]
    %v979 = vld [vmem:[%s977 + $0x8] sm:$0xff]
    %v980 = vld [vmem:[%s977 + $0x10] sm:$0xff]
    %v981 = vld [vmem:[%s977 + $0x18] sm:$0xff]
    %982 = vmatpush.msra.mxu0 %v164
    %983 = vmatpush.msra.mxu0 %v160
    %984 = vmatpush.msra.mxu0 %v156
    %985 = vmatpush.msra.mxu0 %v152
    %986 = vmatpush.msra.mxu0 %v148
    %987 = vmatpush.msra.mxu0 %v144
    %988 = vmatpush.msra.mxu0 %v140
    %989 = vmatpush.msra.mxu0 %v136
    %990 = vmatpush.msra.mxu0 %v132
    %991 = vmatpush.msra.mxu0 %v128
    %992 = vmatpush.msra.mxu0 %v124
    %993 = vmatpush.msra.mxu0 %v120
    %994 = vmatpush.msra.mxu0 %v116
    %995 = vmatpush.msra.mxu0 %v112
    %996 = vmatpush.msra.mxu0 %v108
    %997 = vmatpush.msra.mxu0 %v104
    %998 = vmatmul.f32.gmra.mxu0 %v891
    %v999 = vpop.f32.mrf.mxu0
    %v1000 = vadd.f32 0.0, %v999
    %1001 = vdwg.mxu0
    %1002 = vmatpush.msra.mxu0 %v165
    %1003 = vmatpush.msra.mxu0 %v161
    %1004 = vmatpush.msra.mxu0 %v157
    %1005 = vmatpush.msra.mxu0 %v153
    %1006 = vmatpush.msra.mxu0 %v149
    %1007 = vmatpush.msra.mxu0 %v145
    %1008 = vmatpush.msra.mxu0 %v141
    %1009 = vmatpush.msra.mxu0 %v137
    %1010 = vmatpush.msra.mxu0 %v133
    %1011 = vmatpush.msra.mxu0 %v129
    %1012 = vmatpush.msra.mxu0 %v125
    %1013 = vmatpush.msra.mxu0 %v121
    %1014 = vmatpush.msra.mxu0 %v117
    %1015 = vmatpush.msra.mxu0 %v113
    %1016 = vmatpush.msra.mxu0 %v109
    %1017 = vmatpush.msra.mxu0 %v105
    %1018 = vmatmul.f32.gmra.mxu0 %v891
    %v1019 = vpop.f32.mrf.mxu0
    %v1020 = vadd.f32 0.0, %v1019
    %1021 = vdwg.mxu0
    %1022 = vmatpush.msra.mxu0 %v166
    %1023 = vmatpush.msra.mxu0 %v162
    %1024 = vmatpush.msra.mxu0 %v158
    %1025 = vmatpush.msra.mxu0 %v154
    %1026 = vmatpush.msra.mxu0 %v150
    %1027 = vmatpush.msra.mxu0 %v146
    %1028 = vmatpush.msra.mxu0 %v142
    %1029 = vmatpush.msra.mxu0 %v138
    %1030 = vmatpush.msra.mxu0 %v134
    %1031 = vmatpush.msra.mxu0 %v130
    %1032 = vmatpush.msra.mxu0 %v126
    %1033 = vmatpush.msra.mxu0 %v122
    %1034 = vmatpush.msra.mxu0 %v118
    %1035 = vmatpush.msra.mxu0 %v114
    %1036 = vmatpush.msra.mxu0 %v110
    %1037 = vmatpush.msra.mxu0 %v106
    %1038 = vmatmul.f32.gmra.mxu0 %v891
    %v1039 = vpop.f32.mrf.mxu0
    %v1040 = vadd.f32 0.0, %v1039
    %1041 = vdwg.mxu0
    %1042 = vmatpush.msra.mxu0 %v167
    %1043 = vmatpush.msra.mxu0 %v163
    %1044 = vmatpush.msra.mxu0 %v159
    %1045 = vmatpush.msra.mxu0 %v155
    %1046 = vmatpush.msra.mxu0 %v151
    %1047 = vmatpush.msra.mxu0 %v147
    %1048 = vmatpush.msra.mxu0 %v143
    %1049 = vmatpush.msra.mxu0 %v139
    %1050 = vmatpush.msra.mxu0 %v135
    %1051 = vmatpush.msra.mxu0 %v131
    %1052 = vmatpush.msra.mxu0 %v127
    %1053 = vmatpush.msra.mxu0 %v123
    %1054 = vmatpush.msra.mxu0 %v119
    %1055 = vmatpush.msra.mxu0 %v115
    %1056 = vmatpush.msra.mxu0 %v111
    %1057 = vmatpush.msra.mxu0 %v107
    %1058 = vmatmul.f32.gmra.mxu0 %v891
    %v1059 = vpop.f32.mrf.mxu0
    %v1060 = vadd.f32 0.0, %v1059
    %1061 = vdwg.mxu0
    %v1062 = vadd.f32 %v978, %v1000
    %v1063 = vadd.f32 %v979, %v1020
    %v1064 = vadd.f32 %v980, %v1040
    %v1065 = vadd.f32 %v981, %v1060
    %v1066 = vxor.u32 %v1062, 2147483648
    %v1067 = vmul.f32 %v1066, 1.442695
    %v1068 = vpow.pop %v1067
    %v1069 = vadd.f32 %v1068, 1.0
    %v1070 = vrcp.pop %v1069
    %v1071 = vmul.f32 %v1069, %v1070
    %v1072 = vsub.f32 1.0, %v1071
    %v1073 = vmul.f32 %v1070, %v1072
    %v1074 = vadd.f32 %v1070, %v1073
    %vm1075 = vweird.f32 %v1069
    %vm1076 = vweird.f32 %v1070
    %vm1077 = vmor %vm1075, %vm1076
    %v1078 = vsel %vm1077, %v1070, %v1074
    %v1079 = vand.u32 2147483647, %v1069
    %vm1080 = vcmp.eq.f32.partialorder %v1079, 8.507059e+37
    %v1081 = vand.u32 %v1069, 2147483648
    %v1082 = vor.u32 1.1754944e-38, %v1081
    %v1083 = vsel %vm1080, %v1082, %v1078
    %v1084 = vmul.f32 1.0, %v1083
    %v1085 = vxor.u32 %v1063, 2147483648
    %v1086 = vmul.f32 %v1085, 1.442695
    %v1087 = vpow.pop %v1086
    %v1088 = vadd.f32 %v1087, 1.0
    %v1089 = vrcp.pop %v1088
    %v1090 = vmul.f32 %v1088, %v1089
    %v1091 = vsub.f32 1.0, %v1090
    %v1092 = vmul.f32 %v1089, %v1091
    %v1093 = vadd.f32 %v1089, %v1092
    %vm1094 = vweird.f32 %v1088
    %vm1095 = vweird.f32 %v1089
    %vm1096 = vmor %vm1094, %vm1095
    %v1097 = vsel %vm1096, %v1089, %v1093
    %v1098 = vand.u32 2147483647, %v1088
    %vm1099 = vcmp.eq.f32.partialorder %v1098, 8.507059e+37
    %v1100 = vand.u32 %v1088, 2147483648
    %v1101 = vor.u32 1.1754944e-38, %v1100
    %v1102 = vsel %vm1099, %v1101, %v1097
    %v1103 = vmul.f32 1.0, %v1102
    %v1104 = vtanh.pop %v1064
    %v1105 = vxor.u32 %v1065, 2147483648
    %v1106 = vmul.f32 %v1105, 1.442695
    %v1107 = vpow.pop %v1106
    %v1108 = vadd.f32 %v1107, 1.0
    %v1109 = vrcp.pop %v1108
    %v1110 = vmul.f32 %v1108, %v1109
    %v1111 = vsub.f32 1.0, %v1110
    %v1112 = vmul.f32 %v1109, %v1111
    %v1113 = vadd.f32 %v1109, %v1112
    %vm1114 = vweird.f32 %v1108
    %vm1115 = vweird.f32 %v1109
    %vm1116 = vmor %vm1114, %vm1115
    %v1117 = vsel %vm1116, %v1109, %v1113
    %v1118 = vand.u32 2147483647, %v1108
    %vm1119 = vcmp.eq.f32.partialorder %v1118, 8.507059e+37
    %v1120 = vand.u32 %v1108, 2147483648
    %v1121 = vor.u32 1.1754944e-38, %v1120
    %v1122 = vsel %vm1119, %v1121, %v1117
    %v1123 = vmul.f32 1.0, %v1122
    %v1124 = vmul.f32 %v1103, %v889
    %v1125 = vmul.f32 %v1084, %v1104
    %v1126 = vadd.f32 %v1124, %v1125
    %v1127 = vtanh.pop %v1126
    %v1128 = vmul.f32 %v1123, %v1127
    %1129 = vmatpush.msra.mxu0 %v260
    %1130 = vmatpush.msra.mxu0 %v256
    %1131 = vmatpush.msra.mxu0 %v252
    %1132 = vmatpush.msra.mxu0 %v248
    %1133 = vmatpush.msra.mxu0 %v244
    %1134 = vmatpush.msra.mxu0 %v240
    %1135 = vmatpush.msra.mxu0 %v236
    %1136 = vmatpush.msra.mxu0 %v232
    %1137 = vmatpush.msra.mxu0 %v228
    %1138 = vmatpush.msra.mxu0 %v224
    %1139 = vmatpush.msra.mxu0 %v220
    %1140 = vmatpush.msra.mxu0 %v216
    %1141 = vmatpush.msra.mxu0 %v212
    %1142 = vmatpush.msra.mxu0 %v208
    %1143 = vmatpush.msra.mxu0 %v204
    %1144 = vmatpush.msra.mxu0 %v200
    %1145 = vmatmul.f32.gmra.mxu0 %v1128
    %v1146 = vpop.f32.mrf.mxu0
    %v1147 = vadd.f32 %v264, %v1146
    %1148 = vdwg.mxu0
    %1149 = vmatpush.msra.mxu0 %v261
    %1150 = vmatpush.msra.mxu0 %v257
    %1151 = vmatpush.msra.mxu0 %v253
    %1152 = vmatpush.msra.mxu0 %v249
    %1153 = vmatpush.msra.mxu0 %v245
    %1154 = vmatpush.msra.mxu0 %v241
    %1155 = vmatpush.msra.mxu0 %v237
    %1156 = vmatpush.msra.mxu0 %v233
    %1157 = vmatpush.msra.mxu0 %v229
    %1158 = vmatpush.msra.mxu0 %v225
    %1159 = vmatpush.msra.mxu0 %v221
    %1160 = vmatpush.msra.mxu0 %v217
    %1161 = vmatpush.msra.mxu0 %v213
    %1162 = vmatpush.msra.mxu0 %v209
    %1163 = vmatpush.msra.mxu0 %v205
    %1164 = vmatpush.msra.mxu0 %v201
    %1165 = vmatmul.f32.gmra.mxu0 %v1128
    %v1166 = vpop.f32.mrf.mxu0
    %v1167 = vadd.f32 %v265, %v1166
    %1168 = vdwg.mxu0
    %1169 = vmatpush.msra.mxu0 %v262
    %1170 = vmatpush.msra.mxu0 %v258
    %1171 = vmatpush.msra.mxu0 %v254
    %1172 = vmatpush.msra.mxu0 %v250
    %1173 = vmatpush.msra.mxu0 %v246
    %1174 = vmatpush.msra.mxu0 %v242
    %1175 = vmatpush.msra.mxu0 %v238
    %1176 = vmatpush.msra.mxu0 %v234
    %1177 = vmatpush.msra.mxu0 %v230
    %1178 = vmatpush.msra.mxu0 %v226
    %1179 = vmatpush.msra.mxu0 %v222
    %1180 = vmatpush.msra.mxu0 %v218
    %1181 = vmatpush.msra.mxu0 %v214
    %1182 = vmatpush.msra.mxu0 %v210
    %1183 = vmatpush.msra.mxu0 %v206
    %1184 = vmatpush.msra.mxu0 %v202
    %1185 = vmatmul.f32.gmra.mxu0 %v1128
    %v1186 = vpop.f32.mrf.mxu0
    %v1187 = vadd.f32 %v266, %v1186
    %1188 = vdwg.mxu0
    %1189 = vmatpush.msra.mxu0 %v263
    %1190 = vmatpush.msra.mxu0 %v259
    %1191 = vmatpush.msra.mxu0 %v255
    %1192 = vmatpush.msra.mxu0 %v251
    %1193 = vmatpush.msra.mxu0 %v247
    %1194 = vmatpush.msra.mxu0 %v243
    %1195 = vmatpush.msra.mxu0 %v239
    %1196 = vmatpush.msra.mxu0 %v235
    %1197 = vmatpush.msra.mxu0 %v231
    %1198 = vmatpush.msra.mxu0 %v227
    %1199 = vmatpush.msra.mxu0 %v223
    %1200 = vmatpush.msra.mxu0 %v219
    %1201 = vmatpush.msra.mxu0 %v215
    %1202 = vmatpush.msra.mxu0 %v211
    %1203 = vmatpush.msra.mxu0 %v207
    %1204 = vmatpush.msra.mxu0 %v203
    %1205 = vmatmul.f32.gmra.mxu0 %v1128
    %v1206 = vpop.f32.mrf.mxu0
    %v1207 = vadd.f32 %v267, %v1206
    %1208 = vdwg.mxu0
    %s1209 = scalar_lea.vmem [#allocation2], 96
    %1210 = vst [vmem:[%s1209] sm:$0xff] %v1147
    %1211 = vst [vmem:[%s1209 + $0x8] sm:$0xff] %v1167
    %1212 = vst [vmem:[%s1209 + $0x10] sm:$0xff] %v1187
    %1213 = vst [vmem:[%s1209 + $0x18] sm:$0xff] %v1207
    %s1214 = scalar_lea.vmem [#allocation4], 128
    %v1215 = vld [vmem:[%s1214] sm:$0xff]
    %v1216 = vld [vmem:[%s1214 + $0x8] sm:$0xff]
    %v1217 = vld [vmem:[%s1214 + $0x10] sm:$0xff]
    %v1218 = vld [vmem:[%s1214 + $0x18] sm:$0xff]
    %1219 = vmatpush.msra.mxu0 %v164
    %1220 = vmatpush.msra.mxu0 %v160
    %1221 = vmatpush.msra.mxu0 %v156
    %1222 = vmatpush.msra.mxu0 %v152
    %1223 = vmatpush.msra.mxu0 %v148
    %1224 = vmatpush.msra.mxu0 %v144
    %1225 = vmatpush.msra.mxu0 %v140
    %1226 = vmatpush.msra.mxu0 %v136
    %1227 = vmatpush.msra.mxu0 %v132
    %1228 = vmatpush.msra.mxu0 %v128
    %1229 = vmatpush.msra.mxu0 %v124
    %1230 = vmatpush.msra.mxu0 %v120
    %1231 = vmatpush.msra.mxu0 %v116
    %1232 = vmatpush.msra.mxu0 %v112
    %1233 = vmatpush.msra.mxu0 %v108
    %1234 = vmatpush.msra.mxu0 %v104
    %1235 = vmatmul.f32.gmra.mxu0 %v1128
    %v1236 = vpop.f32.mrf.mxu0
    %v1237 = vadd.f32 0.0, %v1236
    %1238 = vdwg.mxu0
    %1239 = vmatpush.msra.mxu0 %v165
    %1240 = vmatpush.msra.mxu0 %v161
    %1241 = vmatpush.msra.mxu0 %v157
    %1242 = vmatpush.msra.mxu0 %v153
    %1243 = vmatpush.msra.mxu0 %v149
    %1244 = vmatpush.msra.mxu0 %v145
    %1245 = vmatpush.msra.mxu0 %v141
    %1246 = vmatpush.msra.mxu0 %v137
    %1247 = vmatpush.msra.mxu0 %v133
    %1248 = vmatpush.msra.mxu0 %v129
    %1249 = vmatpush.msra.mxu0 %v125
    %1250 = vmatpush.msra.mxu0 %v121
    %1251 = vmatpush.msra.mxu0 %v117
    %1252 = vmatpush.msra.mxu0 %v113
    %1253 = vmatpush.msra.mxu0 %v109
    %1254 = vmatpush.msra.mxu0 %v105
    %1255 = vmatmul.f32.gmra.mxu0 %v1128
    %v1256 = vpop.f32.mrf.mxu0
    %v1257 = vadd.f32 0.0, %v1256
    %1258 = vdwg.mxu0
    %1259 = vmatpush.msra.mxu0 %v166
    %1260 = vmatpush.msra.mxu0 %v162
    %1261 = vmatpush.msra.mxu0 %v158
    %1262 = vmatpush.msra.mxu0 %v154
    %1263 = vmatpush.msra.mxu0 %v150
    %1264 = vmatpush.msra.mxu0 %v146
    %1265 = vmatpush.msra.mxu0 %v142
    %1266 = vmatpush.msra.mxu0 %v138
    %1267 = vmatpush.msra.mxu0 %v134
    %1268 = vmatpush.msra.mxu0 %v130
    %1269 = vmatpush.msra.mxu0 %v126
    %1270 = vmatpush.msra.mxu0 %v122
    %1271 = vmatpush.msra.mxu0 %v118
    %1272 = vmatpush.msra.mxu0 %v114
    %1273 = vmatpush.msra.mxu0 %v110
    %1274 = vmatpush.msra.mxu0 %v106
    %1275 = vmatmul.f32.gmra.mxu0 %v1128
    %v1276 = vpop.f32.mrf.mxu0
    %v1277 = vadd.f32 0.0, %v1276
    %1278 = vdwg.mxu0
    %1279 = vmatpush.msra.mxu0 %v167
    %1280 = vmatpush.msra.mxu0 %v163
    %1281 = vmatpush.msra.mxu0 %v159
    %1282 = vmatpush.msra.mxu0 %v155
    %1283 = vmatpush.msra.mxu0 %v151
    %1284 = vmatpush.msra.mxu0 %v147
    %1285 = vmatpush.msra.mxu0 %v143
    %1286 = vmatpush.msra.mxu0 %v139
    %1287 = vmatpush.msra.mxu0 %v135
    %1288 = vmatpush.msra.mxu0 %v131
    %1289 = vmatpush.msra.mxu0 %v127
    %1290 = vmatpush.msra.mxu0 %v123
    %1291 = vmatpush.msra.mxu0 %v119
    %1292 = vmatpush.msra.mxu0 %v115
    %1293 = vmatpush.msra.mxu0 %v111
    %1294 = vmatpush.msra.mxu0 %v107
    %1295 = vmatmul.f32.gmra.mxu0 %v1128
    %v1296 = vpop.f32.mrf.mxu0
    %v1297 = vadd.f32 0.0, %v1296
    %1298 = vdwg.mxu0
    %v1299 = vadd.f32 %v1215, %v1237
    %v1300 = vadd.f32 %v1216, %v1257
    %v1301 = vadd.f32 %v1217, %v1277
    %v1302 = vadd.f32 %v1218, %v1297
    %v1303 = vxor.u32 %v1299, 2147483648
    %v1304 = vmul.f32 %v1303, 1.442695
    %v1305 = vpow.pop %v1304
    %v1306 = vadd.f32 %v1305, 1.0
    %v1307 = vrcp.pop %v1306
    %v1308 = vmul.f32 %v1306, %v1307
    %v1309 = vsub.f32 1.0, %v1308
    %v1310 = vmul.f32 %v1307, %v1309
    %v1311 = vadd.f32 %v1307, %v1310
    %vm1312 = vweird.f32 %v1306
    %vm1313 = vweird.f32 %v1307
    %vm1314 = vmor %vm1312, %vm1313
    %v1315 = vsel %vm1314, %v1307, %v1311
    %v1316 = vand.u32 2147483647, %v1306
    %vm1317 = vcmp.eq.f32.partialorder %v1316, 8.507059e+37
    %v1318 = vand.u32 %v1306, 2147483648
    %v1319 = vor.u32 1.1754944e-38, %v1318
    %v1320 = vsel %vm1317, %v1319, %v1315
    %v1321 = vmul.f32 1.0, %v1320
    %v1322 = vxor.u32 %v1300, 2147483648
    %v1323 = vmul.f32 %v1322, 1.442695
    %v1324 = vpow.pop %v1323
    %v1325 = vadd.f32 %v1324, 1.0
    %v1326 = vrcp.pop %v1325
    %v1327 = vmul.f32 %v1325, %v1326
    %v1328 = vsub.f32 1.0, %v1327
    %v1329 = vmul.f32 %v1326, %v1328
    %v1330 = vadd.f32 %v1326, %v1329
    %vm1331 = vweird.f32 %v1325
    %vm1332 = vweird.f32 %v1326
    %vm1333 = vmor %vm1331, %vm1332
    %v1334 = vsel %vm1333, %v1326, %v1330
    %v1335 = vand.u32 2147483647, %v1325
    %vm1336 = vcmp.eq.f32.partialorder %v1335, 8.507059e+37
    %v1337 = vand.u32 %v1325, 2147483648
    %v1338 = vor.u32 1.1754944e-38, %v1337
    %v1339 = vsel %vm1336, %v1338, %v1334
    %v1340 = vmul.f32 1.0, %v1339
    %v1341 = vtanh.pop %v1301
    %v1342 = vxor.u32 %v1302, 2147483648
    %v1343 = vmul.f32 %v1342, 1.442695
    %v1344 = vpow.pop %v1343
    %v1345 = vadd.f32 %v1344, 1.0
    %v1346 = vrcp.pop %v1345
    %v1347 = vmul.f32 %v1345, %v1346
    %v1348 = vsub.f32 1.0, %v1347
    %v1349 = vmul.f32 %v1346, %v1348
    %v1350 = vadd.f32 %v1346, %v1349
    %vm1351 = vweird.f32 %v1345
    %vm1352 = vweird.f32 %v1346
    %vm1353 = vmor %vm1351, %vm1352
    %v1354 = vsel %vm1353, %v1346, %v1350
    %v1355 = vand.u32 2147483647, %v1345
    %vm1356 = vcmp.eq.f32.partialorder %v1355, 8.507059e+37
    %v1357 = vand.u32 %v1345, 2147483648
    %v1358 = vor.u32 1.1754944e-38, %v1357
    %v1359 = vsel %vm1356, %v1358, %v1354
    %v1360 = vmul.f32 1.0, %v1359
    %v1361 = vmul.f32 %v1340, %v1126
    %v1362 = vmul.f32 %v1321, %v1341
    %v1363 = vadd.f32 %v1361, %v1362
    %v1364 = vtanh.pop %v1363
    %v1365 = vmul.f32 %v1360, %v1364
    %1366 = vmatpush.msra.mxu0 %v260
    %1367 = vmatpush.msra.mxu0 %v256
    %1368 = vmatpush.msra.mxu0 %v252
    %1369 = vmatpush.msra.mxu0 %v248
    %1370 = vmatpush.msra.mxu0 %v244
    %1371 = vmatpush.msra.mxu0 %v240
    %1372 = vmatpush.msra.mxu0 %v236
    %1373 = vmatpush.msra.mxu0 %v232
    %1374 = vmatpush.msra.mxu0 %v228
    %1375 = vmatpush.msra.mxu0 %v224
    %1376 = vmatpush.msra.mxu0 %v220
    %1377 = vmatpush.msra.mxu0 %v216
    %1378 = vmatpush.msra.mxu0 %v212
    %1379 = vmatpush.msra.mxu0 %v208
    %1380 = vmatpush.msra.mxu0 %v204
    %1381 = vmatpush.msra.mxu0 %v200
    %1382 = vmatmul.f32.gmra.mxu0 %v1365
    %v1383 = vpop.f32.mrf.mxu0
    %v1384 = vadd.f32 %v264, %v1383
    %1385 = vdwg.mxu0
    %1386 = vmatpush.msra.mxu0 %v261
    %1387 = vmatpush.msra.mxu0 %v257
    %1388 = vmatpush.msra.mxu0 %v253
    %1389 = vmatpush.msra.mxu0 %v249
    %1390 = vmatpush.msra.mxu0 %v245
    %1391 = vmatpush.msra.mxu0 %v241
    %1392 = vmatpush.msra.mxu0 %v237
    %1393 = vmatpush.msra.mxu0 %v233
    %1394 = vmatpush.msra.mxu0 %v229
    %1395 = vmatpush.msra.mxu0 %v225
    %1396 = vmatpush.msra.mxu0 %v221
    %1397 = vmatpush.msra.mxu0 %v217
    %1398 = vmatpush.msra.mxu0 %v213
    %1399 = vmatpush.msra.mxu0 %v209
    %1400 = vmatpush.msra.mxu0 %v205
    %1401 = vmatpush.msra.mxu0 %v201
    %1402 = vmatmul.f32.gmra.mxu0 %v1365
    %v1403 = vpop.f32.mrf.mxu0
    %v1404 = vadd.f32 %v265, %v1403
    %1405 = vdwg.mxu0
    %1406 = vmatpush.msra.mxu0 %v262
    %1407 = vmatpush.msra.mxu0 %v258
    %1408 = vmatpush.msra.mxu0 %v254
    %1409 = vmatpush.msra.mxu0 %v250
    %1410 = vmatpush.msra.mxu0 %v246
    %1411 = vmatpush.msra.mxu0 %v242
    %1412 = vmatpush.msra.mxu0 %v238
    %1413 = vmatpush.msra.mxu0 %v234
    %1414 = vmatpush.msra.mxu0 %v230
    %1415 = vmatpush.msra.mxu0 %v226
    %1416 = vmatpush.msra.mxu0 %v222
    %1417 = vmatpush.msra.mxu0 %v218
    %1418 = vmatpush.msra.mxu0 %v214
    %1419 = vmatpush.msra.mxu0 %v210
    %1420 = vmatpush.msra.mxu0 %v206
    %1421 = vmatpush.msra.mxu0 %v202
    %1422 = vmatmul.f32.gmra.mxu0 %v1365
    %v1423 = vpop.f32.mrf.mxu0
    %v1424 = vadd.f32 %v266, %v1423
    %1425 = vdwg.mxu0
    %1426 = vmatpush.msra.mxu0 %v263
    %1427 = vmatpush.msra.mxu0 %v259
    %1428 = vmatpush.msra.mxu0 %v255
    %1429 = vmatpush.msra.mxu0 %v251
    %1430 = vmatpush.msra.mxu0 %v247
    %1431 = vmatpush.msra.mxu0 %v243
    %1432 = vmatpush.msra.mxu0 %v239
    %1433 = vmatpush.msra.mxu0 %v235
    %1434 = vmatpush.msra.mxu0 %v231
    %1435 = vmatpush.msra.mxu0 %v227
    %1436 = vmatpush.msra.mxu0 %v223
    %1437 = vmatpush.msra.mxu0 %v219
    %1438 = vmatpush.msra.mxu0 %v215
    %1439 = vmatpush.msra.mxu0 %v211
    %1440 = vmatpush.msra.mxu0 %v207
    %1441 = vmatpush.msra.mxu0 %v203
    %1442 = vmatmul.f32.gmra.mxu0 %v1365
    %v1443 = vpop.f32.mrf.mxu0
    %v1444 = vadd.f32 %v267, %v1443
    %1445 = vdwg.mxu0
    %s1446 = scalar_lea.vmem [#allocation2], 128
    %1447 = vst [vmem:[%s1446] sm:$0xff] %v1384
    %1448 = vst [vmem:[%s1446 + $0x8] sm:$0xff] %v1404
    %1449 = vst [vmem:[%s1446 + $0x10] sm:$0xff] %v1424
    %1450 = vst [vmem:[%s1446 + $0x18] sm:$0xff] %v1444
    %s1451 = scalar_lea.vmem [#allocation4], 160
    %v1452 = vld [vmem:[%s1451] sm:$0xff]
    %v1453 = vld [vmem:[%s1451 + $0x8] sm:$0xff]
    %v1454 = vld [vmem:[%s1451 + $0x10] sm:$0xff]
    %v1455 = vld [vmem:[%s1451 + $0x18] sm:$0xff]
    %1456 = vmatpush.msra.mxu0 %v164
    %1457 = vmatpush.msra.mxu0 %v160
    %1458 = vmatpush.msra.mxu0 %v156
    %1459 = vmatpush.msra.mxu0 %v152
    %1460 = vmatpush.msra.mxu0 %v148
    %1461 = vmatpush.msra.mxu0 %v144
    %1462 = vmatpush.msra.mxu0 %v140
    %1463 = vmatpush.msra.mxu0 %v136
    %1464 = vmatpush.msra.mxu0 %v132
    %1465 = vmatpush.msra.mxu0 %v128
    %1466 = vmatpush.msra.mxu0 %v124
    %1467 = vmatpush.msra.mxu0 %v120
    %1468 = vmatpush.msra.mxu0 %v116
    %1469 = vmatpush.msra.mxu0 %v112
    %1470 = vmatpush.msra.mxu0 %v108
    %1471 = vmatpush.msra.mxu0 %v104
    %1472 = vmatmul.f32.gmra.mxu0 %v1365
    %v1473 = vpop.f32.mrf.mxu0
    %v1474 = vadd.f32 0.0, %v1473
    %1475 = vdwg.mxu0
    %1476 = vmatpush.msra.mxu0 %v165
    %1477 = vmatpush.msra.mxu0 %v161
    %1478 = vmatpush.msra.mxu0 %v157
    %1479 = vmatpush.msra.mxu0 %v153
    %1480 = vmatpush.msra.mxu0 %v149
    %1481 = vmatpush.msra.mxu0 %v145
    %1482 = vmatpush.msra.mxu0 %v141
    %1483 = vmatpush.msra.mxu0 %v137
    %1484 = vmatpush.msra.mxu0 %v133
    %1485 = vmatpush.msra.mxu0 %v129
    %1486 = vmatpush.msra.mxu0 %v125
    %1487 = vmatpush.msra.mxu0 %v121
    %1488 = vmatpush.msra.mxu0 %v117
    %1489 = vmatpush.msra.mxu0 %v113
    %1490 = vmatpush.msra.mxu0 %v109
    %1491 = vmatpush.msra.mxu0 %v105
    %1492 = vmatmul.f32.gmra.mxu0 %v1365
    %v1493 = vpop.f32.mrf.mxu0
    %v1494 = vadd.f32 0.0, %v1493
    %1495 = vdwg.mxu0
    %1496 = vmatpush.msra.mxu0 %v166
    %1497 = vmatpush.msra.mxu0 %v162
    %1498 = vmatpush.msra.mxu0 %v158
    %1499 = vmatpush.msra.mxu0 %v154
    %1500 = vmatpush.msra.mxu0 %v150
    %1501 = vmatpush.msra.mxu0 %v146
    %1502 = vmatpush.msra.mxu0 %v142
    %1503 = vmatpush.msra.mxu0 %v138
    %1504 = vmatpush.msra.mxu0 %v134
    %1505 = vmatpush.msra.mxu0 %v130
    %1506 = vmatpush.msra.mxu0 %v126
    %1507 = vmatpush.msra.mxu0 %v122
    %1508 = vmatpush.msra.mxu0 %v118
    %1509 = vmatpush.msra.mxu0 %v114
    %1510 = vmatpush.msra.mxu0 %v110
    %1511 = vmatpush.msra.mxu0 %v106
    %1512 = vmatmul.f32.gmra.mxu0 %v1365
    %v1513 = vpop.f32.mrf.mxu0
    %v1514 = vadd.f32 0.0, %v1513
    %1515 = vdwg.mxu0
    %1516 = vmatpush.msra.mxu0 %v167
    %1517 = vmatpush.msra.mxu0 %v163
    %1518 = vmatpush.msra.mxu0 %v159
    %1519 = vmatpush.msra.mxu0 %v155
    %1520 = vmatpush.msra.mxu0 %v151
    %1521 = vmatpush.msra.mxu0 %v147
    %1522 = vmatpush.msra.mxu0 %v143
    %1523 = vmatpush.msra.mxu0 %v139
    %1524 = vmatpush.msra.mxu0 %v135
    %1525 = vmatpush.msra.mxu0 %v131
    %1526 = vmatpush.msra.mxu0 %v127
    %1527 = vmatpush.msra.mxu0 %v123
    %1528 = vmatpush.msra.mxu0 %v119
    %1529 = vmatpush.msra.mxu0 %v115
    %1530 = vmatpush.msra.mxu0 %v111
    %1531 = vmatpush.msra.mxu0 %v107
    %1532 = vmatmul.f32.gmra.mxu0 %v1365
    %v1533 = vpop.f32.mrf.mxu0
    %v1534 = vadd.f32 0.0, %v1533
    %1535 = vdwg.mxu0
    %v1536 = vadd.f32 %v1452, %v1474
    %v1537 = vadd.f32 %v1453, %v1494
    %v1538 = vadd.f32 %v1454, %v1514
    %v1539 = vadd.f32 %v1455, %v1534
    %v1540 = vxor.u32 %v1536, 2147483648
    %v1541 = vmul.f32 %v1540, 1.442695
    %v1542 = vpow.pop %v1541
    %v1543 = vadd.f32 %v1542, 1.0
    %v1544 = vrcp.pop %v1543
    %v1545 = vmul.f32 %v1543, %v1544
    %v1546 = vsub.f32 1.0, %v1545
    %v1547 = vmul.f32 %v1544, %v1546
    %v1548 = vadd.f32 %v1544, %v1547
    %vm1549 = vweird.f32 %v1543
    %vm1550 = vweird.f32 %v1544
    %vm1551 = vmor %vm1549, %vm1550
    %v1552 = vsel %vm1551, %v1544, %v1548
    %v1553 = vand.u32 2147483647, %v1543
    %vm1554 = vcmp.eq.f32.partialorder %v1553, 8.507059e+37
    %v1555 = vand.u32 %v1543, 2147483648
    %v1556 = vor.u32 1.1754944e-38, %v1555
    %v1557 = vsel %vm1554, %v1556, %v1552
    %v1558 = vmul.f32 1.0, %v1557
    %v1559 = vxor.u32 %v1537, 2147483648
    %v1560 = vmul.f32 %v1559, 1.442695
    %v1561 = vpow.pop %v1560
    %v1562 = vadd.f32 %v1561, 1.0
    %v1563 = vrcp.pop %v1562
    %v1564 = vmul.f32 %v1562, %v1563
    %v1565 = vsub.f32 1.0, %v1564
    %v1566 = vmul.f32 %v1563, %v1565
    %v1567 = vadd.f32 %v1563, %v1566
    %vm1568 = vweird.f32 %v1562
    %vm1569 = vweird.f32 %v1563
    %vm1570 = vmor %vm1568, %vm1569
    %v1571 = vsel %vm1570, %v1563, %v1567
    %v1572 = vand.u32 2147483647, %v1562
    %vm1573 = vcmp.eq.f32.partialorder %v1572, 8.507059e+37
    %v1574 = vand.u32 %v1562, 2147483648
    %v1575 = vor.u32 1.1754944e-38, %v1574
    %v1576 = vsel %vm1573, %v1575, %v1571
    %v1577 = vmul.f32 1.0, %v1576
    %v1578 = vtanh.pop %v1538
    %v1579 = vxor.u32 %v1539, 2147483648
    %v1580 = vmul.f32 %v1579, 1.442695
    %v1581 = vpow.pop %v1580
    %v1582 = vadd.f32 %v1581, 1.0
    %v1583 = vrcp.pop %v1582
    %v1584 = vmul.f32 %v1582, %v1583
    %v1585 = vsub.f32 1.0, %v1584
    %v1586 = vmul.f32 %v1583, %v1585
    %v1587 = vadd.f32 %v1583, %v1586
    %vm1588 = vweird.f32 %v1582
    %vm1589 = vweird.f32 %v1583
    %vm1590 = vmor %vm1588, %vm1589
    %v1591 = vsel %vm1590, %v1583, %v1587
    %v1592 = vand.u32 2147483647, %v1582
    %vm1593 = vcmp.eq.f32.partialorder %v1592, 8.507059e+37
    %v1594 = vand.u32 %v1582, 2147483648
    %v1595 = vor.u32 1.1754944e-38, %v1594
    %v1596 = vsel %vm1593, %v1595, %v1591
    %v1597 = vmul.f32 1.0, %v1596
    %v1598 = vmul.f32 %v1577, %v1363
    %v1599 = vmul.f32 %v1558, %v1578
    %v1600 = vadd.f32 %v1598, %v1599
    %v1601 = vtanh.pop %v1600
    %v1602 = vmul.f32 %v1597, %v1601
    %1603 = vmatpush.msra.mxu0 %v260
    %1604 = vmatpush.msra.mxu0 %v256
    %1605 = vmatpush.msra.mxu0 %v252
    %1606 = vmatpush.msra.mxu0 %v248
    %1607 = vmatpush.msra.mxu0 %v244
    %1608 = vmatpush.msra.mxu0 %v240
    %1609 = vmatpush.msra.mxu0 %v236
    %1610 = vmatpush.msra.mxu0 %v232
    %1611 = vmatpush.msra.mxu0 %v228
    %1612 = vmatpush.msra.mxu0 %v224
    %1613 = vmatpush.msra.mxu0 %v220
    %1614 = vmatpush.msra.mxu0 %v216
    %1615 = vmatpush.msra.mxu0 %v212
    %1616 = vmatpush.msra.mxu0 %v208
    %1617 = vmatpush.msra.mxu0 %v204
    %1618 = vmatpush.msra.mxu0 %v200
    %1619 = vmatmul.f32.gmra.mxu0 %v1602
    %v1620 = vpop.f32.mrf.mxu0
    %v1621 = vadd.f32 %v264, %v1620
    %1622 = vdwg.mxu0
    %1623 = vmatpush.msra.mxu0 %v261
    %1624 = vmatpush.msra.mxu0 %v257
    %1625 = vmatpush.msra.mxu0 %v253
    %1626 = vmatpush.msra.mxu0 %v249
    %1627 = vmatpush.msra.mxu0 %v245
    %1628 = vmatpush.msra.mxu0 %v241
    %1629 = vmatpush.msra.mxu0 %v237
    %1630 = vmatpush.msra.mxu0 %v233
    %1631 = vmatpush.msra.mxu0 %v229
    %1632 = vmatpush.msra.mxu0 %v225
    %1633 = vmatpush.msra.mxu0 %v221
    %1634 = vmatpush.msra.mxu0 %v217
    %1635 = vmatpush.msra.mxu0 %v213
    %1636 = vmatpush.msra.mxu0 %v209
    %1637 = vmatpush.msra.mxu0 %v205
    %1638 = vmatpush.msra.mxu0 %v201
    %1639 = vmatmul.f32.gmra.mxu0 %v1602
    %v1640 = vpop.f32.mrf.mxu0
    %v1641 = vadd.f32 %v265, %v1640
    %1642 = vdwg.mxu0
    %1643 = vmatpush.msra.mxu0 %v262
    %1644 = vmatpush.msra.mxu0 %v258
    %1645 = vmatpush.msra.mxu0 %v254
    %1646 = vmatpush.msra.mxu0 %v250
    %1647 = vmatpush.msra.mxu0 %v246
    %1648 = vmatpush.msra.mxu0 %v242
    %1649 = vmatpush.msra.mxu0 %v238
    %1650 = vmatpush.msra.mxu0 %v234
    %1651 = vmatpush.msra.mxu0 %v230
    %1652 = vmatpush.msra.mxu0 %v226
    %1653 = vmatpush.msra.mxu0 %v222
    %1654 = vmatpush.msra.mxu0 %v218
    %1655 = vmatpush.msra.mxu0 %v214
    %1656 = vmatpush.msra.mxu0 %v210
    %1657 = vmatpush.msra.mxu0 %v206
    %1658 = vmatpush.msra.mxu0 %v202
    %1659 = vmatmul.f32.gmra.mxu0 %v1602
    %v1660 = vpop.f32.mrf.mxu0
    %v1661 = vadd.f32 %v266, %v1660
    %1662 = vdwg.mxu0
    %1663 = vmatpush.msra.mxu0 %v263
    %1664 = vmatpush.msra.mxu0 %v259
    %1665 = vmatpush.msra.mxu0 %v255
    %1666 = vmatpush.msra.mxu0 %v251
    %1667 = vmatpush.msra.mxu0 %v247
    %1668 = vmatpush.msra.mxu0 %v243
    %1669 = vmatpush.msra.mxu0 %v239
    %1670 = vmatpush.msra.mxu0 %v235
    %1671 = vmatpush.msra.mxu0 %v231
    %1672 = vmatpush.msra.mxu0 %v227
    %1673 = vmatpush.msra.mxu0 %v223
    %1674 = vmatpush.msra.mxu0 %v219
    %1675 = vmatpush.msra.mxu0 %v215
    %1676 = vmatpush.msra.mxu0 %v211
    %1677 = vmatpush.msra.mxu0 %v207
    %1678 = vmatpush.msra.mxu0 %v203
    %1679 = vmatmul.f32.gmra.mxu0 %v1602
    %v1680 = vpop.f32.mrf.mxu0
    %v1681 = vadd.f32 %v267, %v1680
    %1682 = vdwg.mxu0
    %s1683 = scalar_lea.vmem [#allocation2], 160
    %1684 = vst [vmem:[%s1683] sm:$0xff] %v1621
    %1685 = vst [vmem:[%s1683 + $0x8] sm:$0xff] %v1641
    %1686 = vst [vmem:[%s1683 + $0x10] sm:$0xff] %v1661
    %1687 = vst [vmem:[%s1683 + $0x18] sm:$0xff] %v1681
    %s1688 = scalar_lea.vmem [#allocation4], 192
    %v1689 = vld [vmem:[%s1688] sm:$0xff]
    %v1690 = vld [vmem:[%s1688 + $0x8] sm:$0xff]
    %v1691 = vld [vmem:[%s1688 + $0x10] sm:$0xff]
    %v1692 = vld [vmem:[%s1688 + $0x18] sm:$0xff]
    %1693 = vmatpush.msra.mxu0 %v164
    %1694 = vmatpush.msra.mxu0 %v160
    %1695 = vmatpush.msra.mxu0 %v156
    %1696 = vmatpush.msra.mxu0 %v152
    %1697 = vmatpush.msra.mxu0 %v148
    %1698 = vmatpush.msra.mxu0 %v144
    %1699 = vmatpush.msra.mxu0 %v140
    %1700 = vmatpush.msra.mxu0 %v136
    %1701 = vmatpush.msra.mxu0 %v132
    %1702 = vmatpush.msra.mxu0 %v128
    %1703 = vmatpush.msra.mxu0 %v124
    %1704 = vmatpush.msra.mxu0 %v120
    %1705 = vmatpush.msra.mxu0 %v116
    %1706 = vmatpush.msra.mxu0 %v112
    %1707 = vmatpush.msra.mxu0 %v108
    %1708 = vmatpush.msra.mxu0 %v104
    %1709 = vmatmul.f32.gmra.mxu0 %v1602
    %v1710 = vpop.f32.mrf.mxu0
    %v1711 = vadd.f32 0.0, %v1710
    %1712 = vdwg.mxu0
    %1713 = vmatpush.msra.mxu0 %v165
    %1714 = vmatpush.msra.mxu0 %v161
    %1715 = vmatpush.msra.mxu0 %v157
    %1716 = vmatpush.msra.mxu0 %v153
    %1717 = vmatpush.msra.mxu0 %v149
    %1718 = vmatpush.msra.mxu0 %v145
    %1719 = vmatpush.msra.mxu0 %v141
    %1720 = vmatpush.msra.mxu0 %v137
    %1721 = vmatpush.msra.mxu0 %v133
    %1722 = vmatpush.msra.mxu0 %v129
    %1723 = vmatpush.msra.mxu0 %v125
    %1724 = vmatpush.msra.mxu0 %v121
    %1725 = vmatpush.msra.mxu0 %v117
    %1726 = vmatpush.msra.mxu0 %v113
    %1727 = vmatpush.msra.mxu0 %v109
    %1728 = vmatpush.msra.mxu0 %v105
    %1729 = vmatmul.f32.gmra.mxu0 %v1602
    %v1730 = vpop.f32.mrf.mxu0
    %v1731 = vadd.f32 0.0, %v1730
    %1732 = vdwg.mxu0
    %1733 = vmatpush.msra.mxu0 %v166
    %1734 = vmatpush.msra.mxu0 %v162
    %1735 = vmatpush.msra.mxu0 %v158
    %1736 = vmatpush.msra.mxu0 %v154
    %1737 = vmatpush.msra.mxu0 %v150
    %1738 = vmatpush.msra.mxu0 %v146
    %1739 = vmatpush.msra.mxu0 %v142
    %1740 = vmatpush.msra.mxu0 %v138
    %1741 = vmatpush.msra.mxu0 %v134
    %1742 = vmatpush.msra.mxu0 %v130
    %1743 = vmatpush.msra.mxu0 %v126
    %1744 = vmatpush.msra.mxu0 %v122
    %1745 = vmatpush.msra.mxu0 %v118
    %1746 = vmatpush.msra.mxu0 %v114
    %1747 = vmatpush.msra.mxu0 %v110
    %1748 = vmatpush.msra.mxu0 %v106
    %1749 = vmatmul.f32.gmra.mxu0 %v1602
    %v1750 = vpop.f32.mrf.mxu0
    %v1751 = vadd.f32 0.0, %v1750
    %1752 = vdwg.mxu0
    %1753 = vmatpush.msra.mxu0 %v167
    %1754 = vmatpush.msra.mxu0 %v163
    %1755 = vmatpush.msra.mxu0 %v159
    %1756 = vmatpush.msra.mxu0 %v155
    %1757 = vmatpush.msra.mxu0 %v151
    %1758 = vmatpush.msra.mxu0 %v147
    %1759 = vmatpush.msra.mxu0 %v143
    %1760 = vmatpush.msra.mxu0 %v139
    %1761 = vmatpush.msra.mxu0 %v135
    %1762 = vmatpush.msra.mxu0 %v131
    %1763 = vmatpush.msra.mxu0 %v127
    %1764 = vmatpush.msra.mxu0 %v123
    %1765 = vmatpush.msra.mxu0 %v119
    %1766 = vmatpush.msra.mxu0 %v115
    %1767 = vmatpush.msra.mxu0 %v111
    %1768 = vmatpush.msra.mxu0 %v107
    %1769 = vmatmul.f32.gmra.mxu0 %v1602
    %v1770 = vpop.f32.mrf.mxu0
    %v1771 = vadd.f32 0.0, %v1770
    %1772 = vdwg.mxu0
    %v1773 = vadd.f32 %v1689, %v1711
    %v1774 = vadd.f32 %v1690, %v1731
    %v1775 = vadd.f32 %v1691, %v1751
    %v1776 = vadd.f32 %v1692, %v1771
    %v1777 = vxor.u32 %v1773, 2147483648
    %v1778 = vmul.f32 %v1777, 1.442695
    %v1779 = vpow.pop %v1778
    %v1780 = vadd.f32 %v1779, 1.0
    %v1781 = vrcp.pop %v1780
    %v1782 = vmul.f32 %v1780, %v1781
    %v1783 = vsub.f32 1.0, %v1782
    %v1784 = vmul.f32 %v1781, %v1783
    %v1785 = vadd.f32 %v1781, %v1784
    %vm1786 = vweird.f32 %v1780
    %vm1787 = vweird.f32 %v1781
    %vm1788 = vmor %vm1786, %vm1787
    %v1789 = vsel %vm1788, %v1781, %v1785
    %v1790 = vand.u32 2147483647, %v1780
    %vm1791 = vcmp.eq.f32.partialorder %v1790, 8.507059e+37
    %v1792 = vand.u32 %v1780, 2147483648
    %v1793 = vor.u32 1.1754944e-38, %v1792
    %v1794 = vsel %vm1791, %v1793, %v1789
    %v1795 = vmul.f32 1.0, %v1794
    %v1796 = vxor.u32 %v1774, 2147483648
    %v1797 = vmul.f32 %v1796, 1.442695
    %v1798 = vpow.pop %v1797
    %v1799 = vadd.f32 %v1798, 1.0
    %v1800 = vrcp.pop %v1799
    %v1801 = vmul.f32 %v1799, %v1800
    %v1802 = vsub.f32 1.0, %v1801
    %v1803 = vmul.f32 %v1800, %v1802
    %v1804 = vadd.f32 %v1800, %v1803
    %vm1805 = vweird.f32 %v1799
    %vm1806 = vweird.f32 %v1800
    %vm1807 = vmor %vm1805, %vm1806
    %v1808 = vsel %vm1807, %v1800, %v1804
    %v1809 = vand.u32 2147483647, %v1799
    %vm1810 = vcmp.eq.f32.partialorder %v1809, 8.507059e+37
    %v1811 = vand.u32 %v1799, 2147483648
    %v1812 = vor.u32 1.1754944e-38, %v1811
    %v1813 = vsel %vm1810, %v1812, %v1808
    %v1814 = vmul.f32 1.0, %v1813
    %v1815 = vtanh.pop %v1775
    %v1816 = vxor.u32 %v1776, 2147483648
    %v1817 = vmul.f32 %v1816, 1.442695
    %v1818 = vpow.pop %v1817
    %v1819 = vadd.f32 %v1818, 1.0
    %v1820 = vrcp.pop %v1819
    %v1821 = vmul.f32 %v1819, %v1820
    %v1822 = vsub.f32 1.0, %v1821
    %v1823 = vmul.f32 %v1820, %v1822
    %v1824 = vadd.f32 %v1820, %v1823
    %vm1825 = vweird.f32 %v1819
    %vm1826 = vweird.f32 %v1820
    %vm1827 = vmor %vm1825, %vm1826
    %v1828 = vsel %vm1827, %v1820, %v1824
    %v1829 = vand.u32 2147483647, %v1819
    %vm1830 = vcmp.eq.f32.partialorder %v1829, 8.507059e+37
    %v1831 = vand.u32 %v1819, 2147483648
    %v1832 = vor.u32 1.1754944e-38, %v1831
    %v1833 = vsel %vm1830, %v1832, %v1828
    %v1834 = vmul.f32 1.0, %v1833
    %v1835 = vmul.f32 %v1814, %v1600
    %v1836 = vmul.f32 %v1795, %v1815
    %v1837 = vadd.f32 %v1835, %v1836
    %v1838 = vtanh.pop %v1837
    %v1839 = vmul.f32 %v1834, %v1838
    %1840 = vmatpush.msra.mxu0 %v260
    %1841 = vmatpush.msra.mxu0 %v256
    %1842 = vmatpush.msra.mxu0 %v252
    %1843 = vmatpush.msra.mxu0 %v248
    %1844 = vmatpush.msra.mxu0 %v244
    %1845 = vmatpush.msra.mxu0 %v240
    %1846 = vmatpush.msra.mxu0 %v236
    %1847 = vmatpush.msra.mxu0 %v232
    %1848 = vmatpush.msra.mxu0 %v228
    %1849 = vmatpush.msra.mxu0 %v224
    %1850 = vmatpush.msra.mxu0 %v220
    %1851 = vmatpush.msra.mxu0 %v216
    %1852 = vmatpush.msra.mxu0 %v212
    %1853 = vmatpush.msra.mxu0 %v208
    %1854 = vmatpush.msra.mxu0 %v204
    %1855 = vmatpush.msra.mxu0 %v200
    %1856 = vmatmul.f32.gmra.mxu0 %v1839
    %v1857 = vpop.f32.mrf.mxu0
    %v1858 = vadd.f32 %v264, %v1857
    %1859 = vdwg.mxu0
    %1860 = vmatpush.msra.mxu0 %v261
    %1861 = vmatpush.msra.mxu0 %v257
    %1862 = vmatpush.msra.mxu0 %v253
    %1863 = vmatpush.msra.mxu0 %v249
    %1864 = vmatpush.msra.mxu0 %v245
    %1865 = vmatpush.msra.mxu0 %v241
    %1866 = vmatpush.msra.mxu0 %v237
    %1867 = vmatpush.msra.mxu0 %v233
    %1868 = vmatpush.msra.mxu0 %v229
    %1869 = vmatpush.msra.mxu0 %v225
    %1870 = vmatpush.msra.mxu0 %v221
    %1871 = vmatpush.msra.mxu0 %v217
    %1872 = vmatpush.msra.mxu0 %v213
    %1873 = vmatpush.msra.mxu0 %v209
    %1874 = vmatpush.msra.mxu0 %v205
    %1875 = vmatpush.msra.mxu0 %v201
    %1876 = vmatmul.f32.gmra.mxu0 %v1839
    %v1877 = vpop.f32.mrf.mxu0
    %v1878 = vadd.f32 %v265, %v1877
    %1879 = vdwg.mxu0
    %1880 = vmatpush.msra.mxu0 %v262
    %1881 = vmatpush.msra.mxu0 %v258
    %1882 = vmatpush.msra.mxu0 %v254
    %1883 = vmatpush.msra.mxu0 %v250
    %1884 = vmatpush.msra.mxu0 %v246
    %1885 = vmatpush.msra.mxu0 %v242
    %1886 = vmatpush.msra.mxu0 %v238
    %1887 = vmatpush.msra.mxu0 %v234
    %1888 = vmatpush.msra.mxu0 %v230
    %1889 = vmatpush.msra.mxu0 %v226
    %1890 = vmatpush.msra.mxu0 %v222
    %1891 = vmatpush.msra.mxu0 %v218
    %1892 = vmatpush.msra.mxu0 %v214
    %1893 = vmatpush.msra.mxu0 %v210
    %1894 = vmatpush.msra.mxu0 %v206
    %1895 = vmatpush.msra.mxu0 %v202
    %1896 = vmatmul.f32.gmra.mxu0 %v1839
    %v1897 = vpop.f32.mrf.mxu0
    %v1898 = vadd.f32 %v266, %v1897
    %1899 = vdwg.mxu0
    %1900 = vmatpush.msra.mxu0 %v263
    %1901 = vmatpush.msra.mxu0 %v259
    %1902 = vmatpush.msra.mxu0 %v255
    %1903 = vmatpush.msra.mxu0 %v251
    %1904 = vmatpush.msra.mxu0 %v247
    %1905 = vmatpush.msra.mxu0 %v243
    %1906 = vmatpush.msra.mxu0 %v239
    %1907 = vmatpush.msra.mxu0 %v235
    %1908 = vmatpush.msra.mxu0 %v231
    %1909 = vmatpush.msra.mxu0 %v227
    %1910 = vmatpush.msra.mxu0 %v223
    %1911 = vmatpush.msra.mxu0 %v219
    %1912 = vmatpush.msra.mxu0 %v215
    %1913 = vmatpush.msra.mxu0 %v211
    %1914 = vmatpush.msra.mxu0 %v207
    %1915 = vmatpush.msra.mxu0 %v203
    %1916 = vmatmul.f32.gmra.mxu0 %v1839
    %v1917 = vpop.f32.mrf.mxu0
    %v1918 = vadd.f32 %v267, %v1917
    %1919 = vdwg.mxu0
    %s1920 = scalar_lea.vmem [#allocation2], 192
    %1921 = vst [vmem:[%s1920] sm:$0xff] %v1858
    %1922 = vst [vmem:[%s1920 + $0x8] sm:$0xff] %v1878
    %1923 = vst [vmem:[%s1920 + $0x10] sm:$0xff] %v1898
    %1924 = vst [vmem:[%s1920 + $0x18] sm:$0xff] %v1918
    %s1925 = scalar_lea.vmem [#allocation4], 224
    %v1926 = vld [vmem:[%s1925] sm:$0xff]
    %v1927 = vld [vmem:[%s1925 + $0x8] sm:$0xff]
    %v1928 = vld [vmem:[%s1925 + $0x10] sm:$0xff]
    %v1929 = vld [vmem:[%s1925 + $0x18] sm:$0xff]
    %1930 = vmatpush.msra.mxu0 %v164
    %1931 = vmatpush.msra.mxu0 %v160
    %1932 = vmatpush.msra.mxu0 %v156
    %1933 = vmatpush.msra.mxu0 %v152
    %1934 = vmatpush.msra.mxu0 %v148
    %1935 = vmatpush.msra.mxu0 %v144
    %1936 = vmatpush.msra.mxu0 %v140
    %1937 = vmatpush.msra.mxu0 %v136
    %1938 = vmatpush.msra.mxu0 %v132
    %1939 = vmatpush.msra.mxu0 %v128
    %1940 = vmatpush.msra.mxu0 %v124
    %1941 = vmatpush.msra.mxu0 %v120
    %1942 = vmatpush.msra.mxu0 %v116
    %1943 = vmatpush.msra.mxu0 %v112
    %1944 = vmatpush.msra.mxu0 %v108
    %1945 = vmatpush.msra.mxu0 %v104
    %1946 = vmatmul.f32.gmra.mxu0 %v1839
    %v1947 = vpop.f32.mrf.mxu0
    %v1948 = vadd.f32 0.0, %v1947
    %1949 = vdwg.mxu0
    %1950 = vmatpush.msra.mxu0 %v165
    %1951 = vmatpush.msra.mxu0 %v161
    %1952 = vmatpush.msra.mxu0 %v157
    %1953 = vmatpush.msra.mxu0 %v153
    %1954 = vmatpush.msra.mxu0 %v149
    %1955 = vmatpush.msra.mxu0 %v145
    %1956 = vmatpush.msra.mxu0 %v141
    %1957 = vmatpush.msra.mxu0 %v137
    %1958 = vmatpush.msra.mxu0 %v133
    %1959 = vmatpush.msra.mxu0 %v129
    %1960 = vmatpush.msra.mxu0 %v125
    %1961 = vmatpush.msra.mxu0 %v121
    %1962 = vmatpush.msra.mxu0 %v117
    %1963 = vmatpush.msra.mxu0 %v113
    %1964 = vmatpush.msra.mxu0 %v109
    %1965 = vmatpush.msra.mxu0 %v105
    %1966 = vmatmul.f32.gmra.mxu0 %v1839
    %v1967 = vpop.f32.mrf.mxu0
    %v1968 = vadd.f32 0.0, %v1967
    %1969 = vdwg.mxu0
    %1970 = vmatpush.msra.mxu0 %v166
    %1971 = vmatpush.msra.mxu0 %v162
    %1972 = vmatpush.msra.mxu0 %v158
    %1973 = vmatpush.msra.mxu0 %v154
    %1974 = vmatpush.msra.mxu0 %v150
    %1975 = vmatpush.msra.mxu0 %v146
    %1976 = vmatpush.msra.mxu0 %v142
    %1977 = vmatpush.msra.mxu0 %v138
    %1978 = vmatpush.msra.mxu0 %v134
    %1979 = vmatpush.msra.mxu0 %v130
    %1980 = vmatpush.msra.mxu0 %v126
    %1981 = vmatpush.msra.mxu0 %v122
    %1982 = vmatpush.msra.mxu0 %v118
    %1983 = vmatpush.msra.mxu0 %v114
    %1984 = vmatpush.msra.mxu0 %v110
    %1985 = vmatpush.msra.mxu0 %v106
    %1986 = vmatmul.f32.gmra.mxu0 %v1839
    %v1987 = vpop.f32.mrf.mxu0
    %v1988 = vadd.f32 0.0, %v1987
    %1989 = vdwg.mxu0
    %1990 = vmatpush.msra.mxu0 %v167
    %1991 = vmatpush.msra.mxu0 %v163
    %1992 = vmatpush.msra.mxu0 %v159
    %1993 = vmatpush.msra.mxu0 %v155
    %1994 = vmatpush.msra.mxu0 %v151
    %1995 = vmatpush.msra.mxu0 %v147
    %1996 = vmatpush.msra.mxu0 %v143
    %1997 = vmatpush.msra.mxu0 %v139
    %1998 = vmatpush.msra.mxu0 %v135
    %1999 = vmatpush.msra.mxu0 %v131
    %2000 = vmatpush.msra.mxu0 %v127
    %2001 = vmatpush.msra.mxu0 %v123
    %2002 = vmatpush.msra.mxu0 %v119
    %2003 = vmatpush.msra.mxu0 %v115
    %2004 = vmatpush.msra.mxu0 %v111
    %2005 = vmatpush.msra.mxu0 %v107
    %2006 = vmatmul.f32.gmra.mxu0 %v1839
    %v2007 = vpop.f32.mrf.mxu0
    %v2008 = vadd.f32 0.0, %v2007
    %2009 = vdwg.mxu0
    %v2010 = vadd.f32 %v1926, %v1948
    %v2011 = vadd.f32 %v1927, %v1968
    %v2012 = vadd.f32 %v1928, %v1988
    %v2013 = vadd.f32 %v1929, %v2008
    %v2014 = vxor.u32 %v2010, 2147483648
    %v2015 = vmul.f32 %v2014, 1.442695
    %v2016 = vpow.pop %v2015
    %v2017 = vadd.f32 %v2016, 1.0
    %v2018 = vrcp.pop %v2017
    %v2019 = vmul.f32 %v2017, %v2018
    %v2020 = vsub.f32 1.0, %v2019
    %v2021 = vmul.f32 %v2018, %v2020
    %v2022 = vadd.f32 %v2018, %v2021
    %vm2023 = vweird.f32 %v2017
    %vm2024 = vweird.f32 %v2018
    %vm2025 = vmor %vm2023, %vm2024
    %v2026 = vsel %vm2025, %v2018, %v2022
    %v2027 = vand.u32 2147483647, %v2017
    %vm2028 = vcmp.eq.f32.partialorder %v2027, 8.507059e+37
    %v2029 = vand.u32 %v2017, 2147483648
    %v2030 = vor.u32 1.1754944e-38, %v2029
    %v2031 = vsel %vm2028, %v2030, %v2026
    %v2032 = vmul.f32 1.0, %v2031
    %v2033 = vxor.u32 %v2011, 2147483648
    %v2034 = vmul.f32 %v2033, 1.442695
    %v2035 = vpow.pop %v2034
    %v2036 = vadd.f32 %v2035, 1.0
    %v2037 = vrcp.pop %v2036
    %v2038 = vmul.f32 %v2036, %v2037
    %v2039 = vsub.f32 1.0, %v2038
    %v2040 = vmul.f32 %v2037, %v2039
    %v2041 = vadd.f32 %v2037, %v2040
    %vm2042 = vweird.f32 %v2036
    %vm2043 = vweird.f32 %v2037
    %vm2044 = vmor %vm2042, %vm2043
    %v2045 = vsel %vm2044, %v2037, %v2041
    %v2046 = vand.u32 2147483647, %v2036
    %vm2047 = vcmp.eq.f32.partialorder %v2046, 8.507059e+37
    %v2048 = vand.u32 %v2036, 2147483648
    %v2049 = vor.u32 1.1754944e-38, %v2048
    %v2050 = vsel %vm2047, %v2049, %v2045
    %v2051 = vmul.f32 1.0, %v2050
    %v2052 = vtanh.pop %v2012
    %v2053 = vxor.u32 %v2013, 2147483648
    %v2054 = vmul.f32 %v2053, 1.442695
    %v2055 = vpow.pop %v2054
    %v2056 = vadd.f32 %v2055, 1.0
    %v2057 = vrcp.pop %v2056
    %v2058 = vmul.f32 %v2056, %v2057
    %v2059 = vsub.f32 1.0, %v2058
    %v2060 = vmul.f32 %v2057, %v2059
    %v2061 = vadd.f32 %v2057, %v2060
    %vm2062 = vweird.f32 %v2056
    %vm2063 = vweird.f32 %v2057
    %vm2064 = vmor %vm2062, %vm2063
    %v2065 = vsel %vm2064, %v2057, %v2061
    %v2066 = vand.u32 2147483647, %v2056
    %vm2067 = vcmp.eq.f32.partialorder %v2066, 8.507059e+37
    %v2068 = vand.u32 %v2056, 2147483648
    %v2069 = vor.u32 1.1754944e-38, %v2068
    %v2070 = vsel %vm2067, %v2069, %v2065
    %v2071 = vmul.f32 1.0, %v2070
    %v2072 = vmul.f32 %v2051, %v1837
    %v2073 = vmul.f32 %v2032, %v2052
    %v2074 = vadd.f32 %v2072, %v2073
    %v2075 = vtanh.pop %v2074
    %v2076 = vmul.f32 %v2071, %v2075
    %2077 = vmatpush.msra.mxu0 %v260
    %2078 = vmatpush.msra.mxu0 %v256
    %2079 = vmatpush.msra.mxu0 %v252
    %2080 = vmatpush.msra.mxu0 %v248
    %2081 = vmatpush.msra.mxu0 %v244
    %2082 = vmatpush.msra.mxu0 %v240
    %2083 = vmatpush.msra.mxu0 %v236
    %2084 = vmatpush.msra.mxu0 %v232
    %2085 = vmatpush.msra.mxu0 %v228
    %2086 = vmatpush.msra.mxu0 %v224
    %2087 = vmatpush.msra.mxu0 %v220
    %2088 = vmatpush.msra.mxu0 %v216
    %2089 = vmatpush.msra.mxu0 %v212
    %2090 = vmatpush.msra.mxu0 %v208
    %2091 = vmatpush.msra.mxu0 %v204
    %2092 = vmatpush.msra.mxu0 %v200
    %2093 = vmatmul.f32.gmra.mxu0 %v2076
    %v2094 = vpop.f32.mrf.mxu0
    %v2095 = vadd.f32 %v264, %v2094
    %2096 = vdwg.mxu0
    %2097 = vmatpush.msra.mxu0 %v261
    %2098 = vmatpush.msra.mxu0 %v257
    %2099 = vmatpush.msra.mxu0 %v253
    %2100 = vmatpush.msra.mxu0 %v249
    %2101 = vmatpush.msra.mxu0 %v245
    %2102 = vmatpush.msra.mxu0 %v241
    %2103 = vmatpush.msra.mxu0 %v237
    %2104 = vmatpush.msra.mxu0 %v233
    %2105 = vmatpush.msra.mxu0 %v229
    %2106 = vmatpush.msra.mxu0 %v225
    %2107 = vmatpush.msra.mxu0 %v221
    %2108 = vmatpush.msra.mxu0 %v217
    %2109 = vmatpush.msra.mxu0 %v213
    %2110 = vmatpush.msra.mxu0 %v209
    %2111 = vmatpush.msra.mxu0 %v205
    %2112 = vmatpush.msra.mxu0 %v201
    %2113 = vmatmul.f32.gmra.mxu0 %v2076
    %v2114 = vpop.f32.mrf.mxu0
    %v2115 = vadd.f32 %v265, %v2114
    %2116 = vdwg.mxu0
    %2117 = vmatpush.msra.mxu0 %v262
    %2118 = vmatpush.msra.mxu0 %v258
    %2119 = vmatpush.msra.mxu0 %v254
    %2120 = vmatpush.msra.mxu0 %v250
    %2121 = vmatpush.msra.mxu0 %v246
    %2122 = vmatpush.msra.mxu0 %v242
    %2123 = vmatpush.msra.mxu0 %v238
    %2124 = vmatpush.msra.mxu0 %v234
    %2125 = vmatpush.msra.mxu0 %v230
    %2126 = vmatpush.msra.mxu0 %v226
    %2127 = vmatpush.msra.mxu0 %v222
    %2128 = vmatpush.msra.mxu0 %v218
    %2129 = vmatpush.msra.mxu0 %v214
    %2130 = vmatpush.msra.mxu0 %v210
    %2131 = vmatpush.msra.mxu0 %v206
    %2132 = vmatpush.msra.mxu0 %v202
    %2133 = vmatmul.f32.gmra.mxu0 %v2076
    %v2134 = vpop.f32.mrf.mxu0
    %v2135 = vadd.f32 %v266, %v2134
    %2136 = vdwg.mxu0
    %2137 = vmatpush.msra.mxu0 %v263
    %2138 = vmatpush.msra.mxu0 %v259
    %2139 = vmatpush.msra.mxu0 %v255
    %2140 = vmatpush.msra.mxu0 %v251
    %2141 = vmatpush.msra.mxu0 %v247
    %2142 = vmatpush.msra.mxu0 %v243
    %2143 = vmatpush.msra.mxu0 %v239
    %2144 = vmatpush.msra.mxu0 %v235
    %2145 = vmatpush.msra.mxu0 %v231
    %2146 = vmatpush.msra.mxu0 %v227
    %2147 = vmatpush.msra.mxu0 %v223
    %2148 = vmatpush.msra.mxu0 %v219
    %2149 = vmatpush.msra.mxu0 %v215
    %2150 = vmatpush.msra.mxu0 %v211
    %2151 = vmatpush.msra.mxu0 %v207
    %2152 = vmatpush.msra.mxu0 %v203
    %2153 = vmatmul.f32.gmra.mxu0 %v2076
    %v2154 = vpop.f32.mrf.mxu0
    %v2155 = vadd.f32 %v267, %v2154
    %2156 = vdwg.mxu0
    %s2157 = scalar_lea.vmem [#allocation2], 224
    %2158 = vst [vmem:[%s2157] sm:$0xff] %v2095
    %2159 = vst [vmem:[%s2157 + $0x8] sm:$0xff] %v2115
    %2160 = vst [vmem:[%s2157 + $0x10] sm:$0xff] %v2135
    %2161 = vst [vmem:[%s2157 + $0x18] sm:$0xff] %v2155
    loop: start=1, step=1, limit=4
    $region38: #{tpu_custom_call.1} parent=1 // loop_pre_header
      _
    $region39: #{tpu_custom_call.1} parent=1 // loop_header
      %s2163 = sphi 1, %s2167
      %p2164 = scmp.ge.s32.totalorder %s2163, 4
    $region40: #{tpu_custom_call.1} parent=1 // loop_header_branch
      %2166 = sbr.rel (%p2164) target = $region44
    $region41: #{tpu_custom_call.1} parent=1 // loop_body
      %s2168 = smul.u32 %s2163, 64
      %s2169 = smul.addr %s2168, 4
      %s2170 = scalar_lea.vmem [#allocation8], %s2169
      %v2171 = vld [vmem:[%s2170] sm:$0xff]
      %v2172 = vld [vmem:[%s2170 + $0x8] sm:$0xff]
      %v2173 = vld [vmem:[%s2170 + $0x10] sm:$0xff]
      %v2174 = vld [vmem:[%s2170 + $0x18] sm:$0xff]
      %v2175 = vld [vmem:[%s2170 + $0x20] sm:$0xff]
      %v2176 = vld [vmem:[%s2170 + $0x28] sm:$0xff]
      %v2177 = vld [vmem:[%s2170 + $0x30] sm:$0xff]
      %v2178 = vld [vmem:[%s2170 + $0x38] sm:$0xff]
      %v2179 = vld [vmem:[%s2170 + $0x40] sm:$0xff]
      %v2180 = vld [vmem:[%s2170 + $0x48] sm:$0xff]
      %v2181 = vld [vmem:[%s2170 + $0x50] sm:$0xff]
      %v2182 = vld [vmem:[%s2170 + $0x58] sm:$0xff]
      %v2183 = vld [vmem:[%s2170 + $0x60] sm:$0xff]
      %v2184 = vld [vmem:[%s2170 + $0x68] sm:$0xff]
      %v2185 = vld [vmem:[%s2170 + $0x70] sm:$0xff]
      %v2186 = vld [vmem:[%s2170 + $0x78] sm:$0xff]
      %v2187 = vld [vmem:[%s2170 + $0x80] sm:$0xff]
      %v2188 = vld [vmem:[%s2170 + $0x88] sm:$0xff]
      %v2189 = vld [vmem:[%s2170 + $0x90] sm:$0xff]
      %v2190 = vld [vmem:[%s2170 + $0x98] sm:$0xff]
      %v2191 = vld [vmem:[%s2170 + $0xa0] sm:$0xff]
      %v2192 = vld [vmem:[%s2170 + $0xa8] sm:$0xff]
      %v2193 = vld [vmem:[%s2170 + $0xb0] sm:$0xff]
      %v2194 = vld [vmem:[%s2170 + $0xb8] sm:$0xff]
      %v2195 = vld [vmem:[%s2170 + $0xc0] sm:$0xff]
      %v2196 = vld [vmem:[%s2170 + $0xc8] sm:$0xff]
      %v2197 = vld [vmem:[%s2170 + $0xd0] sm:$0xff]
      %v2198 = vld [vmem:[%s2170 + $0xd8] sm:$0xff]
      %v2199 = vld [vmem:[%s2170 + $0xe0] sm:$0xff]
      %v2200 = vld [vmem:[%s2170 + $0xe8] sm:$0xff]
      %v2201 = vld [vmem:[%s2170 + $0xf0] sm:$0xff]
      %v2202 = vld [vmem:[%s2170 + $0xf8] sm:$0xff]
      %v2203 = vunpack.c.l.bf16 %v2171
      %v2204 = vunpack.c.h.bf16 %v2171
      %v2205 = vunpack.c.l.bf16 %v2172
      %v2206 = vunpack.c.h.bf16 %v2172
      %v2207 = vunpack.c.l.bf16 %v2173
      %v2208 = vunpack.c.h.bf16 %v2173
      %v2209 = vunpack.c.l.bf16 %v2174
      %v2210 = vunpack.c.h.bf16 %v2174
      %v2211 = vunpack.c.l.bf16 %v2175
      %v2212 = vunpack.c.h.bf16 %v2175
      %v2213 = vunpack.c.l.bf16 %v2176
      %v2214 = vunpack.c.h.bf16 %v2176
      %v2215 = vunpack.c.l.bf16 %v2177
      %v2216 = vunpack.c.h.bf16 %v2177
      %v2217 = vunpack.c.l.bf16 %v2178
      %v2218 = vunpack.c.h.bf16 %v2178
      %v2219 = vunpack.c.l.bf16 %v2179
      %v2220 = vunpack.c.h.bf16 %v2179
      %v2221 = vunpack.c.l.bf16 %v2180
      %v2222 = vunpack.c.h.bf16 %v2180
      %v2223 = vunpack.c.l.bf16 %v2181
      %v2224 = vunpack.c.h.bf16 %v2181
      %v2225 = vunpack.c.l.bf16 %v2182
      %v2226 = vunpack.c.h.bf16 %v2182
      %v2227 = vunpack.c.l.bf16 %v2183
      %v2228 = vunpack.c.h.bf16 %v2183
      %v2229 = vunpack.c.l.bf16 %v2184
      %v2230 = vunpack.c.h.bf16 %v2184
      %v2231 = vunpack.c.l.bf16 %v2185
      %v2232 = vunpack.c.h.bf16 %v2185
      %v2233 = vunpack.c.l.bf16 %v2186
      %v2234 = vunpack.c.h.bf16 %v2186
      %v2235 = vunpack.c.l.bf16 %v2187
      %v2236 = vunpack.c.h.bf16 %v2187
      %v2237 = vunpack.c.l.bf16 %v2188
      %v2238 = vunpack.c.h.bf16 %v2188
      %v2239 = vunpack.c.l.bf16 %v2189
      %v2240 = vunpack.c.h.bf16 %v2189
      %v2241 = vunpack.c.l.bf16 %v2190
      %v2242 = vunpack.c.h.bf16 %v2190
      %v2243 = vunpack.c.l.bf16 %v2191
      %v2244 = vunpack.c.h.bf16 %v2191
      %v2245 = vunpack.c.l.bf16 %v2192
      %v2246 = vunpack.c.h.bf16 %v2192
      %v2247 = vunpack.c.l.bf16 %v2193
      %v2248 = vunpack.c.h.bf16 %v2193
      %v2249 = vunpack.c.l.bf16 %v2194
      %v2250 = vunpack.c.h.bf16 %v2194
      %v2251 = vunpack.c.l.bf16 %v2195
      %v2252 = vunpack.c.h.bf16 %v2195
      %v2253 = vunpack.c.l.bf16 %v2196
      %v2254 = vunpack.c.h.bf16 %v2196
      %v2255 = vunpack.c.l.bf16 %v2197
      %v2256 = vunpack.c.h.bf16 %v2197
      %v2257 = vunpack.c.l.bf16 %v2198
      %v2258 = vunpack.c.h.bf16 %v2198
      %v2259 = vunpack.c.l.bf16 %v2199
      %v2260 = vunpack.c.h.bf16 %v2199
      %v2261 = vunpack.c.l.bf16 %v2200
      %v2262 = vunpack.c.h.bf16 %v2200
      %v2263 = vunpack.c.l.bf16 %v2201
      %v2264 = vunpack.c.h.bf16 %v2201
      %v2265 = vunpack.c.l.bf16 %v2202
      %v2266 = vunpack.c.h.bf16 %v2202
      %s2267 = smul.addr %s2168, 4
      %s2268 = scalar_lea.vmem [#allocation6], %s2267
      %v2269 = vld [vmem:[%s2268] sm:$0xff]
      %v2270 = vld [vmem:[%s2268 + $0x8] sm:$0xff]
      %v2271 = vld [vmem:[%s2268 + $0x10] sm:$0xff]
      %v2272 = vld [vmem:[%s2268 + $0x18] sm:$0xff]
      %v2273 = vld [vmem:[%s2268 + $0x20] sm:$0xff]
      %v2274 = vld [vmem:[%s2268 + $0x28] sm:$0xff]
      %v2275 = vld [vmem:[%s2268 + $0x30] sm:$0xff]
      %v2276 = vld [vmem:[%s2268 + $0x38] sm:$0xff]
      %v2277 = vld [vmem:[%s2268 + $0x40] sm:$0xff]
      %v2278 = vld [vmem:[%s2268 + $0x48] sm:$0xff]
      %v2279 = vld [vmem:[%s2268 + $0x50] sm:$0xff]
      %v2280 = vld [vmem:[%s2268 + $0x58] sm:$0xff]
      %v2281 = vld [vmem:[%s2268 + $0x60] sm:$0xff]
      %v2282 = vld [vmem:[%s2268 + $0x68] sm:$0xff]
      %v2283 = vld [vmem:[%s2268 + $0x70] sm:$0xff]
      %v2284 = vld [vmem:[%s2268 + $0x78] sm:$0xff]
      %v2285 = vld [vmem:[%s2268 + $0x80] sm:$0xff]
      %v2286 = vld [vmem:[%s2268 + $0x88] sm:$0xff]
      %v2287 = vld [vmem:[%s2268 + $0x90] sm:$0xff]
      %v2288 = vld [vmem:[%s2268 + $0x98] sm:$0xff]
      %v2289 = vld [vmem:[%s2268 + $0xa0] sm:$0xff]
      %v2290 = vld [vmem:[%s2268 + $0xa8] sm:$0xff]
      %v2291 = vld [vmem:[%s2268 + $0xb0] sm:$0xff]
      %v2292 = vld [vmem:[%s2268 + $0xb8] sm:$0xff]
      %v2293 = vld [vmem:[%s2268 + $0xc0] sm:$0xff]
      %v2294 = vld [vmem:[%s2268 + $0xc8] sm:$0xff]
      %v2295 = vld [vmem:[%s2268 + $0xd0] sm:$0xff]
      %v2296 = vld [vmem:[%s2268 + $0xd8] sm:$0xff]
      %v2297 = vld [vmem:[%s2268 + $0xe0] sm:$0xff]
      %v2298 = vld [vmem:[%s2268 + $0xe8] sm:$0xff]
      %v2299 = vld [vmem:[%s2268 + $0xf0] sm:$0xff]
      %v2300 = vld [vmem:[%s2268 + $0xf8] sm:$0xff]
      %v2301 = vunpack.c.l.bf16 %v2269
      %v2302 = vunpack.c.h.bf16 %v2269
      %v2303 = vunpack.c.l.bf16 %v2270
      %v2304 = vunpack.c.h.bf16 %v2270
      %v2305 = vunpack.c.l.bf16 %v2271
      %v2306 = vunpack.c.h.bf16 %v2271
      %v2307 = vunpack.c.l.bf16 %v2272
      %v2308 = vunpack.c.h.bf16 %v2272
      %v2309 = vunpack.c.l.bf16 %v2273
      %v2310 = vunpack.c.h.bf16 %v2273
      %v2311 = vunpack.c.l.bf16 %v2274
      %v2312 = vunpack.c.h.bf16 %v2274
      %v2313 = vunpack.c.l.bf16 %v2275
      %v2314 = vunpack.c.h.bf16 %v2275
      %v2315 = vunpack.c.l.bf16 %v2276
      %v2316 = vunpack.c.h.bf16 %v2276
      %v2317 = vunpack.c.l.bf16 %v2277
      %v2318 = vunpack.c.h.bf16 %v2277
      %v2319 = vunpack.c.l.bf16 %v2278
      %v2320 = vunpack.c.h.bf16 %v2278
      %v2321 = vunpack.c.l.bf16 %v2279
      %v2322 = vunpack.c.h.bf16 %v2279
      %v2323 = vunpack.c.l.bf16 %v2280
      %v2324 = vunpack.c.h.bf16 %v2280
      %v2325 = vunpack.c.l.bf16 %v2281
      %v2326 = vunpack.c.h.bf16 %v2281
      %v2327 = vunpack.c.l.bf16 %v2282
      %v2328 = vunpack.c.h.bf16 %v2282
      %v2329 = vunpack.c.l.bf16 %v2283
      %v2330 = vunpack.c.h.bf16 %v2283
      %v2331 = vunpack.c.l.bf16 %v2284
      %v2332 = vunpack.c.h.bf16 %v2284
      %v2333 = vunpack.c.l.bf16 %v2285
      %v2334 = vunpack.c.h.bf16 %v2285
      %v2335 = vunpack.c.l.bf16 %v2286
      %v2336 = vunpack.c.h.bf16 %v2286
      %v2337 = vunpack.c.l.bf16 %v2287
      %v2338 = vunpack.c.h.bf16 %v2287
      %v2339 = vunpack.c.l.bf16 %v2288
      %v2340 = vunpack.c.h.bf16 %v2288
      %v2341 = vunpack.c.l.bf16 %v2289
      %v2342 = vunpack.c.h.bf16 %v2289
      %v2343 = vunpack.c.l.bf16 %v2290
      %v2344 = vunpack.c.h.bf16 %v2290
      %v2345 = vunpack.c.l.bf16 %v2291
      %v2346 = vunpack.c.h.bf16 %v2291
      %v2347 = vunpack.c.l.bf16 %v2292
      %v2348 = vunpack.c.h.bf16 %v2292
      %v2349 = vunpack.c.l.bf16 %v2293
      %v2350 = vunpack.c.h.bf16 %v2293
      %v2351 = vunpack.c.l.bf16 %v2294
      %v2352 = vunpack.c.h.bf16 %v2294
      %v2353 = vunpack.c.l.bf16 %v2295
      %v2354 = vunpack.c.h.bf16 %v2295
      %v2355 = vunpack.c.l.bf16 %v2296
      %v2356 = vunpack.c.h.bf16 %v2296
      %v2357 = vunpack.c.l.bf16 %v2297
      %v2358 = vunpack.c.h.bf16 %v2297
      %v2359 = vunpack.c.l.bf16 %v2298
      %v2360 = vunpack.c.h.bf16 %v2298
      %v2361 = vunpack.c.l.bf16 %v2299
      %v2362 = vunpack.c.h.bf16 %v2299
      %v2363 = vunpack.c.l.bf16 %v2300
      %v2364 = vunpack.c.h.bf16 %v2300
      %s2365 = smul.u32 %s2163, 4
      %s2366 = smul.addr %s2365, 8
      %s2367 = scalar_lea.vmem %s3, %s2366
      %v2368 = vld [vmem:[%s2367] sm:$0xff]
      %v2369 = vld [vmem:[%s2367 + $0x8] sm:$0xff]
      %v2370 = vld [vmem:[%s2367 + $0x10] sm:$0xff]
      %v2371 = vld [vmem:[%s2367 + $0x18] sm:$0xff]
      %v2372 = vld [vmem:[#allocation2] sm:$0xff]
      %v2373 = vld [vmem:[#allocation2 + $0x8] sm:$0xff]
      %v2374 = vld [vmem:[#allocation2 + $0x10] sm:$0xff]
      %v2375 = vld [vmem:[#allocation2 + $0x18] sm:$0xff]
      %2376 = vmatpush.msra.mxu0 %v2263
      %2377 = vmatpush.msra.mxu0 %v2259
      %2378 = vmatpush.msra.mxu0 %v2255
      %2379 = vmatpush.msra.mxu0 %v2251
      %2380 = vmatpush.msra.mxu0 %v2247
      %2381 = vmatpush.msra.mxu0 %v2243
      %2382 = vmatpush.msra.mxu0 %v2239
      %2383 = vmatpush.msra.mxu0 %v2235
      %2384 = vmatpush.msra.mxu0 %v2231
      %2385 = vmatpush.msra.mxu0 %v2227
      %2386 = vmatpush.msra.mxu0 %v2223
      %2387 = vmatpush.msra.mxu0 %v2219
      %2388 = vmatpush.msra.mxu0 %v2215
      %2389 = vmatpush.msra.mxu0 %v2211
      %2390 = vmatpush.msra.mxu0 %v2207
      %2391 = vmatpush.msra.mxu0 %v2203
      %2392 = vmatmul.f32.gmra.mxu0 0.0
      %v2393 = vpop.f32.mrf.mxu0
      %v2394 = vadd.f32 0.0, %v2393
      %2395 = vdwg.mxu0
      %2396 = vmatpush.msra.mxu0 %v2264
      %2397 = vmatpush.msra.mxu0 %v2260
      %2398 = vmatpush.msra.mxu0 %v2256
      %2399 = vmatpush.msra.mxu0 %v2252
      %2400 = vmatpush.msra.mxu0 %v2248
      %2401 = vmatpush.msra.mxu0 %v2244
      %2402 = vmatpush.msra.mxu0 %v2240
      %2403 = vmatpush.msra.mxu0 %v2236
      %2404 = vmatpush.msra.mxu0 %v2232
      %2405 = vmatpush.msra.mxu0 %v2228
      %2406 = vmatpush.msra.mxu0 %v2224
      %2407 = vmatpush.msra.mxu0 %v2220
      %2408 = vmatpush.msra.mxu0 %v2216
      %2409 = vmatpush.msra.mxu0 %v2212
      %2410 = vmatpush.msra.mxu0 %v2208
      %2411 = vmatpush.msra.mxu0 %v2204
      %2412 = vmatmul.f32.gmra.mxu0 0.0
      %v2413 = vpop.f32.mrf.mxu0
      %v2414 = vadd.f32 0.0, %v2413
      %2415 = vdwg.mxu0
      %2416 = vmatpush.msra.mxu0 %v2265
      %2417 = vmatpush.msra.mxu0 %v2261
      %2418 = vmatpush.msra.mxu0 %v2257
      %2419 = vmatpush.msra.mxu0 %v2253
      %2420 = vmatpush.msra.mxu0 %v2249
      %2421 = vmatpush.msra.mxu0 %v2245
      %2422 = vmatpush.msra.mxu0 %v2241
      %2423 = vmatpush.msra.mxu0 %v2237
      %2424 = vmatpush.msra.mxu0 %v2233
      %2425 = vmatpush.msra.mxu0 %v2229
      %2426 = vmatpush.msra.mxu0 %v2225
      %2427 = vmatpush.msra.mxu0 %v2221
      %2428 = vmatpush.msra.mxu0 %v2217
      %2429 = vmatpush.msra.mxu0 %v2213
      %2430 = vmatpush.msra.mxu0 %v2209
      %2431 = vmatpush.msra.mxu0 %v2205
      %2432 = vmatmul.f32.gmra.mxu0 0.0
      %v2433 = vpop.f32.mrf.mxu0
      %v2434 = vadd.f32 0.0, %v2433
      %2435 = vdwg.mxu0
      %2436 = vmatpush.msra.mxu0 %v2266
      %2437 = vmatpush.msra.mxu0 %v2262
      %2438 = vmatpush.msra.mxu0 %v2258
      %2439 = vmatpush.msra.mxu0 %v2254
      %2440 = vmatpush.msra.mxu0 %v2250
      %2441 = vmatpush.msra.mxu0 %v2246
      %2442 = vmatpush.msra.mxu0 %v2242
      %2443 = vmatpush.msra.mxu0 %v2238
      %2444 = vmatpush.msra.mxu0 %v2234
      %2445 = vmatpush.msra.mxu0 %v2230
      %2446 = vmatpush.msra.mxu0 %v2226
      %2447 = vmatpush.msra.mxu0 %v2222
      %2448 = vmatpush.msra.mxu0 %v2218
      %2449 = vmatpush.msra.mxu0 %v2214
      %2450 = vmatpush.msra.mxu0 %v2210
      %2451 = vmatpush.msra.mxu0 %v2206
      %2452 = vmatmul.f32.gmra.mxu0 0.0
      %v2453 = vpop.f32.mrf.mxu0
      %v2454 = vadd.f32 0.0, %v2453
      %2455 = vdwg.mxu0
      %v2456 = vadd.f32 %v2372, %v2394
      %v2457 = vadd.f32 %v2373, %v2414
      %v2458 = vadd.f32 %v2374, %v2434
      %v2459 = vadd.f32 %v2375, %v2454
      %v2460 = vxor.u32 %v2456, 2147483648
      %v2461 = vmul.f32 %v2460, 1.442695
      %v2462 = vpow.pop %v2461
      %v2463 = vadd.f32 %v2462, 1.0
      %v2464 = vrcp.pop %v2463
      %v2465 = vmul.f32 %v2463, %v2464
      %v2466 = vsub.f32 1.0, %v2465
      %v2467 = vmul.f32 %v2464, %v2466
      %v2468 = vadd.f32 %v2464, %v2467
      %vm2469 = vweird.f32 %v2463
      %vm2470 = vweird.f32 %v2464
      %vm2471 = vmor %vm2469, %vm2470
      %v2472 = vsel %vm2471, %v2464, %v2468
      %v2473 = vand.u32 2147483647, %v2463
      %vm2474 = vcmp.eq.f32.partialorder %v2473, 8.507059e+37
      %v2475 = vand.u32 %v2463, 2147483648
      %v2476 = vor.u32 1.1754944e-38, %v2475
      %v2477 = vsel %vm2474, %v2476, %v2472
      %v2478 = vmul.f32 1.0, %v2477
      %v2479 = vxor.u32 %v2457, 2147483648
      %v2480 = vmul.f32 %v2479, 1.442695
      %v2481 = vpow.pop %v2480
      %v2482 = vadd.f32 %v2481, 1.0
      %v2483 = vrcp.pop %v2482
      %v2484 = vmul.f32 %v2482, %v2483
      %v2485 = vsub.f32 1.0, %v2484
      %v2486 = vmul.f32 %v2483, %v2485
      %v2487 = vadd.f32 %v2483, %v2486
      %vm2488 = vweird.f32 %v2482
      %vm2489 = vweird.f32 %v2483
      %vm2490 = vmor %vm2488, %vm2489
      %v2491 = vsel %vm2490, %v2483, %v2487
      %v2492 = vand.u32 2147483647, %v2482
      %vm2493 = vcmp.eq.f32.partialorder %v2492, 8.507059e+37
      %v2494 = vand.u32 %v2482, 2147483648
      %v2495 = vor.u32 1.1754944e-38, %v2494
      %v2496 = vsel %vm2493, %v2495, %v2491
      %v2497 = vmul.f32 1.0, %v2496
      %v2498 = vtanh.pop %v2458
      %v2499 = vxor.u32 %v2459, 2147483648
      %v2500 = vmul.f32 %v2499, 1.442695
      %v2501 = vpow.pop %v2500
      %v2502 = vadd.f32 %v2501, 1.0
      %v2503 = vrcp.pop %v2502
      %v2504 = vmul.f32 %v2502, %v2503
      %v2505 = vsub.f32 1.0, %v2504
      %v2506 = vmul.f32 %v2503, %v2505
      %v2507 = vadd.f32 %v2503, %v2506
      %vm2508 = vweird.f32 %v2502
      %vm2509 = vweird.f32 %v2503
      %vm2510 = vmor %vm2508, %vm2509
      %v2511 = vsel %vm2510, %v2503, %v2507
      %v2512 = vand.u32 2147483647, %v2502
      %vm2513 = vcmp.eq.f32.partialorder %v2512, 8.507059e+37
      %v2514 = vand.u32 %v2502, 2147483648
      %v2515 = vor.u32 1.1754944e-38, %v2514
      %v2516 = vsel %vm2513, %v2515, %v2511
      %v2517 = vmul.f32 1.0, %v2516
      %v2518 = vmul.f32 %v2497, 0.0
      %v2519 = vmul.f32 %v2478, %v2498
      %v2520 = vadd.f32 %v2518, %v2519
      %v2521 = vtanh.pop %v2520
      %v2522 = vmul.f32 %v2517, %v2521
      %2523 = vmatpush.msra.mxu0 %v2361
      %2524 = vmatpush.msra.mxu0 %v2357
      %2525 = vmatpush.msra.mxu0 %v2353
      %2526 = vmatpush.msra.mxu0 %v2349
      %2527 = vmatpush.msra.mxu0 %v2345
      %2528 = vmatpush.msra.mxu0 %v2341
      %2529 = vmatpush.msra.mxu0 %v2337
      %2530 = vmatpush.msra.mxu0 %v2333
      %2531 = vmatpush.msra.mxu0 %v2329
      %2532 = vmatpush.msra.mxu0 %v2325
      %2533 = vmatpush.msra.mxu0 %v2321
      %2534 = vmatpush.msra.mxu0 %v2317
      %2535 = vmatpush.msra.mxu0 %v2313
      %2536 = vmatpush.msra.mxu0 %v2309
      %2537 = vmatpush.msra.mxu0 %v2305
      %2538 = vmatpush.msra.mxu0 %v2301
      %2539 = vmatmul.f32.gmra.mxu0 %v2522
      %v2540 = vpop.f32.mrf.mxu0
      %v2541 = vadd.f32 %v2368, %v2540
      %2542 = vdwg.mxu0
      %2543 = vmatpush.msra.mxu0 %v2362
      %2544 = vmatpush.msra.mxu0 %v2358
      %2545 = vmatpush.msra.mxu0 %v2354
      %2546 = vmatpush.msra.mxu0 %v2350
      %2547 = vmatpush.msra.mxu0 %v2346
      %2548 = vmatpush.msra.mxu0 %v2342
      %2549 = vmatpush.msra.mxu0 %v2338
      %2550 = vmatpush.msra.mxu0 %v2334
      %2551 = vmatpush.msra.mxu0 %v2330
      %2552 = vmatpush.msra.mxu0 %v2326
      %2553 = vmatpush.msra.mxu0 %v2322
      %2554 = vmatpush.msra.mxu0 %v2318
      %2555 = vmatpush.msra.mxu0 %v2314
      %2556 = vmatpush.msra.mxu0 %v2310
      %2557 = vmatpush.msra.mxu0 %v2306
      %2558 = vmatpush.msra.mxu0 %v2302
      %2559 = vmatmul.f32.gmra.mxu0 %v2522
      %v2560 = vpop.f32.mrf.mxu0
      %v2561 = vadd.f32 %v2369, %v2560
      %2562 = vdwg.mxu0
      %2563 = vmatpush.msra.mxu0 %v2363
      %2564 = vmatpush.msra.mxu0 %v2359
      %2565 = vmatpush.msra.mxu0 %v2355
      %2566 = vmatpush.msra.mxu0 %v2351
      %2567 = vmatpush.msra.mxu0 %v2347
      %2568 = vmatpush.msra.mxu0 %v2343
      %2569 = vmatpush.msra.mxu0 %v2339
      %2570 = vmatpush.msra.mxu0 %v2335
      %2571 = vmatpush.msra.mxu0 %v2331
      %2572 = vmatpush.msra.mxu0 %v2327
      %2573 = vmatpush.msra.mxu0 %v2323
      %2574 = vmatpush.msra.mxu0 %v2319
      %2575 = vmatpush.msra.mxu0 %v2315
      %2576 = vmatpush.msra.mxu0 %v2311
      %2577 = vmatpush.msra.mxu0 %v2307
      %2578 = vmatpush.msra.mxu0 %v2303
      %2579 = vmatmul.f32.gmra.mxu0 %v2522
      %v2580 = vpop.f32.mrf.mxu0
      %v2581 = vadd.f32 %v2370, %v2580
      %2582 = vdwg.mxu0
      %2583 = vmatpush.msra.mxu0 %v2364
      %2584 = vmatpush.msra.mxu0 %v2360
      %2585 = vmatpush.msra.mxu0 %v2356
      %2586 = vmatpush.msra.mxu0 %v2352
      %2587 = vmatpush.msra.mxu0 %v2348
      %2588 = vmatpush.msra.mxu0 %v2344
      %2589 = vmatpush.msra.mxu0 %v2340
      %2590 = vmatpush.msra.mxu0 %v2336
      %2591 = vmatpush.msra.mxu0 %v2332
      %2592 = vmatpush.msra.mxu0 %v2328
      %2593 = vmatpush.msra.mxu0 %v2324
      %2594 = vmatpush.msra.mxu0 %v2320
      %2595 = vmatpush.msra.mxu0 %v2316
      %2596 = vmatpush.msra.mxu0 %v2312
      %2597 = vmatpush.msra.mxu0 %v2308
      %2598 = vmatpush.msra.mxu0 %v2304
      %2599 = vmatmul.f32.gmra.mxu0 %v2522
      %v2600 = vpop.f32.mrf.mxu0
      %v2601 = vadd.f32 %v2371, %v2600
      %2602 = vdwg.mxu0
      %2603 = vst [vmem:[#allocation2] sm:$0xff] %v2541
      %2604 = vst [vmem:[#allocation2 + $0x8] sm:$0xff] %v2561
      %2605 = vst [vmem:[#allocation2 + $0x10] sm:$0xff] %v2581
      %2606 = vst [vmem:[#allocation2 + $0x18] sm:$0xff] %v2601
      %v2607 = vld [vmem:[%s735] sm:$0xff]
      %v2608 = vld [vmem:[%s735 + $0x8] sm:$0xff]
      %v2609 = vld [vmem:[%s735 + $0x10] sm:$0xff]
      %v2610 = vld [vmem:[%s735 + $0x18] sm:$0xff]
      %2611 = vmatpush.msra.mxu0 %v2263
      %2612 = vmatpush.msra.mxu0 %v2259
      %2613 = vmatpush.msra.mxu0 %v2255
      %2614 = vmatpush.msra.mxu0 %v2251
      %2615 = vmatpush.msra.mxu0 %v2247
      %2616 = vmatpush.msra.mxu0 %v2243
      %2617 = vmatpush.msra.mxu0 %v2239
      %2618 = vmatpush.msra.mxu0 %v2235
      %2619 = vmatpush.msra.mxu0 %v2231
      %2620 = vmatpush.msra.mxu0 %v2227
      %2621 = vmatpush.msra.mxu0 %v2223
      %2622 = vmatpush.msra.mxu0 %v2219
      %2623 = vmatpush.msra.mxu0 %v2215
      %2624 = vmatpush.msra.mxu0 %v2211
      %2625 = vmatpush.msra.mxu0 %v2207
      %2626 = vmatpush.msra.mxu0 %v2203
      %2627 = vmatmul.f32.gmra.mxu0 %v2522
      %v2628 = vpop.f32.mrf.mxu0
      %v2629 = vadd.f32 0.0, %v2628
      %2630 = vdwg.mxu0
      %2631 = vmatpush.msra.mxu0 %v2264
      %2632 = vmatpush.msra.mxu0 %v2260
      %2633 = vmatpush.msra.mxu0 %v2256
      %2634 = vmatpush.msra.mxu0 %v2252
      %2635 = vmatpush.msra.mxu0 %v2248
      %2636 = vmatpush.msra.mxu0 %v2244
      %2637 = vmatpush.msra.mxu0 %v2240
      %2638 = vmatpush.msra.mxu0 %v2236
      %2639 = vmatpush.msra.mxu0 %v2232
      %2640 = vmatpush.msra.mxu0 %v2228
      %2641 = vmatpush.msra.mxu0 %v2224
      %2642 = vmatpush.msra.mxu0 %v2220
      %2643 = vmatpush.msra.mxu0 %v2216
      %2644 = vmatpush.msra.mxu0 %v2212
      %2645 = vmatpush.msra.mxu0 %v2208
      %2646 = vmatpush.msra.mxu0 %v2204
      %2647 = vmatmul.f32.gmra.mxu0 %v2522
      %v2648 = vpop.f32.mrf.mxu0
      %v2649 = vadd.f32 0.0, %v2648
      %2650 = vdwg.mxu0
      %2651 = vmatpush.msra.mxu0 %v2265
      %2652 = vmatpush.msra.mxu0 %v2261
      %2653 = vmatpush.msra.mxu0 %v2257
      %2654 = vmatpush.msra.mxu0 %v2253
      %2655 = vmatpush.msra.mxu0 %v2249
      %2656 = vmatpush.msra.mxu0 %v2245
      %2657 = vmatpush.msra.mxu0 %v2241
      %2658 = vmatpush.msra.mxu0 %v2237
      %2659 = vmatpush.msra.mxu0 %v2233
      %2660 = vmatpush.msra.mxu0 %v2229
      %2661 = vmatpush.msra.mxu0 %v2225
      %2662 = vmatpush.msra.mxu0 %v2221
      %2663 = vmatpush.msra.mxu0 %v2217
      %2664 = vmatpush.msra.mxu0 %v2213
      %2665 = vmatpush.msra.mxu0 %v2209
      %2666 = vmatpush.msra.mxu0 %v2205
      %2667 = vmatmul.f32.gmra.mxu0 %v2522
      %v2668 = vpop.f32.mrf.mxu0
      %v2669 = vadd.f32 0.0, %v2668
      %2670 = vdwg.mxu0
      %2671 = vmatpush.msra.mxu0 %v2266
      %2672 = vmatpush.msra.mxu0 %v2262
      %2673 = vmatpush.msra.mxu0 %v2258
      %2674 = vmatpush.msra.mxu0 %v2254
      %2675 = vmatpush.msra.mxu0 %v2250
      %2676 = vmatpush.msra.mxu0 %v2246
      %2677 = vmatpush.msra.mxu0 %v2242
      %2678 = vmatpush.msra.mxu0 %v2238
      %2679 = vmatpush.msra.mxu0 %v2234
      %2680 = vmatpush.msra.mxu0 %v2230
      %2681 = vmatpush.msra.mxu0 %v2226
      %2682 = vmatpush.msra.mxu0 %v2222
      %2683 = vmatpush.msra.mxu0 %v2218
      %2684 = vmatpush.msra.mxu0 %v2214
      %2685 = vmatpush.msra.mxu0 %v2210
      %2686 = vmatpush.msra.mxu0 %v2206
      %2687 = vmatmul.f32.gmra.mxu0 %v2522
      %v2688 = vpop.f32.mrf.mxu0
      %v2689 = vadd.f32 0.0, %v2688
      %2690 = vdwg.mxu0
      %v2691 = vadd.f32 %v2607, %v2629
      %v2692 = vadd.f32 %v2608, %v2649
      %v2693 = vadd.f32 %v2609, %v2669
      %v2694 = vadd.f32 %v2610, %v2689
      %v2695 = vxor.u32 %v2691, 2147483648
      %v2696 = vmul.f32 %v2695, 1.442695
      %v2697 = vpow.pop %v2696
      %v2698 = vadd.f32 %v2697, 1.0
      %v2699 = vrcp.pop %v2698
      %v2700 = vmul.f32 %v2698, %v2699
      %v2701 = vsub.f32 1.0, %v2700
      %v2702 = vmul.f32 %v2699, %v2701
      %v2703 = vadd.f32 %v2699, %v2702
      %vm2704 = vweird.f32 %v2698
      %vm2705 = vweird.f32 %v2699
      %vm2706 = vmor %vm2704, %vm2705
      %v2707 = vsel %vm2706, %v2699, %v2703
      %v2708 = vand.u32 2147483647, %v2698
      %vm2709 = vcmp.eq.f32.partialorder %v2708, 8.507059e+37
      %v2710 = vand.u32 %v2698, 2147483648
      %v2711 = vor.u32 1.1754944e-38, %v2710
      %v2712 = vsel %vm2709, %v2711, %v2707
      %v2713 = vmul.f32 1.0, %v2712
      %v2714 = vxor.u32 %v2692, 2147483648
      %v2715 = vmul.f32 %v2714, 1.442695
      %v2716 = vpow.pop %v2715
      %v2717 = vadd.f32 %v2716, 1.0
      %v2718 = vrcp.pop %v2717
      %v2719 = vmul.f32 %v2717, %v2718
      %v2720 = vsub.f32 1.0, %v2719
      %v2721 = vmul.f32 %v2718, %v2720
      %v2722 = vadd.f32 %v2718, %v2721
      %vm2723 = vweird.f32 %v2717
      %vm2724 = vweird.f32 %v2718
      %vm2725 = vmor %vm2723, %vm2724
      %v2726 = vsel %vm2725, %v2718, %v2722
      %v2727 = vand.u32 2147483647, %v2717
      %vm2728 = vcmp.eq.f32.partialorder %v2727, 8.507059e+37
      %v2729 = vand.u32 %v2717, 2147483648
      %v2730 = vor.u32 1.1754944e-38, %v2729
      %v2731 = vsel %vm2728, %v2730, %v2726
      %v2732 = vmul.f32 1.0, %v2731
      %v2733 = vtanh.pop %v2693
      %v2734 = vxor.u32 %v2694, 2147483648
      %v2735 = vmul.f32 %v2734, 1.442695
      %v2736 = vpow.pop %v2735
      %v2737 = vadd.f32 %v2736, 1.0
      %v2738 = vrcp.pop %v2737
      %v2739 = vmul.f32 %v2737, %v2738
      %v2740 = vsub.f32 1.0, %v2739
      %v2741 = vmul.f32 %v2738, %v2740
      %v2742 = vadd.f32 %v2738, %v2741
      %vm2743 = vweird.f32 %v2737
      %vm2744 = vweird.f32 %v2738
      %vm2745 = vmor %vm2743, %vm2744
      %v2746 = vsel %vm2745, %v2738, %v2742
      %v2747 = vand.u32 2147483647, %v2737
      %vm2748 = vcmp.eq.f32.partialorder %v2747, 8.507059e+37
      %v2749 = vand.u32 %v2737, 2147483648
      %v2750 = vor.u32 1.1754944e-38, %v2749
      %v2751 = vsel %vm2748, %v2750, %v2746
      %v2752 = vmul.f32 1.0, %v2751
      %v2753 = vmul.f32 %v2732, %v2520
      %v2754 = vmul.f32 %v2713, %v2733
      %v2755 = vadd.f32 %v2753, %v2754
      %v2756 = vtanh.pop %v2755
      %v2757 = vmul.f32 %v2752, %v2756
      %2758 = vmatpush.msra.mxu0 %v2361
      %2759 = vmatpush.msra.mxu0 %v2357
      %2760 = vmatpush.msra.mxu0 %v2353
      %2761 = vmatpush.msra.mxu0 %v2349
      %2762 = vmatpush.msra.mxu0 %v2345
      %2763 = vmatpush.msra.mxu0 %v2341
      %2764 = vmatpush.msra.mxu0 %v2337
      %2765 = vmatpush.msra.mxu0 %v2333
      %2766 = vmatpush.msra.mxu0 %v2329
      %2767 = vmatpush.msra.mxu0 %v2325
      %2768 = vmatpush.msra.mxu0 %v2321
      %2769 = vmatpush.msra.mxu0 %v2317
      %2770 = vmatpush.msra.mxu0 %v2313
      %2771 = vmatpush.msra.mxu0 %v2309
      %2772 = vmatpush.msra.mxu0 %v2305
      %2773 = vmatpush.msra.mxu0 %v2301
      %2774 = vmatmul.f32.gmra.mxu0 %v2757
      %v2775 = vpop.f32.mrf.mxu0
      %v2776 = vadd.f32 %v2368, %v2775
      %2777 = vdwg.mxu0
      %2778 = vmatpush.msra.mxu0 %v2362
      %2779 = vmatpush.msra.mxu0 %v2358
      %2780 = vmatpush.msra.mxu0 %v2354
      %2781 = vmatpush.msra.mxu0 %v2350
      %2782 = vmatpush.msra.mxu0 %v2346
      %2783 = vmatpush.msra.mxu0 %v2342
      %2784 = vmatpush.msra.mxu0 %v2338
      %2785 = vmatpush.msra.mxu0 %v2334
      %2786 = vmatpush.msra.mxu0 %v2330
      %2787 = vmatpush.msra.mxu0 %v2326
      %2788 = vmatpush.msra.mxu0 %v2322
      %2789 = vmatpush.msra.mxu0 %v2318
      %2790 = vmatpush.msra.mxu0 %v2314
      %2791 = vmatpush.msra.mxu0 %v2310
      %2792 = vmatpush.msra.mxu0 %v2306
      %2793 = vmatpush.msra.mxu0 %v2302
      %2794 = vmatmul.f32.gmra.mxu0 %v2757
      %v2795 = vpop.f32.mrf.mxu0
      %v2796 = vadd.f32 %v2369, %v2795
      %2797 = vdwg.mxu0
      %2798 = vmatpush.msra.mxu0 %v2363
      %2799 = vmatpush.msra.mxu0 %v2359
      %2800 = vmatpush.msra.mxu0 %v2355
      %2801 = vmatpush.msra.mxu0 %v2351
      %2802 = vmatpush.msra.mxu0 %v2347
      %2803 = vmatpush.msra.mxu0 %v2343
      %2804 = vmatpush.msra.mxu0 %v2339
      %2805 = vmatpush.msra.mxu0 %v2335
      %2806 = vmatpush.msra.mxu0 %v2331
      %2807 = vmatpush.msra.mxu0 %v2327
      %2808 = vmatpush.msra.mxu0 %v2323
      %2809 = vmatpush.msra.mxu0 %v2319
      %2810 = vmatpush.msra.mxu0 %v2315
      %2811 = vmatpush.msra.mxu0 %v2311
      %2812 = vmatpush.msra.mxu0 %v2307
      %2813 = vmatpush.msra.mxu0 %v2303
      %2814 = vmatmul.f32.gmra.mxu0 %v2757
      %v2815 = vpop.f32.mrf.mxu0
      %v2816 = vadd.f32 %v2370, %v2815
      %2817 = vdwg.mxu0
      %2818 = vmatpush.msra.mxu0 %v2364
      %2819 = vmatpush.msra.mxu0 %v2360
      %2820 = vmatpush.msra.mxu0 %v2356
      %2821 = vmatpush.msra.mxu0 %v2352
      %2822 = vmatpush.msra.mxu0 %v2348
      %2823 = vmatpush.msra.mxu0 %v2344
      %2824 = vmatpush.msra.mxu0 %v2340
      %2825 = vmatpush.msra.mxu0 %v2336
      %2826 = vmatpush.msra.mxu0 %v2332
      %2827 = vmatpush.msra.mxu0 %v2328
      %2828 = vmatpush.msra.mxu0 %v2324
      %2829 = vmatpush.msra.mxu0 %v2320
      %2830 = vmatpush.msra.mxu0 %v2316
      %2831 = vmatpush.msra.mxu0 %v2312
      %2832 = vmatpush.msra.mxu0 %v2308
      %2833 = vmatpush.msra.mxu0 %v2304
      %2834 = vmatmul.f32.gmra.mxu0 %v2757
      %v2835 = vpop.f32.mrf.mxu0
      %v2836 = vadd.f32 %v2371, %v2835
      %2837 = vdwg.mxu0
      %2838 = vst [vmem:[%s735] sm:$0xff] %v2776
      %2839 = vst [vmem:[%s735 + $0x8] sm:$0xff] %v2796
      %2840 = vst [vmem:[%s735 + $0x10] sm:$0xff] %v2816
      %2841 = vst [vmem:[%s735 + $0x18] sm:$0xff] %v2836
      %v2842 = vld [vmem:[%s972] sm:$0xff]
      %v2843 = vld [vmem:[%s972 + $0x8] sm:$0xff]
      %v2844 = vld [vmem:[%s972 + $0x10] sm:$0xff]
      %v2845 = vld [vmem:[%s972 + $0x18] sm:$0xff]
      %2846 = vmatpush.msra.mxu0 %v2263
      %2847 = vmatpush.msra.mxu0 %v2259
      %2848 = vmatpush.msra.mxu0 %v2255
      %2849 = vmatpush.msra.mxu0 %v2251
      %2850 = vmatpush.msra.mxu0 %v2247
      %2851 = vmatpush.msra.mxu0 %v2243
      %2852 = vmatpush.msra.mxu0 %v2239
      %2853 = vmatpush.msra.mxu0 %v2235
      %2854 = vmatpush.msra.mxu0 %v2231
      %2855 = vmatpush.msra.mxu0 %v2227
      %2856 = vmatpush.msra.mxu0 %v2223
      %2857 = vmatpush.msra.mxu0 %v2219
      %2858 = vmatpush.msra.mxu0 %v2215
      %2859 = vmatpush.msra.mxu0 %v2211
      %2860 = vmatpush.msra.mxu0 %v2207
      %2861 = vmatpush.msra.mxu0 %v2203
      %2862 = vmatmul.f32.gmra.mxu0 %v2757
      %v2863 = vpop.f32.mrf.mxu0
      %v2864 = vadd.f32 0.0, %v2863
      %2865 = vdwg.mxu0
      %2866 = vmatpush.msra.mxu0 %v2264
      %2867 = vmatpush.msra.mxu0 %v2260
      %2868 = vmatpush.msra.mxu0 %v2256
      %2869 = vmatpush.msra.mxu0 %v2252
      %2870 = vmatpush.msra.mxu0 %v2248
      %2871 = vmatpush.msra.mxu0 %v2244
      %2872 = vmatpush.msra.mxu0 %v2240
      %2873 = vmatpush.msra.mxu0 %v2236
      %2874 = vmatpush.msra.mxu0 %v2232
      %2875 = vmatpush.msra.mxu0 %v2228
      %2876 = vmatpush.msra.mxu0 %v2224
      %2877 = vmatpush.msra.mxu0 %v2220
      %2878 = vmatpush.msra.mxu0 %v2216
      %2879 = vmatpush.msra.mxu0 %v2212
      %2880 = vmatpush.msra.mxu0 %v2208
      %2881 = vmatpush.msra.mxu0 %v2204
      %2882 = vmatmul.f32.gmra.mxu0 %v2757
      %v2883 = vpop.f32.mrf.mxu0
      %v2884 = vadd.f32 0.0, %v2883
      %2885 = vdwg.mxu0
      %2886 = vmatpush.msra.mxu0 %v2265
      %2887 = vmatpush.msra.mxu0 %v2261
      %2888 = vmatpush.msra.mxu0 %v2257
      %2889 = vmatpush.msra.mxu0 %v2253
      %2890 = vmatpush.msra.mxu0 %v2249
      %2891 = vmatpush.msra.mxu0 %v2245
      %2892 = vmatpush.msra.mxu0 %v2241
      %2893 = vmatpush.msra.mxu0 %v2237
      %2894 = vmatpush.msra.mxu0 %v2233
      %2895 = vmatpush.msra.mxu0 %v2229
      %2896 = vmatpush.msra.mxu0 %v2225
      %2897 = vmatpush.msra.mxu0 %v2221
      %2898 = vmatpush.msra.mxu0 %v2217
      %2899 = vmatpush.msra.mxu0 %v2213
      %2900 = vmatpush.msra.mxu0 %v2209
      %2901 = vmatpush.msra.mxu0 %v2205
      %2902 = vmatmul.f32.gmra.mxu0 %v2757
      %v2903 = vpop.f32.mrf.mxu0
      %v2904 = vadd.f32 0.0, %v2903
      %2905 = vdwg.mxu0
      %2906 = vmatpush.msra.mxu0 %v2266
      %2907 = vmatpush.msra.mxu0 %v2262
      %2908 = vmatpush.msra.mxu0 %v2258
      %2909 = vmatpush.msra.mxu0 %v2254
      %2910 = vmatpush.msra.mxu0 %v2250
      %2911 = vmatpush.msra.mxu0 %v2246
      %2912 = vmatpush.msra.mxu0 %v2242
      %2913 = vmatpush.msra.mxu0 %v2238
      %2914 = vmatpush.msra.mxu0 %v2234
      %2915 = vmatpush.msra.mxu0 %v2230
      %2916 = vmatpush.msra.mxu0 %v2226
      %2917 = vmatpush.msra.mxu0 %v2222
      %2918 = vmatpush.msra.mxu0 %v2218
      %2919 = vmatpush.msra.mxu0 %v2214
      %2920 = vmatpush.msra.mxu0 %v2210
      %2921 = vmatpush.msra.mxu0 %v2206
      %2922 = vmatmul.f32.gmra.mxu0 %v2757
      %v2923 = vpop.f32.mrf.mxu0
      %v2924 = vadd.f32 0.0, %v2923
      %2925 = vdwg.mxu0
      %v2926 = vadd.f32 %v2842, %v2864
      %v2927 = vadd.f32 %v2843, %v2884
      %v2928 = vadd.f32 %v2844, %v2904
      %v2929 = vadd.f32 %v2845, %v2924
      %v2930 = vxor.u32 %v2926, 2147483648
      %v2931 = vmul.f32 %v2930, 1.442695
      %v2932 = vpow.pop %v2931
      %v2933 = vadd.f32 %v2932, 1.0
      %v2934 = vrcp.pop %v2933
      %v2935 = vmul.f32 %v2933, %v2934
      %v2936 = vsub.f32 1.0, %v2935
      %v2937 = vmul.f32 %v2934, %v2936
      %v2938 = vadd.f32 %v2934, %v2937
      %vm2939 = vweird.f32 %v2933
      %vm2940 = vweird.f32 %v2934
      %vm2941 = vmor %vm2939, %vm2940
      %v2942 = vsel %vm2941, %v2934, %v2938
      %v2943 = vand.u32 2147483647, %v2933
      %vm2944 = vcmp.eq.f32.partialorder %v2943, 8.507059e+37
      %v2945 = vand.u32 %v2933, 2147483648
      %v2946 = vor.u32 1.1754944e-38, %v2945
      %v2947 = vsel %vm2944, %v2946, %v2942
      %v2948 = vmul.f32 1.0, %v2947
      %v2949 = vxor.u32 %v2927, 2147483648
      %v2950 = vmul.f32 %v2949, 1.442695
      %v2951 = vpow.pop %v2950
      %v2952 = vadd.f32 %v2951, 1.0
      %v2953 = vrcp.pop %v2952
      %v2954 = vmul.f32 %v2952, %v2953
      %v2955 = vsub.f32 1.0, %v2954
      %v2956 = vmul.f32 %v2953, %v2955
      %v2957 = vadd.f32 %v2953, %v2956
      %vm2958 = vweird.f32 %v2952
      %vm2959 = vweird.f32 %v2953
      %vm2960 = vmor %vm2958, %vm2959
      %v2961 = vsel %vm2960, %v2953, %v2957
      %v2962 = vand.u32 2147483647, %v2952
      %vm2963 = vcmp.eq.f32.partialorder %v2962, 8.507059e+37
      %v2964 = vand.u32 %v2952, 2147483648
      %v2965 = vor.u32 1.1754944e-38, %v2964
      %v2966 = vsel %vm2963, %v2965, %v2961
      %v2967 = vmul.f32 1.0, %v2966
      %v2968 = vtanh.pop %v2928
      %v2969 = vxor.u32 %v2929, 2147483648
      %v2970 = vmul.f32 %v2969, 1.442695
      %v2971 = vpow.pop %v2970
      %v2972 = vadd.f32 %v2971, 1.0
      %v2973 = vrcp.pop %v2972
      %v2974 = vmul.f32 %v2972, %v2973
      %v2975 = vsub.f32 1.0, %v2974
      %v2976 = vmul.f32 %v2973, %v2975
      %v2977 = vadd.f32 %v2973, %v2976
      %vm2978 = vweird.f32 %v2972
      %vm2979 = vweird.f32 %v2973
      %vm2980 = vmor %vm2978, %vm2979
      %v2981 = vsel %vm2980, %v2973, %v2977
      %v2982 = vand.u32 2147483647, %v2972
      %vm2983 = vcmp.eq.f32.partialorder %v2982, 8.507059e+37
      %v2984 = vand.u32 %v2972, 2147483648
      %v2985 = vor.u32 1.1754944e-38, %v2984
      %v2986 = vsel %vm2983, %v2985, %v2981
      %v2987 = vmul.f32 1.0, %v2986
      %v2988 = vmul.f32 %v2967, %v2755
      %v2989 = vmul.f32 %v2948, %v2968
      %v2990 = vadd.f32 %v2988, %v2989
      %v2991 = vtanh.pop %v2990
      %v2992 = vmul.f32 %v2987, %v2991
      %2993 = vmatpush.msra.mxu0 %v2361
      %2994 = vmatpush.msra.mxu0 %v2357
      %2995 = vmatpush.msra.mxu0 %v2353
      %2996 = vmatpush.msra.mxu0 %v2349
      %2997 = vmatpush.msra.mxu0 %v2345
      %2998 = vmatpush.msra.mxu0 %v2341
      %2999 = vmatpush.msra.mxu0 %v2337
      %3000 = vmatpush.msra.mxu0 %v2333
      %3001 = vmatpush.msra.mxu0 %v2329
      %3002 = vmatpush.msra.mxu0 %v2325
      %3003 = vmatpush.msra.mxu0 %v2321
      %3004 = vmatpush.msra.mxu0 %v2317
      %3005 = vmatpush.msra.mxu0 %v2313
      %3006 = vmatpush.msra.mxu0 %v2309
      %3007 = vmatpush.msra.mxu0 %v2305
      %3008 = vmatpush.msra.mxu0 %v2301
      %3009 = vmatmul.f32.gmra.mxu0 %v2992
      %v3010 = vpop.f32.mrf.mxu0
      %v3011 = vadd.f32 %v2368, %v3010
      %3012 = vdwg.mxu0
      %3013 = vmatpush.msra.mxu0 %v2362
      %3014 = vmatpush.msra.mxu0 %v2358
      %3015 = vmatpush.msra.mxu0 %v2354
      %3016 = vmatpush.msra.mxu0 %v2350
      %3017 = vmatpush.msra.mxu0 %v2346
      %3018 = vmatpush.msra.mxu0 %v2342
      %3019 = vmatpush.msra.mxu0 %v2338
      %3020 = vmatpush.msra.mxu0 %v2334
      %3021 = vmatpush.msra.mxu0 %v2330
      %3022 = vmatpush.msra.mxu0 %v2326
      %3023 = vmatpush.msra.mxu0 %v2322
      %3024 = vmatpush.msra.mxu0 %v2318
      %3025 = vmatpush.msra.mxu0 %v2314
      %3026 = vmatpush.msra.mxu0 %v2310
      %3027 = vmatpush.msra.mxu0 %v2306
      %3028 = vmatpush.msra.mxu0 %v2302
      %3029 = vmatmul.f32.gmra.mxu0 %v2992
      %v3030 = vpop.f32.mrf.mxu0
      %v3031 = vadd.f32 %v2369, %v3030
      %3032 = vdwg.mxu0
      %3033 = vmatpush.msra.mxu0 %v2363
      %3034 = vmatpush.msra.mxu0 %v2359
      %3035 = vmatpush.msra.mxu0 %v2355
      %3036 = vmatpush.msra.mxu0 %v2351
      %3037 = vmatpush.msra.mxu0 %v2347
      %3038 = vmatpush.msra.mxu0 %v2343
      %3039 = vmatpush.msra.mxu0 %v2339
      %3040 = vmatpush.msra.mxu0 %v2335
      %3041 = vmatpush.msra.mxu0 %v2331
      %3042 = vmatpush.msra.mxu0 %v2327
      %3043 = vmatpush.msra.mxu0 %v2323
      %3044 = vmatpush.msra.mxu0 %v2319
      %3045 = vmatpush.msra.mxu0 %v2315
      %3046 = vmatpush.msra.mxu0 %v2311
      %3047 = vmatpush.msra.mxu0 %v2307
      %3048 = vmatpush.msra.mxu0 %v2303
      %3049 = vmatmul.f32.gmra.mxu0 %v2992
      %v3050 = vpop.f32.mrf.mxu0
      %v3051 = vadd.f32 %v2370, %v3050
      %3052 = vdwg.mxu0
      %3053 = vmatpush.msra.mxu0 %v2364
      %3054 = vmatpush.msra.mxu0 %v2360
      %3055 = vmatpush.msra.mxu0 %v2356
      %3056 = vmatpush.msra.mxu0 %v2352
      %3057 = vmatpush.msra.mxu0 %v2348
      %3058 = vmatpush.msra.mxu0 %v2344
      %3059 = vmatpush.msra.mxu0 %v2340
      %3060 = vmatpush.msra.mxu0 %v2336
      %3061 = vmatpush.msra.mxu0 %v2332
      %3062 = vmatpush.msra.mxu0 %v2328
      %3063 = vmatpush.msra.mxu0 %v2324
      %3064 = vmatpush.msra.mxu0 %v2320
      %3065 = vmatpush.msra.mxu0 %v2316
      %3066 = vmatpush.msra.mxu0 %v2312
      %3067 = vmatpush.msra.mxu0 %v2308
      %3068 = vmatpush.msra.mxu0 %v2304
      %3069 = vmatmul.f32.gmra.mxu0 %v2992
      %v3070 = vpop.f32.mrf.mxu0
      %v3071 = vadd.f32 %v2371, %v3070
      %3072 = vdwg.mxu0
      %3073 = vst [vmem:[%s972] sm:$0xff] %v3011
      %3074 = vst [vmem:[%s972 + $0x8] sm:$0xff] %v3031
      %3075 = vst [vmem:[%s972 + $0x10] sm:$0xff] %v3051
      %3076 = vst [vmem:[%s972 + $0x18] sm:$0xff] %v3071
      %v3077 = vld [vmem:[%s1209] sm:$0xff]
      %v3078 = vld [vmem:[%s1209 + $0x8] sm:$0xff]
      %v3079 = vld [vmem:[%s1209 + $0x10] sm:$0xff]
      %v3080 = vld [vmem:[%s1209 + $0x18] sm:$0xff]
      %3081 = vmatpush.msra.mxu0 %v2263
      %3082 = vmatpush.msra.mxu0 %v2259
      %3083 = vmatpush.msra.mxu0 %v2255
      %3084 = vmatpush.msra.mxu0 %v2251
      %3085 = vmatpush.msra.mxu0 %v2247
      %3086 = vmatpush.msra.mxu0 %v2243
      %3087 = vmatpush.msra.mxu0 %v2239
      %3088 = vmatpush.msra.mxu0 %v2235
      %3089 = vmatpush.msra.mxu0 %v2231
      %3090 = vmatpush.msra.mxu0 %v2227
      %3091 = vmatpush.msra.mxu0 %v2223
      %3092 = vmatpush.msra.mxu0 %v2219
      %3093 = vmatpush.msra.mxu0 %v2215
      %3094 = vmatpush.msra.mxu0 %v2211
      %3095 = vmatpush.msra.mxu0 %v2207
      %3096 = vmatpush.msra.mxu0 %v2203
      %3097 = vmatmul.f32.gmra.mxu0 %v2992
      %v3098 = vpop.f32.mrf.mxu0
      %v3099 = vadd.f32 0.0, %v3098
      %3100 = vdwg.mxu0
      %3101 = vmatpush.msra.mxu0 %v2264
      %3102 = vmatpush.msra.mxu0 %v2260
      %3103 = vmatpush.msra.mxu0 %v2256
      %3104 = vmatpush.msra.mxu0 %v2252
      %3105 = vmatpush.msra.mxu0 %v2248
      %3106 = vmatpush.msra.mxu0 %v2244
      %3107 = vmatpush.msra.mxu0 %v2240
      %3108 = vmatpush.msra.mxu0 %v2236
      %3109 = vmatpush.msra.mxu0 %v2232
      %3110 = vmatpush.msra.mxu0 %v2228
      %3111 = vmatpush.msra.mxu0 %v2224
      %3112 = vmatpush.msra.mxu0 %v2220
      %3113 = vmatpush.msra.mxu0 %v2216
      %3114 = vmatpush.msra.mxu0 %v2212
      %3115 = vmatpush.msra.mxu0 %v2208
      %3116 = vmatpush.msra.mxu0 %v2204
      %3117 = vmatmul.f32.gmra.mxu0 %v2992
      %v3118 = vpop.f32.mrf.mxu0
      %v3119 = vadd.f32 0.0, %v3118
      %3120 = vdwg.mxu0
      %3121 = vmatpush.msra.mxu0 %v2265
      %3122 = vmatpush.msra.mxu0 %v2261
      %3123 = vmatpush.msra.mxu0 %v2257
      %3124 = vmatpush.msra.mxu0 %v2253
      %3125 = vmatpush.msra.mxu0 %v2249
      %3126 = vmatpush.msra.mxu0 %v2245
      %3127 = vmatpush.msra.mxu0 %v2241
      %3128 = vmatpush.msra.mxu0 %v2237
      %3129 = vmatpush.msra.mxu0 %v2233
      %3130 = vmatpush.msra.mxu0 %v2229
      %3131 = vmatpush.msra.mxu0 %v2225
      %3132 = vmatpush.msra.mxu0 %v2221
      %3133 = vmatpush.msra.mxu0 %v2217
      %3134 = vmatpush.msra.mxu0 %v2213
      %3135 = vmatpush.msra.mxu0 %v2209
      %3136 = vmatpush.msra.mxu0 %v2205
      %3137 = vmatmul.f32.gmra.mxu0 %v2992
      %v3138 = vpop.f32.mrf.mxu0
      %v3139 = vadd.f32 0.0, %v3138
      %3140 = vdwg.mxu0
      %3141 = vmatpush.msra.mxu0 %v2266
      %3142 = vmatpush.msra.mxu0 %v2262
      %3143 = vmatpush.msra.mxu0 %v2258
      %3144 = vmatpush.msra.mxu0 %v2254
      %3145 = vmatpush.msra.mxu0 %v2250
      %3146 = vmatpush.msra.mxu0 %v2246
      %3147 = vmatpush.msra.mxu0 %v2242
      %3148 = vmatpush.msra.mxu0 %v2238
      %3149 = vmatpush.msra.mxu0 %v2234
      %3150 = vmatpush.msra.mxu0 %v2230
      %3151 = vmatpush.msra.mxu0 %v2226
      %3152 = vmatpush.msra.mxu0 %v2222
      %3153 = vmatpush.msra.mxu0 %v2218
      %3154 = vmatpush.msra.mxu0 %v2214
      %3155 = vmatpush.msra.mxu0 %v2210
      %3156 = vmatpush.msra.mxu0 %v2206
      %3157 = vmatmul.f32.gmra.mxu0 %v2992
      %v3158 = vpop.f32.mrf.mxu0
      %v3159 = vadd.f32 0.0, %v3158
      %3160 = vdwg.mxu0
      %v3161 = vadd.f32 %v3077, %v3099
      %v3162 = vadd.f32 %v3078, %v3119
      %v3163 = vadd.f32 %v3079, %v3139
      %v3164 = vadd.f32 %v3080, %v3159
      %v3165 = vxor.u32 %v3161, 2147483648
      %v3166 = vmul.f32 %v3165, 1.442695
      %v3167 = vpow.pop %v3166
      %v3168 = vadd.f32 %v3167, 1.0
      %v3169 = vrcp.pop %v3168
      %v3170 = vmul.f32 %v3168, %v3169
      %v3171 = vsub.f32 1.0, %v3170
      %v3172 = vmul.f32 %v3169, %v3171
      %v3173 = vadd.f32 %v3169, %v3172
      %vm3174 = vweird.f32 %v3168
      %vm3175 = vweird.f32 %v3169
      %vm3176 = vmor %vm3174, %vm3175
      %v3177 = vsel %vm3176, %v3169, %v3173
      %v3178 = vand.u32 2147483647, %v3168
      %vm3179 = vcmp.eq.f32.partialorder %v3178, 8.507059e+37
      %v3180 = vand.u32 %v3168, 2147483648
      %v3181 = vor.u32 1.1754944e-38, %v3180
      %v3182 = vsel %vm3179, %v3181, %v3177
      %v3183 = vmul.f32 1.0, %v3182
      %v3184 = vxor.u32 %v3162, 2147483648
      %v3185 = vmul.f32 %v3184, 1.442695
      %v3186 = vpow.pop %v3185
      %v3187 = vadd.f32 %v3186, 1.0
      %v3188 = vrcp.pop %v3187
      %v3189 = vmul.f32 %v3187, %v3188
      %v3190 = vsub.f32 1.0, %v3189
      %v3191 = vmul.f32 %v3188, %v3190
      %v3192 = vadd.f32 %v3188, %v3191
      %vm3193 = vweird.f32 %v3187
      %vm3194 = vweird.f32 %v3188
      %vm3195 = vmor %vm3193, %vm3194
      %v3196 = vsel %vm3195, %v3188, %v3192
      %v3197 = vand.u32 2147483647, %v3187
      %vm3198 = vcmp.eq.f32.partialorder %v3197, 8.507059e+37
      %v3199 = vand.u32 %v3187, 2147483648
      %v3200 = vor.u32 1.1754944e-38, %v3199
      %v3201 = vsel %vm3198, %v3200, %v3196
      %v3202 = vmul.f32 1.0, %v3201
      %v3203 = vtanh.pop %v3163
      %v3204 = vxor.u32 %v3164, 2147483648
      %v3205 = vmul.f32 %v3204, 1.442695
      %v3206 = vpow.pop %v3205
      %v3207 = vadd.f32 %v3206, 1.0
      %v3208 = vrcp.pop %v3207
      %v3209 = vmul.f32 %v3207, %v3208
      %v3210 = vsub.f32 1.0, %v3209
      %v3211 = vmul.f32 %v3208, %v3210
      %v3212 = vadd.f32 %v3208, %v3211
      %vm3213 = vweird.f32 %v3207
      %vm3214 = vweird.f32 %v3208
      %vm3215 = vmor %vm3213, %vm3214
      %v3216 = vsel %vm3215, %v3208, %v3212
      %v3217 = vand.u32 2147483647, %v3207
      %vm3218 = vcmp.eq.f32.partialorder %v3217, 8.507059e+37
      %v3219 = vand.u32 %v3207, 2147483648
      %v3220 = vor.u32 1.1754944e-38, %v3219
      %v3221 = vsel %vm3218, %v3220, %v3216
      %v3222 = vmul.f32 1.0, %v3221
      %v3223 = vmul.f32 %v3202, %v2990
      %v3224 = vmul.f32 %v3183, %v3203
      %v3225 = vadd.f32 %v3223, %v3224
      %v3226 = vtanh.pop %v3225
      %v3227 = vmul.f32 %v3222, %v3226
      %3228 = vmatpush.msra.mxu0 %v2361
      %3229 = vmatpush.msra.mxu0 %v2357
      %3230 = vmatpush.msra.mxu0 %v2353
      %3231 = vmatpush.msra.mxu0 %v2349
      %3232 = vmatpush.msra.mxu0 %v2345
      %3233 = vmatpush.msra.mxu0 %v2341
      %3234 = vmatpush.msra.mxu0 %v2337
      %3235 = vmatpush.msra.mxu0 %v2333
      %3236 = vmatpush.msra.mxu0 %v2329
      %3237 = vmatpush.msra.mxu0 %v2325
      %3238 = vmatpush.msra.mxu0 %v2321
      %3239 = vmatpush.msra.mxu0 %v2317
      %3240 = vmatpush.msra.mxu0 %v2313
      %3241 = vmatpush.msra.mxu0 %v2309
      %3242 = vmatpush.msra.mxu0 %v2305
      %3243 = vmatpush.msra.mxu0 %v2301
      %3244 = vmatmul.f32.gmra.mxu0 %v3227
      %v3245 = vpop.f32.mrf.mxu0
      %v3246 = vadd.f32 %v2368, %v3245
      %3247 = vdwg.mxu0
      %3248 = vmatpush.msra.mxu0 %v2362
      %3249 = vmatpush.msra.mxu0 %v2358
      %3250 = vmatpush.msra.mxu0 %v2354
      %3251 = vmatpush.msra.mxu0 %v2350
      %3252 = vmatpush.msra.mxu0 %v2346
      %3253 = vmatpush.msra.mxu0 %v2342
      %3254 = vmatpush.msra.mxu0 %v2338
      %3255 = vmatpush.msra.mxu0 %v2334
      %3256 = vmatpush.msra.mxu0 %v2330
      %3257 = vmatpush.msra.mxu0 %v2326
      %3258 = vmatpush.msra.mxu0 %v2322
      %3259 = vmatpush.msra.mxu0 %v2318
      %3260 = vmatpush.msra.mxu0 %v2314
      %3261 = vmatpush.msra.mxu0 %v2310
      %3262 = vmatpush.msra.mxu0 %v2306
      %3263 = vmatpush.msra.mxu0 %v2302
      %3264 = vmatmul.f32.gmra.mxu0 %v3227
      %v3265 = vpop.f32.mrf.mxu0
      %v3266 = vadd.f32 %v2369, %v3265
      %3267 = vdwg.mxu0
      %3268 = vmatpush.msra.mxu0 %v2363
      %3269 = vmatpush.msra.mxu0 %v2359
      %3270 = vmatpush.msra.mxu0 %v2355
      %3271 = vmatpush.msra.mxu0 %v2351
      %3272 = vmatpush.msra.mxu0 %v2347
      %3273 = vmatpush.msra.mxu0 %v2343
      %3274 = vmatpush.msra.mxu0 %v2339
      %3275 = vmatpush.msra.mxu0 %v2335
      %3276 = vmatpush.msra.mxu0 %v2331
      %3277 = vmatpush.msra.mxu0 %v2327
      %3278 = vmatpush.msra.mxu0 %v2323
      %3279 = vmatpush.msra.mxu0 %v2319
      %3280 = vmatpush.msra.mxu0 %v2315
      %3281 = vmatpush.msra.mxu0 %v2311
      %3282 = vmatpush.msra.mxu0 %v2307
      %3283 = vmatpush.msra.mxu0 %v2303
      %3284 = vmatmul.f32.gmra.mxu0 %v3227
      %v3285 = vpop.f32.mrf.mxu0
      %v3286 = vadd.f32 %v2370, %v3285
      %3287 = vdwg.mxu0
      %3288 = vmatpush.msra.mxu0 %v2364
      %3289 = vmatpush.msra.mxu0 %v2360
      %3290 = vmatpush.msra.mxu0 %v2356
      %3291 = vmatpush.msra.mxu0 %v2352
      %3292 = vmatpush.msra.mxu0 %v2348
      %3293 = vmatpush.msra.mxu0 %v2344
      %3294 = vmatpush.msra.mxu0 %v2340
      %3295 = vmatpush.msra.mxu0 %v2336
      %3296 = vmatpush.msra.mxu0 %v2332
      %3297 = vmatpush.msra.mxu0 %v2328
      %3298 = vmatpush.msra.mxu0 %v2324
      %3299 = vmatpush.msra.mxu0 %v2320
      %3300 = vmatpush.msra.mxu0 %v2316
      %3301 = vmatpush.msra.mxu0 %v2312
      %3302 = vmatpush.msra.mxu0 %v2308
      %3303 = vmatpush.msra.mxu0 %v2304
      %3304 = vmatmul.f32.gmra.mxu0 %v3227
      %v3305 = vpop.f32.mrf.mxu0
      %v3306 = vadd.f32 %v2371, %v3305
      %3307 = vdwg.mxu0
      %3308 = vst [vmem:[%s1209] sm:$0xff] %v3246
      %3309 = vst [vmem:[%s1209 + $0x8] sm:$0xff] %v3266
      %3310 = vst [vmem:[%s1209 + $0x10] sm:$0xff] %v3286
      %3311 = vst [vmem:[%s1209 + $0x18] sm:$0xff] %v3306
      %v3312 = vld [vmem:[%s1446] sm:$0xff]
      %v3313 = vld [vmem:[%s1446 + $0x8] sm:$0xff]
      %v3314 = vld [vmem:[%s1446 + $0x10] sm:$0xff]
      %v3315 = vld [vmem:[%s1446 + $0x18] sm:$0xff]
      %3316 = vmatpush.msra.mxu0 %v2263
      %3317 = vmatpush.msra.mxu0 %v2259
      %3318 = vmatpush.msra.mxu0 %v2255
      %3319 = vmatpush.msra.mxu0 %v2251
      %3320 = vmatpush.msra.mxu0 %v2247
      %3321 = vmatpush.msra.mxu0 %v2243
      %3322 = vmatpush.msra.mxu0 %v2239
      %3323 = vmatpush.msra.mxu0 %v2235
      %3324 = vmatpush.msra.mxu0 %v2231
      %3325 = vmatpush.msra.mxu0 %v2227
      %3326 = vmatpush.msra.mxu0 %v2223
      %3327 = vmatpush.msra.mxu0 %v2219
      %3328 = vmatpush.msra.mxu0 %v2215
      %3329 = vmatpush.msra.mxu0 %v2211
      %3330 = vmatpush.msra.mxu0 %v2207
      %3331 = vmatpush.msra.mxu0 %v2203
      %3332 = vmatmul.f32.gmra.mxu0 %v3227
      %v3333 = vpop.f32.mrf.mxu0
      %v3334 = vadd.f32 0.0, %v3333
      %3335 = vdwg.mxu0
      %3336 = vmatpush.msra.mxu0 %v2264
      %3337 = vmatpush.msra.mxu0 %v2260
      %3338 = vmatpush.msra.mxu0 %v2256
      %3339 = vmatpush.msra.mxu0 %v2252
      %3340 = vmatpush.msra.mxu0 %v2248
      %3341 = vmatpush.msra.mxu0 %v2244
      %3342 = vmatpush.msra.mxu0 %v2240
      %3343 = vmatpush.msra.mxu0 %v2236
      %3344 = vmatpush.msra.mxu0 %v2232
      %3345 = vmatpush.msra.mxu0 %v2228
      %3346 = vmatpush.msra.mxu0 %v2224
      %3347 = vmatpush.msra.mxu0 %v2220
      %3348 = vmatpush.msra.mxu0 %v2216
      %3349 = vmatpush.msra.mxu0 %v2212
      %3350 = vmatpush.msra.mxu0 %v2208
      %3351 = vmatpush.msra.mxu0 %v2204
      %3352 = vmatmul.f32.gmra.mxu0 %v3227
      %v3353 = vpop.f32.mrf.mxu0
      %v3354 = vadd.f32 0.0, %v3353
      %3355 = vdwg.mxu0
      %3356 = vmatpush.msra.mxu0 %v2265
      %3357 = vmatpush.msra.mxu0 %v2261
      %3358 = vmatpush.msra.mxu0 %v2257
      %3359 = vmatpush.msra.mxu0 %v2253
      %3360 = vmatpush.msra.mxu0 %v2249
      %3361 = vmatpush.msra.mxu0 %v2245
      %3362 = vmatpush.msra.mxu0 %v2241
      %3363 = vmatpush.msra.mxu0 %v2237
      %3364 = vmatpush.msra.mxu0 %v2233
      %3365 = vmatpush.msra.mxu0 %v2229
      %3366 = vmatpush.msra.mxu0 %v2225
      %3367 = vmatpush.msra.mxu0 %v2221
      %3368 = vmatpush.msra.mxu0 %v2217
      %3369 = vmatpush.msra.mxu0 %v2213
      %3370 = vmatpush.msra.mxu0 %v2209
      %3371 = vmatpush.msra.mxu0 %v2205
      %3372 = vmatmul.f32.gmra.mxu0 %v3227
      %v3373 = vpop.f32.mrf.mxu0
      %v3374 = vadd.f32 0.0, %v3373
      %3375 = vdwg.mxu0
      %3376 = vmatpush.msra.mxu0 %v2266
      %3377 = vmatpush.msra.mxu0 %v2262
      %3378 = vmatpush.msra.mxu0 %v2258
      %3379 = vmatpush.msra.mxu0 %v2254
      %3380 = vmatpush.msra.mxu0 %v2250
      %3381 = vmatpush.msra.mxu0 %v2246
      %3382 = vmatpush.msra.mxu0 %v2242
      %3383 = vmatpush.msra.mxu0 %v2238
      %3384 = vmatpush.msra.mxu0 %v2234
      %3385 = vmatpush.msra.mxu0 %v2230
      %3386 = vmatpush.msra.mxu0 %v2226
      %3387 = vmatpush.msra.mxu0 %v2222
      %3388 = vmatpush.msra.mxu0 %v2218
      %3389 = vmatpush.msra.mxu0 %v2214
      %3390 = vmatpush.msra.mxu0 %v2210
      %3391 = vmatpush.msra.mxu0 %v2206
      %3392 = vmatmul.f32.gmra.mxu0 %v3227
      %v3393 = vpop.f32.mrf.mxu0
      %v3394 = vadd.f32 0.0, %v3393
      %3395 = vdwg.mxu0
      %v3396 = vadd.f32 %v3312, %v3334
      %v3397 = vadd.f32 %v3313, %v3354
      %v3398 = vadd.f32 %v3314, %v3374
      %v3399 = vadd.f32 %v3315, %v3394
      %v3400 = vxor.u32 %v3396, 2147483648
      %v3401 = vmul.f32 %v3400, 1.442695
      %v3402 = vpow.pop %v3401
      %v3403 = vadd.f32 %v3402, 1.0
      %v3404 = vrcp.pop %v3403
      %v3405 = vmul.f32 %v3403, %v3404
      %v3406 = vsub.f32 1.0, %v3405
      %v3407 = vmul.f32 %v3404, %v3406
      %v3408 = vadd.f32 %v3404, %v3407
      %vm3409 = vweird.f32 %v3403
      %vm3410 = vweird.f32 %v3404
      %vm3411 = vmor %vm3409, %vm3410
      %v3412 = vsel %vm3411, %v3404, %v3408
      %v3413 = vand.u32 2147483647, %v3403
      %vm3414 = vcmp.eq.f32.partialorder %v3413, 8.507059e+37
      %v3415 = vand.u32 %v3403, 2147483648
      %v3416 = vor.u32 1.1754944e-38, %v3415
      %v3417 = vsel %vm3414, %v3416, %v3412
      %v3418 = vmul.f32 1.0, %v3417
      %v3419 = vxor.u32 %v3397, 2147483648
      %v3420 = vmul.f32 %v3419, 1.442695
      %v3421 = vpow.pop %v3420
      %v3422 = vadd.f32 %v3421, 1.0
      %v3423 = vrcp.pop %v3422
      %v3424 = vmul.f32 %v3422, %v3423
      %v3425 = vsub.f32 1.0, %v3424
      %v3426 = vmul.f32 %v3423, %v3425
      %v3427 = vadd.f32 %v3423, %v3426
      %vm3428 = vweird.f32 %v3422
      %vm3429 = vweird.f32 %v3423
      %vm3430 = vmor %vm3428, %vm3429
      %v3431 = vsel %vm3430, %v3423, %v3427
      %v3432 = vand.u32 2147483647, %v3422
      %vm3433 = vcmp.eq.f32.partialorder %v3432, 8.507059e+37
      %v3434 = vand.u32 %v3422, 2147483648
      %v3435 = vor.u32 1.1754944e-38, %v3434
      %v3436 = vsel %vm3433, %v3435, %v3431
      %v3437 = vmul.f32 1.0, %v3436
      %v3438 = vtanh.pop %v3398
      %v3439 = vxor.u32 %v3399, 2147483648
      %v3440 = vmul.f32 %v3439, 1.442695
      %v3441 = vpow.pop %v3440
      %v3442 = vadd.f32 %v3441, 1.0
      %v3443 = vrcp.pop %v3442
      %v3444 = vmul.f32 %v3442, %v3443
      %v3445 = vsub.f32 1.0, %v3444
      %v3446 = vmul.f32 %v3443, %v3445
      %v3447 = vadd.f32 %v3443, %v3446
      %vm3448 = vweird.f32 %v3442
      %vm3449 = vweird.f32 %v3443
      %vm3450 = vmor %vm3448, %vm3449
      %v3451 = vsel %vm3450, %v3443, %v3447
      %v3452 = vand.u32 2147483647, %v3442
      %vm3453 = vcmp.eq.f32.partialorder %v3452, 8.507059e+37
      %v3454 = vand.u32 %v3442, 2147483648
      %v3455 = vor.u32 1.1754944e-38, %v3454
      %v3456 = vsel %vm3453, %v3455, %v3451
      %v3457 = vmul.f32 1.0, %v3456
      %v3458 = vmul.f32 %v3437, %v3225
      %v3459 = vmul.f32 %v3418, %v3438
      %v3460 = vadd.f32 %v3458, %v3459
      %v3461 = vtanh.pop %v3460
      %v3462 = vmul.f32 %v3457, %v3461
      %3463 = vmatpush.msra.mxu0 %v2361
      %3464 = vmatpush.msra.mxu0 %v2357
      %3465 = vmatpush.msra.mxu0 %v2353
      %3466 = vmatpush.msra.mxu0 %v2349
      %3467 = vmatpush.msra.mxu0 %v2345
      %3468 = vmatpush.msra.mxu0 %v2341
      %3469 = vmatpush.msra.mxu0 %v2337
      %3470 = vmatpush.msra.mxu0 %v2333
      %3471 = vmatpush.msra.mxu0 %v2329
      %3472 = vmatpush.msra.mxu0 %v2325
      %3473 = vmatpush.msra.mxu0 %v2321
      %3474 = vmatpush.msra.mxu0 %v2317
      %3475 = vmatpush.msra.mxu0 %v2313
      %3476 = vmatpush.msra.mxu0 %v2309
      %3477 = vmatpush.msra.mxu0 %v2305
      %3478 = vmatpush.msra.mxu0 %v2301
      %3479 = vmatmul.f32.gmra.mxu0 %v3462
      %v3480 = vpop.f32.mrf.mxu0
      %v3481 = vadd.f32 %v2368, %v3480
      %3482 = vdwg.mxu0
      %3483 = vmatpush.msra.mxu0 %v2362
      %3484 = vmatpush.msra.mxu0 %v2358
      %3485 = vmatpush.msra.mxu0 %v2354
      %3486 = vmatpush.msra.mxu0 %v2350
      %3487 = vmatpush.msra.mxu0 %v2346
      %3488 = vmatpush.msra.mxu0 %v2342
      %3489 = vmatpush.msra.mxu0 %v2338
      %3490 = vmatpush.msra.mxu0 %v2334
      %3491 = vmatpush.msra.mxu0 %v2330
      %3492 = vmatpush.msra.mxu0 %v2326
      %3493 = vmatpush.msra.mxu0 %v2322
      %3494 = vmatpush.msra.mxu0 %v2318
      %3495 = vmatpush.msra.mxu0 %v2314
      %3496 = vmatpush.msra.mxu0 %v2310
      %3497 = vmatpush.msra.mxu0 %v2306
      %3498 = vmatpush.msra.mxu0 %v2302
      %3499 = vmatmul.f32.gmra.mxu0 %v3462
      %v3500 = vpop.f32.mrf.mxu0
      %v3501 = vadd.f32 %v2369, %v3500
      %3502 = vdwg.mxu0
      %3503 = vmatpush.msra.mxu0 %v2363
      %3504 = vmatpush.msra.mxu0 %v2359
      %3505 = vmatpush.msra.mxu0 %v2355
      %3506 = vmatpush.msra.mxu0 %v2351
      %3507 = vmatpush.msra.mxu0 %v2347
      %3508 = vmatpush.msra.mxu0 %v2343
      %3509 = vmatpush.msra.mxu0 %v2339
      %3510 = vmatpush.msra.mxu0 %v2335
      %3511 = vmatpush.msra.mxu0 %v2331
      %3512 = vmatpush.msra.mxu0 %v2327
      %3513 = vmatpush.msra.mxu0 %v2323
      %3514 = vmatpush.msra.mxu0 %v2319
      %3515 = vmatpush.msra.mxu0 %v2315
      %3516 = vmatpush.msra.mxu0 %v2311
      %3517 = vmatpush.msra.mxu0 %v2307
      %3518 = vmatpush.msra.mxu0 %v2303
      %3519 = vmatmul.f32.gmra.mxu0 %v3462
      %v3520 = vpop.f32.mrf.mxu0
      %v3521 = vadd.f32 %v2370, %v3520
      %3522 = vdwg.mxu0
      %3523 = vmatpush.msra.mxu0 %v2364
      %3524 = vmatpush.msra.mxu0 %v2360
      %3525 = vmatpush.msra.mxu0 %v2356
      %3526 = vmatpush.msra.mxu0 %v2352
      %3527 = vmatpush.msra.mxu0 %v2348
      %3528 = vmatpush.msra.mxu0 %v2344
      %3529 = vmatpush.msra.mxu0 %v2340
      %3530 = vmatpush.msra.mxu0 %v2336
      %3531 = vmatpush.msra.mxu0 %v2332
      %3532 = vmatpush.msra.mxu0 %v2328
      %3533 = vmatpush.msra.mxu0 %v2324
      %3534 = vmatpush.msra.mxu0 %v2320
      %3535 = vmatpush.msra.mxu0 %v2316
      %3536 = vmatpush.msra.mxu0 %v2312
      %3537 = vmatpush.msra.mxu0 %v2308
      %3538 = vmatpush.msra.mxu0 %v2304
      %3539 = vmatmul.f32.gmra.mxu0 %v3462
      %v3540 = vpop.f32.mrf.mxu0
      %v3541 = vadd.f32 %v2371, %v3540
      %3542 = vdwg.mxu0
      %3543 = vst [vmem:[%s1446] sm:$0xff] %v3481
      %3544 = vst [vmem:[%s1446 + $0x8] sm:$0xff] %v3501
      %3545 = vst [vmem:[%s1446 + $0x10] sm:$0xff] %v3521
      %3546 = vst [vmem:[%s1446 + $0x18] sm:$0xff] %v3541
      %v3547 = vld [vmem:[%s1683] sm:$0xff]
      %v3548 = vld [vmem:[%s1683 + $0x8] sm:$0xff]
      %v3549 = vld [vmem:[%s1683 + $0x10] sm:$0xff]
      %v3550 = vld [vmem:[%s1683 + $0x18] sm:$0xff]
      %3551 = vmatpush.msra.mxu0 %v2263
      %3552 = vmatpush.msra.mxu0 %v2259
      %3553 = vmatpush.msra.mxu0 %v2255
      %3554 = vmatpush.msra.mxu0 %v2251
      %3555 = vmatpush.msra.mxu0 %v2247
      %3556 = vmatpush.msra.mxu0 %v2243
      %3557 = vmatpush.msra.mxu0 %v2239
      %3558 = vmatpush.msra.mxu0 %v2235
      %3559 = vmatpush.msra.mxu0 %v2231
      %3560 = vmatpush.msra.mxu0 %v2227
      %3561 = vmatpush.msra.mxu0 %v2223
      %3562 = vmatpush.msra.mxu0 %v2219
      %3563 = vmatpush.msra.mxu0 %v2215
      %3564 = vmatpush.msra.mxu0 %v2211
      %3565 = vmatpush.msra.mxu0 %v2207
      %3566 = vmatpush.msra.mxu0 %v2203
      %3567 = vmatmul.f32.gmra.mxu0 %v3462
      %v3568 = vpop.f32.mrf.mxu0
      %v3569 = vadd.f32 0.0, %v3568
      %3570 = vdwg.mxu0
      %3571 = vmatpush.msra.mxu0 %v2264
      %3572 = vmatpush.msra.mxu0 %v2260
      %3573 = vmatpush.msra.mxu0 %v2256
      %3574 = vmatpush.msra.mxu0 %v2252
      %3575 = vmatpush.msra.mxu0 %v2248
      %3576 = vmatpush.msra.mxu0 %v2244
      %3577 = vmatpush.msra.mxu0 %v2240
      %3578 = vmatpush.msra.mxu0 %v2236
      %3579 = vmatpush.msra.mxu0 %v2232
      %3580 = vmatpush.msra.mxu0 %v2228
      %3581 = vmatpush.msra.mxu0 %v2224
      %3582 = vmatpush.msra.mxu0 %v2220
      %3583 = vmatpush.msra.mxu0 %v2216
      %3584 = vmatpush.msra.mxu0 %v2212
      %3585 = vmatpush.msra.mxu0 %v2208
      %3586 = vmatpush.msra.mxu0 %v2204
      %3587 = vmatmul.f32.gmra.mxu0 %v3462
      %v3588 = vpop.f32.mrf.mxu0
      %v3589 = vadd.f32 0.0, %v3588
      %3590 = vdwg.mxu0
      %3591 = vmatpush.msra.mxu0 %v2265
      %3592 = vmatpush.msra.mxu0 %v2261
      %3593 = vmatpush.msra.mxu0 %v2257
      %3594 = vmatpush.msra.mxu0 %v2253
      %3595 = vmatpush.msra.mxu0 %v2249
      %3596 = vmatpush.msra.mxu0 %v2245
      %3597 = vmatpush.msra.mxu0 %v2241
      %3598 = vmatpush.msra.mxu0 %v2237
      %3599 = vmatpush.msra.mxu0 %v2233
      %3600 = vmatpush.msra.mxu0 %v2229
      %3601 = vmatpush.msra.mxu0 %v2225
      %3602 = vmatpush.msra.mxu0 %v2221
      %3603 = vmatpush.msra.mxu0 %v2217
      %3604 = vmatpush.msra.mxu0 %v2213
      %3605 = vmatpush.msra.mxu0 %v2209
      %3606 = vmatpush.msra.mxu0 %v2205
      %3607 = vmatmul.f32.gmra.mxu0 %v3462
      %v3608 = vpop.f32.mrf.mxu0
      %v3609 = vadd.f32 0.0, %v3608
      %3610 = vdwg.mxu0
      %3611 = vmatpush.msra.mxu0 %v2266
      %3612 = vmatpush.msra.mxu0 %v2262
      %3613 = vmatpush.msra.mxu0 %v2258
      %3614 = vmatpush.msra.mxu0 %v2254
      %3615 = vmatpush.msra.mxu0 %v2250
      %3616 = vmatpush.msra.mxu0 %v2246
      %3617 = vmatpush.msra.mxu0 %v2242
      %3618 = vmatpush.msra.mxu0 %v2238
      %3619 = vmatpush.msra.mxu0 %v2234
      %3620 = vmatpush.msra.mxu0 %v2230
      %3621 = vmatpush.msra.mxu0 %v2226
      %3622 = vmatpush.msra.mxu0 %v2222
      %3623 = vmatpush.msra.mxu0 %v2218
      %3624 = vmatpush.msra.mxu0 %v2214
      %3625 = vmatpush.msra.mxu0 %v2210
      %3626 = vmatpush.msra.mxu0 %v2206
      %3627 = vmatmul.f32.gmra.mxu0 %v3462
      %v3628 = vpop.f32.mrf.mxu0
      %v3629 = vadd.f32 0.0, %v3628
      %3630 = vdwg.mxu0
      %v3631 = vadd.f32 %v3547, %v3569
      %v3632 = vadd.f32 %v3548, %v3589
      %v3633 = vadd.f32 %v3549, %v3609
      %v3634 = vadd.f32 %v3550, %v3629
      %v3635 = vxor.u32 %v3631, 2147483648
      %v3636 = vmul.f32 %v3635, 1.442695
      %v3637 = vpow.pop %v3636
      %v3638 = vadd.f32 %v3637, 1.0
      %v3639 = vrcp.pop %v3638
      %v3640 = vmul.f32 %v3638, %v3639
      %v3641 = vsub.f32 1.0, %v3640
      %v3642 = vmul.f32 %v3639, %v3641
      %v3643 = vadd.f32 %v3639, %v3642
      %vm3644 = vweird.f32 %v3638
      %vm3645 = vweird.f32 %v3639
      %vm3646 = vmor %vm3644, %vm3645
      %v3647 = vsel %vm3646, %v3639, %v3643
      %v3648 = vand.u32 2147483647, %v3638
      %vm3649 = vcmp.eq.f32.partialorder %v3648, 8.507059e+37
      %v3650 = vand.u32 %v3638, 2147483648
      %v3651 = vor.u32 1.1754944e-38, %v3650
      %v3652 = vsel %vm3649, %v3651, %v3647
      %v3653 = vmul.f32 1.0, %v3652
      %v3654 = vxor.u32 %v3632, 2147483648
      %v3655 = vmul.f32 %v3654, 1.442695
      %v3656 = vpow.pop %v3655
      %v3657 = vadd.f32 %v3656, 1.0
      %v3658 = vrcp.pop %v3657
      %v3659 = vmul.f32 %v3657, %v3658
      %v3660 = vsub.f32 1.0, %v3659
      %v3661 = vmul.f32 %v3658, %v3660
      %v3662 = vadd.f32 %v3658, %v3661
      %vm3663 = vweird.f32 %v3657
      %vm3664 = vweird.f32 %v3658
      %vm3665 = vmor %vm3663, %vm3664
      %v3666 = vsel %vm3665, %v3658, %v3662
      %v3667 = vand.u32 2147483647, %v3657
      %vm3668 = vcmp.eq.f32.partialorder %v3667, 8.507059e+37
      %v3669 = vand.u32 %v3657, 2147483648
      %v3670 = vor.u32 1.1754944e-38, %v3669
      %v3671 = vsel %vm3668, %v3670, %v3666
      %v3672 = vmul.f32 1.0, %v3671
      %v3673 = vtanh.pop %v3633
      %v3674 = vxor.u32 %v3634, 2147483648
      %v3675 = vmul.f32 %v3674, 1.442695
      %v3676 = vpow.pop %v3675
      %v3677 = vadd.f32 %v3676, 1.0
      %v3678 = vrcp.pop %v3677
      %v3679 = vmul.f32 %v3677, %v3678
      %v3680 = vsub.f32 1.0, %v3679
      %v3681 = vmul.f32 %v3678, %v3680
      %v3682 = vadd.f32 %v3678, %v3681
      %vm3683 = vweird.f32 %v3677
      %vm3684 = vweird.f32 %v3678
      %vm3685 = vmor %vm3683, %vm3684
      %v3686 = vsel %vm3685, %v3678, %v3682
      %v3687 = vand.u32 2147483647, %v3677
      %vm3688 = vcmp.eq.f32.partialorder %v3687, 8.507059e+37
      %v3689 = vand.u32 %v3677, 2147483648
      %v3690 = vor.u32 1.1754944e-38, %v3689
      %v3691 = vsel %vm3688, %v3690, %v3686
      %v3692 = vmul.f32 1.0, %v3691
      %v3693 = vmul.f32 %v3672, %v3460
      %v3694 = vmul.f32 %v3653, %v3673
      %v3695 = vadd.f32 %v3693, %v3694
      %v3696 = vtanh.pop %v3695
      %v3697 = vmul.f32 %v3692, %v3696
      %3698 = vmatpush.msra.mxu0 %v2361
      %3699 = vmatpush.msra.mxu0 %v2357
      %3700 = vmatpush.msra.mxu0 %v2353
      %3701 = vmatpush.msra.mxu0 %v2349
      %3702 = vmatpush.msra.mxu0 %v2345
      %3703 = vmatpush.msra.mxu0 %v2341
      %3704 = vmatpush.msra.mxu0 %v2337
      %3705 = vmatpush.msra.mxu0 %v2333
      %3706 = vmatpush.msra.mxu0 %v2329
      %3707 = vmatpush.msra.mxu0 %v2325
      %3708 = vmatpush.msra.mxu0 %v2321
      %3709 = vmatpush.msra.mxu0 %v2317
      %3710 = vmatpush.msra.mxu0 %v2313
      %3711 = vmatpush.msra.mxu0 %v2309
      %3712 = vmatpush.msra.mxu0 %v2305
      %3713 = vmatpush.msra.mxu0 %v2301
      %3714 = vmatmul.f32.gmra.mxu0 %v3697
      %v3715 = vpop.f32.mrf.mxu0
      %v3716 = vadd.f32 %v2368, %v3715
      %3717 = vdwg.mxu0
      %3718 = vmatpush.msra.mxu0 %v2362
      %3719 = vmatpush.msra.mxu0 %v2358
      %3720 = vmatpush.msra.mxu0 %v2354
      %3721 = vmatpush.msra.mxu0 %v2350
      %3722 = vmatpush.msra.mxu0 %v2346
      %3723 = vmatpush.msra.mxu0 %v2342
      %3724 = vmatpush.msra.mxu0 %v2338
      %3725 = vmatpush.msra.mxu0 %v2334
      %3726 = vmatpush.msra.mxu0 %v2330
      %3727 = vmatpush.msra.mxu0 %v2326
      %3728 = vmatpush.msra.mxu0 %v2322
      %3729 = vmatpush.msra.mxu0 %v2318
      %3730 = vmatpush.msra.mxu0 %v2314
      %3731 = vmatpush.msra.mxu0 %v2310
      %3732 = vmatpush.msra.mxu0 %v2306
      %3733 = vmatpush.msra.mxu0 %v2302
      %3734 = vmatmul.f32.gmra.mxu0 %v3697
      %v3735 = vpop.f32.mrf.mxu0
      %v3736 = vadd.f32 %v2369, %v3735
      %3737 = vdwg.mxu0
      %3738 = vmatpush.msra.mxu0 %v2363
      %3739 = vmatpush.msra.mxu0 %v2359
      %3740 = vmatpush.msra.mxu0 %v2355
      %3741 = vmatpush.msra.mxu0 %v2351
      %3742 = vmatpush.msra.mxu0 %v2347
      %3743 = vmatpush.msra.mxu0 %v2343
      %3744 = vmatpush.msra.mxu0 %v2339
      %3745 = vmatpush.msra.mxu0 %v2335
      %3746 = vmatpush.msra.mxu0 %v2331
      %3747 = vmatpush.msra.mxu0 %v2327
      %3748 = vmatpush.msra.mxu0 %v2323
      %3749 = vmatpush.msra.mxu0 %v2319
      %3750 = vmatpush.msra.mxu0 %v2315
      %3751 = vmatpush.msra.mxu0 %v2311
      %3752 = vmatpush.msra.mxu0 %v2307
      %3753 = vmatpush.msra.mxu0 %v2303
      %3754 = vmatmul.f32.gmra.mxu0 %v3697
      %v3755 = vpop.f32.mrf.mxu0
      %v3756 = vadd.f32 %v2370, %v3755
      %3757 = vdwg.mxu0
      %3758 = vmatpush.msra.mxu0 %v2364
      %3759 = vmatpush.msra.mxu0 %v2360
      %3760 = vmatpush.msra.mxu0 %v2356
      %3761 = vmatpush.msra.mxu0 %v2352
      %3762 = vmatpush.msra.mxu0 %v2348
      %3763 = vmatpush.msra.mxu0 %v2344
      %3764 = vmatpush.msra.mxu0 %v2340
      %3765 = vmatpush.msra.mxu0 %v2336
      %3766 = vmatpush.msra.mxu0 %v2332
      %3767 = vmatpush.msra.mxu0 %v2328
      %3768 = vmatpush.msra.mxu0 %v2324
      %3769 = vmatpush.msra.mxu0 %v2320
      %3770 = vmatpush.msra.mxu0 %v2316
      %3771 = vmatpush.msra.mxu0 %v2312
      %3772 = vmatpush.msra.mxu0 %v2308
      %3773 = vmatpush.msra.mxu0 %v2304
      %3774 = vmatmul.f32.gmra.mxu0 %v3697
      %v3775 = vpop.f32.mrf.mxu0
      %v3776 = vadd.f32 %v2371, %v3775
      %3777 = vdwg.mxu0
      %3778 = vst [vmem:[%s1683] sm:$0xff] %v3716
      %3779 = vst [vmem:[%s1683 + $0x8] sm:$0xff] %v3736
      %3780 = vst [vmem:[%s1683 + $0x10] sm:$0xff] %v3756
      %3781 = vst [vmem:[%s1683 + $0x18] sm:$0xff] %v3776
      %v3782 = vld [vmem:[%s1920] sm:$0xff]
      %v3783 = vld [vmem:[%s1920 + $0x8] sm:$0xff]
      %v3784 = vld [vmem:[%s1920 + $0x10] sm:$0xff]
      %v3785 = vld [vmem:[%s1920 + $0x18] sm:$0xff]
      %3786 = vmatpush.msra.mxu0 %v2263
      %3787 = vmatpush.msra.mxu0 %v2259
      %3788 = vmatpush.msra.mxu0 %v2255
      %3789 = vmatpush.msra.mxu0 %v2251
      %3790 = vmatpush.msra.mxu0 %v2247
      %3791 = vmatpush.msra.mxu0 %v2243
      %3792 = vmatpush.msra.mxu0 %v2239
      %3793 = vmatpush.msra.mxu0 %v2235
      %3794 = vmatpush.msra.mxu0 %v2231
      %3795 = vmatpush.msra.mxu0 %v2227
      %3796 = vmatpush.msra.mxu0 %v2223
      %3797 = vmatpush.msra.mxu0 %v2219
      %3798 = vmatpush.msra.mxu0 %v2215
      %3799 = vmatpush.msra.mxu0 %v2211
      %3800 = vmatpush.msra.mxu0 %v2207
      %3801 = vmatpush.msra.mxu0 %v2203
      %3802 = vmatmul.f32.gmra.mxu0 %v3697
      %v3803 = vpop.f32.mrf.mxu0
      %v3804 = vadd.f32 0.0, %v3803
      %3805 = vdwg.mxu0
      %3806 = vmatpush.msra.mxu0 %v2264
      %3807 = vmatpush.msra.mxu0 %v2260
      %3808 = vmatpush.msra.mxu0 %v2256
      %3809 = vmatpush.msra.mxu0 %v2252
      %3810 = vmatpush.msra.mxu0 %v2248
      %3811 = vmatpush.msra.mxu0 %v2244
      %3812 = vmatpush.msra.mxu0 %v2240
      %3813 = vmatpush.msra.mxu0 %v2236
      %3814 = vmatpush.msra.mxu0 %v2232
      %3815 = vmatpush.msra.mxu0 %v2228
      %3816 = vmatpush.msra.mxu0 %v2224
      %3817 = vmatpush.msra.mxu0 %v2220
      %3818 = vmatpush.msra.mxu0 %v2216
      %3819 = vmatpush.msra.mxu0 %v2212
      %3820 = vmatpush.msra.mxu0 %v2208
      %3821 = vmatpush.msra.mxu0 %v2204
      %3822 = vmatmul.f32.gmra.mxu0 %v3697
      %v3823 = vpop.f32.mrf.mxu0
      %v3824 = vadd.f32 0.0, %v3823
      %3825 = vdwg.mxu0
      %3826 = vmatpush.msra.mxu0 %v2265
      %3827 = vmatpush.msra.mxu0 %v2261
      %3828 = vmatpush.msra.mxu0 %v2257
      %3829 = vmatpush.msra.mxu0 %v2253
      %3830 = vmatpush.msra.mxu0 %v2249
      %3831 = vmatpush.msra.mxu0 %v2245
      %3832 = vmatpush.msra.mxu0 %v2241
      %3833 = vmatpush.msra.mxu0 %v2237
      %3834 = vmatpush.msra.mxu0 %v2233
      %3835 = vmatpush.msra.mxu0 %v2229
      %3836 = vmatpush.msra.mxu0 %v2225
      %3837 = vmatpush.msra.mxu0 %v2221
      %3838 = vmatpush.msra.mxu0 %v2217
      %3839 = vmatpush.msra.mxu0 %v2213
      %3840 = vmatpush.msra.mxu0 %v2209
      %3841 = vmatpush.msra.mxu0 %v2205
      %3842 = vmatmul.f32.gmra.mxu0 %v3697
      %v3843 = vpop.f32.mrf.mxu0
      %v3844 = vadd.f32 0.0, %v3843
      %3845 = vdwg.mxu0
      %3846 = vmatpush.msra.mxu0 %v2266
      %3847 = vmatpush.msra.mxu0 %v2262
      %3848 = vmatpush.msra.mxu0 %v2258
      %3849 = vmatpush.msra.mxu0 %v2254
      %3850 = vmatpush.msra.mxu0 %v2250
      %3851 = vmatpush.msra.mxu0 %v2246
      %3852 = vmatpush.msra.mxu0 %v2242
      %3853 = vmatpush.msra.mxu0 %v2238
      %3854 = vmatpush.msra.mxu0 %v2234
      %3855 = vmatpush.msra.mxu0 %v2230
      %3856 = vmatpush.msra.mxu0 %v2226
      %3857 = vmatpush.msra.mxu0 %v2222
      %3858 = vmatpush.msra.mxu0 %v2218
      %3859 = vmatpush.msra.mxu0 %v2214
      %3860 = vmatpush.msra.mxu0 %v2210
      %3861 = vmatpush.msra.mxu0 %v2206
      %3862 = vmatmul.f32.gmra.mxu0 %v3697
      %v3863 = vpop.f32.mrf.mxu0
      %v3864 = vadd.f32 0.0, %v3863
      %3865 = vdwg.mxu0
      %v3866 = vadd.f32 %v3782, %v3804
      %v3867 = vadd.f32 %v3783, %v3824
      %v3868 = vadd.f32 %v3784, %v3844
      %v3869 = vadd.f32 %v3785, %v3864
      %v3870 = vxor.u32 %v3866, 2147483648
      %v3871 = vmul.f32 %v3870, 1.442695
      %v3872 = vpow.pop %v3871
      %v3873 = vadd.f32 %v3872, 1.0
      %v3874 = vrcp.pop %v3873
      %v3875 = vmul.f32 %v3873, %v3874
      %v3876 = vsub.f32 1.0, %v3875
      %v3877 = vmul.f32 %v3874, %v3876
      %v3878 = vadd.f32 %v3874, %v3877
      %vm3879 = vweird.f32 %v3873
      %vm3880 = vweird.f32 %v3874
      %vm3881 = vmor %vm3879, %vm3880
      %v3882 = vsel %vm3881, %v3874, %v3878
      %v3883 = vand.u32 2147483647, %v3873
      %vm3884 = vcmp.eq.f32.partialorder %v3883, 8.507059e+37
      %v3885 = vand.u32 %v3873, 2147483648
      %v3886 = vor.u32 1.1754944e-38, %v3885
      %v3887 = vsel %vm3884, %v3886, %v3882
      %v3888 = vmul.f32 1.0, %v3887
      %v3889 = vxor.u32 %v3867, 2147483648
      %v3890 = vmul.f32 %v3889, 1.442695
      %v3891 = vpow.pop %v3890
      %v3892 = vadd.f32 %v3891, 1.0
      %v3893 = vrcp.pop %v3892
      %v3894 = vmul.f32 %v3892, %v3893
      %v3895 = vsub.f32 1.0, %v3894
      %v3896 = vmul.f32 %v3893, %v3895
      %v3897 = vadd.f32 %v3893, %v3896
      %vm3898 = vweird.f32 %v3892
      %vm3899 = vweird.f32 %v3893
      %vm3900 = vmor %vm3898, %vm3899
      %v3901 = vsel %vm3900, %v3893, %v3897
      %v3902 = vand.u32 2147483647, %v3892
      %vm3903 = vcmp.eq.f32.partialorder %v3902, 8.507059e+37
      %v3904 = vand.u32 %v3892, 2147483648
      %v3905 = vor.u32 1.1754944e-38, %v3904
      %v3906 = vsel %vm3903, %v3905, %v3901
      %v3907 = vmul.f32 1.0, %v3906
      %v3908 = vtanh.pop %v3868
      %v3909 = vxor.u32 %v3869, 2147483648
      %v3910 = vmul.f32 %v3909, 1.442695
      %v3911 = vpow.pop %v3910
      %v3912 = vadd.f32 %v3911, 1.0
      %v3913 = vrcp.pop %v3912
      %v3914 = vmul.f32 %v3912, %v3913
      %v3915 = vsub.f32 1.0, %v3914
      %v3916 = vmul.f32 %v3913, %v3915
      %v3917 = vadd.f32 %v3913, %v3916
      %vm3918 = vweird.f32 %v3912
      %vm3919 = vweird.f32 %v3913
      %vm3920 = vmor %vm3918, %vm3919
      %v3921 = vsel %vm3920, %v3913, %v3917
      %v3922 = vand.u32 2147483647, %v3912
      %vm3923 = vcmp.eq.f32.partialorder %v3922, 8.507059e+37
      %v3924 = vand.u32 %v3912, 2147483648
      %v3925 = vor.u32 1.1754944e-38, %v3924
      %v3926 = vsel %vm3923, %v3925, %v3921
      %v3927 = vmul.f32 1.0, %v3926
      %v3928 = vmul.f32 %v3907, %v3695
      %v3929 = vmul.f32 %v3888, %v3908
      %v3930 = vadd.f32 %v3928, %v3929
      %v3931 = vtanh.pop %v3930
      %v3932 = vmul.f32 %v3927, %v3931
      %3933 = vmatpush.msra.mxu0 %v2361
      %3934 = vmatpush.msra.mxu0 %v2357
      %3935 = vmatpush.msra.mxu0 %v2353
      %3936 = vmatpush.msra.mxu0 %v2349
      %3937 = vmatpush.msra.mxu0 %v2345
      %3938 = vmatpush.msra.mxu0 %v2341
      %3939 = vmatpush.msra.mxu0 %v2337
      %3940 = vmatpush.msra.mxu0 %v2333
      %3941 = vmatpush.msra.mxu0 %v2329
      %3942 = vmatpush.msra.mxu0 %v2325
      %3943 = vmatpush.msra.mxu0 %v2321
      %3944 = vmatpush.msra.mxu0 %v2317
      %3945 = vmatpush.msra.mxu0 %v2313
      %3946 = vmatpush.msra.mxu0 %v2309
      %3947 = vmatpush.msra.mxu0 %v2305
      %3948 = vmatpush.msra.mxu0 %v2301
      %3949 = vmatmul.f32.gmra.mxu0 %v3932
      %v3950 = vpop.f32.mrf.mxu0
      %v3951 = vadd.f32 %v2368, %v3950
      %3952 = vdwg.mxu0
      %3953 = vmatpush.msra.mxu0 %v2362
      %3954 = vmatpush.msra.mxu0 %v2358
      %3955 = vmatpush.msra.mxu0 %v2354
      %3956 = vmatpush.msra.mxu0 %v2350
      %3957 = vmatpush.msra.mxu0 %v2346
      %3958 = vmatpush.msra.mxu0 %v2342
      %3959 = vmatpush.msra.mxu0 %v2338
      %3960 = vmatpush.msra.mxu0 %v2334
      %3961 = vmatpush.msra.mxu0 %v2330
      %3962 = vmatpush.msra.mxu0 %v2326
      %3963 = vmatpush.msra.mxu0 %v2322
      %3964 = vmatpush.msra.mxu0 %v2318
      %3965 = vmatpush.msra.mxu0 %v2314
      %3966 = vmatpush.msra.mxu0 %v2310
      %3967 = vmatpush.msra.mxu0 %v2306
      %3968 = vmatpush.msra.mxu0 %v2302
      %3969 = vmatmul.f32.gmra.mxu0 %v3932
      %v3970 = vpop.f32.mrf.mxu0
      %v3971 = vadd.f32 %v2369, %v3970
      %3972 = vdwg.mxu0
      %3973 = vmatpush.msra.mxu0 %v2363
      %3974 = vmatpush.msra.mxu0 %v2359
      %3975 = vmatpush.msra.mxu0 %v2355
      %3976 = vmatpush.msra.mxu0 %v2351
      %3977 = vmatpush.msra.mxu0 %v2347
      %3978 = vmatpush.msra.mxu0 %v2343
      %3979 = vmatpush.msra.mxu0 %v2339
      %3980 = vmatpush.msra.mxu0 %v2335
      %3981 = vmatpush.msra.mxu0 %v2331
      %3982 = vmatpush.msra.mxu0 %v2327
      %3983 = vmatpush.msra.mxu0 %v2323
      %3984 = vmatpush.msra.mxu0 %v2319
      %3985 = vmatpush.msra.mxu0 %v2315
      %3986 = vmatpush.msra.mxu0 %v2311
      %3987 = vmatpush.msra.mxu0 %v2307
      %3988 = vmatpush.msra.mxu0 %v2303
      %3989 = vmatmul.f32.gmra.mxu0 %v3932
      %v3990 = vpop.f32.mrf.mxu0
      %v3991 = vadd.f32 %v2370, %v3990
      %3992 = vdwg.mxu0
      %3993 = vmatpush.msra.mxu0 %v2364
      %3994 = vmatpush.msra.mxu0 %v2360
      %3995 = vmatpush.msra.mxu0 %v2356
      %3996 = vmatpush.msra.mxu0 %v2352
      %3997 = vmatpush.msra.mxu0 %v2348
      %3998 = vmatpush.msra.mxu0 %v2344
      %3999 = vmatpush.msra.mxu0 %v2340
      %4000 = vmatpush.msra.mxu0 %v2336
      %4001 = vmatpush.msra.mxu0 %v2332
      %4002 = vmatpush.msra.mxu0 %v2328
      %4003 = vmatpush.msra.mxu0 %v2324
      %4004 = vmatpush.msra.mxu0 %v2320
      %4005 = vmatpush.msra.mxu0 %v2316
      %4006 = vmatpush.msra.mxu0 %v2312
      %4007 = vmatpush.msra.mxu0 %v2308
      %4008 = vmatpush.msra.mxu0 %v2304
      %4009 = vmatmul.f32.gmra.mxu0 %v3932
      %v4010 = vpop.f32.mrf.mxu0
      %v4011 = vadd.f32 %v2371, %v4010
      %4012 = vdwg.mxu0
      %4013 = vst [vmem:[%s1920] sm:$0xff] %v3951
      %4014 = vst [vmem:[%s1920 + $0x8] sm:$0xff] %v3971
      %4015 = vst [vmem:[%s1920 + $0x10] sm:$0xff] %v3991
      %4016 = vst [vmem:[%s1920 + $0x18] sm:$0xff] %v4011
      %v4017 = vld [vmem:[%s2157] sm:$0xff]
      %v4018 = vld [vmem:[%s2157 + $0x8] sm:$0xff]
      %v4019 = vld [vmem:[%s2157 + $0x10] sm:$0xff]
      %v4020 = vld [vmem:[%s2157 + $0x18] sm:$0xff]
      %4021 = vmatpush.msra.mxu0 %v2263
      %4022 = vmatpush.msra.mxu0 %v2259
      %4023 = vmatpush.msra.mxu0 %v2255
      %4024 = vmatpush.msra.mxu0 %v2251
      %4025 = vmatpush.msra.mxu0 %v2247
      %4026 = vmatpush.msra.mxu0 %v2243
      %4027 = vmatpush.msra.mxu0 %v2239
      %4028 = vmatpush.msra.mxu0 %v2235
      %4029 = vmatpush.msra.mxu0 %v2231
      %4030 = vmatpush.msra.mxu0 %v2227
      %4031 = vmatpush.msra.mxu0 %v2223
      %4032 = vmatpush.msra.mxu0 %v2219
      %4033 = vmatpush.msra.mxu0 %v2215
      %4034 = vmatpush.msra.mxu0 %v2211
      %4035 = vmatpush.msra.mxu0 %v2207
      %4036 = vmatpush.msra.mxu0 %v2203
      %4037 = vmatmul.f32.gmra.mxu0 %v3932
      %v4038 = vpop.f32.mrf.mxu0
      %v4039 = vadd.f32 0.0, %v4038
      %4040 = vdwg.mxu0
      %4041 = vmatpush.msra.mxu0 %v2264
      %4042 = vmatpush.msra.mxu0 %v2260
      %4043 = vmatpush.msra.mxu0 %v2256
      %4044 = vmatpush.msra.mxu0 %v2252
      %4045 = vmatpush.msra.mxu0 %v2248
      %4046 = vmatpush.msra.mxu0 %v2244
      %4047 = vmatpush.msra.mxu0 %v2240
      %4048 = vmatpush.msra.mxu0 %v2236
      %4049 = vmatpush.msra.mxu0 %v2232
      %4050 = vmatpush.msra.mxu0 %v2228
      %4051 = vmatpush.msra.mxu0 %v2224
      %4052 = vmatpush.msra.mxu0 %v2220
      %4053 = vmatpush.msra.mxu0 %v2216
      %4054 = vmatpush.msra.mxu0 %v2212
      %4055 = vmatpush.msra.mxu0 %v2208
      %4056 = vmatpush.msra.mxu0 %v2204
      %4057 = vmatmul.f32.gmra.mxu0 %v3932
      %v4058 = vpop.f32.mrf.mxu0
      %v4059 = vadd.f32 0.0, %v4058
      %4060 = vdwg.mxu0
      %4061 = vmatpush.msra.mxu0 %v2265
      %4062 = vmatpush.msra.mxu0 %v2261
      %4063 = vmatpush.msra.mxu0 %v2257
      %4064 = vmatpush.msra.mxu0 %v2253
      %4065 = vmatpush.msra.mxu0 %v2249
      %4066 = vmatpush.msra.mxu0 %v2245
      %4067 = vmatpush.msra.mxu0 %v2241
      %4068 = vmatpush.msra.mxu0 %v2237
      %4069 = vmatpush.msra.mxu0 %v2233
      %4070 = vmatpush.msra.mxu0 %v2229
      %4071 = vmatpush.msra.mxu0 %v2225
      %4072 = vmatpush.msra.mxu0 %v2221
      %4073 = vmatpush.msra.mxu0 %v2217
      %4074 = vmatpush.msra.mxu0 %v2213
      %4075 = vmatpush.msra.mxu0 %v2209
      %4076 = vmatpush.msra.mxu0 %v2205
      %4077 = vmatmul.f32.gmra.mxu0 %v3932
      %v4078 = vpop.f32.mrf.mxu0
      %v4079 = vadd.f32 0.0, %v4078
      %4080 = vdwg.mxu0
      %4081 = vmatpush.msra.mxu0 %v2266
      %4082 = vmatpush.msra.mxu0 %v2262
      %4083 = vmatpush.msra.mxu0 %v2258
      %4084 = vmatpush.msra.mxu0 %v2254
      %4085 = vmatpush.msra.mxu0 %v2250
      %4086 = vmatpush.msra.mxu0 %v2246
      %4087 = vmatpush.msra.mxu0 %v2242
      %4088 = vmatpush.msra.mxu0 %v2238
      %4089 = vmatpush.msra.mxu0 %v2234
      %4090 = vmatpush.msra.mxu0 %v2230
      %4091 = vmatpush.msra.mxu0 %v2226
      %4092 = vmatpush.msra.mxu0 %v2222
      %4093 = vmatpush.msra.mxu0 %v2218
      %4094 = vmatpush.msra.mxu0 %v2214
      %4095 = vmatpush.msra.mxu0 %v2210
      %4096 = vmatpush.msra.mxu0 %v2206
      %4097 = vmatmul.f32.gmra.mxu0 %v3932
      %v4098 = vpop.f32.mrf.mxu0
      %v4099 = vadd.f32 0.0, %v4098
      %4100 = vdwg.mxu0
      %v4101 = vadd.f32 %v4017, %v4039
      %v4102 = vadd.f32 %v4018, %v4059
      %v4103 = vadd.f32 %v4019, %v4079
      %v4104 = vadd.f32 %v4020, %v4099
      %v4105 = vxor.u32 %v4101, 2147483648
      %v4106 = vmul.f32 %v4105, 1.442695
      %v4107 = vpow.pop %v4106
      %v4108 = vadd.f32 %v4107, 1.0
      %v4109 = vrcp.pop %v4108
      %v4110 = vmul.f32 %v4108, %v4109
      %v4111 = vsub.f32 1.0, %v4110
      %v4112 = vmul.f32 %v4109, %v4111
      %v4113 = vadd.f32 %v4109, %v4112
      %vm4114 = vweird.f32 %v4108
      %vm4115 = vweird.f32 %v4109
      %vm4116 = vmor %vm4114, %vm4115
      %v4117 = vsel %vm4116, %v4109, %v4113
      %v4118 = vand.u32 2147483647, %v4108
      %vm4119 = vcmp.eq.f32.partialorder %v4118, 8.507059e+37
      %v4120 = vand.u32 %v4108, 2147483648
      %v4121 = vor.u32 1.1754944e-38, %v4120
      %v4122 = vsel %vm4119, %v4121, %v4117
      %v4123 = vmul.f32 1.0, %v4122
      %v4124 = vxor.u32 %v4102, 2147483648
      %v4125 = vmul.f32 %v4124, 1.442695
      %v4126 = vpow.pop %v4125
      %v4127 = vadd.f32 %v4126, 1.0
      %v4128 = vrcp.pop %v4127
      %v4129 = vmul.f32 %v4127, %v4128
      %v4130 = vsub.f32 1.0, %v4129
      %v4131 = vmul.f32 %v4128, %v4130
      %v4132 = vadd.f32 %v4128, %v4131
      %vm4133 = vweird.f32 %v4127
      %vm4134 = vweird.f32 %v4128
      %vm4135 = vmor %vm4133, %vm4134
      %v4136 = vsel %vm4135, %v4128, %v4132
      %v4137 = vand.u32 2147483647, %v4127
      %vm4138 = vcmp.eq.f32.partialorder %v4137, 8.507059e+37
      %v4139 = vand.u32 %v4127, 2147483648
      %v4140 = vor.u32 1.1754944e-38, %v4139
      %v4141 = vsel %vm4138, %v4140, %v4136
      %v4142 = vmul.f32 1.0, %v4141
      %v4143 = vtanh.pop %v4103
      %v4144 = vxor.u32 %v4104, 2147483648
      %v4145 = vmul.f32 %v4144, 1.442695
      %v4146 = vpow.pop %v4145
      %v4147 = vadd.f32 %v4146, 1.0
      %v4148 = vrcp.pop %v4147
      %v4149 = vmul.f32 %v4147, %v4148
      %v4150 = vsub.f32 1.0, %v4149
      %v4151 = vmul.f32 %v4148, %v4150
      %v4152 = vadd.f32 %v4148, %v4151
      %vm4153 = vweird.f32 %v4147
      %vm4154 = vweird.f32 %v4148
      %vm4155 = vmor %vm4153, %vm4154
      %v4156 = vsel %vm4155, %v4148, %v4152
      %v4157 = vand.u32 2147483647, %v4147
      %vm4158 = vcmp.eq.f32.partialorder %v4157, 8.507059e+37
      %v4159 = vand.u32 %v4147, 2147483648
      %v4160 = vor.u32 1.1754944e-38, %v4159
      %v4161 = vsel %vm4158, %v4160, %v4156
      %v4162 = vmul.f32 1.0, %v4161
      %v4163 = vmul.f32 %v4142, %v3930
      %v4164 = vmul.f32 %v4123, %v4143
      %v4165 = vadd.f32 %v4163, %v4164
      %v4166 = vtanh.pop %v4165
      %v4167 = vmul.f32 %v4162, %v4166
      %4168 = vmatpush.msra.mxu0 %v2361
      %4169 = vmatpush.msra.mxu0 %v2357
      %4170 = vmatpush.msra.mxu0 %v2353
      %4171 = vmatpush.msra.mxu0 %v2349
      %4172 = vmatpush.msra.mxu0 %v2345
      %4173 = vmatpush.msra.mxu0 %v2341
      %4174 = vmatpush.msra.mxu0 %v2337
      %4175 = vmatpush.msra.mxu0 %v2333
      %4176 = vmatpush.msra.mxu0 %v2329
      %4177 = vmatpush.msra.mxu0 %v2325
      %4178 = vmatpush.msra.mxu0 %v2321
      %4179 = vmatpush.msra.mxu0 %v2317
      %4180 = vmatpush.msra.mxu0 %v2313
      %4181 = vmatpush.msra.mxu0 %v2309
      %4182 = vmatpush.msra.mxu0 %v2305
      %4183 = vmatpush.msra.mxu0 %v2301
      %4184 = vmatmul.f32.gmra.mxu0 %v4167
      %v4185 = vpop.f32.mrf.mxu0
      %v4186 = vadd.f32 %v2368, %v4185
      %4187 = vdwg.mxu0
      %4188 = vmatpush.msra.mxu0 %v2362
      %4189 = vmatpush.msra.mxu0 %v2358
      %4190 = vmatpush.msra.mxu0 %v2354
      %4191 = vmatpush.msra.mxu0 %v2350
      %4192 = vmatpush.msra.mxu0 %v2346
      %4193 = vmatpush.msra.mxu0 %v2342
      %4194 = vmatpush.msra.mxu0 %v2338
      %4195 = vmatpush.msra.mxu0 %v2334
      %4196 = vmatpush.msra.mxu0 %v2330
      %4197 = vmatpush.msra.mxu0 %v2326
      %4198 = vmatpush.msra.mxu0 %v2322
      %4199 = vmatpush.msra.mxu0 %v2318
      %4200 = vmatpush.msra.mxu0 %v2314
      %4201 = vmatpush.msra.mxu0 %v2310
      %4202 = vmatpush.msra.mxu0 %v2306
      %4203 = vmatpush.msra.mxu0 %v2302
      %4204 = vmatmul.f32.gmra.mxu0 %v4167
      %v4205 = vpop.f32.mrf.mxu0
      %v4206 = vadd.f32 %v2369, %v4205
      %4207 = vdwg.mxu0
      %4208 = vmatpush.msra.mxu0 %v2363
      %4209 = vmatpush.msra.mxu0 %v2359
      %4210 = vmatpush.msra.mxu0 %v2355
      %4211 = vmatpush.msra.mxu0 %v2351
      %4212 = vmatpush.msra.mxu0 %v2347
      %4213 = vmatpush.msra.mxu0 %v2343
      %4214 = vmatpush.msra.mxu0 %v2339
      %4215 = vmatpush.msra.mxu0 %v2335
      %4216 = vmatpush.msra.mxu0 %v2331
      %4217 = vmatpush.msra.mxu0 %v2327
      %4218 = vmatpush.msra.mxu0 %v2323
      %4219 = vmatpush.msra.mxu0 %v2319
      %4220 = vmatpush.msra.mxu0 %v2315
      %4221 = vmatpush.msra.mxu0 %v2311
      %4222 = vmatpush.msra.mxu0 %v2307
      %4223 = vmatpush.msra.mxu0 %v2303
      %4224 = vmatmul.f32.gmra.mxu0 %v4167
      %v4225 = vpop.f32.mrf.mxu0
      %v4226 = vadd.f32 %v2370, %v4225
      %4227 = vdwg.mxu0
      %4228 = vmatpush.msra.mxu0 %v2364
      %4229 = vmatpush.msra.mxu0 %v2360
      %4230 = vmatpush.msra.mxu0 %v2356
      %4231 = vmatpush.msra.mxu0 %v2352
      %4232 = vmatpush.msra.mxu0 %v2348
      %4233 = vmatpush.msra.mxu0 %v2344
      %4234 = vmatpush.msra.mxu0 %v2340
      %4235 = vmatpush.msra.mxu0 %v2336
      %4236 = vmatpush.msra.mxu0 %v2332
      %4237 = vmatpush.msra.mxu0 %v2328
      %4238 = vmatpush.msra.mxu0 %v2324
      %4239 = vmatpush.msra.mxu0 %v2320
      %4240 = vmatpush.msra.mxu0 %v2316
      %4241 = vmatpush.msra.mxu0 %v2312
      %4242 = vmatpush.msra.mxu0 %v2308
      %4243 = vmatpush.msra.mxu0 %v2304
      %4244 = vmatmul.f32.gmra.mxu0 %v4167
      %v4245 = vpop.f32.mrf.mxu0
      %v4246 = vadd.f32 %v2371, %v4245
      %4247 = vdwg.mxu0
      %4248 = vst [vmem:[%s2157] sm:$0xff] %v4186
      %4249 = vst [vmem:[%s2157 + $0x8] sm:$0xff] %v4206
      %4250 = vst [vmem:[%s2157 + $0x10] sm:$0xff] %v4226
      %4251 = vst [vmem:[%s2157 + $0x18] sm:$0xff] %v4246
    $region42: #{tpu_custom_call.1} parent=1 // loop_footer
      %s2167 = sadd.s32 1, %s2163
    $region43: #{tpu_custom_call.1} parent=1 // loop_footer_branch
      %2162 = sbr.rel target = $region39
    $region44: #{tpu_custom_call.1} parent=1 // loop_exit
      _
    %s4252 = scalar_lea.vmem [#allocation8], 1024
    %v4253 = vld [vmem:[%s4252] sm:$0xff]
    %v4254 = vld [vmem:[%s4252 + $0x8] sm:$0xff]
    %v4255 = vld [vmem:[%s4252 + $0x10] sm:$0xff]
    %v4256 = vld [vmem:[%s4252 + $0x18] sm:$0xff]
    %v4257 = vld [vmem:[%s4252 + $0x20] sm:$0xff]
    %v4258 = vld [vmem:[%s4252 + $0x28] sm:$0xff]
    %v4259 = vld [vmem:[%s4252 + $0x30] sm:$0xff]
    %v4260 = vld [vmem:[%s4252 + $0x38] sm:$0xff]
    %v4261 = vld [vmem:[%s4252 + $0x40] sm:$0xff]
    %v4262 = vld [vmem:[%s4252 + $0x48] sm:$0xff]
    %v4263 = vld [vmem:[%s4252 + $0x50] sm:$0xff]
    %v4264 = vld [vmem:[%s4252 + $0x58] sm:$0xff]
    %v4265 = vld [vmem:[%s4252 + $0x60] sm:$0xff]
    %v4266 = vld [vmem:[%s4252 + $0x68] sm:$0xff]
    %v4267 = vld [vmem:[%s4252 + $0x70] sm:$0xff]
    %v4268 = vld [vmem:[%s4252 + $0x78] sm:$0xff]
    %v4269 = vld [vmem:[%s4252 + $0x80] sm:$0xff]
    %v4270 = vld [vmem:[%s4252 + $0x88] sm:$0xff]
    %v4271 = vld [vmem:[%s4252 + $0x90] sm:$0xff]
    %v4272 = vld [vmem:[%s4252 + $0x98] sm:$0xff]
    %v4273 = vld [vmem:[%s4252 + $0xa0] sm:$0xff]
    %v4274 = vld [vmem:[%s4252 + $0xa8] sm:$0xff]
    %v4275 = vld [vmem:[%s4252 + $0xb0] sm:$0xff]
    %v4276 = vld [vmem:[%s4252 + $0xb8] sm:$0xff]
    %v4277 = vld [vmem:[%s4252 + $0xc0] sm:$0xff]
    %v4278 = vld [vmem:[%s4252 + $0xc8] sm:$0xff]
    %v4279 = vld [vmem:[%s4252 + $0xd0] sm:$0xff]
    %v4280 = vld [vmem:[%s4252 + $0xd8] sm:$0xff]
    %v4281 = vld [vmem:[%s4252 + $0xe0] sm:$0xff]
    %v4282 = vld [vmem:[%s4252 + $0xe8] sm:$0xff]
    %v4283 = vld [vmem:[%s4252 + $0xf0] sm:$0xff]
    %v4284 = vld [vmem:[%s4252 + $0xf8] sm:$0xff]
    %v4285 = vunpack.c.l.bf16 %v4253
    %v4286 = vunpack.c.h.bf16 %v4253
    %v4287 = vunpack.c.l.bf16 %v4254
    %v4288 = vunpack.c.h.bf16 %v4254
    %v4289 = vunpack.c.l.bf16 %v4255
    %v4290 = vunpack.c.h.bf16 %v4255
    %v4291 = vunpack.c.l.bf16 %v4256
    %v4292 = vunpack.c.h.bf16 %v4256
    %v4293 = vunpack.c.l.bf16 %v4257
    %v4294 = vunpack.c.h.bf16 %v4257
    %v4295 = vunpack.c.l.bf16 %v4258
    %v4296 = vunpack.c.h.bf16 %v4258
    %v4297 = vunpack.c.l.bf16 %v4259
    %v4298 = vunpack.c.h.bf16 %v4259
    %v4299 = vunpack.c.l.bf16 %v4260
    %v4300 = vunpack.c.h.bf16 %v4260
    %v4301 = vunpack.c.l.bf16 %v4261
    %v4302 = vunpack.c.h.bf16 %v4261
    %v4303 = vunpack.c.l.bf16 %v4262
    %v4304 = vunpack.c.h.bf16 %v4262
    %v4305 = vunpack.c.l.bf16 %v4263
    %v4306 = vunpack.c.h.bf16 %v4263
    %v4307 = vunpack.c.l.bf16 %v4264
    %v4308 = vunpack.c.h.bf16 %v4264
    %v4309 = vunpack.c.l.bf16 %v4265
    %v4310 = vunpack.c.h.bf16 %v4265
    %v4311 = vunpack.c.l.bf16 %v4266
    %v4312 = vunpack.c.h.bf16 %v4266
    %v4313 = vunpack.c.l.bf16 %v4267
    %v4314 = vunpack.c.h.bf16 %v4267
    %v4315 = vunpack.c.l.bf16 %v4268
    %v4316 = vunpack.c.h.bf16 %v4268
    %v4317 = vunpack.c.l.bf16 %v4269
    %v4318 = vunpack.c.h.bf16 %v4269
    %v4319 = vunpack.c.l.bf16 %v4270
    %v4320 = vunpack.c.h.bf16 %v4270
    %v4321 = vunpack.c.l.bf16 %v4271
    %v4322 = vunpack.c.h.bf16 %v4271
    %v4323 = vunpack.c.l.bf16 %v4272
    %v4324 = vunpack.c.h.bf16 %v4272
    %v4325 = vunpack.c.l.bf16 %v4273
    %v4326 = vunpack.c.h.bf16 %v4273
    %v4327 = vunpack.c.l.bf16 %v4274
    %v4328 = vunpack.c.h.bf16 %v4274
    %v4329 = vunpack.c.l.bf16 %v4275
    %v4330 = vunpack.c.h.bf16 %v4275
    %v4331 = vunpack.c.l.bf16 %v4276
    %v4332 = vunpack.c.h.bf16 %v4276
    %v4333 = vunpack.c.l.bf16 %v4277
    %v4334 = vunpack.c.h.bf16 %v4277
    %v4335 = vunpack.c.l.bf16 %v4278
    %v4336 = vunpack.c.h.bf16 %v4278
    %v4337 = vunpack.c.l.bf16 %v4279
    %v4338 = vunpack.c.h.bf16 %v4279
    %v4339 = vunpack.c.l.bf16 %v4280
    %v4340 = vunpack.c.h.bf16 %v4280
    %v4341 = vunpack.c.l.bf16 %v4281
    %v4342 = vunpack.c.h.bf16 %v4281
    %v4343 = vunpack.c.l.bf16 %v4282
    %v4344 = vunpack.c.h.bf16 %v4282
    %v4345 = vunpack.c.l.bf16 %v4283
    %v4346 = vunpack.c.h.bf16 %v4283
    %v4347 = vunpack.c.l.bf16 %v4284
    %v4348 = vunpack.c.h.bf16 %v4284
    %v4349 = vld [vmem:[#allocation2] sm:$0xff]
    %v4350 = vld [vmem:[#allocation2 + $0x8] sm:$0xff]
    %v4351 = vld [vmem:[#allocation2 + $0x10] sm:$0xff]
    %v4352 = vld [vmem:[#allocation2 + $0x18] sm:$0xff]
    %4353 = vmatpush.msra.mxu0 %v4345
    %4354 = vmatpush.msra.mxu0 %v4341
    %4355 = vmatpush.msra.mxu0 %v4337
    %4356 = vmatpush.msra.mxu0 %v4333
    %4357 = vmatpush.msra.mxu0 %v4329
    %4358 = vmatpush.msra.mxu0 %v4325
    %4359 = vmatpush.msra.mxu0 %v4321
    %4360 = vmatpush.msra.mxu0 %v4317
    %4361 = vmatpush.msra.mxu0 %v4313
    %4362 = vmatpush.msra.mxu0 %v4309
    %4363 = vmatpush.msra.mxu0 %v4305
    %4364 = vmatpush.msra.mxu0 %v4301
    %4365 = vmatpush.msra.mxu0 %v4297
    %4366 = vmatpush.msra.mxu0 %v4293
    %4367 = vmatpush.msra.mxu0 %v4289
    %4368 = vmatpush.msra.mxu0 %v4285
    %4369 = vmatmul.f32.gmra.mxu0 0.0
    %v4370 = vpop.f32.mrf.mxu0
    %v4371 = vadd.f32 0.0, %v4370
    %4372 = vdwg.mxu0
    %4373 = vmatpush.msra.mxu0 %v4346
    %4374 = vmatpush.msra.mxu0 %v4342
    %4375 = vmatpush.msra.mxu0 %v4338
    %4376 = vmatpush.msra.mxu0 %v4334
    %4377 = vmatpush.msra.mxu0 %v4330
    %4378 = vmatpush.msra.mxu0 %v4326
    %4379 = vmatpush.msra.mxu0 %v4322
    %4380 = vmatpush.msra.mxu0 %v4318
    %4381 = vmatpush.msra.mxu0 %v4314
    %4382 = vmatpush.msra.mxu0 %v4310
    %4383 = vmatpush.msra.mxu0 %v4306
    %4384 = vmatpush.msra.mxu0 %v4302
    %4385 = vmatpush.msra.mxu0 %v4298
    %4386 = vmatpush.msra.mxu0 %v4294
    %4387 = vmatpush.msra.mxu0 %v4290
    %4388 = vmatpush.msra.mxu0 %v4286
    %4389 = vmatmul.f32.gmra.mxu0 0.0
    %v4390 = vpop.f32.mrf.mxu0
    %v4391 = vadd.f32 0.0, %v4390
    %4392 = vdwg.mxu0
    %4393 = vmatpush.msra.mxu0 %v4347
    %4394 = vmatpush.msra.mxu0 %v4343
    %4395 = vmatpush.msra.mxu0 %v4339
    %4396 = vmatpush.msra.mxu0 %v4335
    %4397 = vmatpush.msra.mxu0 %v4331
    %4398 = vmatpush.msra.mxu0 %v4327
    %4399 = vmatpush.msra.mxu0 %v4323
    %4400 = vmatpush.msra.mxu0 %v4319
    %4401 = vmatpush.msra.mxu0 %v4315
    %4402 = vmatpush.msra.mxu0 %v4311
    %4403 = vmatpush.msra.mxu0 %v4307
    %4404 = vmatpush.msra.mxu0 %v4303
    %4405 = vmatpush.msra.mxu0 %v4299
    %4406 = vmatpush.msra.mxu0 %v4295
    %4407 = vmatpush.msra.mxu0 %v4291
    %4408 = vmatpush.msra.mxu0 %v4287
    %4409 = vmatmul.f32.gmra.mxu0 0.0
    %v4410 = vpop.f32.mrf.mxu0
    %v4411 = vadd.f32 0.0, %v4410
    %4412 = vdwg.mxu0
    %4413 = vmatpush.msra.mxu0 %v4348
    %4414 = vmatpush.msra.mxu0 %v4344
    %4415 = vmatpush.msra.mxu0 %v4340
    %4416 = vmatpush.msra.mxu0 %v4336
    %4417 = vmatpush.msra.mxu0 %v4332
    %4418 = vmatpush.msra.mxu0 %v4328
    %4419 = vmatpush.msra.mxu0 %v4324
    %4420 = vmatpush.msra.mxu0 %v4320
    %4421 = vmatpush.msra.mxu0 %v4316
    %4422 = vmatpush.msra.mxu0 %v4312
    %4423 = vmatpush.msra.mxu0 %v4308
    %4424 = vmatpush.msra.mxu0 %v4304
    %4425 = vmatpush.msra.mxu0 %v4300
    %4426 = vmatpush.msra.mxu0 %v4296
    %4427 = vmatpush.msra.mxu0 %v4292
    %4428 = vmatpush.msra.mxu0 %v4288
    %4429 = vmatmul.f32.gmra.mxu0 0.0
    %v4430 = vpop.f32.mrf.mxu0
    %v4431 = vadd.f32 0.0, %v4430
    %4432 = vdwg.mxu0
    %v4433 = vadd.f32 %v4349, %v4371
    %v4434 = vadd.f32 %v4350, %v4391
    %v4435 = vadd.f32 %v4351, %v4411
    %v4436 = vadd.f32 %v4352, %v4431
    %v4437 = vxor.u32 %v4433, 2147483648
    %v4438 = vmul.f32 %v4437, 1.442695
    %v4439 = vpow.pop %v4438
    %v4440 = vadd.f32 %v4439, 1.0
    %v4441 = vrcp.pop %v4440
    %v4442 = vmul.f32 %v4440, %v4441
    %v4443 = vsub.f32 1.0, %v4442
    %v4444 = vmul.f32 %v4441, %v4443
    %v4445 = vadd.f32 %v4441, %v4444
    %vm4446 = vweird.f32 %v4440
    %vm4447 = vweird.f32 %v4441
    %vm4448 = vmor %vm4446, %vm4447
    %v4449 = vsel %vm4448, %v4441, %v4445
    %v4450 = vand.u32 2147483647, %v4440
    %vm4451 = vcmp.eq.f32.partialorder %v4450, 8.507059e+37
    %v4452 = vand.u32 %v4440, 2147483648
    %v4453 = vor.u32 1.1754944e-38, %v4452
    %v4454 = vsel %vm4451, %v4453, %v4449
    %v4455 = vmul.f32 1.0, %v4454
    %v4456 = vxor.u32 %v4434, 2147483648
    %v4457 = vmul.f32 %v4456, 1.442695
    %v4458 = vpow.pop %v4457
    %v4459 = vadd.f32 %v4458, 1.0
    %v4460 = vrcp.pop %v4459
    %v4461 = vmul.f32 %v4459, %v4460
    %v4462 = vsub.f32 1.0, %v4461
    %v4463 = vmul.f32 %v4460, %v4462
    %v4464 = vadd.f32 %v4460, %v4463
    %vm4465 = vweird.f32 %v4459
    %vm4466 = vweird.f32 %v4460
    %vm4467 = vmor %vm4465, %vm4466
    %v4468 = vsel %vm4467, %v4460, %v4464
    %v4469 = vand.u32 2147483647, %v4459
    %vm4470 = vcmp.eq.f32.partialorder %v4469, 8.507059e+37
    %v4471 = vand.u32 %v4459, 2147483648
    %v4472 = vor.u32 1.1754944e-38, %v4471
    %v4473 = vsel %vm4470, %v4472, %v4468
    %v4474 = vmul.f32 1.0, %v4473
    %v4475 = vtanh.pop %v4435
    %v4476 = vxor.u32 %v4436, 2147483648
    %v4477 = vmul.f32 %v4476, 1.442695
    %v4478 = vpow.pop %v4477
    %v4479 = vadd.f32 %v4478, 1.0
    %v4480 = vrcp.pop %v4479
    %v4481 = vmul.f32 %v4479, %v4480
    %v4482 = vsub.f32 1.0, %v4481
    %v4483 = vmul.f32 %v4480, %v4482
    %v4484 = vadd.f32 %v4480, %v4483
    %vm4485 = vweird.f32 %v4479
    %vm4486 = vweird.f32 %v4480
    %vm4487 = vmor %vm4485, %vm4486
    %v4488 = vsel %vm4487, %v4480, %v4484
    %v4489 = vand.u32 2147483647, %v4479
    %vm4490 = vcmp.eq.f32.partialorder %v4489, 8.507059e+37
    %v4491 = vand.u32 %v4479, 2147483648
    %v4492 = vor.u32 1.1754944e-38, %v4491
    %v4493 = vsel %vm4490, %v4492, %v4488
    %v4494 = vmul.f32 1.0, %v4493
    %v4495 = vmul.f32 %v4474, 0.0
    %v4496 = vmul.f32 %v4455, %v4475
    %v4497 = vadd.f32 %v4495, %v4496
    %v4498 = vtanh.pop %v4497
    %v4499 = vmul.f32 %v4494, %v4498
    %v4500 = vld [vmem:[%s735] sm:$0xff]
    %v4501 = vld [vmem:[%s735 + $0x8] sm:$0xff]
    %v4502 = vld [vmem:[%s735 + $0x10] sm:$0xff]
    %v4503 = vld [vmem:[%s735 + $0x18] sm:$0xff]
    %4504 = vmatpush.msra.mxu0 %v4345
    %4505 = vmatpush.msra.mxu0 %v4341
    %4506 = vmatpush.msra.mxu0 %v4337
    %4507 = vmatpush.msra.mxu0 %v4333
    %4508 = vmatpush.msra.mxu0 %v4329
    %4509 = vmatpush.msra.mxu0 %v4325
    %4510 = vmatpush.msra.mxu0 %v4321
    %4511 = vmatpush.msra.mxu0 %v4317
    %4512 = vmatpush.msra.mxu0 %v4313
    %4513 = vmatpush.msra.mxu0 %v4309
    %4514 = vmatpush.msra.mxu0 %v4305
    %4515 = vmatpush.msra.mxu0 %v4301
    %4516 = vmatpush.msra.mxu0 %v4297
    %4517 = vmatpush.msra.mxu0 %v4293
    %4518 = vmatpush.msra.mxu0 %v4289
    %4519 = vmatpush.msra.mxu0 %v4285
    %4520 = vmatmul.f32.gmra.mxu0 %v4499
    %v4521 = vpop.f32.mrf.mxu0
    %v4522 = vadd.f32 0.0, %v4521
    %4523 = vdwg.mxu0
    %4524 = vmatpush.msra.mxu0 %v4346
    %4525 = vmatpush.msra.mxu0 %v4342
    %4526 = vmatpush.msra.mxu0 %v4338
    %4527 = vmatpush.msra.mxu0 %v4334
    %4528 = vmatpush.msra.mxu0 %v4330
    %4529 = vmatpush.msra.mxu0 %v4326
    %4530 = vmatpush.msra.mxu0 %v4322
    %4531 = vmatpush.msra.mxu0 %v4318
    %4532 = vmatpush.msra.mxu0 %v4314
    %4533 = vmatpush.msra.mxu0 %v4310
    %4534 = vmatpush.msra.mxu0 %v4306
    %4535 = vmatpush.msra.mxu0 %v4302
    %4536 = vmatpush.msra.mxu0 %v4298
    %4537 = vmatpush.msra.mxu0 %v4294
    %4538 = vmatpush.msra.mxu0 %v4290
    %4539 = vmatpush.msra.mxu0 %v4286
    %4540 = vmatmul.f32.gmra.mxu0 %v4499
    %v4541 = vpop.f32.mrf.mxu0
    %v4542 = vadd.f32 0.0, %v4541
    %4543 = vdwg.mxu0
    %4544 = vmatpush.msra.mxu0 %v4347
    %4545 = vmatpush.msra.mxu0 %v4343
    %4546 = vmatpush.msra.mxu0 %v4339
    %4547 = vmatpush.msra.mxu0 %v4335
    %4548 = vmatpush.msra.mxu0 %v4331
    %4549 = vmatpush.msra.mxu0 %v4327
    %4550 = vmatpush.msra.mxu0 %v4323
    %4551 = vmatpush.msra.mxu0 %v4319
    %4552 = vmatpush.msra.mxu0 %v4315
    %4553 = vmatpush.msra.mxu0 %v4311
    %4554 = vmatpush.msra.mxu0 %v4307
    %4555 = vmatpush.msra.mxu0 %v4303
    %4556 = vmatpush.msra.mxu0 %v4299
    %4557 = vmatpush.msra.mxu0 %v4295
    %4558 = vmatpush.msra.mxu0 %v4291
    %4559 = vmatpush.msra.mxu0 %v4287
    %4560 = vmatmul.f32.gmra.mxu0 %v4499
    %v4561 = vpop.f32.mrf.mxu0
    %v4562 = vadd.f32 0.0, %v4561
    %4563 = vdwg.mxu0
    %4564 = vmatpush.msra.mxu0 %v4348
    %4565 = vmatpush.msra.mxu0 %v4344
    %4566 = vmatpush.msra.mxu0 %v4340
    %4567 = vmatpush.msra.mxu0 %v4336
    %4568 = vmatpush.msra.mxu0 %v4332
    %4569 = vmatpush.msra.mxu0 %v4328
    %4570 = vmatpush.msra.mxu0 %v4324
    %4571 = vmatpush.msra.mxu0 %v4320
    %4572 = vmatpush.msra.mxu0 %v4316
    %4573 = vmatpush.msra.mxu0 %v4312
    %4574 = vmatpush.msra.mxu0 %v4308
    %4575 = vmatpush.msra.mxu0 %v4304
    %4576 = vmatpush.msra.mxu0 %v4300
    %4577 = vmatpush.msra.mxu0 %v4296
    %4578 = vmatpush.msra.mxu0 %v4292
    %4579 = vmatpush.msra.mxu0 %v4288
    %4580 = vmatmul.f32.gmra.mxu0 %v4499
    %v4581 = vpop.f32.mrf.mxu0
    %v4582 = vadd.f32 0.0, %v4581
    %4583 = vdwg.mxu0
    %v4584 = vadd.f32 %v4500, %v4522
    %v4585 = vadd.f32 %v4501, %v4542
    %v4586 = vadd.f32 %v4502, %v4562
    %v4587 = vadd.f32 %v4503, %v4582
    %v4588 = vxor.u32 %v4584, 2147483648
    %v4589 = vmul.f32 %v4588, 1.442695
    %v4590 = vpow.pop %v4589
    %v4591 = vadd.f32 %v4590, 1.0
    %v4592 = vrcp.pop %v4591
    %v4593 = vmul.f32 %v4591, %v4592
    %v4594 = vsub.f32 1.0, %v4593
    %v4595 = vmul.f32 %v4592, %v4594
    %v4596 = vadd.f32 %v4592, %v4595
    %vm4597 = vweird.f32 %v4591
    %vm4598 = vweird.f32 %v4592
    %vm4599 = vmor %vm4597, %vm4598
    %v4600 = vsel %vm4599, %v4592, %v4596
    %v4601 = vand.u32 2147483647, %v4591
    %vm4602 = vcmp.eq.f32.partialorder %v4601, 8.507059e+37
    %v4603 = vand.u32 %v4591, 2147483648
    %v4604 = vor.u32 1.1754944e-38, %v4603
    %v4605 = vsel %vm4602, %v4604, %v4600
    %v4606 = vmul.f32 1.0, %v4605
    %v4607 = vxor.u32 %v4585, 2147483648
    %v4608 = vmul.f32 %v4607, 1.442695
    %v4609 = vpow.pop %v4608
    %v4610 = vadd.f32 %v4609, 1.0
    %v4611 = vrcp.pop %v4610
    %v4612 = vmul.f32 %v4610, %v4611
    %v4613 = vsub.f32 1.0, %v4612
    %v4614 = vmul.f32 %v4611, %v4613
    %v4615 = vadd.f32 %v4611, %v4614
    %vm4616 = vweird.f32 %v4610
    %vm4617 = vweird.f32 %v4611
    %vm4618 = vmor %vm4616, %vm4617
    %v4619 = vsel %vm4618, %v4611, %v4615
    %v4620 = vand.u32 2147483647, %v4610
    %vm4621 = vcmp.eq.f32.partialorder %v4620, 8.507059e+37
    %v4622 = vand.u32 %v4610, 2147483648
    %v4623 = vor.u32 1.1754944e-38, %v4622
    %v4624 = vsel %vm4621, %v4623, %v4619
    %v4625 = vmul.f32 1.0, %v4624
    %v4626 = vtanh.pop %v4586
    %v4627 = vxor.u32 %v4587, 2147483648
    %v4628 = vmul.f32 %v4627, 1.442695
    %v4629 = vpow.pop %v4628
    %v4630 = vadd.f32 %v4629, 1.0
    %v4631 = vrcp.pop %v4630
    %v4632 = vmul.f32 %v4630, %v4631
    %v4633 = vsub.f32 1.0, %v4632
    %v4634 = vmul.f32 %v4631, %v4633
    %v4635 = vadd.f32 %v4631, %v4634
    %vm4636 = vweird.f32 %v4630
    %vm4637 = vweird.f32 %v4631
    %vm4638 = vmor %vm4636, %vm4637
    %v4639 = vsel %vm4638, %v4631, %v4635
    %v4640 = vand.u32 2147483647, %v4630
    %vm4641 = vcmp.eq.f32.partialorder %v4640, 8.507059e+37
    %v4642 = vand.u32 %v4630, 2147483648
    %v4643 = vor.u32 1.1754944e-38, %v4642
    %v4644 = vsel %vm4641, %v4643, %v4639
    %v4645 = vmul.f32 1.0, %v4644
    %v4646 = vmul.f32 %v4625, %v4497
    %v4647 = vmul.f32 %v4606, %v4626
    %v4648 = vadd.f32 %v4646, %v4647
    %v4649 = vtanh.pop %v4648
    %v4650 = vmul.f32 %v4645, %v4649
    %v4651 = vld [vmem:[%s972] sm:$0xff]
    %v4652 = vld [vmem:[%s972 + $0x8] sm:$0xff]
    %v4653 = vld [vmem:[%s972 + $0x10] sm:$0xff]
    %v4654 = vld [vmem:[%s972 + $0x18] sm:$0xff]
    %4655 = vmatpush.msra.mxu0 %v4345
    %4656 = vmatpush.msra.mxu0 %v4341
    %4657 = vmatpush.msra.mxu0 %v4337
    %4658 = vmatpush.msra.mxu0 %v4333
    %4659 = vmatpush.msra.mxu0 %v4329
    %4660 = vmatpush.msra.mxu0 %v4325
    %4661 = vmatpush.msra.mxu0 %v4321
    %4662 = vmatpush.msra.mxu0 %v4317
    %4663 = vmatpush.msra.mxu0 %v4313
    %4664 = vmatpush.msra.mxu0 %v4309
    %4665 = vmatpush.msra.mxu0 %v4305
    %4666 = vmatpush.msra.mxu0 %v4301
    %4667 = vmatpush.msra.mxu0 %v4297
    %4668 = vmatpush.msra.mxu0 %v4293
    %4669 = vmatpush.msra.mxu0 %v4289
    %4670 = vmatpush.msra.mxu0 %v4285
    %4671 = vmatmul.f32.gmra.mxu0 %v4650
    %v4672 = vpop.f32.mrf.mxu0
    %v4673 = vadd.f32 0.0, %v4672
    %4674 = vdwg.mxu0
    %4675 = vmatpush.msra.mxu0 %v4346
    %4676 = vmatpush.msra.mxu0 %v4342
    %4677 = vmatpush.msra.mxu0 %v4338
    %4678 = vmatpush.msra.mxu0 %v4334
    %4679 = vmatpush.msra.mxu0 %v4330
    %4680 = vmatpush.msra.mxu0 %v4326
    %4681 = vmatpush.msra.mxu0 %v4322
    %4682 = vmatpush.msra.mxu0 %v4318
    %4683 = vmatpush.msra.mxu0 %v4314
    %4684 = vmatpush.msra.mxu0 %v4310
    %4685 = vmatpush.msra.mxu0 %v4306
    %4686 = vmatpush.msra.mxu0 %v4302
    %4687 = vmatpush.msra.mxu0 %v4298
    %4688 = vmatpush.msra.mxu0 %v4294
    %4689 = vmatpush.msra.mxu0 %v4290
    %4690 = vmatpush.msra.mxu0 %v4286
    %4691 = vmatmul.f32.gmra.mxu0 %v4650
    %v4692 = vpop.f32.mrf.mxu0
    %v4693 = vadd.f32 0.0, %v4692
    %4694 = vdwg.mxu0
    %4695 = vmatpush.msra.mxu0 %v4347
    %4696 = vmatpush.msra.mxu0 %v4343
    %4697 = vmatpush.msra.mxu0 %v4339
    %4698 = vmatpush.msra.mxu0 %v4335
    %4699 = vmatpush.msra.mxu0 %v4331
    %4700 = vmatpush.msra.mxu0 %v4327
    %4701 = vmatpush.msra.mxu0 %v4323
    %4702 = vmatpush.msra.mxu0 %v4319
    %4703 = vmatpush.msra.mxu0 %v4315
    %4704 = vmatpush.msra.mxu0 %v4311
    %4705 = vmatpush.msra.mxu0 %v4307
    %4706 = vmatpush.msra.mxu0 %v4303
    %4707 = vmatpush.msra.mxu0 %v4299
    %4708 = vmatpush.msra.mxu0 %v4295
    %4709 = vmatpush.msra.mxu0 %v4291
    %4710 = vmatpush.msra.mxu0 %v4287
    %4711 = vmatmul.f32.gmra.mxu0 %v4650
    %v4712 = vpop.f32.mrf.mxu0
    %v4713 = vadd.f32 0.0, %v4712
    %4714 = vdwg.mxu0
    %4715 = vmatpush.msra.mxu0 %v4348
    %4716 = vmatpush.msra.mxu0 %v4344
    %4717 = vmatpush.msra.mxu0 %v4340
    %4718 = vmatpush.msra.mxu0 %v4336
    %4719 = vmatpush.msra.mxu0 %v4332
    %4720 = vmatpush.msra.mxu0 %v4328
    %4721 = vmatpush.msra.mxu0 %v4324
    %4722 = vmatpush.msra.mxu0 %v4320
    %4723 = vmatpush.msra.mxu0 %v4316
    %4724 = vmatpush.msra.mxu0 %v4312
    %4725 = vmatpush.msra.mxu0 %v4308
    %4726 = vmatpush.msra.mxu0 %v4304
    %4727 = vmatpush.msra.mxu0 %v4300
    %4728 = vmatpush.msra.mxu0 %v4296
    %4729 = vmatpush.msra.mxu0 %v4292
    %4730 = vmatpush.msra.mxu0 %v4288
    %4731 = vmatmul.f32.gmra.mxu0 %v4650
    %v4732 = vpop.f32.mrf.mxu0
    %v4733 = vadd.f32 0.0, %v4732
    %4734 = vdwg.mxu0
    %v4735 = vadd.f32 %v4651, %v4673
    %v4736 = vadd.f32 %v4652, %v4693
    %v4737 = vadd.f32 %v4653, %v4713
    %v4738 = vadd.f32 %v4654, %v4733
    %v4739 = vxor.u32 %v4735, 2147483648
    %v4740 = vmul.f32 %v4739, 1.442695
    %v4741 = vpow.pop %v4740
    %v4742 = vadd.f32 %v4741, 1.0
    %v4743 = vrcp.pop %v4742
    %v4744 = vmul.f32 %v4742, %v4743
    %v4745 = vsub.f32 1.0, %v4744
    %v4746 = vmul.f32 %v4743, %v4745
    %v4747 = vadd.f32 %v4743, %v4746
    %vm4748 = vweird.f32 %v4742
    %vm4749 = vweird.f32 %v4743
    %vm4750 = vmor %vm4748, %vm4749
    %v4751 = vsel %vm4750, %v4743, %v4747
    %v4752 = vand.u32 2147483647, %v4742
    %vm4753 = vcmp.eq.f32.partialorder %v4752, 8.507059e+37
    %v4754 = vand.u32 %v4742, 2147483648
    %v4755 = vor.u32 1.1754944e-38, %v4754
    %v4756 = vsel %vm4753, %v4755, %v4751
    %v4757 = vmul.f32 1.0, %v4756
    %v4758 = vxor.u32 %v4736, 2147483648
    %v4759 = vmul.f32 %v4758, 1.442695
    %v4760 = vpow.pop %v4759
    %v4761 = vadd.f32 %v4760, 1.0
    %v4762 = vrcp.pop %v4761
    %v4763 = vmul.f32 %v4761, %v4762
    %v4764 = vsub.f32 1.0, %v4763
    %v4765 = vmul.f32 %v4762, %v4764
    %v4766 = vadd.f32 %v4762, %v4765
    %vm4767 = vweird.f32 %v4761
    %vm4768 = vweird.f32 %v4762
    %vm4769 = vmor %vm4767, %vm4768
    %v4770 = vsel %vm4769, %v4762, %v4766
    %v4771 = vand.u32 2147483647, %v4761
    %vm4772 = vcmp.eq.f32.partialorder %v4771, 8.507059e+37
    %v4773 = vand.u32 %v4761, 2147483648
    %v4774 = vor.u32 1.1754944e-38, %v4773
    %v4775 = vsel %vm4772, %v4774, %v4770
    %v4776 = vmul.f32 1.0, %v4775
    %v4777 = vtanh.pop %v4737
    %v4778 = vxor.u32 %v4738, 2147483648
    %v4779 = vmul.f32 %v4778, 1.442695
    %v4780 = vpow.pop %v4779
    %v4781 = vadd.f32 %v4780, 1.0
    %v4782 = vrcp.pop %v4781
    %v4783 = vmul.f32 %v4781, %v4782
    %v4784 = vsub.f32 1.0, %v4783
    %v4785 = vmul.f32 %v4782, %v4784
    %v4786 = vadd.f32 %v4782, %v4785
    %vm4787 = vweird.f32 %v4781
    %vm4788 = vweird.f32 %v4782
    %vm4789 = vmor %vm4787, %vm4788
    %v4790 = vsel %vm4789, %v4782, %v4786
    %v4791 = vand.u32 2147483647, %v4781
    %vm4792 = vcmp.eq.f32.partialorder %v4791, 8.507059e+37
    %v4793 = vand.u32 %v4781, 2147483648
    %v4794 = vor.u32 1.1754944e-38, %v4793
    %v4795 = vsel %vm4792, %v4794, %v4790
    %v4796 = vmul.f32 1.0, %v4795
    %v4797 = vmul.f32 %v4776, %v4648
    %v4798 = vmul.f32 %v4757, %v4777
    %v4799 = vadd.f32 %v4797, %v4798
    %v4800 = vtanh.pop %v4799
    %v4801 = vmul.f32 %v4796, %v4800
    %v4802 = vld [vmem:[%s1209] sm:$0xff]
    %v4803 = vld [vmem:[%s1209 + $0x8] sm:$0xff]
    %v4804 = vld [vmem:[%s1209 + $0x10] sm:$0xff]
    %v4805 = vld [vmem:[%s1209 + $0x18] sm:$0xff]
    %4806 = vmatpush.msra.mxu0 %v4345
    %4807 = vmatpush.msra.mxu0 %v4341
    %4808 = vmatpush.msra.mxu0 %v4337
    %4809 = vmatpush.msra.mxu0 %v4333
    %4810 = vmatpush.msra.mxu0 %v4329
    %4811 = vmatpush.msra.mxu0 %v4325
    %4812 = vmatpush.msra.mxu0 %v4321
    %4813 = vmatpush.msra.mxu0 %v4317
    %4814 = vmatpush.msra.mxu0 %v4313
    %4815 = vmatpush.msra.mxu0 %v4309
    %4816 = vmatpush.msra.mxu0 %v4305
    %4817 = vmatpush.msra.mxu0 %v4301
    %4818 = vmatpush.msra.mxu0 %v4297
    %4819 = vmatpush.msra.mxu0 %v4293
    %4820 = vmatpush.msra.mxu0 %v4289
    %4821 = vmatpush.msra.mxu0 %v4285
    %4822 = vmatmul.f32.gmra.mxu0 %v4801
    %v4823 = vpop.f32.mrf.mxu0
    %v4824 = vadd.f32 0.0, %v4823
    %4825 = vdwg.mxu0
    %4826 = vmatpush.msra.mxu0 %v4346
    %4827 = vmatpush.msra.mxu0 %v4342
    %4828 = vmatpush.msra.mxu0 %v4338
    %4829 = vmatpush.msra.mxu0 %v4334
    %4830 = vmatpush.msra.mxu0 %v4330
    %4831 = vmatpush.msra.mxu0 %v4326
    %4832 = vmatpush.msra.mxu0 %v4322
    %4833 = vmatpush.msra.mxu0 %v4318
    %4834 = vmatpush.msra.mxu0 %v4314
    %4835 = vmatpush.msra.mxu0 %v4310
    %4836 = vmatpush.msra.mxu0 %v4306
    %4837 = vmatpush.msra.mxu0 %v4302
    %4838 = vmatpush.msra.mxu0 %v4298
    %4839 = vmatpush.msra.mxu0 %v4294
    %4840 = vmatpush.msra.mxu0 %v4290
    %4841 = vmatpush.msra.mxu0 %v4286
    %4842 = vmatmul.f32.gmra.mxu0 %v4801
    %v4843 = vpop.f32.mrf.mxu0
    %v4844 = vadd.f32 0.0, %v4843
    %4845 = vdwg.mxu0
    %4846 = vmatpush.msra.mxu0 %v4347
    %4847 = vmatpush.msra.mxu0 %v4343
    %4848 = vmatpush.msra.mxu0 %v4339
    %4849 = vmatpush.msra.mxu0 %v4335
    %4850 = vmatpush.msra.mxu0 %v4331
    %4851 = vmatpush.msra.mxu0 %v4327
    %4852 = vmatpush.msra.mxu0 %v4323
    %4853 = vmatpush.msra.mxu0 %v4319
    %4854 = vmatpush.msra.mxu0 %v4315
    %4855 = vmatpush.msra.mxu0 %v4311
    %4856 = vmatpush.msra.mxu0 %v4307
    %4857 = vmatpush.msra.mxu0 %v4303
    %4858 = vmatpush.msra.mxu0 %v4299
    %4859 = vmatpush.msra.mxu0 %v4295
    %4860 = vmatpush.msra.mxu0 %v4291
    %4861 = vmatpush.msra.mxu0 %v4287
    %4862 = vmatmul.f32.gmra.mxu0 %v4801
    %v4863 = vpop.f32.mrf.mxu0
    %v4864 = vadd.f32 0.0, %v4863
    %4865 = vdwg.mxu0
    %4866 = vmatpush.msra.mxu0 %v4348
    %4867 = vmatpush.msra.mxu0 %v4344
    %4868 = vmatpush.msra.mxu0 %v4340
    %4869 = vmatpush.msra.mxu0 %v4336
    %4870 = vmatpush.msra.mxu0 %v4332
    %4871 = vmatpush.msra.mxu0 %v4328
    %4872 = vmatpush.msra.mxu0 %v4324
    %4873 = vmatpush.msra.mxu0 %v4320
    %4874 = vmatpush.msra.mxu0 %v4316
    %4875 = vmatpush.msra.mxu0 %v4312
    %4876 = vmatpush.msra.mxu0 %v4308
    %4877 = vmatpush.msra.mxu0 %v4304
    %4878 = vmatpush.msra.mxu0 %v4300
    %4879 = vmatpush.msra.mxu0 %v4296
    %4880 = vmatpush.msra.mxu0 %v4292
    %4881 = vmatpush.msra.mxu0 %v4288
    %4882 = vmatmul.f32.gmra.mxu0 %v4801
    %v4883 = vpop.f32.mrf.mxu0
    %v4884 = vadd.f32 0.0, %v4883
    %4885 = vdwg.mxu0
    %v4886 = vadd.f32 %v4802, %v4824
    %v4887 = vadd.f32 %v4803, %v4844
    %v4888 = vadd.f32 %v4804, %v4864
    %v4889 = vadd.f32 %v4805, %v4884
    %v4890 = vxor.u32 %v4886, 2147483648
    %v4891 = vmul.f32 %v4890, 1.442695
    %v4892 = vpow.pop %v4891
    %v4893 = vadd.f32 %v4892, 1.0
    %v4894 = vrcp.pop %v4893
    %v4895 = vmul.f32 %v4893, %v4894
    %v4896 = vsub.f32 1.0, %v4895
    %v4897 = vmul.f32 %v4894, %v4896
    %v4898 = vadd.f32 %v4894, %v4897
    %vm4899 = vweird.f32 %v4893
    %vm4900 = vweird.f32 %v4894
    %vm4901 = vmor %vm4899, %vm4900
    %v4902 = vsel %vm4901, %v4894, %v4898
    %v4903 = vand.u32 2147483647, %v4893
    %vm4904 = vcmp.eq.f32.partialorder %v4903, 8.507059e+37
    %v4905 = vand.u32 %v4893, 2147483648
    %v4906 = vor.u32 1.1754944e-38, %v4905
    %v4907 = vsel %vm4904, %v4906, %v4902
    %v4908 = vmul.f32 1.0, %v4907
    %v4909 = vxor.u32 %v4887, 2147483648
    %v4910 = vmul.f32 %v4909, 1.442695
    %v4911 = vpow.pop %v4910
    %v4912 = vadd.f32 %v4911, 1.0
    %v4913 = vrcp.pop %v4912
    %v4914 = vmul.f32 %v4912, %v4913
    %v4915 = vsub.f32 1.0, %v4914
    %v4916 = vmul.f32 %v4913, %v4915
    %v4917 = vadd.f32 %v4913, %v4916
    %vm4918 = vweird.f32 %v4912
    %vm4919 = vweird.f32 %v4913
    %vm4920 = vmor %vm4918, %vm4919
    %v4921 = vsel %vm4920, %v4913, %v4917
    %v4922 = vand.u32 2147483647, %v4912
    %vm4923 = vcmp.eq.f32.partialorder %v4922, 8.507059e+37
    %v4924 = vand.u32 %v4912, 2147483648
    %v4925 = vor.u32 1.1754944e-38, %v4924
    %v4926 = vsel %vm4923, %v4925, %v4921
    %v4927 = vmul.f32 1.0, %v4926
    %v4928 = vtanh.pop %v4888
    %v4929 = vxor.u32 %v4889, 2147483648
    %v4930 = vmul.f32 %v4929, 1.442695
    %v4931 = vpow.pop %v4930
    %v4932 = vadd.f32 %v4931, 1.0
    %v4933 = vrcp.pop %v4932
    %v4934 = vmul.f32 %v4932, %v4933
    %v4935 = vsub.f32 1.0, %v4934
    %v4936 = vmul.f32 %v4933, %v4935
    %v4937 = vadd.f32 %v4933, %v4936
    %vm4938 = vweird.f32 %v4932
    %vm4939 = vweird.f32 %v4933
    %vm4940 = vmor %vm4938, %vm4939
    %v4941 = vsel %vm4940, %v4933, %v4937
    %v4942 = vand.u32 2147483647, %v4932
    %vm4943 = vcmp.eq.f32.partialorder %v4942, 8.507059e+37
    %v4944 = vand.u32 %v4932, 2147483648
    %v4945 = vor.u32 1.1754944e-38, %v4944
    %v4946 = vsel %vm4943, %v4945, %v4941
    %v4947 = vmul.f32 1.0, %v4946
    %v4948 = vmul.f32 %v4927, %v4799
    %v4949 = vmul.f32 %v4908, %v4928
    %v4950 = vadd.f32 %v4948, %v4949
    %v4951 = vtanh.pop %v4950
    %v4952 = vmul.f32 %v4947, %v4951
    %v4953 = vld [vmem:[%s1446] sm:$0xff]
    %v4954 = vld [vmem:[%s1446 + $0x8] sm:$0xff]
    %v4955 = vld [vmem:[%s1446 + $0x10] sm:$0xff]
    %v4956 = vld [vmem:[%s1446 + $0x18] sm:$0xff]
    %4957 = vmatpush.msra.mxu0 %v4345
    %4958 = vmatpush.msra.mxu0 %v4341
    %4959 = vmatpush.msra.mxu0 %v4337
    %4960 = vmatpush.msra.mxu0 %v4333
    %4961 = vmatpush.msra.mxu0 %v4329
    %4962 = vmatpush.msra.mxu0 %v4325
    %4963 = vmatpush.msra.mxu0 %v4321
    %4964 = vmatpush.msra.mxu0 %v4317
    %4965 = vmatpush.msra.mxu0 %v4313
    %4966 = vmatpush.msra.mxu0 %v4309
    %4967 = vmatpush.msra.mxu0 %v4305
    %4968 = vmatpush.msra.mxu0 %v4301
    %4969 = vmatpush.msra.mxu0 %v4297
    %4970 = vmatpush.msra.mxu0 %v4293
    %4971 = vmatpush.msra.mxu0 %v4289
    %4972 = vmatpush.msra.mxu0 %v4285
    %4973 = vmatmul.f32.gmra.mxu0 %v4952
    %v4974 = vpop.f32.mrf.mxu0
    %v4975 = vadd.f32 0.0, %v4974
    %4976 = vdwg.mxu0
    %4977 = vmatpush.msra.mxu0 %v4346
    %4978 = vmatpush.msra.mxu0 %v4342
    %4979 = vmatpush.msra.mxu0 %v4338
    %4980 = vmatpush.msra.mxu0 %v4334
    %4981 = vmatpush.msra.mxu0 %v4330
    %4982 = vmatpush.msra.mxu0 %v4326
    %4983 = vmatpush.msra.mxu0 %v4322
    %4984 = vmatpush.msra.mxu0 %v4318
    %4985 = vmatpush.msra.mxu0 %v4314
    %4986 = vmatpush.msra.mxu0 %v4310
    %4987 = vmatpush.msra.mxu0 %v4306
    %4988 = vmatpush.msra.mxu0 %v4302
    %4989 = vmatpush.msra.mxu0 %v4298
    %4990 = vmatpush.msra.mxu0 %v4294
    %4991 = vmatpush.msra.mxu0 %v4290
    %4992 = vmatpush.msra.mxu0 %v4286
    %4993 = vmatmul.f32.gmra.mxu0 %v4952
    %v4994 = vpop.f32.mrf.mxu0
    %v4995 = vadd.f32 0.0, %v4994
    %4996 = vdwg.mxu0
    %4997 = vmatpush.msra.mxu0 %v4347
    %4998 = vmatpush.msra.mxu0 %v4343
    %4999 = vmatpush.msra.mxu0 %v4339
    %5000 = vmatpush.msra.mxu0 %v4335
    %5001 = vmatpush.msra.mxu0 %v4331
    %5002 = vmatpush.msra.mxu0 %v4327
    %5003 = vmatpush.msra.mxu0 %v4323
    %5004 = vmatpush.msra.mxu0 %v4319
    %5005 = vmatpush.msra.mxu0 %v4315
    %5006 = vmatpush.msra.mxu0 %v4311
    %5007 = vmatpush.msra.mxu0 %v4307
    %5008 = vmatpush.msra.mxu0 %v4303
    %5009 = vmatpush.msra.mxu0 %v4299
    %5010 = vmatpush.msra.mxu0 %v4295
    %5011 = vmatpush.msra.mxu0 %v4291
    %5012 = vmatpush.msra.mxu0 %v4287
    %5013 = vmatmul.f32.gmra.mxu0 %v4952
    %v5014 = vpop.f32.mrf.mxu0
    %v5015 = vadd.f32 0.0, %v5014
    %5016 = vdwg.mxu0
    %5017 = vmatpush.msra.mxu0 %v4348
    %5018 = vmatpush.msra.mxu0 %v4344
    %5019 = vmatpush.msra.mxu0 %v4340
    %5020 = vmatpush.msra.mxu0 %v4336
    %5021 = vmatpush.msra.mxu0 %v4332
    %5022 = vmatpush.msra.mxu0 %v4328
    %5023 = vmatpush.msra.mxu0 %v4324
    %5024 = vmatpush.msra.mxu0 %v4320
    %5025 = vmatpush.msra.mxu0 %v4316
    %5026 = vmatpush.msra.mxu0 %v4312
    %5027 = vmatpush.msra.mxu0 %v4308
    %5028 = vmatpush.msra.mxu0 %v4304
    %5029 = vmatpush.msra.mxu0 %v4300
    %5030 = vmatpush.msra.mxu0 %v4296
    %5031 = vmatpush.msra.mxu0 %v4292
    %5032 = vmatpush.msra.mxu0 %v4288
    %5033 = vmatmul.f32.gmra.mxu0 %v4952
    %v5034 = vpop.f32.mrf.mxu0
    %v5035 = vadd.f32 0.0, %v5034
    %5036 = vdwg.mxu0
    %v5037 = vadd.f32 %v4953, %v4975
    %v5038 = vadd.f32 %v4954, %v4995
    %v5039 = vadd.f32 %v4955, %v5015
    %v5040 = vadd.f32 %v4956, %v5035
    %v5041 = vxor.u32 %v5037, 2147483648
    %v5042 = vmul.f32 %v5041, 1.442695
    %v5043 = vpow.pop %v5042
    %v5044 = vadd.f32 %v5043, 1.0
    %v5045 = vrcp.pop %v5044
    %v5046 = vmul.f32 %v5044, %v5045
    %v5047 = vsub.f32 1.0, %v5046
    %v5048 = vmul.f32 %v5045, %v5047
    %v5049 = vadd.f32 %v5045, %v5048
    %vm5050 = vweird.f32 %v5044
    %vm5051 = vweird.f32 %v5045
    %vm5052 = vmor %vm5050, %vm5051
    %v5053 = vsel %vm5052, %v5045, %v5049
    %v5054 = vand.u32 2147483647, %v5044
    %vm5055 = vcmp.eq.f32.partialorder %v5054, 8.507059e+37
    %v5056 = vand.u32 %v5044, 2147483648
    %v5057 = vor.u32 1.1754944e-38, %v5056
    %v5058 = vsel %vm5055, %v5057, %v5053
    %v5059 = vmul.f32 1.0, %v5058
    %v5060 = vxor.u32 %v5038, 2147483648
    %v5061 = vmul.f32 %v5060, 1.442695
    %v5062 = vpow.pop %v5061
    %v5063 = vadd.f32 %v5062, 1.0
    %v5064 = vrcp.pop %v5063
    %v5065 = vmul.f32 %v5063, %v5064
    %v5066 = vsub.f32 1.0, %v5065
    %v5067 = vmul.f32 %v5064, %v5066
    %v5068 = vadd.f32 %v5064, %v5067
    %vm5069 = vweird.f32 %v5063
    %vm5070 = vweird.f32 %v5064
    %vm5071 = vmor %vm5069, %vm5070
    %v5072 = vsel %vm5071, %v5064, %v5068
    %v5073 = vand.u32 2147483647, %v5063
    %vm5074 = vcmp.eq.f32.partialorder %v5073, 8.507059e+37
    %v5075 = vand.u32 %v5063, 2147483648
    %v5076 = vor.u32 1.1754944e-38, %v5075
    %v5077 = vsel %vm5074, %v5076, %v5072
    %v5078 = vmul.f32 1.0, %v5077
    %v5079 = vtanh.pop %v5039
    %v5080 = vxor.u32 %v5040, 2147483648
    %v5081 = vmul.f32 %v5080, 1.442695
    %v5082 = vpow.pop %v5081
    %v5083 = vadd.f32 %v5082, 1.0
    %v5084 = vrcp.pop %v5083
    %v5085 = vmul.f32 %v5083, %v5084
    %v5086 = vsub.f32 1.0, %v5085
    %v5087 = vmul.f32 %v5084, %v5086
    %v5088 = vadd.f32 %v5084, %v5087
    %vm5089 = vweird.f32 %v5083
    %vm5090 = vweird.f32 %v5084
    %vm5091 = vmor %vm5089, %vm5090
    %v5092 = vsel %vm5091, %v5084, %v5088
    %v5093 = vand.u32 2147483647, %v5083
    %vm5094 = vcmp.eq.f32.partialorder %v5093, 8.507059e+37
    %v5095 = vand.u32 %v5083, 2147483648
    %v5096 = vor.u32 1.1754944e-38, %v5095
    %v5097 = vsel %vm5094, %v5096, %v5092
    %v5098 = vmul.f32 1.0, %v5097
    %v5099 = vmul.f32 %v5078, %v4950
    %v5100 = vmul.f32 %v5059, %v5079
    %v5101 = vadd.f32 %v5099, %v5100
    %v5102 = vtanh.pop %v5101
    %v5103 = vmul.f32 %v5098, %v5102
    %v5104 = vld [vmem:[%s1683] sm:$0xff]
    %v5105 = vld [vmem:[%s1683 + $0x8] sm:$0xff]
    %v5106 = vld [vmem:[%s1683 + $0x10] sm:$0xff]
    %v5107 = vld [vmem:[%s1683 + $0x18] sm:$0xff]
    %5108 = vmatpush.msra.mxu0 %v4345
    %5109 = vmatpush.msra.mxu0 %v4341
    %5110 = vmatpush.msra.mxu0 %v4337
    %5111 = vmatpush.msra.mxu0 %v4333
    %5112 = vmatpush.msra.mxu0 %v4329
    %5113 = vmatpush.msra.mxu0 %v4325
    %5114 = vmatpush.msra.mxu0 %v4321
    %5115 = vmatpush.msra.mxu0 %v4317
    %5116 = vmatpush.msra.mxu0 %v4313
    %5117 = vmatpush.msra.mxu0 %v4309
    %5118 = vmatpush.msra.mxu0 %v4305
    %5119 = vmatpush.msra.mxu0 %v4301
    %5120 = vmatpush.msra.mxu0 %v4297
    %5121 = vmatpush.msra.mxu0 %v4293
    %5122 = vmatpush.msra.mxu0 %v4289
    %5123 = vmatpush.msra.mxu0 %v4285
    %5124 = vmatmul.f32.gmra.mxu0 %v5103
    %v5125 = vpop.f32.mrf.mxu0
    %v5126 = vadd.f32 0.0, %v5125
    %5127 = vdwg.mxu0
    %5128 = vmatpush.msra.mxu0 %v4346
    %5129 = vmatpush.msra.mxu0 %v4342
    %5130 = vmatpush.msra.mxu0 %v4338
    %5131 = vmatpush.msra.mxu0 %v4334
    %5132 = vmatpush.msra.mxu0 %v4330
    %5133 = vmatpush.msra.mxu0 %v4326
    %5134 = vmatpush.msra.mxu0 %v4322
    %5135 = vmatpush.msra.mxu0 %v4318
    %5136 = vmatpush.msra.mxu0 %v4314
    %5137 = vmatpush.msra.mxu0 %v4310
    %5138 = vmatpush.msra.mxu0 %v4306
    %5139 = vmatpush.msra.mxu0 %v4302
    %5140 = vmatpush.msra.mxu0 %v4298
    %5141 = vmatpush.msra.mxu0 %v4294
    %5142 = vmatpush.msra.mxu0 %v4290
    %5143 = vmatpush.msra.mxu0 %v4286
    %5144 = vmatmul.f32.gmra.mxu0 %v5103
    %v5145 = vpop.f32.mrf.mxu0
    %v5146 = vadd.f32 0.0, %v5145
    %5147 = vdwg.mxu0
    %5148 = vmatpush.msra.mxu0 %v4347
    %5149 = vmatpush.msra.mxu0 %v4343
    %5150 = vmatpush.msra.mxu0 %v4339
    %5151 = vmatpush.msra.mxu0 %v4335
    %5152 = vmatpush.msra.mxu0 %v4331
    %5153 = vmatpush.msra.mxu0 %v4327
    %5154 = vmatpush.msra.mxu0 %v4323
    %5155 = vmatpush.msra.mxu0 %v4319
    %5156 = vmatpush.msra.mxu0 %v4315
    %5157 = vmatpush.msra.mxu0 %v4311
    %5158 = vmatpush.msra.mxu0 %v4307
    %5159 = vmatpush.msra.mxu0 %v4303
    %5160 = vmatpush.msra.mxu0 %v4299
    %5161 = vmatpush.msra.mxu0 %v4295
    %5162 = vmatpush.msra.mxu0 %v4291
    %5163 = vmatpush.msra.mxu0 %v4287
    %5164 = vmatmul.f32.gmra.mxu0 %v5103
    %v5165 = vpop.f32.mrf.mxu0
    %v5166 = vadd.f32 0.0, %v5165
    %5167 = vdwg.mxu0
    %5168 = vmatpush.msra.mxu0 %v4348
    %5169 = vmatpush.msra.mxu0 %v4344
    %5170 = vmatpush.msra.mxu0 %v4340
    %5171 = vmatpush.msra.mxu0 %v4336
    %5172 = vmatpush.msra.mxu0 %v4332
    %5173 = vmatpush.msra.mxu0 %v4328
    %5174 = vmatpush.msra.mxu0 %v4324
    %5175 = vmatpush.msra.mxu0 %v4320
    %5176 = vmatpush.msra.mxu0 %v4316
    %5177 = vmatpush.msra.mxu0 %v4312
    %5178 = vmatpush.msra.mxu0 %v4308
    %5179 = vmatpush.msra.mxu0 %v4304
    %5180 = vmatpush.msra.mxu0 %v4300
    %5181 = vmatpush.msra.mxu0 %v4296
    %5182 = vmatpush.msra.mxu0 %v4292
    %5183 = vmatpush.msra.mxu0 %v4288
    %5184 = vmatmul.f32.gmra.mxu0 %v5103
    %v5185 = vpop.f32.mrf.mxu0
    %v5186 = vadd.f32 0.0, %v5185
    %5187 = vdwg.mxu0
    %v5188 = vadd.f32 %v5104, %v5126
    %v5189 = vadd.f32 %v5105, %v5146
    %v5190 = vadd.f32 %v5106, %v5166
    %v5191 = vadd.f32 %v5107, %v5186
    %v5192 = vxor.u32 %v5188, 2147483648
    %v5193 = vmul.f32 %v5192, 1.442695
    %v5194 = vpow.pop %v5193
    %v5195 = vadd.f32 %v5194, 1.0
    %v5196 = vrcp.pop %v5195
    %v5197 = vmul.f32 %v5195, %v5196
    %v5198 = vsub.f32 1.0, %v5197
    %v5199 = vmul.f32 %v5196, %v5198
    %v5200 = vadd.f32 %v5196, %v5199
    %vm5201 = vweird.f32 %v5195
    %vm5202 = vweird.f32 %v5196
    %vm5203 = vmor %vm5201, %vm5202
    %v5204 = vsel %vm5203, %v5196, %v5200
    %v5205 = vand.u32 2147483647, %v5195
    %vm5206 = vcmp.eq.f32.partialorder %v5205, 8.507059e+37
    %v5207 = vand.u32 %v5195, 2147483648
    %v5208 = vor.u32 1.1754944e-38, %v5207
    %v5209 = vsel %vm5206, %v5208, %v5204
    %v5210 = vmul.f32 1.0, %v5209
    %v5211 = vxor.u32 %v5189, 2147483648
    %v5212 = vmul.f32 %v5211, 1.442695
    %v5213 = vpow.pop %v5212
    %v5214 = vadd.f32 %v5213, 1.0
    %v5215 = vrcp.pop %v5214
    %v5216 = vmul.f32 %v5214, %v5215
    %v5217 = vsub.f32 1.0, %v5216
    %v5218 = vmul.f32 %v5215, %v5217
    %v5219 = vadd.f32 %v5215, %v5218
    %vm5220 = vweird.f32 %v5214
    %vm5221 = vweird.f32 %v5215
    %vm5222 = vmor %vm5220, %vm5221
    %v5223 = vsel %vm5222, %v5215, %v5219
    %v5224 = vand.u32 2147483647, %v5214
    %vm5225 = vcmp.eq.f32.partialorder %v5224, 8.507059e+37
    %v5226 = vand.u32 %v5214, 2147483648
    %v5227 = vor.u32 1.1754944e-38, %v5226
    %v5228 = vsel %vm5225, %v5227, %v5223
    %v5229 = vmul.f32 1.0, %v5228
    %v5230 = vtanh.pop %v5190
    %v5231 = vxor.u32 %v5191, 2147483648
    %v5232 = vmul.f32 %v5231, 1.442695
    %v5233 = vpow.pop %v5232
    %v5234 = vadd.f32 %v5233, 1.0
    %v5235 = vrcp.pop %v5234
    %v5236 = vmul.f32 %v5234, %v5235
    %v5237 = vsub.f32 1.0, %v5236
    %v5238 = vmul.f32 %v5235, %v5237
    %v5239 = vadd.f32 %v5235, %v5238
    %vm5240 = vweird.f32 %v5234
    %vm5241 = vweird.f32 %v5235
    %vm5242 = vmor %vm5240, %vm5241
    %v5243 = vsel %vm5242, %v5235, %v5239
    %v5244 = vand.u32 2147483647, %v5234
    %vm5245 = vcmp.eq.f32.partialorder %v5244, 8.507059e+37
    %v5246 = vand.u32 %v5234, 2147483648
    %v5247 = vor.u32 1.1754944e-38, %v5246
    %v5248 = vsel %vm5245, %v5247, %v5243
    %v5249 = vmul.f32 1.0, %v5248
    %v5250 = vmul.f32 %v5229, %v5101
    %v5251 = vmul.f32 %v5210, %v5230
    %v5252 = vadd.f32 %v5250, %v5251
    %v5253 = vtanh.pop %v5252
    %v5254 = vmul.f32 %v5249, %v5253
    %v5255 = vld [vmem:[%s1920] sm:$0xff]
    %v5256 = vld [vmem:[%s1920 + $0x8] sm:$0xff]
    %v5257 = vld [vmem:[%s1920 + $0x10] sm:$0xff]
    %v5258 = vld [vmem:[%s1920 + $0x18] sm:$0xff]
    %5259 = vmatpush.msra.mxu0 %v4345
    %5260 = vmatpush.msra.mxu0 %v4341
    %5261 = vmatpush.msra.mxu0 %v4337
    %5262 = vmatpush.msra.mxu0 %v4333
    %5263 = vmatpush.msra.mxu0 %v4329
    %5264 = vmatpush.msra.mxu0 %v4325
    %5265 = vmatpush.msra.mxu0 %v4321
    %5266 = vmatpush.msra.mxu0 %v4317
    %5267 = vmatpush.msra.mxu0 %v4313
    %5268 = vmatpush.msra.mxu0 %v4309
    %5269 = vmatpush.msra.mxu0 %v4305
    %5270 = vmatpush.msra.mxu0 %v4301
    %5271 = vmatpush.msra.mxu0 %v4297
    %5272 = vmatpush.msra.mxu0 %v4293
    %5273 = vmatpush.msra.mxu0 %v4289
    %5274 = vmatpush.msra.mxu0 %v4285
    %5275 = vmatmul.f32.gmra.mxu0 %v5254
    %v5276 = vpop.f32.mrf.mxu0
    %v5277 = vadd.f32 0.0, %v5276
    %5278 = vdwg.mxu0
    %5279 = vmatpush.msra.mxu0 %v4346
    %5280 = vmatpush.msra.mxu0 %v4342
    %5281 = vmatpush.msra.mxu0 %v4338
    %5282 = vmatpush.msra.mxu0 %v4334
    %5283 = vmatpush.msra.mxu0 %v4330
    %5284 = vmatpush.msra.mxu0 %v4326
    %5285 = vmatpush.msra.mxu0 %v4322
    %5286 = vmatpush.msra.mxu0 %v4318
    %5287 = vmatpush.msra.mxu0 %v4314
    %5288 = vmatpush.msra.mxu0 %v4310
    %5289 = vmatpush.msra.mxu0 %v4306
    %5290 = vmatpush.msra.mxu0 %v4302
    %5291 = vmatpush.msra.mxu0 %v4298
    %5292 = vmatpush.msra.mxu0 %v4294
    %5293 = vmatpush.msra.mxu0 %v4290
    %5294 = vmatpush.msra.mxu0 %v4286
    %5295 = vmatmul.f32.gmra.mxu0 %v5254
    %v5296 = vpop.f32.mrf.mxu0
    %v5297 = vadd.f32 0.0, %v5296
    %5298 = vdwg.mxu0
    %5299 = vmatpush.msra.mxu0 %v4347
    %5300 = vmatpush.msra.mxu0 %v4343
    %5301 = vmatpush.msra.mxu0 %v4339
    %5302 = vmatpush.msra.mxu0 %v4335
    %5303 = vmatpush.msra.mxu0 %v4331
    %5304 = vmatpush.msra.mxu0 %v4327
    %5305 = vmatpush.msra.mxu0 %v4323
    %5306 = vmatpush.msra.mxu0 %v4319
    %5307 = vmatpush.msra.mxu0 %v4315
    %5308 = vmatpush.msra.mxu0 %v4311
    %5309 = vmatpush.msra.mxu0 %v4307
    %5310 = vmatpush.msra.mxu0 %v4303
    %5311 = vmatpush.msra.mxu0 %v4299
    %5312 = vmatpush.msra.mxu0 %v4295
    %5313 = vmatpush.msra.mxu0 %v4291
    %5314 = vmatpush.msra.mxu0 %v4287
    %5315 = vmatmul.f32.gmra.mxu0 %v5254
    %v5316 = vpop.f32.mrf.mxu0
    %v5317 = vadd.f32 0.0, %v5316
    %5318 = vdwg.mxu0
    %5319 = vmatpush.msra.mxu0 %v4348
    %5320 = vmatpush.msra.mxu0 %v4344
    %5321 = vmatpush.msra.mxu0 %v4340
    %5322 = vmatpush.msra.mxu0 %v4336
    %5323 = vmatpush.msra.mxu0 %v4332
    %5324 = vmatpush.msra.mxu0 %v4328
    %5325 = vmatpush.msra.mxu0 %v4324
    %5326 = vmatpush.msra.mxu0 %v4320
    %5327 = vmatpush.msra.mxu0 %v4316
    %5328 = vmatpush.msra.mxu0 %v4312
    %5329 = vmatpush.msra.mxu0 %v4308
    %5330 = vmatpush.msra.mxu0 %v4304
    %5331 = vmatpush.msra.mxu0 %v4300
    %5332 = vmatpush.msra.mxu0 %v4296
    %5333 = vmatpush.msra.mxu0 %v4292
    %5334 = vmatpush.msra.mxu0 %v4288
    %5335 = vmatmul.f32.gmra.mxu0 %v5254
    %v5336 = vpop.f32.mrf.mxu0
    %v5337 = vadd.f32 0.0, %v5336
    %5338 = vdwg.mxu0
    %v5339 = vadd.f32 %v5255, %v5277
    %v5340 = vadd.f32 %v5256, %v5297
    %v5341 = vadd.f32 %v5257, %v5317
    %v5342 = vadd.f32 %v5258, %v5337
    %v5343 = vxor.u32 %v5339, 2147483648
    %v5344 = vmul.f32 %v5343, 1.442695
    %v5345 = vpow.pop %v5344
    %v5346 = vadd.f32 %v5345, 1.0
    %v5347 = vrcp.pop %v5346
    %v5348 = vmul.f32 %v5346, %v5347
    %v5349 = vsub.f32 1.0, %v5348
    %v5350 = vmul.f32 %v5347, %v5349
    %v5351 = vadd.f32 %v5347, %v5350
    %vm5352 = vweird.f32 %v5346
    %vm5353 = vweird.f32 %v5347
    %vm5354 = vmor %vm5352, %vm5353
    %v5355 = vsel %vm5354, %v5347, %v5351
    %v5356 = vand.u32 2147483647, %v5346
    %vm5357 = vcmp.eq.f32.partialorder %v5356, 8.507059e+37
    %v5358 = vand.u32 %v5346, 2147483648
    %v5359 = vor.u32 1.1754944e-38, %v5358
    %v5360 = vsel %vm5357, %v5359, %v5355
    %v5361 = vmul.f32 1.0, %v5360
    %v5362 = vxor.u32 %v5340, 2147483648
    %v5363 = vmul.f32 %v5362, 1.442695
    %v5364 = vpow.pop %v5363
    %v5365 = vadd.f32 %v5364, 1.0
    %v5366 = vrcp.pop %v5365
    %v5367 = vmul.f32 %v5365, %v5366
    %v5368 = vsub.f32 1.0, %v5367
    %v5369 = vmul.f32 %v5366, %v5368
    %v5370 = vadd.f32 %v5366, %v5369
    %vm5371 = vweird.f32 %v5365
    %vm5372 = vweird.f32 %v5366
    %vm5373 = vmor %vm5371, %vm5372
    %v5374 = vsel %vm5373, %v5366, %v5370
    %v5375 = vand.u32 2147483647, %v5365
    %vm5376 = vcmp.eq.f32.partialorder %v5375, 8.507059e+37
    %v5377 = vand.u32 %v5365, 2147483648
    %v5378 = vor.u32 1.1754944e-38, %v5377
    %v5379 = vsel %vm5376, %v5378, %v5374
    %v5380 = vmul.f32 1.0, %v5379
    %v5381 = vtanh.pop %v5341
    %v5382 = vxor.u32 %v5342, 2147483648
    %v5383 = vmul.f32 %v5382, 1.442695
    %v5384 = vpow.pop %v5383
    %v5385 = vadd.f32 %v5384, 1.0
    %v5386 = vrcp.pop %v5385
    %v5387 = vmul.f32 %v5385, %v5386
    %v5388 = vsub.f32 1.0, %v5387
    %v5389 = vmul.f32 %v5386, %v5388
    %v5390 = vadd.f32 %v5386, %v5389
    %vm5391 = vweird.f32 %v5385
    %vm5392 = vweird.f32 %v5386
    %vm5393 = vmor %vm5391, %vm5392
    %v5394 = vsel %vm5393, %v5386, %v5390
    %v5395 = vand.u32 2147483647, %v5385
    %vm5396 = vcmp.eq.f32.partialorder %v5395, 8.507059e+37
    %v5397 = vand.u32 %v5385, 2147483648
    %v5398 = vor.u32 1.1754944e-38, %v5397
    %v5399 = vsel %vm5396, %v5398, %v5394
    %v5400 = vmul.f32 1.0, %v5399
    %v5401 = vmul.f32 %v5380, %v5252
    %v5402 = vmul.f32 %v5361, %v5381
    %v5403 = vadd.f32 %v5401, %v5402
    %v5404 = vtanh.pop %v5403
    %v5405 = vmul.f32 %v5400, %v5404
    %v5406 = vld [vmem:[%s2157] sm:$0xff]
    %v5407 = vld [vmem:[%s2157 + $0x8] sm:$0xff]
    %v5408 = vld [vmem:[%s2157 + $0x10] sm:$0xff]
    %v5409 = vld [vmem:[%s2157 + $0x18] sm:$0xff]
    %5410 = vmatpush.msra.mxu0 %v4345
    %5411 = vmatpush.msra.mxu0 %v4341
    %5412 = vmatpush.msra.mxu0 %v4337
    %5413 = vmatpush.msra.mxu0 %v4333
    %5414 = vmatpush.msra.mxu0 %v4329
    %5415 = vmatpush.msra.mxu0 %v4325
    %5416 = vmatpush.msra.mxu0 %v4321
    %5417 = vmatpush.msra.mxu0 %v4317
    %5418 = vmatpush.msra.mxu0 %v4313
    %5419 = vmatpush.msra.mxu0 %v4309
    %5420 = vmatpush.msra.mxu0 %v4305
    %5421 = vmatpush.msra.mxu0 %v4301
    %5422 = vmatpush.msra.mxu0 %v4297
    %5423 = vmatpush.msra.mxu0 %v4293
    %5424 = vmatpush.msra.mxu0 %v4289
    %5425 = vmatpush.msra.mxu0 %v4285
    %5426 = vmatmul.f32.gmra.mxu0 %v5405
    %v5427 = vpop.f32.mrf.mxu0
    %v5428 = vadd.f32 0.0, %v5427
    %5429 = vdwg.mxu0
    %5430 = vmatpush.msra.mxu0 %v4346
    %5431 = vmatpush.msra.mxu0 %v4342
    %5432 = vmatpush.msra.mxu0 %v4338
    %5433 = vmatpush.msra.mxu0 %v4334
    %5434 = vmatpush.msra.mxu0 %v4330
    %5435 = vmatpush.msra.mxu0 %v4326
    %5436 = vmatpush.msra.mxu0 %v4322
    %5437 = vmatpush.msra.mxu0 %v4318
    %5438 = vmatpush.msra.mxu0 %v4314
    %5439 = vmatpush.msra.mxu0 %v4310
    %5440 = vmatpush.msra.mxu0 %v4306
    %5441 = vmatpush.msra.mxu0 %v4302
    %5442 = vmatpush.msra.mxu0 %v4298
    %5443 = vmatpush.msra.mxu0 %v4294
    %5444 = vmatpush.msra.mxu0 %v4290
    %5445 = vmatpush.msra.mxu0 %v4286
    %5446 = vmatmul.f32.gmra.mxu0 %v5405
    %v5447 = vpop.f32.mrf.mxu0
    %v5448 = vadd.f32 0.0, %v5447
    %5449 = vdwg.mxu0
    %5450 = vmatpush.msra.mxu0 %v4347
    %5451 = vmatpush.msra.mxu0 %v4343
    %5452 = vmatpush.msra.mxu0 %v4339
    %5453 = vmatpush.msra.mxu0 %v4335
    %5454 = vmatpush.msra.mxu0 %v4331
    %5455 = vmatpush.msra.mxu0 %v4327
    %5456 = vmatpush.msra.mxu0 %v4323
    %5457 = vmatpush.msra.mxu0 %v4319
    %5458 = vmatpush.msra.mxu0 %v4315
    %5459 = vmatpush.msra.mxu0 %v4311
    %5460 = vmatpush.msra.mxu0 %v4307
    %5461 = vmatpush.msra.mxu0 %v4303
    %5462 = vmatpush.msra.mxu0 %v4299
    %5463 = vmatpush.msra.mxu0 %v4295
    %5464 = vmatpush.msra.mxu0 %v4291
    %5465 = vmatpush.msra.mxu0 %v4287
    %5466 = vmatmul.f32.gmra.mxu0 %v5405
    %v5467 = vpop.f32.mrf.mxu0
    %v5468 = vadd.f32 0.0, %v5467
    %5469 = vdwg.mxu0
    %5470 = vmatpush.msra.mxu0 %v4348
    %5471 = vmatpush.msra.mxu0 %v4344
    %5472 = vmatpush.msra.mxu0 %v4340
    %5473 = vmatpush.msra.mxu0 %v4336
    %5474 = vmatpush.msra.mxu0 %v4332
    %5475 = vmatpush.msra.mxu0 %v4328
    %5476 = vmatpush.msra.mxu0 %v4324
    %5477 = vmatpush.msra.mxu0 %v4320
    %5478 = vmatpush.msra.mxu0 %v4316
    %5479 = vmatpush.msra.mxu0 %v4312
    %5480 = vmatpush.msra.mxu0 %v4308
    %5481 = vmatpush.msra.mxu0 %v4304
    %5482 = vmatpush.msra.mxu0 %v4300
    %5483 = vmatpush.msra.mxu0 %v4296
    %5484 = vmatpush.msra.mxu0 %v4292
    %5485 = vmatpush.msra.mxu0 %v4288
    %5486 = vmatmul.f32.gmra.mxu0 %v5405
    %v5487 = vpop.f32.mrf.mxu0
    %v5488 = vadd.f32 0.0, %v5487
    %5489 = vdwg.mxu0
    %v5490 = vadd.f32 %v5406, %v5428
    %v5491 = vadd.f32 %v5407, %v5448
    %v5492 = vadd.f32 %v5408, %v5468
    %v5493 = vadd.f32 %v5409, %v5488
    %v5494 = vxor.u32 %v5490, 2147483648
    %v5495 = vmul.f32 %v5494, 1.442695
    %v5496 = vpow.pop %v5495
    %v5497 = vadd.f32 %v5496, 1.0
    %v5498 = vrcp.pop %v5497
    %v5499 = vmul.f32 %v5497, %v5498
    %v5500 = vsub.f32 1.0, %v5499
    %v5501 = vmul.f32 %v5498, %v5500
    %v5502 = vadd.f32 %v5498, %v5501
    %vm5503 = vweird.f32 %v5497
    %vm5504 = vweird.f32 %v5498
    %vm5505 = vmor %vm5503, %vm5504
    %v5506 = vsel %vm5505, %v5498, %v5502
    %v5507 = vand.u32 2147483647, %v5497
    %vm5508 = vcmp.eq.f32.partialorder %v5507, 8.507059e+37
    %v5509 = vand.u32 %v5497, 2147483648
    %v5510 = vor.u32 1.1754944e-38, %v5509
    %v5511 = vsel %vm5508, %v5510, %v5506
    %v5512 = vmul.f32 1.0, %v5511
    %v5513 = vxor.u32 %v5491, 2147483648
    %v5514 = vmul.f32 %v5513, 1.442695
    %v5515 = vpow.pop %v5514
    %v5516 = vadd.f32 %v5515, 1.0
    %v5517 = vrcp.pop %v5516
    %v5518 = vmul.f32 %v5516, %v5517
    %v5519 = vsub.f32 1.0, %v5518
    %v5520 = vmul.f32 %v5517, %v5519
    %v5521 = vadd.f32 %v5517, %v5520
    %vm5522 = vweird.f32 %v5516
    %vm5523 = vweird.f32 %v5517
    %vm5524 = vmor %vm5522, %vm5523
    %v5525 = vsel %vm5524, %v5517, %v5521
    %v5526 = vand.u32 2147483647, %v5516
    %vm5527 = vcmp.eq.f32.partialorder %v5526, 8.507059e+37
    %v5528 = vand.u32 %v5516, 2147483648
    %v5529 = vor.u32 1.1754944e-38, %v5528
    %v5530 = vsel %vm5527, %v5529, %v5525
    %v5531 = vmul.f32 1.0, %v5530
    %v5532 = vtanh.pop %v5492
    %v5533 = vxor.u32 %v5493, 2147483648
    %v5534 = vmul.f32 %v5533, 1.442695
    %v5535 = vpow.pop %v5534
    %v5536 = vadd.f32 %v5535, 1.0
    %v5537 = vrcp.pop %v5536
    %v5538 = vmul.f32 %v5536, %v5537
    %v5539 = vsub.f32 1.0, %v5538
    %v5540 = vmul.f32 %v5537, %v5539
    %v5541 = vadd.f32 %v5537, %v5540
    %vm5542 = vweird.f32 %v5536
    %vm5543 = vweird.f32 %v5537
    %vm5544 = vmor %vm5542, %vm5543
    %v5545 = vsel %vm5544, %v5537, %v5541
    %v5546 = vand.u32 2147483647, %v5536
    %vm5547 = vcmp.eq.f32.partialorder %v5546, 8.507059e+37
    %v5548 = vand.u32 %v5536, 2147483648
    %v5549 = vor.u32 1.1754944e-38, %v5548
    %v5550 = vsel %vm5547, %v5549, %v5545
    %v5551 = vmul.f32 1.0, %v5550
    %v5552 = vmul.f32 %v5531, %v5403
    %v5553 = vmul.f32 %v5512, %v5532
    %v5554 = vadd.f32 %v5552, %v5553
    %v5555 = vtanh.pop %v5554
    %v5556 = vmul.f32 %v5551, %v5555
    %v5557 = vld [vmem:[%s4] sm:$0xff]
    %v5558 = vld [vmem:[%s4 + $0x8] sm:$0xff]
    %v5559 = vld [vmem:[%s4 + $0x10] sm:$0xff]
    %v5560 = vld [vmem:[%s4 + $0x18] sm:$0xff]
    %v5561 = vld [vmem:[%s4 + $0x20] sm:$0xff]
    %v5562 = vld [vmem:[%s4 + $0x28] sm:$0xff]
    %v5563 = vld [vmem:[%s4 + $0x30] sm:$0xff]
    %v5564 = vld [vmem:[%s4 + $0x38] sm:$0xff]
    %v5565 = vld [vmem:[%s4 + $0x40] sm:$0xff]
    %v5566 = vld [vmem:[%s4 + $0x48] sm:$0xff]
    %v5567 = vld [vmem:[%s4 + $0x50] sm:$0xff]
    %v5568 = vld [vmem:[%s4 + $0x58] sm:$0xff]
    %v5569 = vld [vmem:[%s4 + $0x60] sm:$0xff]
    %v5570 = vld [vmem:[%s4 + $0x68] sm:$0xff]
    %v5571 = vld [vmem:[%s4 + $0x70] sm:$0xff]
    %v5572 = vld [vmem:[%s4 + $0x78] sm:$0xff]
    %v5573 = vld [vmem:[#allocation3] sm:$0x1]
    %v5575 = vperm.slane %v5573, 0
    %5577 = vmatpush.msra.mxu0 %v5572
    %5578 = vmatpush.msra.mxu0 %v5571
    %5579 = vmatpush.msra.mxu0 %v5570
    %5580 = vmatpush.msra.mxu0 %v5569
    %5581 = vmatpush.msra.mxu0 %v5568
    %5582 = vmatpush.msra.mxu0 %v5567
    %5583 = vmatpush.msra.mxu0 %v5566
    %5584 = vmatpush.msra.mxu0 %v5565
    %5585 = vmatpush.msra.mxu0 %v5564
    %5586 = vmatpush.msra.mxu0 %v5563
    %5587 = vmatpush.msra.mxu0 %v5562
    %5588 = vmatpush.msra.mxu0 %v5561
    %5589 = vmatpush.msra.mxu0 %v5560
    %5590 = vmatpush.msra.mxu0 %v5559
    %5591 = vmatpush.msra.mxu0 %v5558
    %5592 = vmatpush.msra.mxu0 %v5557
    %5593 = vmatmul.f32.gmra.mxu0 %v5556
    %v5594 = vpop.f32.mrf.mxu0
    %v5595 = vadd.f32 %v5575, %v5594
    %5596 = vdwg.mxu0
    %vm5597 = vcmask 7168
    %5598 = vst.msk [vmem:[%s6] sm:$0xff] %vm5597, %v5595
    // Predicated region
    $region45: #{tpu_custom_call.1} parent=1 // pred_check
      _
    $region46: #{tpu_custom_call.1} parent=1 // pred_check_branch
      %5600 = sbr.rel (0) target = $region48
    $region47: #{tpu_custom_call.1} parent=1 // pred_region
      _
    $region48: #{tpu_custom_call.1} parent=1 // pred_fallthru
      _
    // Predicated region
    $region49: #{tpu_custom_call.1} parent=1 // pred_check
      _
    $region50: #{tpu_custom_call.1} parent=1 // pred_check_branch
      %5602 = sbr.rel (0) target = $region52
    $region51: #{tpu_custom_call.1} parent=1 // pred_region
      _
    $region52: #{tpu_custom_call.1} parent=1 // pred_fallthru
      _
    %5603 = vsyncpa [#allocation5], 1
    %5604 = vsyncpa [#allocation7], 1

</llo_original>
